<compile_context>
chip_gen: v6e
topology: v6e:2x2x1
jax: 0.10.0
libtpu: 0.0.40
codegen_flags: <defaults>
</compile_context>

<pallas_src>
import functools
import math

import jax
import jax.numpy as jnp
from jax import lax
from jax.experimental import pallas as pl
from jax.experimental.pallas import tpu as pltpu

_BN_EPS = 1e-5
_VMEM_LIMIT = 48 * 1024 * 1024


# -----------------------------------------------------------------------------
# Pallas kernels: fused GEMM (bf16 x bf16 -> f32) + bias + optional SiLU.
# -----------------------------------------------------------------------------
def _gemm_single_k_kernel(x_ref, w_ref, b_ref, o_ref, *, activation):
    y = lax.dot_general(
        x_ref[...], w_ref[...],
        dimension_numbers=(((1,), (0,)), ((), ())),
        preferred_element_type=jnp.float32)
    y = y + b_ref[...]
    if activation == "silu":                 # static Python flag (baked per-kernel)
        y = y * jax.nn.sigmoid(y)
    o_ref[...] = y.astype(o_ref.dtype)


def _gemm_multi_k_kernel(x_ref, w_ref, b_ref, o_ref, acc_ref, *, activation):
    k = pl.program_id(2)
    prod = lax.dot_general(
        x_ref[...], w_ref[...],
        dimension_numbers=(((1,), (0,)), ((), ())),
        preferred_element_type=jnp.float32)

    @pl.when(k == 0)
    def _():
        acc_ref[...] = prod                  # direct write: no zero-fill + add

    @pl.when(k > 0)
    def _():
        acc_ref[...] += prod

    @pl.when(k == pl.num_programs(2) - 1)
    def _():
        y = acc_ref[...] + b_ref[...]
        if activation == "silu":
            y = y * jax.nn.sigmoid(y)
        o_ref[...] = y.astype(o_ref.dtype)


def _round_up(x, m):
    return (x + m - 1) // m * m


def _pick_m_tiling(m):
    """(tm, padded_m).  Single full-dim block for small M, >=2 blocks otherwise."""
    if m <= 256:
        return m, m
    if m <= 1024:
        tm = _round_up((m + 1) // 2, 8)      # 2 parallel blocks (v7x dual-TC)
        return tm, 2 * tm
    tm = 512
    return tm, _round_up(m, tm)


def fused_gemm(x, w, bias, activation=None, out_dtype=jnp.bfloat16):
    """act((x @ w) + bias); bias broadcasts over rows.  bf16 operands, f32 acc."""
    m, kdim = x.shape
    kdim2, n = w.shape
    assert kdim == kdim2

    tm, mp = _pick_m_tiling(m)
    if n <= 1024:
        tn, np_ = n, n                       # full-dim N block: no pad / slice
    else:
        tn, np_ = 256, _round_up(n, 256)
    if kdim <= 2048:
        tk, kp = kdim, kdim                  # full-dim K block: no reduction loop
    else:
        tk, kp = 512, _round_up(kdim, 512)

    xb = x.astype(jnp.bfloat16)
    wb = w.astype(jnp.bfloat16)
    if (mp, kp) != (m, kdim):
        xb = jnp.pad(xb, ((0, mp - m), (0, kp - kdim)))
    if (kp, np_) != (kdim, n):
        wb = jnp.pad(wb, ((0, kp - kdim), (0, np_ - n)))
    bp = bias.astype(jnp.float32).reshape(1, n)
    if np_ != n:
        bp = jnp.pad(bp, ((0, 0), (0, np_ - n)))

    nk = kp // tk
    out_bytes = mp * np_ * jnp.dtype(out_dtype).itemsize
    cost = pl.CostEstimate(
        flops=2 * mp * np_ * kp,
        transcendentals=(mp * np_ if activation == "silu" else 0),
        bytes_accessed=(mp * kp + kp * np_) * 2 + mp * np_ * 4 + out_bytes)

    if nk == 1:
        cparams = pltpu.CompilerParams(
            dimension_semantics=("parallel", "parallel"),
            vmem_limit_bytes=_VMEM_LIMIT)
        out = pl.pallas_call(
            functools.partial(_gemm_single_k_kernel, activation=activation),
            out_shape=jax.ShapeDtypeStruct((mp, np_), out_dtype),
            grid_spec=pltpu.PrefetchScalarGridSpec(
                num_scalar_prefetch=0,
                grid=(mp // tm, np_ // tn),
                in_specs=[
                    pl.BlockSpec((tm, tk), lambda i, j: (i, 0)),
                    pl.BlockSpec((tk, tn), lambda i, j: (0, j)),
                    pl.BlockSpec((1, tn), lambda i, j: (0, j)),
                ],
                out_specs=pl.BlockSpec((tm, tn), lambda i, j: (i, j)),
            ),
            compiler_params=cparams,
            cost_estimate=cost,
        )(xb, wb, bp)
    else:
        cparams = pltpu.CompilerParams(
            dimension_semantics=("parallel", "parallel", "arbitrary"),
            vmem_limit_bytes=_VMEM_LIMIT)
        out = pl.pallas_call(
            functools.partial(_gemm_multi_k_kernel, activation=activation),
            out_shape=jax.ShapeDtypeStruct((mp, np_), out_dtype),
            grid_spec=pltpu.PrefetchScalarGridSpec(
                num_scalar_prefetch=0,
                grid=(mp // tm, np_ // tn, nk),
                in_specs=[
                    pl.BlockSpec((tm, tk), lambda i, j, k: (i, k)),
                    pl.BlockSpec((tk, tn), lambda i, j, k: (k, j)),
                    pl.BlockSpec((1, tn), lambda i, j, k: (0, j)),
                ],
                out_specs=pl.BlockSpec((tm, tn), lambda i, j, k: (i, j)),
                scratch_shapes=[pltpu.VMEM((tm, tn), jnp.float32)],
            ),
            compiler_params=cparams,
            cost_estimate=cost,
        )(xb, wb, bp)

    if (mp, np_) != (m, n):
        out = out[:m, :n]
    return out


# -----------------------------------------------------------------------------
# Convolutions lowered to the fused GEMM (Pallas path, NHWC).
# -----------------------------------------------------------------------------
def _im2col(x, kh, kw, stride, padding):
    b, h, w, c = x.shape
    xp = jnp.pad(x, ((0, 0), (padding, padding), (padding, padding), (0, 0)))
    ho = (h + 2 * padding - kh) // stride + 1
    wo = (w + 2 * padding - kw) // stride + 1
    cols = []
    for di in range(kh):
        for dj in range(kw):
            cols.append(xp[:, di:di + stride * (ho - 1) + 1:stride,
                           dj:dj + stride * (wo - 1) + 1:stride, :])
    return jnp.concatenate(cols, axis=-1), ho, wo


def _conv_gemm_nhwc(x, wmat, bias, kh, kw, stride, padding, activation, out_dtype):
    b, h, w_sp, cin = x.shape
    if kh == 1 and kw == 1 and stride == 1 and padding == 0:
        patches, ho, wo = x, h, w_sp
    else:
        patches, ho, wo = _im2col(x, kh, kw, stride, padding)
    cout = wmat.shape[1]
    y = fused_gemm(patches.reshape(b * ho * wo, kh * kw * cin), wmat, bias,
                   activation, out_dtype)
    return y.reshape(b, ho, wo, cout)


def _infer_ksize(wmat, cin):
    return int(round(math.sqrt(wmat.shape[0] // cin)))


def _cb_pallas(pp, x, stride, padding):            # ConvBlock: conv+BN+SiLU
    k = _infer_ksize(pp["wmat"], x.shape[-1])
    return _conv_gemm_nhwc(x, pp["wmat"], pp["bias"], k, k, stride, padding,
                           "silu", jnp.bfloat16)


def _detect_pallas(pp, x):                         # plain 1x1 conv + bias (f32 out)
    return _conv_gemm_nhwc(x, pp["wmat"], pp["bias"], 1, 1, 1, 0, None, jnp.float32)


def _up_pallas(pp, x):                             # ConvTranspose2d(4,2,1) sub-pixel
    y = _conv_gemm_nhwc(x, pp["wmat"], pp["bias"], 3, 3, 1, 1, None, jnp.bfloat16)
    b, h, w, c4 = y.shape
    cout = c4 // 4
    return (y.reshape(b, h, w, 2, 2, cout)
             .transpose(0, 1, 3, 2, 4, 5)          # depth-to-space
             .reshape(b, 2 * h, 2 * w, cout))


# -----------------------------------------------------------------------------
# One-time weight prepacking (BN fold + transpose + bf16 cast, outside jit).
# -----------------------------------------------------------------------------
def _fold_bn(bn):
    scale = bn["gamma"] * lax.rsqrt(bn["var"] + _BN_EPS)
    bias = bn["beta"] - bn["mean"] * scale
    return scale, bias


def _pack_conv(w_oihw, scale, bias):
    cout, cin, kh, kw = w_oihw.shape
    wf = w_oihw * scale[:, None, None, None]                 # fold BN scale into W
    wmat = jnp.transpose(wf, (2, 3, 1, 0)).reshape(kh * kw * cin, cout)
    return {"wmat": wmat.astype(jnp.bfloat16), "bias": bias.astype(jnp.float32)}


def _pack_cb(p):
    scale, bias = _fold_bn(p["bn"])
    return _pack_conv(p["w"], scale, bias)


def _pack_detect(p):
    cout = p["w"].shape[0]
    return _pack_conv(p["w"], jnp.ones((cout,), jnp.float32), p["b"])


def _pack_up(p):
    # ConvTranspose2d(k=4, s=2, p=1) -> 4 sub-pixel 2x2 convs packed as one
    # 3x3 conv (pad=1) producing 4*Cout channels, then depth-to-space.
    # out[2a+r, 2b+c] uses kernel tap ki = r + 3 - 2*a', kj = c + 3 - 2*b'.
    w = p["w"]                                               # (Cin, Cout, 4, 4)
    cin, cout, _, _ = w.shape
    wsub = jnp.zeros((4 * cout, cin, 3, 3), w.dtype)
    for r in range(2):
        for c in range(2):
            q = r * 2 + c
            for a in range(3):
                ki = r + 3 - 2 * a
                if not (0 <= ki <= 3):
                    continue
                for bb in range(3):
                    kj = c + 3 - 2 * bb
                    if not (0 <= kj <= 3):
                        continue
                    wsub = wsub.at[q * cout:(q + 1) * cout, :, a, bb].set(
                        jnp.transpose(w[:, :, ki, kj]))      # (cout, cin)
    bias_sub = jnp.tile(p["b"], 4)
    return _pack_conv(wsub, jnp.ones((4 * cout,), jnp.float32), bias_sub)


def _pack_c2f(p):
    return {"conv1": _pack_cb(p["conv1"]),
            "blocks": [{"conv1": _pack_cb(b["conv1"]), "conv2": _pack_cb(b["conv2"])}
                       for b in p["blocks"]],
            "conv2": _pack_cb(p["conv2"])}


def prepack_params(params):
    out = {}
    for name, p in params.items():
        if name.startswith("c2f"):
            out[name] = _pack_c2f(p)
        elif name.startswith("upsample"):
            out[name] = _pack_up(p)
        elif name.startswith("detect"):
            out[name] = _pack_detect(p)
        else:                                                # conv1_* / concat_*
            out[name] = _pack_cb(p)
    return out


# -----------------------------------------------------------------------------
# Pure-JAX (lax.conv) reference with matching bf16 quantization points.
# -----------------------------------------------------------------------------
def _q(x):                                     # bf16 round-trip (quantization point)
    return x.astype(jnp.bfloat16).astype(jnp.float32)


def _conv_lax(x, w_oihw, stride, padding, lhs_dilation=(1, 1)):
    w_hwio = jnp.transpose(w_oihw, (2, 3, 1, 0))
    return lax.conv_general_dilated(
        x, w_hwio, window_strides=(stride, stride),
        padding=[(padding, padding), (padding, padding)],
        lhs_dilation=lhs_dilation,
        dimension_numbers=("NHWC", "HWIO", "NHWC"),
        precision=lax.Precision.HIGHEST)


def _cb_ref(p, x, stride, padding):
    scale, bias = _fold_bn(p["bn"])
    wq = _q(p["w"] * scale[:, None, None, None])
    y = _conv_lax(_q(x), wq, stride, padding) + bias
    y = y * jax.nn.sigmoid(y)
    return _q(y)


def _detect_ref(p, x):
    return _conv_lax(_q(x), _q(p["w"]), 1, 0) + p["b"]


def _up_ref(p, x):
    w = p["w"]
    kh = w.shape[2]
    w_conv = jnp.transpose(jnp.flip(w, axis=(2, 3)), (1, 0, 2, 3))
    y = _conv_lax(_q(x), _q(w_conv), 1, kh - 1 - 1, lhs_dilation=(2, 2)) + p["b"]
    return _q(y)


# -----------------------------------------------------------------------------
# Shared forward graph (mirrors YOLOv8HeadFull.forward), NHWC internally.
# -----------------------------------------------------------------------------
def _c2f(p, x, cb):
    x1 = cb(p["conv1"], x, 1, 0)
    half = x1.shape[-1] // 2
    parts = [x1[..., :half], x1[..., half:]]
    y = parts[1]
    for blk in p["blocks"]:                    # Bottleneck (shortcut: in == out)
        y1 = cb(blk["conv1"], y, 1, 1)
        y2 = cb(blk["conv2"], y1, 1, 1)
        y = y + y2
        parts.append(y)
    return cb(p["conv2"], jnp.concatenate(parts, axis=-1), 1, 0)


def _head_forward(params, p5, p3, p2, cb, up, detect, quant):
    # NCHW inputs (PyTorch layout) -> channel-last NHWC internally.
    p5 = quant(jnp.transpose(p5, (0, 2, 3, 1)))
    p3 = quant(jnp.transpose(p3, (0, 2, 3, 1)))
    p2 = quant(jnp.transpose(p2, (0, 2, 3, 1)))

    p2_1 = up(params["upsample_p2_1"], p5)
    p2_2 = jnp.concatenate([p3, p2_1], axis=-1)
    p2_3 = cb(params["concat_p2_1"], p2_2, 1, 0)
    p2_4 = _c2f(params["c2f_p2_1"], p2_3, cb)
    P2_5 = up(params["upsample_p2_2"], p2_4)
    P2_6 = jnp.concatenate([p2, P2_5], axis=-1)
    p2_7 = cb(params["concat_p2_2"], P2_6, 1, 0)
    p2_8 = _c2f(params["c2f_p2_2"], p2_7, cb)
    p3_1 = cb(params["conv1_p3"], p2_8, 2, 1)
    p3_2 = jnp.concatenate([p2_4, p3_1], axis=-1)
    p3_3 = cb(params["concat_p3"], p3_2, 1, 0)
    p3_4 = _c2f(params["c2f_p3"], p3_3, cb)
    p5_1 = cb(params["conv1_p5"], p3_4, 2, 1)
    p5_2 = jnp.concatenate([p5, p5_1], axis=-1)
    p5_3 = cb(params["concat_p5"], p5_2, 1, 0)
    p5_4 = _c2f(params["c2f_p5"], p5_3, cb)
    # NHWC detect outputs == PyTorch's conv(...).permute(0, 2, 3, 1)
    return (detect(params["detect_p2"], p2_8),
            detect(params["detect_p3"], p3_4),
            detect(params["detect_p5"], p5_4))


@jax.jit
def yolov8_head_forward(packed_params, p5, p3, p2):
    return _head_forward(packed_params, p5, p3, p2, _cb_pallas, _up_pallas,
                         _detect_pallas, lambda a: a.astype(jnp.bfloat16))


@jax.jit
def yolov8_head_forward_ref(params, p5, p3, p2):
    return _head_forward(params, p5, p3, p2, _cb_ref, _up_ref, _detect_ref, _q)


# -----------------------------------------------------------------------------
# Parameter construction (matches YOLOv8HeadFull(num_classes, d, w, r)).
# -----------------------------------------------------------------------------
def _init_cb(key, cin, cout, k):
    k1, k2, k3, k4, k5 = jax.random.split(key, 5)
    return {
        "w": jax.random.normal(k1, (cout, cin, k, k), jnp.float32) / math.sqrt(cin * k * k),
        "bn": {
            "gamma": 1.0 + 0.1 * jax.random.normal(k2, (cout,), jnp.float32),
            "beta": 0.1 * jax.random.normal(k3, (cout,), jnp.float32),
            "mean": 0.1 * jax.random.normal(k4, (cout,), jnp.float32),
            "var": jax.random.uniform(k5, (cout,), jnp.float32, 0.5, 1.5),
        },
    }


def _init_bottleneck(key, c):
    k1, k2 = jax.random.split(key)
    return {"conv1": _init_cb(k1, c, c // 2, 3), "conv2": _init_cb(k2, c // 2, c, 3)}


def _init_c2f(key, cin, cout, num_blocks):
    ks = jax.random.split(key, num_blocks + 2)
    return {
        "conv1": _init_cb(ks[0], cin, cout, 1),
        "blocks": [_init_bottleneck(ks[2 + i], cout // 2) for i in range(num_blocks)],
        "conv2": _init_cb(ks[1], math.ceil(cout * 0.5 * (num_blocks + 2)), cout, 1),
    }


def _init_detect(key, cin, cout):
    k1, k2 = jax.random.split(key)
    return {"w": jax.random.normal(k1, (cout, cin, 1, 1), jnp.float32) / math.sqrt(cin),
            "b": 0.1 * jax.random.normal(k2, (cout,), jnp.float32)}


def _init_upsample(key, cin, cout, k=4):
    k1, k2 = jax.random.split(key)
    return {"w": jax.random.normal(k1, (cin, cout, k, k), jnp.float32) / math.sqrt(cin * k * k),
            "b": 0.1 * jax.random.normal(k2, (cout,), jnp.float32)}


def build_params(key, num_classes, d=1.0, w_mult=1.0, r=1.0):
    def sc(c, plus=0.0):
        return max(1, int(c * (w_mult + plus)))

    def sd(depth, plus=0.0):
        return max(1, math.ceil(depth * (d + plus)))

    def sr(ratio, plus=0.0):
        return max(1, math.ceil(ratio * (r + plus)))

    nb = sd(3)
    nd = num_classes + 4 + 1
    ks = jax.random.split(key, 15)
    return {
        "conv1_p5": _init_cb(ks[0], sc(512), sc(512), 3),
        "concat_p5": _init_cb(ks[1], sr(sc(512), 1), sr(sc(512), 1), 1),
        "c2f_p5": _init_c2f(ks[2], sr(sc(512), 1), sc(512), nb),
        "conv1_p3": _init_cb(ks[3], sc(256), sc(256), 3),
        "concat_p3": _init_cb(ks[4], sc(512 + 256), sc(512), 1),
        "c2f_p3": _init_c2f(ks[5], sc(512), sc(512), nb),
        "upsample_p2_1": _init_upsample(ks[6], sr(sc(512)), sr(sc(512))),
        "concat_p2_1": _init_cb(ks[7], sr(sc(512), 1), sr(sc(512), 1), 1),
        "c2f_p2_1": _init_c2f(ks[8], sr(sc(512), 1), sc(512), nb),
        "upsample_p2_2": _init_upsample(ks[9], sc(512), sc(256)),
        "concat_p2_2": _init_cb(ks[10], sc(256 + 256), sc(512), 1),
        "c2f_p2_2": _init_c2f(ks[11], sc(512), sc(256), nb),
        "detect_p2": _init_detect(ks[12], sc(256), nd),
        "detect_p3": _init_detect(ks[13], sc(512), nd),
        "detect_p5": _init_detect(ks[14], sc(512), nd),
    }


if __name__ == "__main__":
    key = jax.random.PRNGKey(0)
    kp_, k5, k3, k2 = jax.random.split(key, 4)

    NUM_CLASSES = 4
    D, W_MULT, R = 0.33, 0.0625, 1.0          # scaled_channels(512)=32, (256)=16, depth=1
    B, H5, W5 = 2, 4, 4                       # p5: 4x4, p3: 8x8, p2: 16x16

    params = build_params(kp_, NUM_CLASSES, d=D, w_mult=W_MULT, r=R)
    packed = prepack_params(params)           # one-time BN fold / transpose / bf16 cast

    c512 = max(1, int(512 * W_MULT))          # 32
    c256 = max(1, int(256 * W_MULT))          # 16
    p5 = jax.random.normal(k5, (B, c512, H5, W5), jnp.float32)
    p3 = jax.random.normal(k3, (B, c512, 2 * H5, 2 * W5), jnp.float32)
    p2 = jax.random.normal(k2, (B, c256, 4 * H5, 4 * W5), jnp.float32)

    outs = yolov8_head_forward(packed, p5, p3, p2)
    jax.block_until_ready(outs)

    refs = yolov8_head_forward_ref(params, p5, p3, p2)
    for o, r in zip(outs, refs):
        assert o.shape == r.shape, (o.shape, r.shape)
        err = float(jnp.max(jnp.abs(o - r)))
        assert jnp.allclose(o, r, rtol=1e-2, atol=1e-2), err

    print("KERNEL_OK")
</pallas_src>

<mosaic_0001>
module attributes {stable_mosaic.version = 11 : i64} {
  func.func @_gemm_single_k_kernel(%arg0: i32, %arg1: i32, %arg2: memref<32x288xbf16, #tpu.memory_space<vmem>>, %arg3: memref<288x128xbf16, #tpu.memory_space<vmem>>, %arg4: memref<1x128xf32, #tpu.memory_space<vmem>>, %arg5: memref<32x128xbf16, #tpu.memory_space<vmem>>) attributes {dimension_semantics = [#tpu.dimension_semantics<parallel>, #tpu.dimension_semantics<parallel>], iteration_bounds = array<i64: 1, 1>, scalar_prefetch = 0 : i64, scratch_operands = 0 : i64, tpu.core_type = #tpu.core_type<tc>, window_params = [{transform_indices = @transform_0, window_bounds = array<i64: 32, 288>}, {transform_indices = @transform_1, window_bounds = array<i64: 288, 128>}, {transform_indices = @transform_2, window_bounds = array<i64: 1, 128>}, {transform_indices = @transform_3, window_bounds = array<i64: 32, 128>}]} {
    %c0 = arith.constant 0 : index
    %c0_0 = arith.constant 0 : index
    %0 = vector.load %arg2[%c0, %c0_0] : memref<32x288xbf16, #tpu.memory_space<vmem>>, vector<32x288xbf16>
    %c0_1 = arith.constant 0 : index
    %c0_2 = arith.constant 0 : index
    %1 = vector.load %arg3[%c0_1, %c0_2] : memref<288x128xbf16, #tpu.memory_space<vmem>>, vector<288x128xbf16>
    %cst = arith.constant dense<0.000000e+00> : vector<32x128xf32>
    %2 = tpu.matmul %0, %1, %cst {dimension_numbers = #tpu.dot_dimension_numbers<[1], [0], [0], [1], [0, 0, 1, 1], [], []>} : vector<32x288xbf16>, vector<288x128xbf16>, vector<32x128xf32> -> vector<32x128xf32>
    %c0_3 = arith.constant 0 : index
    %c0_4 = arith.constant 0 : index
    %3 = vector.load %arg4[%c0_3, %c0_4] : memref<1x128xf32, #tpu.memory_space<vmem>>, vector<1x128xf32>
    %4 = vector.broadcast %3 : vector<1x128xf32> to vector<32x128xf32>
    %5 = arith.addf %2, %4 : vector<32x128xf32>
    %6 = arith.truncf %5 : vector<32x128xf32> to vector<32x128xbf16>
    %c0_5 = arith.constant 0 : index
    %c0_6 = arith.constant 0 : index
    %7 = vector.load %arg5[%c0_5, %c0_6] : memref<32x128xbf16, #tpu.memory_space<vmem>>, vector<32x128xbf16>
    tpu.vector_store %arg5[%c0_5, %c0_6], %6 {strides = array<i32>} : memref<32x128xbf16, #tpu.memory_space<vmem>>, vector<32x128xbf16>,
    return
  }
  func.func @transform_0(%arg0: i32, %arg1: i32) -> (i32, i32) {
    %c0_i32 = arith.constant 0 : i32
    %c0_i32_0 = arith.constant 0 : i32
    return %arg0, %c0_i32 : i32, i32
  }
  func.func @transform_1(%arg0: i32, %arg1: i32) -> (i32, i32) {
    %c0_i32 = arith.constant 0 : i32
    %c0_i32_0 = arith.constant 0 : i32
    return %c0_i32, %arg1 : i32, i32
  }
  func.func @transform_2(%arg0: i32, %arg1: i32) -> (i32, i32) {
    %c0_i32 = arith.constant 0 : i32
    %c0_i32_0 = arith.constant 0 : i32
    return %c0_i32, %arg1 : i32, i32
  }
  func.func @transform_3(%arg0: i32, %arg1: i32) -> (i32, i32) {
    %c0_i32 = arith.constant 0 : i32
    return %arg0, %arg1 : i32, i32
  }
}

module attributes {stable_mosaic.version = 11 : i64} {
  func.func @_gemm_single_k_kernel(%arg0: i32, %arg1: i32, %arg2: memref<128x64xbf16, #tpu.memory_space<vmem>>, %arg3: memref<64x64xbf16, #tpu.memory_space<vmem>>, %arg4: memref<1x64xf32, #tpu.memory_space<vmem>>, %arg5: memref<128x64xbf16, #tpu.memory_space<vmem>>) attributes {dimension_semantics = [#tpu.dimension_semantics<parallel>, #tpu.dimension_semantics<parallel>], iteration_bounds = array<i64: 1, 1>, scalar_prefetch = 0 : i64, scratch_operands = 0 : i64, tpu.core_type = #tpu.core_type<tc>, window_params = [{transform_indices = @transform_0, window_bounds = array<i64: 128, 64>}, {transform_indices = @transform_1, window_bounds = array<i64: 64, 64>}, {transform_indices = @transform_2, window_bounds = array<i64: 1, 64>}, {transform_indices = @transform_3, window_bounds = array<i64: 128, 64>}]} {
    %c0 = arith.constant 0 : index
    %c0_0 = arith.constant 0 : index
    %0 = vector.load %arg2[%c0, %c0_0] : memref<128x64xbf16, #tpu.memory_space<vmem>>, vector<128x64xbf16>
    %c0_1 = arith.constant 0 : index
    %c0_2 = arith.constant 0 : index
    %1 = vector.load %arg3[%c0_1, %c0_2] : memref<64x64xbf16, #tpu.memory_space<vmem>>, vector<64x64xbf16>
    %cst = arith.constant dense<0.000000e+00> : vector<128x64xf32>
    %2 = tpu.matmul %0, %1, %cst {dimension_numbers = #tpu.dot_dimension_numbers<[1], [0], [0], [1], [0, 0, 1, 1], [], []>} : vector<128x64xbf16>, vector<64x64xbf16>, vector<128x64xf32> -> vector<128x64xf32>
    %c0_3 = arith.constant 0 : index
    %c0_4 = arith.constant 0 : index
    %3 = vector.load %arg4[%c0_3, %c0_4] : memref<1x64xf32, #tpu.memory_space<vmem>>, vector<1x64xf32>
    %4 = vector.broadcast %3 : vector<1x64xf32> to vector<128x64xf32>
    %5 = arith.addf %2, %4 : vector<128x64xf32>
    %6 = arith.negf %5 : vector<128x64xf32>
    %7 = math.exp %6 : vector<128x64xf32>
    %cst_5 = arith.constant 1.000000e+00 : f32
    %8 = vector.broadcast %cst_5 : f32 to vector<128x64xf32>
    %9 = arith.addf %8, %7 : vector<128x64xf32>
    %10 = arith.divf %8, %9 : vector<128x64xf32>
    %11 = arith.mulf %5, %10 : vector<128x64xf32>
    %12 = arith.truncf %11 : vector<128x64xf32> to vector<128x64xbf16>
    %c0_6 = arith.constant 0 : index
    %c0_7 = arith.constant 0 : index
    %13 = vector.load %arg5[%c0_6, %c0_7] : memref<128x64xbf16, #tpu.memory_space<vmem>>, vector<128x64xbf16>
    tpu.vector_store %arg5[%c0_6, %c0_7], %12 {strides = array<i32>} : memref<128x64xbf16, #tpu.memory_space<vmem>>, vector<128x64xbf16>,
    return
  }
  func.func @transform_0(%arg0: i32, %arg1: i32) -> (i32, i32) {
    %c0_i32 = arith.constant 0 : i32
    %c0_i32_0 = arith.constant 0 : i32
    return %arg0, %c0_i32 : i32, i32
  }
  func.func @transform_1(%arg0: i32, %arg1: i32) -> (i32, i32) {
    %c0_i32 = arith.constant 0 : i32
    %c0_i32_0 = arith.constant 0 : i32
    return %c0_i32, %arg1 : i32, i32
  }
  func.func @transform_2(%arg0: i32, %arg1: i32) -> (i32, i32) {
    %c0_i32 = arith.constant 0 : i32
    %c0_i32_0 = arith.constant 0 : i32
    return %c0_i32, %arg1 : i32, i32
  }
  func.func @transform_3(%arg0: i32, %arg1: i32) -> (i32, i32) {
    %c0_i32 = arith.constant 0 : i32
    return %arg0, %arg1 : i32, i32
  }
}

module attributes {stable_mosaic.version = 11 : i64} {
  func.func @_gemm_single_k_kernel(%arg0: i32, %arg1: i32, %arg2: memref<128x64xbf16, #tpu.memory_space<vmem>>, %arg3: memref<64x32xbf16, #tpu.memory_space<vmem>>, %arg4: memref<1x32xf32, #tpu.memory_space<vmem>>, %arg5: memref<128x32xbf16, #tpu.memory_space<vmem>>) attributes {dimension_semantics = [#tpu.dimension_semantics<parallel>, #tpu.dimension_semantics<parallel>], iteration_bounds = array<i64: 1, 1>, scalar_prefetch = 0 : i64, scratch_operands = 0 : i64, tpu.core_type = #tpu.core_type<tc>, window_params = [{transform_indices = @transform_0, window_bounds = array<i64: 128, 64>}, {transform_indices = @transform_1, window_bounds = array<i64: 64, 32>}, {transform_indices = @transform_2, window_bounds = array<i64: 1, 32>}, {transform_indices = @transform_3, window_bounds = array<i64: 128, 32>}]} {
    %c0 = arith.constant 0 : index
    %c0_0 = arith.constant 0 : index
    %0 = vector.load %arg2[%c0, %c0_0] : memref<128x64xbf16, #tpu.memory_space<vmem>>, vector<128x64xbf16>
    %c0_1 = arith.constant 0 : index
    %c0_2 = arith.constant 0 : index
    %1 = vector.load %arg3[%c0_1, %c0_2] : memref<64x32xbf16, #tpu.memory_space<vmem>>, vector<64x32xbf16>
    %cst = arith.constant dense<0.000000e+00> : vector<128x32xf32>
    %2 = tpu.matmul %0, %1, %cst {dimension_numbers = #tpu.dot_dimension_numbers<[1], [0], [0], [1], [0, 0, 1, 1], [], []>} : vector<128x64xbf16>, vector<64x32xbf16>, vector<128x32xf32> -> vector<128x32xf32>
    %c0_3 = arith.constant 0 : index
    %c0_4 = arith.constant 0 : index
    %3 = vector.load %arg4[%c0_3, %c0_4] : memref<1x32xf32, #tpu.memory_space<vmem>>, vector<1x32xf32>
    %4 = vector.broadcast %3 : vector<1x32xf32> to vector<128x32xf32>
    %5 = arith.addf %2, %4 : vector<128x32xf32>
    %6 = arith.negf %5 : vector<128x32xf32>
    %7 = math.exp %6 : vector<128x32xf32>
    %cst_5 = arith.constant 1.000000e+00 : f32
    %8 = vector.broadcast %cst_5 : f32 to vector<128x32xf32>
    %9 = arith.addf %8, %7 : vector<128x32xf32>
    %10 = arith.divf %8, %9 : vector<128x32xf32>
    %11 = arith.mulf %5, %10 : vector<128x32xf32>
    %12 = arith.truncf %11 : vector<128x32xf32> to vector<128x32xbf16>
    %c0_6 = arith.constant 0 : index
    %c0_7 = arith.constant 0 : index
    %13 = vector.load %arg5[%c0_6, %c0_7] : memref<128x32xbf16, #tpu.memory_space<vmem>>, vector<128x32xbf16>
    tpu.vector_store %arg5[%c0_6, %c0_7], %12 {strides = array<i32>} : memref<128x32xbf16, #tpu.memory_space<vmem>>, vector<128x32xbf16>,
    return
  }
  func.func @transform_0(%arg0: i32, %arg1: i32) -> (i32, i32) {
    %c0_i32 = arith.constant 0 : i32
    %c0_i32_0 = arith.constant 0 : i32
    return %arg0, %c0_i32 : i32, i32
  }
  func.func @transform_1(%arg0: i32, %arg1: i32) -> (i32, i32) {
    %c0_i32 = arith.constant 0 : i32
    %c0_i32_0 = arith.constant 0 : i32
    return %c0_i32, %arg1 : i32, i32
  }
  func.func @transform_2(%arg0: i32, %arg1: i32) -> (i32, i32) {
    %c0_i32 = arith.constant 0 : i32
    %c0_i32_0 = arith.constant 0 : i32
    return %c0_i32, %arg1 : i32, i32
  }
  func.func @transform_3(%arg0: i32, %arg1: i32) -> (i32, i32) {
    %c0_i32 = arith.constant 0 : i32
    return %arg0, %arg1 : i32, i32
  }
}

module attributes {stable_mosaic.version = 11 : i64} {
  func.func @_gemm_single_k_kernel(%arg0: i32, %arg1: i32, %arg2: memref<128x144xbf16, #tpu.memory_space<vmem>>, %arg3: memref<144x8xbf16, #tpu.memory_space<vmem>>, %arg4: memref<1x8xf32, #tpu.memory_space<vmem>>, %arg5: memref<128x8xbf16, #tpu.memory_space<vmem>>) attributes {dimension_semantics = [#tpu.dimension_semantics<parallel>, #tpu.dimension_semantics<parallel>], iteration_bounds = array<i64: 1, 1>, scalar_prefetch = 0 : i64, scratch_operands = 0 : i64, tpu.core_type = #tpu.core_type<tc>, window_params = [{transform_indices = @transform_0, window_bounds = array<i64: 128, 144>}, {transform_indices = @transform_1, window_bounds = array<i64: 144, 8>}, {transform_indices = @transform_2, window_bounds = array<i64: 1, 8>}, {transform_indices = @transform_3, window_bounds = array<i64: 128, 8>}]} {
    %c0 = arith.constant 0 : index
    %c0_0 = arith.constant 0 : index
    %0 = vector.load %arg2[%c0, %c0_0] : memref<128x144xbf16, #tpu.memory_space<vmem>>, vector<128x144xbf16>
    %c0_1 = arith.constant 0 : index
    %c0_2 = arith.constant 0 : index
    %1 = vector.load %arg3[%c0_1, %c0_2] : memref<144x8xbf16, #tpu.memory_space<vmem>>, vector<144x8xbf16>
    %cst = arith.constant dense<0.000000e+00> : vector<128x8xf32>
    %2 = tpu.matmul %0, %1, %cst {dimension_numbers = #tpu.dot_dimension_numbers<[1], [0], [0], [1], [0, 0, 1, 1], [], []>} : vector<128x144xbf16>, vector<144x8xbf16>, vector<128x8xf32> -> vector<128x8xf32>
    %c0_3 = arith.constant 0 : index
    %c0_4 = arith.constant 0 : index
    %3 = vector.load %arg4[%c0_3, %c0_4] : memref<1x8xf32, #tpu.memory_space<vmem>>, vector<1x8xf32>
    %4 = vector.broadcast %3 : vector<1x8xf32> to vector<128x8xf32>
    %5 = arith.addf %2, %4 : vector<128x8xf32>
    %6 = arith.negf %5 : vector<128x8xf32>
    %7 = math.exp %6 : vector<128x8xf32>
    %cst_5 = arith.constant 1.000000e+00 : f32
    %8 = vector.broadcast %cst_5 : f32 to vector<128x8xf32>
    %9 = arith.addf %8, %7 : vector<128x8xf32>
    %10 = arith.divf %8, %9 : vector<128x8xf32>
    %11 = arith.mulf %5, %10 : vector<128x8xf32>
    %12 = arith.truncf %11 : vector<128x8xf32> to vector<128x8xbf16>
    %c0_6 = arith.constant 0 : index
    %c0_7 = arith.constant 0 : index
    %13 = vector.load %arg5[%c0_6, %c0_7] : memref<128x8xbf16, #tpu.memory_space<vmem>>, vector<128x8xbf16>
    tpu.vector_store %arg5[%c0_6, %c0_7], %12 {strides = array<i32>} : memref<128x8xbf16, #tpu.memory_space<vmem>>, vector<128x8xbf16>,
    return
  }
  func.func @transform_0(%arg0: i32, %arg1: i32) -> (i32, i32) {
    %c0_i32 = arith.constant 0 : i32
    %c0_i32_0 = arith.constant 0 : i32
    return %arg0, %c0_i32 : i32, i32
  }
  func.func @transform_1(%arg0: i32, %arg1: i32) -> (i32, i32) {
    %c0_i32 = arith.constant 0 : i32
    %c0_i32_0 = arith.constant 0 : i32
    return %c0_i32, %arg1 : i32, i32
  }
  func.func @transform_2(%arg0: i32, %arg1: i32) -> (i32, i32) {
    %c0_i32 = arith.constant 0 : i32
    %c0_i32_0 = arith.constant 0 : i32
    return %c0_i32, %arg1 : i32, i32
  }
  func.func @transform_3(%arg0: i32, %arg1: i32) -> (i32, i32) {
    %c0_i32 = arith.constant 0 : i32
    return %arg0, %arg1 : i32, i32
  }
}

module attributes {stable_mosaic.version = 11 : i64} {
  func.func @_gemm_single_k_kernel(%arg0: i32, %arg1: i32, %arg2: memref<128x72xbf16, #tpu.memory_space<vmem>>, %arg3: memref<72x16xbf16, #tpu.memory_space<vmem>>, %arg4: memref<1x16xf32, #tpu.memory_space<vmem>>, %arg5: memref<128x16xbf16, #tpu.memory_space<vmem>>) attributes {dimension_semantics = [#tpu.dimension_semantics<parallel>, #tpu.dimension_semantics<parallel>], iteration_bounds = array<i64: 1, 1>, scalar_prefetch = 0 : i64, scratch_operands = 0 : i64, tpu.core_type = #tpu.core_type<tc>, window_params = [{transform_indices = @transform_0, window_bounds = array<i64: 128, 72>}, {transform_indices = @transform_1, window_bounds = array<i64: 72, 16>}, {transform_indices = @transform_2, window_bounds = array<i64: 1, 16>}, {transform_indices = @transform_3, window_bounds = array<i64: 128, 16>}]} {
    %c0 = arith.constant 0 : index
    %c0_0 = arith.constant 0 : index
    %0 = vector.load %arg2[%c0, %c0_0] : memref<128x72xbf16, #tpu.memory_space<vmem>>, vector<128x72xbf16>
    %c0_1 = arith.constant 0 : index
    %c0_2 = arith.constant 0 : index
    %1 = vector.load %arg3[%c0_1, %c0_2] : memref<72x16xbf16, #tpu.memory_space<vmem>>, vector<72x16xbf16>
    %cst = arith.constant dense<0.000000e+00> : vector<128x16xf32>
    %2 = tpu.matmul %0, %1, %cst {dimension_numbers = #tpu.dot_dimension_numbers<[1], [0], [0], [1], [0, 0, 1, 1], [], []>} : vector<128x72xbf16>, vector<72x16xbf16>, vector<128x16xf32> -> vector<128x16xf32>
    %c0_3 = arith.constant 0 : index
    %c0_4 = arith.constant 0 : index
    %3 = vector.load %arg4[%c0_3, %c0_4] : memref<1x16xf32, #tpu.memory_space<vmem>>, vector<1x16xf32>
    %4 = vector.broadcast %3 : vector<1x16xf32> to vector<128x16xf32>
    %5 = arith.addf %2, %4 : vector<128x16xf32>
    %6 = arith.negf %5 : vector<128x16xf32>
    %7 = math.exp %6 : vector<128x16xf32>
    %cst_5 = arith.constant 1.000000e+00 : f32
    %8 = vector.broadcast %cst_5 : f32 to vector<128x16xf32>
    %9 = arith.addf %8, %7 : vector<128x16xf32>
    %10 = arith.divf %8, %9 : vector<128x16xf32>
    %11 = arith.mulf %5, %10 : vector<128x16xf32>
    %12 = arith.truncf %11 : vector<128x16xf32> to vector<128x16xbf16>
    %c0_6 = arith.constant 0 : index
    %c0_7 = arith.constant 0 : index
    %13 = vector.load %arg5[%c0_6, %c0_7] : memref<128x16xbf16, #tpu.memory_space<vmem>>, vector<128x16xbf16>
    tpu.vector_store %arg5[%c0_6, %c0_7], %12 {strides = array<i32>} : memref<128x16xbf16, #tpu.memory_space<vmem>>, vector<128x16xbf16>,
    return
  }
  func.func @transform_0(%arg0: i32, %arg1: i32) -> (i32, i32) {
    %c0_i32 = arith.constant 0 : i32
    %c0_i32_0 = arith.constant 0 : i32
    return %arg0, %c0_i32 : i32, i32
  }
  func.func @transform_1(%arg0: i32, %arg1: i32) -> (i32, i32) {
    %c0_i32 = arith.constant 0 : i32
    %c0_i32_0 = arith.constant 0 : i32
    return %c0_i32, %arg1 : i32, i32
  }
  func.func @transform_2(%arg0: i32, %arg1: i32) -> (i32, i32) {
    %c0_i32 = arith.constant 0 : i32
    %c0_i32_0 = arith.constant 0 : i32
    return %c0_i32, %arg1 : i32, i32
  }
  func.func @transform_3(%arg0: i32, %arg1: i32) -> (i32, i32) {
    %c0_i32 = arith.constant 0 : i32
    return %arg0, %arg1 : i32, i32
  }
}

module attributes {stable_mosaic.version = 11 : i64} {
  func.func @_gemm_single_k_kernel(%arg0: i32, %arg1: i32, %arg2: memref<128x48xbf16, #tpu.memory_space<vmem>>, %arg3: memref<48x32xbf16, #tpu.memory_space<vmem>>, %arg4: memref<1x32xf32, #tpu.memory_space<vmem>>, %arg5: memref<128x32xbf16, #tpu.memory_space<vmem>>) attributes {dimension_semantics = [#tpu.dimension_semantics<parallel>, #tpu.dimension_semantics<parallel>], iteration_bounds = array<i64: 1, 1>, scalar_prefetch = 0 : i64, scratch_operands = 0 : i64, tpu.core_type = #tpu.core_type<tc>, window_params = [{transform_indices = @transform_0, window_bounds = array<i64: 128, 48>}, {transform_indices = @transform_1, window_bounds = array<i64: 48, 32>}, {transform_indices = @transform_2, window_bounds = array<i64: 1, 32>}, {transform_indices = @transform_3, window_bounds = array<i64: 128, 32>}]} {
    %c0 = arith.constant 0 : index
    %c0_0 = arith.constant 0 : index
    %0 = vector.load %arg2[%c0, %c0_0] : memref<128x48xbf16, #tpu.memory_space<vmem>>, vector<128x48xbf16>
    %c0_1 = arith.constant 0 : index
    %c0_2 = arith.constant 0 : index
    %1 = vector.load %arg3[%c0_1, %c0_2] : memref<48x32xbf16, #tpu.memory_space<vmem>>, vector<48x32xbf16>
    %cst = arith.constant dense<0.000000e+00> : vector<128x32xf32>
    %2 = tpu.matmul %0, %1, %cst {dimension_numbers = #tpu.dot_dimension_numbers<[1], [0], [0], [1], [0, 0, 1, 1], [], []>} : vector<128x48xbf16>, vector<48x32xbf16>, vector<128x32xf32> -> vector<128x32xf32>
    %c0_3 = arith.constant 0 : index
    %c0_4 = arith.constant 0 : index
    %3 = vector.load %arg4[%c0_3, %c0_4] : memref<1x32xf32, #tpu.memory_space<vmem>>, vector<1x32xf32>
    %4 = vector.broadcast %3 : vector<1x32xf32> to vector<128x32xf32>
    %5 = arith.addf %2, %4 : vector<128x32xf32>
    %6 = arith.negf %5 : vector<128x32xf32>
    %7 = math.exp %6 : vector<128x32xf32>
    %cst_5 = arith.constant 1.000000e+00 : f32
    %8 = vector.broadcast %cst_5 : f32 to vector<128x32xf32>
    %9 = arith.addf %8, %7 : vector<128x32xf32>
    %10 = arith.divf %8, %9 : vector<128x32xf32>
    %11 = arith.mulf %5, %10 : vector<128x32xf32>
    %12 = arith.truncf %11 : vector<128x32xf32> to vector<128x32xbf16>
    %c0_6 = arith.constant 0 : index
    %c0_7 = arith.constant 0 : index
    %13 = vector.load %arg5[%c0_6, %c0_7] : memref<128x32xbf16, #tpu.memory_space<vmem>>, vector<128x32xbf16>
    tpu.vector_store %arg5[%c0_6, %c0_7], %12 {strides = array<i32>} : memref<128x32xbf16, #tpu.memory_space<vmem>>, vector<128x32xbf16>,
    return
  }
  func.func @transform_0(%arg0: i32, %arg1: i32) -> (i32, i32) {
    %c0_i32 = arith.constant 0 : i32
    %c0_i32_0 = arith.constant 0 : i32
    return %arg0, %c0_i32 : i32, i32
  }
  func.func @transform_1(%arg0: i32, %arg1: i32) -> (i32, i32) {
    %c0_i32 = arith.constant 0 : i32
    %c0_i32_0 = arith.constant 0 : i32
    return %c0_i32, %arg1 : i32, i32
  }
  func.func @transform_2(%arg0: i32, %arg1: i32) -> (i32, i32) {
    %c0_i32 = arith.constant 0 : i32
    %c0_i32_0 = arith.constant 0 : i32
    return %c0_i32, %arg1 : i32, i32
  }
  func.func @transform_3(%arg0: i32, %arg1: i32) -> (i32, i32) {
    %c0_i32 = arith.constant 0 : i32
    return %arg0, %arg1 : i32, i32
  }
}

module attributes {stable_mosaic.version = 11 : i64} {
  func.func @_gemm_single_k_kernel(%arg0: i32, %arg1: i32, %arg2: memref<128x288xbf16, #tpu.memory_space<vmem>>, %arg3: memref<288x64xbf16, #tpu.memory_space<vmem>>, %arg4: memref<1x64xf32, #tpu.memory_space<vmem>>, %arg5: memref<128x64xbf16, #tpu.memory_space<vmem>>) attributes {dimension_semantics = [#tpu.dimension_semantics<parallel>, #tpu.dimension_semantics<parallel>], iteration_bounds = array<i64: 1, 1>, scalar_prefetch = 0 : i64, scratch_operands = 0 : i64, tpu.core_type = #tpu.core_type<tc>, window_params = [{transform_indices = @transform_0, window_bounds = array<i64: 128, 288>}, {transform_indices = @transform_1, window_bounds = array<i64: 288, 64>}, {transform_indices = @transform_2, window_bounds = array<i64: 1, 64>}, {transform_indices = @transform_3, window_bounds = array<i64: 128, 64>}]} {
    %c0 = arith.constant 0 : index
    %c0_0 = arith.constant 0 : index
    %0 = vector.load %arg2[%c0, %c0_0] : memref<128x288xbf16, #tpu.memory_space<vmem>>, vector<128x288xbf16>
    %c0_1 = arith.constant 0 : index
    %c0_2 = arith.constant 0 : index
    %1 = vector.load %arg3[%c0_1, %c0_2] : memref<288x64xbf16, #tpu.memory_space<vmem>>, vector<288x64xbf16>
    %cst = arith.constant dense<0.000000e+00> : vector<128x64xf32>
    %2 = tpu.matmul %0, %1, %cst {dimension_numbers = #tpu.dot_dimension_numbers<[1], [0], [0], [1], [0, 0, 1, 1], [], []>} : vector<128x288xbf16>, vector<288x64xbf16>, vector<128x64xf32> -> vector<128x64xf32>
    %c0_3 = arith.constant 0 : index
    %c0_4 = arith.constant 0 : index
    %3 = vector.load %arg4[%c0_3, %c0_4] : memref<1x64xf32, #tpu.memory_space<vmem>>, vector<1x64xf32>
    %4 = vector.broadcast %3 : vector<1x64xf32> to vector<128x64xf32>
    %5 = arith.addf %2, %4 : vector<128x64xf32>
    %6 = arith.truncf %5 : vector<128x64xf32> to vector<128x64xbf16>
    %c0_5 = arith.constant 0 : index
    %c0_6 = arith.constant 0 : index
    %7 = vector.load %arg5[%c0_5, %c0_6] : memref<128x64xbf16, #tpu.memory_space<vmem>>, vector<128x64xbf16>
    tpu.vector_store %arg5[%c0_5, %c0_6], %6 {strides = array<i32>} : memref<128x64xbf16, #tpu.memory_space<vmem>>, vector<128x64xbf16>,
    return
  }
  func.func @transform_0(%arg0: i32, %arg1: i32) -> (i32, i32) {
    %c0_i32 = arith.constant 0 : i32
    %c0_i32_0 = arith.constant 0 : i32
    return %arg0, %c0_i32 : i32, i32
  }
  func.func @transform_1(%arg0: i32, %arg1: i32) -> (i32, i32) {
    %c0_i32 = arith.constant 0 : i32
    %c0_i32_0 = arith.constant 0 : i32
    return %c0_i32, %arg1 : i32, i32
  }
  func.func @transform_2(%arg0: i32, %arg1: i32) -> (i32, i32) {
    %c0_i32 = arith.constant 0 : i32
    %c0_i32_0 = arith.constant 0 : i32
    return %c0_i32, %arg1 : i32, i32
  }
  func.func @transform_3(%arg0: i32, %arg1: i32) -> (i32, i32) {
    %c0_i32 = arith.constant 0 : i32
    return %arg0, %arg1 : i32, i32
  }
}

module attributes {stable_mosaic.version = 11 : i64} {
  func.func @_gemm_single_k_kernel(%arg0: i32, %arg1: i32, %arg2: memref<256x32xbf16, #tpu.memory_space<vmem>>, %arg3: memref<32x32xbf16, #tpu.memory_space<vmem>>, %arg4: memref<1x32xf32, #tpu.memory_space<vmem>>, %arg5: memref<256x32xbf16, #tpu.memory_space<vmem>>) attributes {dimension_semantics = [#tpu.dimension_semantics<parallel>, #tpu.dimension_semantics<parallel>], iteration_bounds = array<i64: 2, 1>, scalar_prefetch = 0 : i64, scratch_operands = 0 : i64, tpu.core_type = #tpu.core_type<tc>, window_params = [{transform_indices = @transform_0, window_bounds = array<i64: 256, 32>}, {transform_indices = @transform_1, window_bounds = array<i64: 32, 32>}, {transform_indices = @transform_2, window_bounds = array<i64: 1, 32>}, {transform_indices = @transform_3, window_bounds = array<i64: 256, 32>}]} {
    %c0 = arith.constant 0 : index
    %c0_0 = arith.constant 0 : index
    %0 = vector.load %arg2[%c0, %c0_0] : memref<256x32xbf16, #tpu.memory_space<vmem>>, vector<256x32xbf16>
    %c0_1 = arith.constant 0 : index
    %c0_2 = arith.constant 0 : index
    %1 = vector.load %arg3[%c0_1, %c0_2] : memref<32x32xbf16, #tpu.memory_space<vmem>>, vector<32x32xbf16>
    %cst = arith.constant dense<0.000000e+00> : vector<256x32xf32>
    %2 = tpu.matmul %0, %1, %cst {dimension_numbers = #tpu.dot_dimension_numbers<[1], [0], [0], [1], [0, 0, 1, 1], [], []>} : vector<256x32xbf16>, vector<32x32xbf16>, vector<256x32xf32> -> vector<256x32xf32>
    %c0_3 = arith.constant 0 : index
    %c0_4 = arith.constant 0 : index
    %3 = vector.load %arg4[%c0_3, %c0_4] : memref<1x32xf32, #tpu.memory_space<vmem>>, vector<1x32xf32>
    %4 = vector.broadcast %3 : vector<1x32xf32> to vector<256x32xf32>
    %5 = arith.addf %2, %4 : vector<256x32xf32>
    %6 = arith.negf %5 : vector<256x32xf32>
    %7 = math.exp %6 : vector<256x32xf32>
    %cst_5 = arith.constant 1.000000e+00 : f32
    %8 = vector.broadcast %cst_5 : f32 to vector<256x32xf32>
    %9 = arith.addf %8, %7 : vector<256x32xf32>
    %10 = arith.divf %8, %9 : vector<256x32xf32>
    %11 = arith.mulf %5, %10 : vector<256x32xf32>
    %12 = arith.truncf %11 : vector<256x32xf32> to vector<256x32xbf16>
    %c0_6 = arith.constant 0 : index
    %c0_7 = arith.constant 0 : index
    %13 = vector.load %arg5[%c0_6, %c0_7] : memref<256x32xbf16, #tpu.memory_space<vmem>>, vector<256x32xbf16>
    tpu.vector_store %arg5[%c0_6, %c0_7], %12 {strides = array<i32>} : memref<256x32xbf16, #tpu.memory_space<vmem>>, vector<256x32xbf16>,
    return
  }
  func.func @transform_0(%arg0: i32, %arg1: i32) -> (i32, i32) {
    %c0_i32 = arith.constant 0 : i32
    %c0_i32_0 = arith.constant 0 : i32
    return %arg0, %c0_i32 : i32, i32
  }
  func.func @transform_1(%arg0: i32, %arg1: i32) -> (i32, i32) {
    %c0_i32 = arith.constant 0 : i32
    %c0_i32_0 = arith.constant 0 : i32
    return %c0_i32, %arg1 : i32, i32
  }
  func.func @transform_2(%arg0: i32, %arg1: i32) -> (i32, i32) {
    %c0_i32 = arith.constant 0 : i32
    %c0_i32_0 = arith.constant 0 : i32
    return %c0_i32, %arg1 : i32, i32
  }
  func.func @transform_3(%arg0: i32, %arg1: i32) -> (i32, i32) {
    %c0_i32 = arith.constant 0 : i32
    return %arg0, %arg1 : i32, i32
  }
}

module attributes {stable_mosaic.version = 11 : i64} {
  func.func @_gemm_single_k_kernel(%arg0: i32, %arg1: i32, %arg2: memref<256x32xbf16, #tpu.memory_space<vmem>>, %arg3: memref<32x16xbf16, #tpu.memory_space<vmem>>, %arg4: memref<1x16xf32, #tpu.memory_space<vmem>>, %arg5: memref<256x16xbf16, #tpu.memory_space<vmem>>) attributes {dimension_semantics = [#tpu.dimension_semantics<parallel>, #tpu.dimension_semantics<parallel>], iteration_bounds = array<i64: 2, 1>, scalar_prefetch = 0 : i64, scratch_operands = 0 : i64, tpu.core_type = #tpu.core_type<tc>, window_params = [{transform_indices = @transform_0, window_bounds = array<i64: 256, 32>}, {transform_indices = @transform_1, window_bounds = array<i64: 32, 16>}, {transform_indices = @transform_2, window_bounds = array<i64: 1, 16>}, {transform_indices = @transform_3, window_bounds = array<i64: 256, 16>}]} {
    %c0 = arith.constant 0 : index
    %c0_0 = arith.constant 0 : index
    %0 = vector.load %arg2[%c0, %c0_0] : memref<256x32xbf16, #tpu.memory_space<vmem>>, vector<256x32xbf16>
    %c0_1 = arith.constant 0 : index
    %c0_2 = arith.constant 0 : index
    %1 = vector.load %arg3[%c0_1, %c0_2] : memref<32x16xbf16, #tpu.memory_space<vmem>>, vector<32x16xbf16>
    %cst = arith.constant dense<0.000000e+00> : vector<256x16xf32>
    %2 = tpu.matmul %0, %1, %cst {dimension_numbers = #tpu.dot_dimension_numbers<[1], [0], [0], [1], [0, 0, 1, 1], [], []>} : vector<256x32xbf16>, vector<32x16xbf16>, vector<256x16xf32> -> vector<256x16xf32>
    %c0_3 = arith.constant 0 : index
    %c0_4 = arith.constant 0 : index
    %3 = vector.load %arg4[%c0_3, %c0_4] : memref<1x16xf32, #tpu.memory_space<vmem>>, vector<1x16xf32>
    %4 = vector.broadcast %3 : vector<1x16xf32> to vector<256x16xf32>
    %5 = arith.addf %2, %4 : vector<256x16xf32>
    %6 = arith.negf %5 : vector<256x16xf32>
    %7 = math.exp %6 : vector<256x16xf32>
    %cst_5 = arith.constant 1.000000e+00 : f32
    %8 = vector.broadcast %cst_5 : f32 to vector<256x16xf32>
    %9 = arith.addf %8, %7 : vector<256x16xf32>
    %10 = arith.divf %8, %9 : vector<256x16xf32>
    %11 = arith.mulf %5, %10 : vector<256x16xf32>
    %12 = arith.truncf %11 : vector<256x16xf32> to vector<256x16xbf16>
    %c0_6 = arith.constant 0 : index
    %c0_7 = arith.constant 0 : index
    %13 = vector.load %arg5[%c0_6, %c0_7] : memref<256x16xbf16, #tpu.memory_space<vmem>>, vector<256x16xbf16>
    tpu.vector_store %arg5[%c0_6, %c0_7], %12 {strides = array<i32>} : memref<256x16xbf16, #tpu.memory_space<vmem>>, vector<256x16xbf16>,
    return
  }
  func.func @transform_0(%arg0: i32, %arg1: i32) -> (i32, i32) {
    %c0_i32 = arith.constant 0 : i32
    %c0_i32_0 = arith.constant 0 : i32
    return %arg0, %c0_i32 : i32, i32
  }
  func.func @transform_1(%arg0: i32, %arg1: i32) -> (i32, i32) {
    %c0_i32 = arith.constant 0 : i32
    %c0_i32_0 = arith.constant 0 : i32
    return %c0_i32, %arg1 : i32, i32
  }
  func.func @transform_2(%arg0: i32, %arg1: i32) -> (i32, i32) {
    %c0_i32 = arith.constant 0 : i32
    %c0_i32_0 = arith.constant 0 : i32
    return %c0_i32, %arg1 : i32, i32
  }
  func.func @transform_3(%arg0: i32, %arg1: i32) -> (i32, i32) {
    %c0_i32 = arith.constant 0 : i32
    return %arg0, %arg1 : i32, i32
  }
}

module attributes {stable_mosaic.version = 11 : i64} {
  func.func @_gemm_single_k_kernel(%arg0: i32, %arg1: i32, %arg2: memref<256x72xbf16, #tpu.memory_space<vmem>>, %arg3: memref<72x4xbf16, #tpu.memory_space<vmem>>, %arg4: memref<1x4xf32, #tpu.memory_space<vmem>>, %arg5: memref<256x4xbf16, #tpu.memory_space<vmem>>) attributes {dimension_semantics = [#tpu.dimension_semantics<parallel>, #tpu.dimension_semantics<parallel>], iteration_bounds = array<i64: 2, 1>, scalar_prefetch = 0 : i64, scratch_operands = 0 : i64, tpu.core_type = #tpu.core_type<tc>, window_params = [{transform_indices = @transform_0, window_bounds = array<i64: 256, 72>}, {transform_indices = @transform_1, window_bounds = array<i64: 72, 4>}, {transform_indices = @transform_2, window_bounds = array<i64: 1, 4>}, {transform_indices = @transform_3, window_bounds = array<i64: 256, 4>}]} {
    %c0 = arith.constant 0 : index
    %c0_0 = arith.constant 0 : index
    %0 = vector.load %arg2[%c0, %c0_0] : memref<256x72xbf16, #tpu.memory_space<vmem>>, vector<256x72xbf16>
    %c0_1 = arith.constant 0 : index
    %c0_2 = arith.constant 0 : index
    %1 = vector.load %arg3[%c0_1, %c0_2] : memref<72x4xbf16, #tpu.memory_space<vmem>>, vector<72x4xbf16>
    %cst = arith.constant dense<0.000000e+00> : vector<256x4xf32>
    %2 = tpu.matmul %0, %1, %cst {dimension_numbers = #tpu.dot_dimension_numbers<[1], [0], [0], [1], [0, 0, 1, 1], [], []>} : vector<256x72xbf16>, vector<72x4xbf16>, vector<256x4xf32> -> vector<256x4xf32>
    %c0_3 = arith.constant 0 : index
    %c0_4 = arith.constant 0 : index
    %3 = vector.load %arg4[%c0_3, %c0_4] : memref<1x4xf32, #tpu.memory_space<vmem>>, vector<1x4xf32>
    %4 = vector.broadcast %3 : vector<1x4xf32> to vector<256x4xf32>
    %5 = arith.addf %2, %4 : vector<256x4xf32>
    %6 = arith.negf %5 : vector<256x4xf32>
    %7 = math.exp %6 : vector<256x4xf32>
    %cst_5 = arith.constant 1.000000e+00 : f32
    %8 = vector.broadcast %cst_5 : f32 to vector<256x4xf32>
    %9 = arith.addf %8, %7 : vector<256x4xf32>
    %10 = arith.divf %8, %9 : vector<256x4xf32>
    %11 = arith.mulf %5, %10 : vector<256x4xf32>
    %12 = arith.truncf %11 : vector<256x4xf32> to vector<256x4xbf16>
    %c0_6 = arith.constant 0 : index
    %c0_7 = arith.constant 0 : index
    %13 = vector.load %arg5[%c0_6, %c0_7] : memref<256x4xbf16, #tpu.memory_space<vmem>>, vector<256x4xbf16>
    tpu.vector_store %arg5[%c0_6, %c0_7], %12 {strides = array<i32>} : memref<256x4xbf16, #tpu.memory_space<vmem>>, vector<256x4xbf16>,
    return
  }
  func.func @transform_0(%arg0: i32, %arg1: i32) -> (i32, i32) {
    %c0_i32 = arith.constant 0 : i32
    %c0_i32_0 = arith.constant 0 : i32
    return %arg0, %c0_i32 : i32, i32
  }
  func.func @transform_1(%arg0: i32, %arg1: i32) -> (i32, i32) {
    %c0_i32 = arith.constant 0 : i32
    %c0_i32_0 = arith.constant 0 : i32
    return %c0_i32, %arg1 : i32, i32
  }
  func.func @transform_2(%arg0: i32, %arg1: i32) -> (i32, i32) {
    %c0_i32 = arith.constant 0 : i32
    %c0_i32_0 = arith.constant 0 : i32
    return %c0_i32, %arg1 : i32, i32
  }
  func.func @transform_3(%arg0: i32, %arg1: i32) -> (i32, i32) {
    %c0_i32 = arith.constant 0 : i32
    return %arg0, %arg1 : i32, i32
  }
}

module attributes {stable_mosaic.version = 11 : i64} {
  func.func @_gemm_single_k_kernel(%arg0: i32, %arg1: i32, %arg2: memref<256x36xbf16, #tpu.memory_space<vmem>>, %arg3: memref<36x8xbf16, #tpu.memory_space<vmem>>, %arg4: memref<1x8xf32, #tpu.memory_space<vmem>>, %arg5: memref<256x8xbf16, #tpu.memory_space<vmem>>) attributes {dimension_semantics = [#tpu.dimension_semantics<parallel>, #tpu.dimension_semantics<parallel>], iteration_bounds = array<i64: 2, 1>, scalar_prefetch = 0 : i64, scratch_operands = 0 : i64, tpu.core_type = #tpu.core_type<tc>, window_params = [{transform_indices = @transform_0, window_bounds = array<i64: 256, 36>}, {transform_indices = @transform_1, window_bounds = array<i64: 36, 8>}, {transform_indices = @transform_2, window_bounds = array<i64: 1, 8>}, {transform_indices = @transform_3, window_bounds = array<i64: 256, 8>}]} {
    %c0 = arith.constant 0 : index
    %c0_0 = arith.constant 0 : index
    %0 = vector.load %arg2[%c0, %c0_0] : memref<256x36xbf16, #tpu.memory_space<vmem>>, vector<256x36xbf16>
    %c0_1 = arith.constant 0 : index
    %c0_2 = arith.constant 0 : index
    %1 = vector.load %arg3[%c0_1, %c0_2] : memref<36x8xbf16, #tpu.memory_space<vmem>>, vector<36x8xbf16>
    %cst = arith.constant dense<0.000000e+00> : vector<256x8xf32>
    %2 = tpu.matmul %0, %1, %cst {dimension_numbers = #tpu.dot_dimension_numbers<[1], [0], [0], [1], [0, 0, 1, 1], [], []>} : vector<256x36xbf16>, vector<36x8xbf16>, vector<256x8xf32> -> vector<256x8xf32>
    %c0_3 = arith.constant 0 : index
    %c0_4 = arith.constant 0 : index
    %3 = vector.load %arg4[%c0_3, %c0_4] : memref<1x8xf32, #tpu.memory_space<vmem>>, vector<1x8xf32>
    %4 = vector.broadcast %3 : vector<1x8xf32> to vector<256x8xf32>
    %5 = arith.addf %2, %4 : vector<256x8xf32>
    %6 = arith.negf %5 : vector<256x8xf32>
    %7 = math.exp %6 : vector<256x8xf32>
    %cst_5 = arith.constant 1.000000e+00 : f32
    %8 = vector.broadcast %cst_5 : f32 to vector<256x8xf32>
    %9 = arith.addf %8, %7 : vector<256x8xf32>
    %10 = arith.divf %8, %9 : vector<256x8xf32>
    %11 = arith.mulf %5, %10 : vector<256x8xf32>
    %12 = arith.truncf %11 : vector<256x8xf32> to vector<256x8xbf16>
    %c0_6 = arith.constant 0 : index
    %c0_7 = arith.constant 0 : index
    %13 = vector.load %arg5[%c0_6, %c0_7] : memref<256x8xbf16, #tpu.memory_space<vmem>>, vector<256x8xbf16>
    tpu.vector_store %arg5[%c0_6, %c0_7], %12 {strides = array<i32>} : memref<256x8xbf16, #tpu.memory_space<vmem>>, vector<256x8xbf16>,
    return
  }
  func.func @transform_0(%arg0: i32, %arg1: i32) -> (i32, i32) {
    %c0_i32 = arith.constant 0 : i32
    %c0_i32_0 = arith.constant 0 : i32
    return %arg0, %c0_i32 : i32, i32
  }
  func.func @transform_1(%arg0: i32, %arg1: i32) -> (i32, i32) {
    %c0_i32 = arith.constant 0 : i32
    %c0_i32_0 = arith.constant 0 : i32
    return %c0_i32, %arg1 : i32, i32
  }
  func.func @transform_2(%arg0: i32, %arg1: i32) -> (i32, i32) {
    %c0_i32 = arith.constant 0 : i32
    %c0_i32_0 = arith.constant 0 : i32
    return %c0_i32, %arg1 : i32, i32
  }
  func.func @transform_3(%arg0: i32, %arg1: i32) -> (i32, i32) {
    %c0_i32 = arith.constant 0 : i32
    return %arg0, %arg1 : i32, i32
  }
}

module attributes {stable_mosaic.version = 11 : i64} {
  func.func @_gemm_single_k_kernel(%arg0: i32, %arg1: i32, %arg2: memref<256x24xbf16, #tpu.memory_space<vmem>>, %arg3: memref<24x16xbf16, #tpu.memory_space<vmem>>, %arg4: memref<1x16xf32, #tpu.memory_space<vmem>>, %arg5: memref<256x16xbf16, #tpu.memory_space<vmem>>) attributes {dimension_semantics = [#tpu.dimension_semantics<parallel>, #tpu.dimension_semantics<parallel>], iteration_bounds = array<i64: 2, 1>, scalar_prefetch = 0 : i64, scratch_operands = 0 : i64, tpu.core_type = #tpu.core_type<tc>, window_params = [{transform_indices = @transform_0, window_bounds = array<i64: 256, 24>}, {transform_indices = @transform_1, window_bounds = array<i64: 24, 16>}, {transform_indices = @transform_2, window_bounds = array<i64: 1, 16>}, {transform_indices = @transform_3, window_bounds = array<i64: 256, 16>}]} {
    %c0 = arith.constant 0 : index
    %c0_0 = arith.constant 0 : index
    %0 = vector.load %arg2[%c0, %c0_0] : memref<256x24xbf16, #tpu.memory_space<vmem>>, vector<256x24xbf16>
    %c0_1 = arith.constant 0 : index
    %c0_2 = arith.constant 0 : index
    %1 = vector.load %arg3[%c0_1, %c0_2] : memref<24x16xbf16, #tpu.memory_space<vmem>>, vector<24x16xbf16>
    %cst = arith.constant dense<0.000000e+00> : vector<256x16xf32>
    %2 = tpu.matmul %0, %1, %cst {dimension_numbers = #tpu.dot_dimension_numbers<[1], [0], [0], [1], [0, 0, 1, 1], [], []>} : vector<256x24xbf16>, vector<24x16xbf16>, vector<256x16xf32> -> vector<256x16xf32>
    %c0_3 = arith.constant 0 : index
    %c0_4 = arith.constant 0 : index
    %3 = vector.load %arg4[%c0_3, %c0_4] : memref<1x16xf32, #tpu.memory_space<vmem>>, vector<1x16xf32>
    %4 = vector.broadcast %3 : vector<1x16xf32> to vector<256x16xf32>
    %5 = arith.addf %2, %4 : vector<256x16xf32>
    %6 = arith.negf %5 : vector<256x16xf32>
    %7 = math.exp %6 : vector<256x16xf32>
    %cst_5 = arith.constant 1.000000e+00 : f32
    %8 = vector.broadcast %cst_5 : f32 to vector<256x16xf32>
    %9 = arith.addf %8, %7 : vector<256x16xf32>
    %10 = arith.divf %8, %9 : vector<256x16xf32>
    %11 = arith.mulf %5, %10 : vector<256x16xf32>
    %12 = arith.truncf %11 : vector<256x16xf32> to vector<256x16xbf16>
    %c0_6 = arith.constant 0 : index
    %c0_7 = arith.constant 0 : index
    %13 = vector.load %arg5[%c0_6, %c0_7] : memref<256x16xbf16, #tpu.memory_space<vmem>>, vector<256x16xbf16>
    tpu.vector_store %arg5[%c0_6, %c0_7], %12 {strides = array<i32>} : memref<256x16xbf16, #tpu.memory_space<vmem>>, vector<256x16xbf16>,
    return
  }
  func.func @transform_0(%arg0: i32, %arg1: i32) -> (i32, i32) {
    %c0_i32 = arith.constant 0 : i32
    %c0_i32_0 = arith.constant 0 : i32
    return %arg0, %c0_i32 : i32, i32
  }
  func.func @transform_1(%arg0: i32, %arg1: i32) -> (i32, i32) {
    %c0_i32 = arith.constant 0 : i32
    %c0_i32_0 = arith.constant 0 : i32
    return %c0_i32, %arg1 : i32, i32
  }
  func.func @transform_2(%arg0: i32, %arg1: i32) -> (i32, i32) {
    %c0_i32 = arith.constant 0 : i32
    %c0_i32_0 = arith.constant 0 : i32
    return %c0_i32, %arg1 : i32, i32
  }
  func.func @transform_3(%arg0: i32, %arg1: i32) -> (i32, i32) {
    %c0_i32 = arith.constant 0 : i32
    return %arg0, %arg1 : i32, i32
  }
}

module attributes {stable_mosaic.version = 11 : i64} {
  func.func @_gemm_single_k_kernel(%arg0: i32, %arg1: i32, %arg2: memref<128x32xbf16, #tpu.memory_space<vmem>>, %arg3: memref<32x32xbf16, #tpu.memory_space<vmem>>, %arg4: memref<1x32xf32, #tpu.memory_space<vmem>>, %arg5: memref<128x32xbf16, #tpu.memory_space<vmem>>) attributes {dimension_semantics = [#tpu.dimension_semantics<parallel>, #tpu.dimension_semantics<parallel>], iteration_bounds = array<i64: 1, 1>, scalar_prefetch = 0 : i64, scratch_operands = 0 : i64, tpu.core_type = #tpu.core_type<tc>, window_params = [{transform_indices = @transform_0, window_bounds = array<i64: 128, 32>}, {transform_indices = @transform_1, window_bounds = array<i64: 32, 32>}, {transform_indices = @transform_2, window_bounds = array<i64: 1, 32>}, {transform_indices = @transform_3, window_bounds = array<i64: 128, 32>}]} {
    %c0 = arith.constant 0 : index
    %c0_0 = arith.constant 0 : index
    %0 = vector.load %arg2[%c0, %c0_0] : memref<128x32xbf16, #tpu.memory_space<vmem>>, vector<128x32xbf16>
    %c0_1 = arith.constant 0 : index
    %c0_2 = arith.constant 0 : index
    %1 = vector.load %arg3[%c0_1, %c0_2] : memref<32x32xbf16, #tpu.memory_space<vmem>>, vector<32x32xbf16>
    %cst = arith.constant dense<0.000000e+00> : vector<128x32xf32>
    %2 = tpu.matmul %0, %1, %cst {dimension_numbers = #tpu.dot_dimension_numbers<[1], [0], [0], [1], [0, 0, 1, 1], [], []>} : vector<128x32xbf16>, vector<32x32xbf16>, vector<128x32xf32> -> vector<128x32xf32>
    %c0_3 = arith.constant 0 : index
    %c0_4 = arith.constant 0 : index
    %3 = vector.load %arg4[%c0_3, %c0_4] : memref<1x32xf32, #tpu.memory_space<vmem>>, vector<1x32xf32>
    %4 = vector.broadcast %3 : vector<1x32xf32> to vector<128x32xf32>
    %5 = arith.addf %2, %4 : vector<128x32xf32>
    %6 = arith.negf %5 : vector<128x32xf32>
    %7 = math.exp %6 : vector<128x32xf32>
    %cst_5 = arith.constant 1.000000e+00 : f32
    %8 = vector.broadcast %cst_5 : f32 to vector<128x32xf32>
    %9 = arith.addf %8, %7 : vector<128x32xf32>
    %10 = arith.divf %8, %9 : vector<128x32xf32>
    %11 = arith.mulf %5, %10 : vector<128x32xf32>
    %12 = arith.truncf %11 : vector<128x32xf32> to vector<128x32xbf16>
    %c0_6 = arith.constant 0 : index
    %c0_7 = arith.constant 0 : index
    %13 = vector.load %arg5[%c0_6, %c0_7] : memref<128x32xbf16, #tpu.memory_space<vmem>>, vector<128x32xbf16>
    tpu.vector_store %arg5[%c0_6, %c0_7], %12 {strides = array<i32>} : memref<128x32xbf16, #tpu.memory_space<vmem>>, vector<128x32xbf16>,
    return
  }
  func.func @transform_0(%arg0: i32, %arg1: i32) -> (i32, i32) {
    %c0_i32 = arith.constant 0 : i32
    %c0_i32_0 = arith.constant 0 : i32
    return %arg0, %c0_i32 : i32, i32
  }
  func.func @transform_1(%arg0: i32, %arg1: i32) -> (i32, i32) {
    %c0_i32 = arith.constant 0 : i32
    %c0_i32_0 = arith.constant 0 : i32
    return %c0_i32, %arg1 : i32, i32
  }
  func.func @transform_2(%arg0: i32, %arg1: i32) -> (i32, i32) {
    %c0_i32 = arith.constant 0 : i32
    %c0_i32_0 = arith.constant 0 : i32
    return %c0_i32, %arg1 : i32, i32
  }
  func.func @transform_3(%arg0: i32, %arg1: i32) -> (i32, i32) {
    %c0_i32 = arith.constant 0 : i32
    return %arg0, %arg1 : i32, i32
  }
}

module attributes {stable_mosaic.version = 11 : i64} {
  func.func @_gemm_single_k_kernel(%arg0: i32, %arg1: i32, %arg2: memref<128x144xbf16, #tpu.memory_space<vmem>>, %arg3: memref<144x16xbf16, #tpu.memory_space<vmem>>, %arg4: memref<1x16xf32, #tpu.memory_space<vmem>>, %arg5: memref<128x16xbf16, #tpu.memory_space<vmem>>) attributes {dimension_semantics = [#tpu.dimension_semantics<parallel>, #tpu.dimension_semantics<parallel>], iteration_bounds = array<i64: 1, 1>, scalar_prefetch = 0 : i64, scratch_operands = 0 : i64, tpu.core_type = #tpu.core_type<tc>, window_params = [{transform_indices = @transform_0, window_bounds = array<i64: 128, 144>}, {transform_indices = @transform_1, window_bounds = array<i64: 144, 16>}, {transform_indices = @transform_2, window_bounds = array<i64: 1, 16>}, {transform_indices = @transform_3, window_bounds = array<i64: 128, 16>}]} {
    %c0 = arith.constant 0 : index
    %c0_0 = arith.constant 0 : index
    %0 = vector.load %arg2[%c0, %c0_0] : memref<128x144xbf16, #tpu.memory_space<vmem>>, vector<128x144xbf16>
    %c0_1 = arith.constant 0 : index
    %c0_2 = arith.constant 0 : index
    %1 = vector.load %arg3[%c0_1, %c0_2] : memref<144x16xbf16, #tpu.memory_space<vmem>>, vector<144x16xbf16>
    %cst = arith.constant dense<0.000000e+00> : vector<128x16xf32>
    %2 = tpu.matmul %0, %1, %cst {dimension_numbers = #tpu.dot_dimension_numbers<[1], [0], [0], [1], [0, 0, 1, 1], [], []>} : vector<128x144xbf16>, vector<144x16xbf16>, vector<128x16xf32> -> vector<128x16xf32>
    %c0_3 = arith.constant 0 : index
    %c0_4 = arith.constant 0 : index
    %3 = vector.load %arg4[%c0_3, %c0_4] : memref<1x16xf32, #tpu.memory_space<vmem>>, vector<1x16xf32>
    %4 = vector.broadcast %3 : vector<1x16xf32> to vector<128x16xf32>
    %5 = arith.addf %2, %4 : vector<128x16xf32>
    %6 = arith.negf %5 : vector<128x16xf32>
    %7 = math.exp %6 : vector<128x16xf32>
    %cst_5 = arith.constant 1.000000e+00 : f32
    %8 = vector.broadcast %cst_5 : f32 to vector<128x16xf32>
    %9 = arith.addf %8, %7 : vector<128x16xf32>
    %10 = arith.divf %8, %9 : vector<128x16xf32>
    %11 = arith.mulf %5, %10 : vector<128x16xf32>
    %12 = arith.truncf %11 : vector<128x16xf32> to vector<128x16xbf16>
    %c0_6 = arith.constant 0 : index
    %c0_7 = arith.constant 0 : index
    %13 = vector.load %arg5[%c0_6, %c0_7] : memref<128x16xbf16, #tpu.memory_space<vmem>>, vector<128x16xbf16>
    tpu.vector_store %arg5[%c0_6, %c0_7], %12 {strides = array<i32>} : memref<128x16xbf16, #tpu.memory_space<vmem>>, vector<128x16xbf16>,
    return
  }
  func.func @transform_0(%arg0: i32, %arg1: i32) -> (i32, i32) {
    %c0_i32 = arith.constant 0 : i32
    %c0_i32_0 = arith.constant 0 : i32
    return %arg0, %c0_i32 : i32, i32
  }
  func.func @transform_1(%arg0: i32, %arg1: i32) -> (i32, i32) {
    %c0_i32 = arith.constant 0 : i32
    %c0_i32_0 = arith.constant 0 : i32
    return %c0_i32, %arg1 : i32, i32
  }
  func.func @transform_2(%arg0: i32, %arg1: i32) -> (i32, i32) {
    %c0_i32 = arith.constant 0 : i32
    %c0_i32_0 = arith.constant 0 : i32
    return %c0_i32, %arg1 : i32, i32
  }
  func.func @transform_3(%arg0: i32, %arg1: i32) -> (i32, i32) {
    %c0_i32 = arith.constant 0 : i32
    return %arg0, %arg1 : i32, i32
  }
}

module attributes {stable_mosaic.version = 11 : i64} {
  func.func @_gemm_single_k_kernel(%arg0: i32, %arg1: i32, %arg2: memref<32x288xbf16, #tpu.memory_space<vmem>>, %arg3: memref<288x32xbf16, #tpu.memory_space<vmem>>, %arg4: memref<1x32xf32, #tpu.memory_space<vmem>>, %arg5: memref<32x32xbf16, #tpu.memory_space<vmem>>) attributes {dimension_semantics = [#tpu.dimension_semantics<parallel>, #tpu.dimension_semantics<parallel>], iteration_bounds = array<i64: 1, 1>, scalar_prefetch = 0 : i64, scratch_operands = 0 : i64, tpu.core_type = #tpu.core_type<tc>, window_params = [{transform_indices = @transform_0, window_bounds = array<i64: 32, 288>}, {transform_indices = @transform_1, window_bounds = array<i64: 288, 32>}, {transform_indices = @transform_2, window_bounds = array<i64: 1, 32>}, {transform_indices = @transform_3, window_bounds = array<i64: 32, 32>}]} {
    %c0 = arith.constant 0 : index
    %c0_0 = arith.constant 0 : index
    %0 = vector.load %arg2[%c0, %c0_0] : memref<32x288xbf16, #tpu.memory_space<vmem>>, vector<32x288xbf16>
    %c0_1 = arith.constant 0 : index
    %c0_2 = arith.constant 0 : index
    %1 = vector.load %arg3[%c0_1, %c0_2] : memref<288x32xbf16, #tpu.memory_space<vmem>>, vector<288x32xbf16>
    %cst = arith.constant dense<0.000000e+00> : vector<32x32xf32>
    %2 = tpu.matmul %0, %1, %cst {dimension_numbers = #tpu.dot_dimension_numbers<[1], [0], [0], [1], [0, 0, 1, 1], [], []>} : vector<32x288xbf16>, vector<288x32xbf16>, vector<32x32xf32> -> vector<32x32xf32>
    %c0_3 = arith.constant 0 : index
    %c0_4 = arith.constant 0 : index
    %3 = vector.load %arg4[%c0_3, %c0_4] : memref<1x32xf32, #tpu.memory_space<vmem>>, vector<1x32xf32>
    %4 = vector.broadcast %3 : vector<1x32xf32> to vector<32x32xf32>
    %5 = arith.addf %2, %4 : vector<32x32xf32>
    %6 = arith.negf %5 : vector<32x32xf32>
    %7 = math.exp %6 : vector<32x32xf32>
    %cst_5 = arith.constant 1.000000e+00 : f32
    %8 = vector.broadcast %cst_5 : f32 to vector<32x32xf32>
    %9 = arith.addf %8, %7 : vector<32x32xf32>
    %10 = arith.divf %8, %9 : vector<32x32xf32>
    %11 = arith.mulf %5, %10 : vector<32x32xf32>
    %12 = arith.truncf %11 : vector<32x32xf32> to vector<32x32xbf16>
    %c0_6 = arith.constant 0 : index
    %c0_7 = arith.constant 0 : index
    %13 = vector.load %arg5[%c0_6, %c0_7] : memref<32x32xbf16, #tpu.memory_space<vmem>>, vector<32x32xbf16>
    tpu.vector_store %arg5[%c0_6, %c0_7], %12 {strides = array<i32>} : memref<32x32xbf16, #tpu.memory_space<vmem>>, vector<32x32xbf16>,
    return
  }
  func.func @transform_0(%arg0: i32, %arg1: i32) -> (i32, i32) {
    %c0_i32 = arith.constant 0 : i32
    %c0_i32_0 = arith.constant 0 : i32
    return %arg0, %c0_i32 : i32, i32
  }
  func.func @transform_1(%arg0: i32, %arg1: i32) -> (i32, i32) {
    %c0_i32 = arith.constant 0 : i32
    %c0_i32_0 = arith.constant 0 : i32
    return %c0_i32, %arg1 : i32, i32
  }
  func.func @transform_2(%arg0: i32, %arg1: i32) -> (i32, i32) {
    %c0_i32 = arith.constant 0 : i32
    %c0_i32_0 = arith.constant 0 : i32
    return %c0_i32, %arg1 : i32, i32
  }
  func.func @transform_3(%arg0: i32, %arg1: i32) -> (i32, i32) {
    %c0_i32 = arith.constant 0 : i32
    return %arg0, %arg1 : i32, i32
  }
}

module attributes {stable_mosaic.version = 11 : i64} {
  func.func @_gemm_single_k_kernel(%arg0: i32, %arg1: i32, %arg2: memref<32x64xbf16, #tpu.memory_space<vmem>>, %arg3: memref<64x32xbf16, #tpu.memory_space<vmem>>, %arg4: memref<1x32xf32, #tpu.memory_space<vmem>>, %arg5: memref<32x32xbf16, #tpu.memory_space<vmem>>) attributes {dimension_semantics = [#tpu.dimension_semantics<parallel>, #tpu.dimension_semantics<parallel>], iteration_bounds = array<i64: 1, 1>, scalar_prefetch = 0 : i64, scratch_operands = 0 : i64, tpu.core_type = #tpu.core_type<tc>, window_params = [{transform_indices = @transform_0, window_bounds = array<i64: 32, 64>}, {transform_indices = @transform_1, window_bounds = array<i64: 64, 32>}, {transform_indices = @transform_2, window_bounds = array<i64: 1, 32>}, {transform_indices = @transform_3, window_bounds = array<i64: 32, 32>}]} {
    %c0 = arith.constant 0 : index
    %c0_0 = arith.constant 0 : index
    %0 = vector.load %arg2[%c0, %c0_0] : memref<32x64xbf16, #tpu.memory_space<vmem>>, vector<32x64xbf16>
    %c0_1 = arith.constant 0 : index
    %c0_2 = arith.constant 0 : index
    %1 = vector.load %arg3[%c0_1, %c0_2] : memref<64x32xbf16, #tpu.memory_space<vmem>>, vector<64x32xbf16>
    %cst = arith.constant dense<0.000000e+00> : vector<32x32xf32>
    %2 = tpu.matmul %0, %1, %cst {dimension_numbers = #tpu.dot_dimension_numbers<[1], [0], [0], [1], [0, 0, 1, 1], [], []>} : vector<32x64xbf16>, vector<64x32xbf16>, vector<32x32xf32> -> vector<32x32xf32>
    %c0_3 = arith.constant 0 : index
    %c0_4 = arith.constant 0 : index
    %3 = vector.load %arg4[%c0_3, %c0_4] : memref<1x32xf32, #tpu.memory_space<vmem>>, vector<1x32xf32>
    %4 = vector.broadcast %3 : vector<1x32xf32> to vector<32x32xf32>
    %5 = arith.addf %2, %4 : vector<32x32xf32>
    %6 = arith.negf %5 : vector<32x32xf32>
    %7 = math.exp %6 : vector<32x32xf32>
    %cst_5 = arith.constant 1.000000e+00 : f32
    %8 = vector.broadcast %cst_5 : f32 to vector<32x32xf32>
    %9 = arith.addf %8, %7 : vector<32x32xf32>
    %10 = arith.divf %8, %9 : vector<32x32xf32>
    %11 = arith.mulf %5, %10 : vector<32x32xf32>
    %12 = arith.truncf %11 : vector<32x32xf32> to vector<32x32xbf16>
    %c0_6 = arith.constant 0 : index
    %c0_7 = arith.constant 0 : index
    %13 = vector.load %arg5[%c0_6, %c0_7] : memref<32x32xbf16, #tpu.memory_space<vmem>>, vector<32x32xbf16>
    tpu.vector_store %arg5[%c0_6, %c0_7], %12 {strides = array<i32>} : memref<32x32xbf16, #tpu.memory_space<vmem>>, vector<32x32xbf16>,
    return
  }
  func.func @transform_0(%arg0: i32, %arg1: i32) -> (i32, i32) {
    %c0_i32 = arith.constant 0 : i32
    %c0_i32_0 = arith.constant 0 : i32
    return %arg0, %c0_i32 : i32, i32
  }
  func.func @transform_1(%arg0: i32, %arg1: i32) -> (i32, i32) {
    %c0_i32 = arith.constant 0 : i32
    %c0_i32_0 = arith.constant 0 : i32
    return %c0_i32, %arg1 : i32, i32
  }
  func.func @transform_2(%arg0: i32, %arg1: i32) -> (i32, i32) {
    %c0_i32 = arith.constant 0 : i32
    %c0_i32_0 = arith.constant 0 : i32
    return %c0_i32, %arg1 : i32, i32
  }
  func.func @transform_3(%arg0: i32, %arg1: i32) -> (i32, i32) {
    %c0_i32 = arith.constant 0 : i32
    return %arg0, %arg1 : i32, i32
  }
}

module attributes {stable_mosaic.version = 11 : i64} {
  func.func @_gemm_single_k_kernel(%arg0: i32, %arg1: i32, %arg2: memref<32x64xbf16, #tpu.memory_space<vmem>>, %arg3: memref<64x64xbf16, #tpu.memory_space<vmem>>, %arg4: memref<1x64xf32, #tpu.memory_space<vmem>>, %arg5: memref<32x64xbf16, #tpu.memory_space<vmem>>) attributes {dimension_semantics = [#tpu.dimension_semantics<parallel>, #tpu.dimension_semantics<parallel>], iteration_bounds = array<i64: 1, 1>, scalar_prefetch = 0 : i64, scratch_operands = 0 : i64, tpu.core_type = #tpu.core_type<tc>, window_params = [{transform_indices = @transform_0, window_bounds = array<i64: 32, 64>}, {transform_indices = @transform_1, window_bounds = array<i64: 64, 64>}, {transform_indices = @transform_2, window_bounds = array<i64: 1, 64>}, {transform_indices = @transform_3, window_bounds = array<i64: 32, 64>}]} {
    %c0 = arith.constant 0 : index
    %c0_0 = arith.constant 0 : index
    %0 = vector.load %arg2[%c0, %c0_0] : memref<32x64xbf16, #tpu.memory_space<vmem>>, vector<32x64xbf16>
    %c0_1 = arith.constant 0 : index
    %c0_2 = arith.constant 0 : index
    %1 = vector.load %arg3[%c0_1, %c0_2] : memref<64x64xbf16, #tpu.memory_space<vmem>>, vector<64x64xbf16>
    %cst = arith.constant dense<0.000000e+00> : vector<32x64xf32>
    %2 = tpu.matmul %0, %1, %cst {dimension_numbers = #tpu.dot_dimension_numbers<[1], [0], [0], [1], [0, 0, 1, 1], [], []>} : vector<32x64xbf16>, vector<64x64xbf16>, vector<32x64xf32> -> vector<32x64xf32>
    %c0_3 = arith.constant 0 : index
    %c0_4 = arith.constant 0 : index
    %3 = vector.load %arg4[%c0_3, %c0_4] : memref<1x64xf32, #tpu.memory_space<vmem>>, vector<1x64xf32>
    %4 = vector.broadcast %3 : vector<1x64xf32> to vector<32x64xf32>
    %5 = arith.addf %2, %4 : vector<32x64xf32>
    %6 = arith.negf %5 : vector<32x64xf32>
    %7 = math.exp %6 : vector<32x64xf32>
    %cst_5 = arith.constant 1.000000e+00 : f32
    %8 = vector.broadcast %cst_5 : f32 to vector<32x64xf32>
    %9 = arith.addf %8, %7 : vector<32x64xf32>
    %10 = arith.divf %8, %9 : vector<32x64xf32>
    %11 = arith.mulf %5, %10 : vector<32x64xf32>
    %12 = arith.truncf %11 : vector<32x64xf32> to vector<32x64xbf16>
    %c0_6 = arith.constant 0 : index
    %c0_7 = arith.constant 0 : index
    %13 = vector.load %arg5[%c0_6, %c0_7] : memref<32x64xbf16, #tpu.memory_space<vmem>>, vector<32x64xbf16>
    tpu.vector_store %arg5[%c0_6, %c0_7], %12 {strides = array<i32>} : memref<32x64xbf16, #tpu.memory_space<vmem>>, vector<32x64xbf16>,
    return
  }
  func.func @transform_0(%arg0: i32, %arg1: i32) -> (i32, i32) {
    %c0_i32 = arith.constant 0 : i32
    %c0_i32_0 = arith.constant 0 : i32
    return %arg0, %c0_i32 : i32, i32
  }
  func.func @transform_1(%arg0: i32, %arg1: i32) -> (i32, i32) {
    %c0_i32 = arith.constant 0 : i32
    %c0_i32_0 = arith.constant 0 : i32
    return %c0_i32, %arg1 : i32, i32
  }
  func.func @transform_2(%arg0: i32, %arg1: i32) -> (i32, i32) {
    %c0_i32 = arith.constant 0 : i32
    %c0_i32_0 = arith.constant 0 : i32
    return %c0_i32, %arg1 : i32, i32
  }
  func.func @transform_3(%arg0: i32, %arg1: i32) -> (i32, i32) {
    %c0_i32 = arith.constant 0 : i32
    return %arg0, %arg1 : i32, i32
  }
}

module attributes {stable_mosaic.version = 11 : i64} {
  func.func @_gemm_single_k_kernel(%arg0: i32, %arg1: i32, %arg2: memref<32x144xbf16, #tpu.memory_space<vmem>>, %arg3: memref<144x8xbf16, #tpu.memory_space<vmem>>, %arg4: memref<1x8xf32, #tpu.memory_space<vmem>>, %arg5: memref<32x8xbf16, #tpu.memory_space<vmem>>) attributes {dimension_semantics = [#tpu.dimension_semantics<parallel>, #tpu.dimension_semantics<parallel>], iteration_bounds = array<i64: 1, 1>, scalar_prefetch = 0 : i64, scratch_operands = 0 : i64, tpu.core_type = #tpu.core_type<tc>, window_params = [{transform_indices = @transform_0, window_bounds = array<i64: 32, 144>}, {transform_indices = @transform_1, window_bounds = array<i64: 144, 8>}, {transform_indices = @transform_2, window_bounds = array<i64: 1, 8>}, {transform_indices = @transform_3, window_bounds = array<i64: 32, 8>}]} {
    %c0 = arith.constant 0 : index
    %c0_0 = arith.constant 0 : index
    %0 = vector.load %arg2[%c0, %c0_0] : memref<32x144xbf16, #tpu.memory_space<vmem>>, vector<32x144xbf16>
    %c0_1 = arith.constant 0 : index
    %c0_2 = arith.constant 0 : index
    %1 = vector.load %arg3[%c0_1, %c0_2] : memref<144x8xbf16, #tpu.memory_space<vmem>>, vector<144x8xbf16>
    %cst = arith.constant dense<0.000000e+00> : vector<32x8xf32>
    %2 = tpu.matmul %0, %1, %cst {dimension_numbers = #tpu.dot_dimension_numbers<[1], [0], [0], [1], [0, 0, 1, 1], [], []>} : vector<32x144xbf16>, vector<144x8xbf16>, vector<32x8xf32> -> vector<32x8xf32>
    %c0_3 = arith.constant 0 : index
    %c0_4 = arith.constant 0 : index
    %3 = vector.load %arg4[%c0_3, %c0_4] : memref<1x8xf32, #tpu.memory_space<vmem>>, vector<1x8xf32>
    %4 = vector.broadcast %3 : vector<1x8xf32> to vector<32x8xf32>
    %5 = arith.addf %2, %4 : vector<32x8xf32>
    %6 = arith.negf %5 : vector<32x8xf32>
    %7 = math.exp %6 : vector<32x8xf32>
    %cst_5 = arith.constant 1.000000e+00 : f32
    %8 = vector.broadcast %cst_5 : f32 to vector<32x8xf32>
    %9 = arith.addf %8, %7 : vector<32x8xf32>
    %10 = arith.divf %8, %9 : vector<32x8xf32>
    %11 = arith.mulf %5, %10 : vector<32x8xf32>
    %12 = arith.truncf %11 : vector<32x8xf32> to vector<32x8xbf16>
    %c0_6 = arith.constant 0 : index
    %c0_7 = arith.constant 0 : index
    %13 = vector.load %arg5[%c0_6, %c0_7] : memref<32x8xbf16, #tpu.memory_space<vmem>>, vector<32x8xbf16>
    tpu.vector_store %arg5[%c0_6, %c0_7], %12 {strides = array<i32>} : memref<32x8xbf16, #tpu.memory_space<vmem>>, vector<32x8xbf16>,
    return
  }
  func.func @transform_0(%arg0: i32, %arg1: i32) -> (i32, i32) {
    %c0_i32 = arith.constant 0 : i32
    %c0_i32_0 = arith.constant 0 : i32
    return %arg0, %c0_i32 : i32, i32
  }
  func.func @transform_1(%arg0: i32, %arg1: i32) -> (i32, i32) {
    %c0_i32 = arith.constant 0 : i32
    %c0_i32_0 = arith.constant 0 : i32
    return %c0_i32, %arg1 : i32, i32
  }
  func.func @transform_2(%arg0: i32, %arg1: i32) -> (i32, i32) {
    %c0_i32 = arith.constant 0 : i32
    %c0_i32_0 = arith.constant 0 : i32
    return %c0_i32, %arg1 : i32, i32
  }
  func.func @transform_3(%arg0: i32, %arg1: i32) -> (i32, i32) {
    %c0_i32 = arith.constant 0 : i32
    return %arg0, %arg1 : i32, i32
  }
}

module attributes {stable_mosaic.version = 11 : i64} {
  func.func @_gemm_single_k_kernel(%arg0: i32, %arg1: i32, %arg2: memref<32x72xbf16, #tpu.memory_space<vmem>>, %arg3: memref<72x16xbf16, #tpu.memory_space<vmem>>, %arg4: memref<1x16xf32, #tpu.memory_space<vmem>>, %arg5: memref<32x16xbf16, #tpu.memory_space<vmem>>) attributes {dimension_semantics = [#tpu.dimension_semantics<parallel>, #tpu.dimension_semantics<parallel>], iteration_bounds = array<i64: 1, 1>, scalar_prefetch = 0 : i64, scratch_operands = 0 : i64, tpu.core_type = #tpu.core_type<tc>, window_params = [{transform_indices = @transform_0, window_bounds = array<i64: 32, 72>}, {transform_indices = @transform_1, window_bounds = array<i64: 72, 16>}, {transform_indices = @transform_2, window_bounds = array<i64: 1, 16>}, {transform_indices = @transform_3, window_bounds = array<i64: 32, 16>}]} {
    %c0 = arith.constant 0 : index
    %c0_0 = arith.constant 0 : index
    %0 = vector.load %arg2[%c0, %c0_0] : memref<32x72xbf16, #tpu.memory_space<vmem>>, vector<32x72xbf16>
    %c0_1 = arith.constant 0 : index
    %c0_2 = arith.constant 0 : index
    %1 = vector.load %arg3[%c0_1, %c0_2] : memref<72x16xbf16, #tpu.memory_space<vmem>>, vector<72x16xbf16>
    %cst = arith.constant dense<0.000000e+00> : vector<32x16xf32>
    %2 = tpu.matmul %0, %1, %cst {dimension_numbers = #tpu.dot_dimension_numbers<[1], [0], [0], [1], [0, 0, 1, 1], [], []>} : vector<32x72xbf16>, vector<72x16xbf16>, vector<32x16xf32> -> vector<32x16xf32>
    %c0_3 = arith.constant 0 : index
    %c0_4 = arith.constant 0 : index
    %3 = vector.load %arg4[%c0_3, %c0_4] : memref<1x16xf32, #tpu.memory_space<vmem>>, vector<1x16xf32>
    %4 = vector.broadcast %3 : vector<1x16xf32> to vector<32x16xf32>
    %5 = arith.addf %2, %4 : vector<32x16xf32>
    %6 = arith.negf %5 : vector<32x16xf32>
    %7 = math.exp %6 : vector<32x16xf32>
    %cst_5 = arith.constant 1.000000e+00 : f32
    %8 = vector.broadcast %cst_5 : f32 to vector<32x16xf32>
    %9 = arith.addf %8, %7 : vector<32x16xf32>
    %10 = arith.divf %8, %9 : vector<32x16xf32>
    %11 = arith.mulf %5, %10 : vector<32x16xf32>
    %12 = arith.truncf %11 : vector<32x16xf32> to vector<32x16xbf16>
    %c0_6 = arith.constant 0 : index
    %c0_7 = arith.constant 0 : index
    %13 = vector.load %arg5[%c0_6, %c0_7] : memref<32x16xbf16, #tpu.memory_space<vmem>>, vector<32x16xbf16>
    tpu.vector_store %arg5[%c0_6, %c0_7], %12 {strides = array<i32>} : memref<32x16xbf16, #tpu.memory_space<vmem>>, vector<32x16xbf16>,
    return
  }
  func.func @transform_0(%arg0: i32, %arg1: i32) -> (i32, i32) {
    %c0_i32 = arith.constant 0 : i32
    %c0_i32_0 = arith.constant 0 : i32
    return %arg0, %c0_i32 : i32, i32
  }
  func.func @transform_1(%arg0: i32, %arg1: i32) -> (i32, i32) {
    %c0_i32 = arith.constant 0 : i32
    %c0_i32_0 = arith.constant 0 : i32
    return %c0_i32, %arg1 : i32, i32
  }
  func.func @transform_2(%arg0: i32, %arg1: i32) -> (i32, i32) {
    %c0_i32 = arith.constant 0 : i32
    %c0_i32_0 = arith.constant 0 : i32
    return %c0_i32, %arg1 : i32, i32
  }
  func.func @transform_3(%arg0: i32, %arg1: i32) -> (i32, i32) {
    %c0_i32 = arith.constant 0 : i32
    return %arg0, %arg1 : i32, i32
  }
}

module attributes {stable_mosaic.version = 11 : i64} {
  func.func @_gemm_single_k_kernel(%arg0: i32, %arg1: i32, %arg2: memref<32x48xbf16, #tpu.memory_space<vmem>>, %arg3: memref<48x32xbf16, #tpu.memory_space<vmem>>, %arg4: memref<1x32xf32, #tpu.memory_space<vmem>>, %arg5: memref<32x32xbf16, #tpu.memory_space<vmem>>) attributes {dimension_semantics = [#tpu.dimension_semantics<parallel>, #tpu.dimension_semantics<parallel>], iteration_bounds = array<i64: 1, 1>, scalar_prefetch = 0 : i64, scratch_operands = 0 : i64, tpu.core_type = #tpu.core_type<tc>, window_params = [{transform_indices = @transform_0, window_bounds = array<i64: 32, 48>}, {transform_indices = @transform_1, window_bounds = array<i64: 48, 32>}, {transform_indices = @transform_2, window_bounds = array<i64: 1, 32>}, {transform_indices = @transform_3, window_bounds = array<i64: 32, 32>}]} {
    %c0 = arith.constant 0 : index
    %c0_0 = arith.constant 0 : index
    %0 = vector.load %arg2[%c0, %c0_0] : memref<32x48xbf16, #tpu.memory_space<vmem>>, vector<32x48xbf16>
    %c0_1 = arith.constant 0 : index
    %c0_2 = arith.constant 0 : index
    %1 = vector.load %arg3[%c0_1, %c0_2] : memref<48x32xbf16, #tpu.memory_space<vmem>>, vector<48x32xbf16>
    %cst = arith.constant dense<0.000000e+00> : vector<32x32xf32>
    %2 = tpu.matmul %0, %1, %cst {dimension_numbers = #tpu.dot_dimension_numbers<[1], [0], [0], [1], [0, 0, 1, 1], [], []>} : vector<32x48xbf16>, vector<48x32xbf16>, vector<32x32xf32> -> vector<32x32xf32>
    %c0_3 = arith.constant 0 : index
    %c0_4 = arith.constant 0 : index
    %3 = vector.load %arg4[%c0_3, %c0_4] : memref<1x32xf32, #tpu.memory_space<vmem>>, vector<1x32xf32>
    %4 = vector.broadcast %3 : vector<1x32xf32> to vector<32x32xf32>
    %5 = arith.addf %2, %4 : vector<32x32xf32>
    %6 = arith.negf %5 : vector<32x32xf32>
    %7 = math.exp %6 : vector<32x32xf32>
    %cst_5 = arith.constant 1.000000e+00 : f32
    %8 = vector.broadcast %cst_5 : f32 to vector<32x32xf32>
    %9 = arith.addf %8, %7 : vector<32x32xf32>
    %10 = arith.divf %8, %9 : vector<32x32xf32>
    %11 = arith.mulf %5, %10 : vector<32x32xf32>
    %12 = arith.truncf %11 : vector<32x32xf32> to vector<32x32xbf16>
    %c0_6 = arith.constant 0 : index
    %c0_7 = arith.constant 0 : index
    %13 = vector.load %arg5[%c0_6, %c0_7] : memref<32x32xbf16, #tpu.memory_space<vmem>>, vector<32x32xbf16>
    tpu.vector_store %arg5[%c0_6, %c0_7], %12 {strides = array<i32>} : memref<32x32xbf16, #tpu.memory_space<vmem>>, vector<32x32xbf16>,
    return
  }
  func.func @transform_0(%arg0: i32, %arg1: i32) -> (i32, i32) {
    %c0_i32 = arith.constant 0 : i32
    %c0_i32_0 = arith.constant 0 : i32
    return %arg0, %c0_i32 : i32, i32
  }
  func.func @transform_1(%arg0: i32, %arg1: i32) -> (i32, i32) {
    %c0_i32 = arith.constant 0 : i32
    %c0_i32_0 = arith.constant 0 : i32
    return %c0_i32, %arg1 : i32, i32
  }
  func.func @transform_2(%arg0: i32, %arg1: i32) -> (i32, i32) {
    %c0_i32 = arith.constant 0 : i32
    %c0_i32_0 = arith.constant 0 : i32
    return %c0_i32, %arg1 : i32, i32
  }
  func.func @transform_3(%arg0: i32, %arg1: i32) -> (i32, i32) {
    %c0_i32 = arith.constant 0 : i32
    return %arg0, %arg1 : i32, i32
  }
}

module attributes {stable_mosaic.version = 11 : i64} {
  func.func @_gemm_single_k_kernel(%arg0: i32, %arg1: i32, %arg2: memref<32x32xbf16, #tpu.memory_space<vmem>>, %arg3: memref<32x9xbf16, #tpu.memory_space<vmem>>, %arg4: memref<1x9xf32, #tpu.memory_space<vmem>>, %arg5: memref<32x9xf32, #tpu.memory_space<vmem>>) attributes {dimension_semantics = [#tpu.dimension_semantics<parallel>, #tpu.dimension_semantics<parallel>], iteration_bounds = array<i64: 1, 1>, scalar_prefetch = 0 : i64, scratch_operands = 0 : i64, tpu.core_type = #tpu.core_type<tc>, window_params = [{transform_indices = @transform_0, window_bounds = array<i64: 32, 32>}, {transform_indices = @transform_1, window_bounds = array<i64: 32, 9>}, {transform_indices = @transform_2, window_bounds = array<i64: 1, 9>}, {transform_indices = @transform_3, window_bounds = array<i64: 32, 9>}]} {
    %c0 = arith.constant 0 : index
    %c0_0 = arith.constant 0 : index
    %0 = vector.load %arg2[%c0, %c0_0] : memref<32x32xbf16, #tpu.memory_space<vmem>>, vector<32x32xbf16>
    %c0_1 = arith.constant 0 : index
    %c0_2 = arith.constant 0 : index
    %1 = vector.load %arg3[%c0_1, %c0_2] : memref<32x9xbf16, #tpu.memory_space<vmem>>, vector<32x9xbf16>
    %cst = arith.constant dense<0.000000e+00> : vector<32x9xf32>
    %2 = tpu.matmul %0, %1, %cst {dimension_numbers = #tpu.dot_dimension_numbers<[1], [0], [0], [1], [0, 0, 1, 1], [], []>} : vector<32x32xbf16>, vector<32x9xbf16>, vector<32x9xf32> -> vector<32x9xf32>
    %c0_3 = arith.constant 0 : index
    %c0_4 = arith.constant 0 : index
    %3 = vector.load %arg4[%c0_3, %c0_4] : memref<1x9xf32, #tpu.memory_space<vmem>>, vector<1x9xf32>
    %4 = vector.broadcast %3 : vector<1x9xf32> to vector<32x9xf32>
    %5 = arith.addf %2, %4 : vector<32x9xf32>
    %c0_5 = arith.constant 0 : index
    %c0_6 = arith.constant 0 : index
    %6 = vector.load %arg5[%c0_5, %c0_6] : memref<32x9xf32, #tpu.memory_space<vmem>>, vector<32x9xf32>
    tpu.vector_store %arg5[%c0_5, %c0_6], %5 {strides = array<i32>} : memref<32x9xf32, #tpu.memory_space<vmem>>, vector<32x9xf32>,
    return
  }
  func.func @transform_0(%arg0: i32, %arg1: i32) -> (i32, i32) {
    %c0_i32 = arith.constant 0 : i32
    %c0_i32_0 = arith.constant 0 : i32
    return %arg0, %c0_i32 : i32, i32
  }
  func.func @transform_1(%arg0: i32, %arg1: i32) -> (i32, i32) {
    %c0_i32 = arith.constant 0 : i32
    %c0_i32_0 = arith.constant 0 : i32
    return %c0_i32, %arg1 : i32, i32
  }
  func.func @transform_2(%arg0: i32, %arg1: i32) -> (i32, i32) {
    %c0_i32 = arith.constant 0 : i32
    %c0_i32_0 = arith.constant 0 : i32
    return %c0_i32, %arg1 : i32, i32
  }
  func.func @transform_3(%arg0: i32, %arg1: i32) -> (i32, i32) {
    %c0_i32 = arith.constant 0 : i32
    return %arg0, %arg1 : i32, i32
  }
}

module attributes {stable_mosaic.version = 11 : i64} {
  func.func @_gemm_single_k_kernel(%arg0: i32, %arg1: i32, %arg2: memref<128x32xbf16, #tpu.memory_space<vmem>>, %arg3: memref<32x9xbf16, #tpu.memory_space<vmem>>, %arg4: memref<1x9xf32, #tpu.memory_space<vmem>>, %arg5: memref<128x9xf32, #tpu.memory_space<vmem>>) attributes {dimension_semantics = [#tpu.dimension_semantics<parallel>, #tpu.dimension_semantics<parallel>], iteration_bounds = array<i64: 1, 1>, scalar_prefetch = 0 : i64, scratch_operands = 0 : i64, tpu.core_type = #tpu.core_type<tc>, window_params = [{transform_indices = @transform_0, window_bounds = array<i64: 128, 32>}, {transform_indices = @transform_1, window_bounds = array<i64: 32, 9>}, {transform_indices = @transform_2, window_bounds = array<i64: 1, 9>}, {transform_indices = @transform_3, window_bounds = array<i64: 128, 9>}]} {
    %c0 = arith.constant 0 : index
    %c0_0 = arith.constant 0 : index
    %0 = vector.load %arg2[%c0, %c0_0] : memref<128x32xbf16, #tpu.memory_space<vmem>>, vector<128x32xbf16>
    %c0_1 = arith.constant 0 : index
    %c0_2 = arith.constant 0 : index
    %1 = vector.load %arg3[%c0_1, %c0_2] : memref<32x9xbf16, #tpu.memory_space<vmem>>, vector<32x9xbf16>
    %cst = arith.constant dense<0.000000e+00> : vector<128x9xf32>
    %2 = tpu.matmul %0, %1, %cst {dimension_numbers = #tpu.dot_dimension_numbers<[1], [0], [0], [1], [0, 0, 1, 1], [], []>} : vector<128x32xbf16>, vector<32x9xbf16>, vector<128x9xf32> -> vector<128x9xf32>
    %c0_3 = arith.constant 0 : index
    %c0_4 = arith.constant 0 : index
    %3 = vector.load %arg4[%c0_3, %c0_4] : memref<1x9xf32, #tpu.memory_space<vmem>>, vector<1x9xf32>
    %4 = vector.broadcast %3 : vector<1x9xf32> to vector<128x9xf32>
    %5 = arith.addf %2, %4 : vector<128x9xf32>
    %c0_5 = arith.constant 0 : index
    %c0_6 = arith.constant 0 : index
    %6 = vector.load %arg5[%c0_5, %c0_6] : memref<128x9xf32, #tpu.memory_space<vmem>>, vector<128x9xf32>
    tpu.vector_store %arg5[%c0_5, %c0_6], %5 {strides = array<i32>} : memref<128x9xf32, #tpu.memory_space<vmem>>, vector<128x9xf32>,
    return
  }
  func.func @transform_0(%arg0: i32, %arg1: i32) -> (i32, i32) {
    %c0_i32 = arith.constant 0 : i32
    %c0_i32_0 = arith.constant 0 : i32
    return %arg0, %c0_i32 : i32, i32
  }
  func.func @transform_1(%arg0: i32, %arg1: i32) -> (i32, i32) {
    %c0_i32 = arith.constant 0 : i32
    %c0_i32_0 = arith.constant 0 : i32
    return %c0_i32, %arg1 : i32, i32
  }
  func.func @transform_2(%arg0: i32, %arg1: i32) -> (i32, i32) {
    %c0_i32 = arith.constant 0 : i32
    %c0_i32_0 = arith.constant 0 : i32
    return %c0_i32, %arg1 : i32, i32
  }
  func.func @transform_3(%arg0: i32, %arg1: i32) -> (i32, i32) {
    %c0_i32 = arith.constant 0 : i32
    return %arg0, %arg1 : i32, i32
  }
}

module attributes {stable_mosaic.version = 11 : i64} {
  func.func @_gemm_single_k_kernel(%arg0: i32, %arg1: i32, %arg2: memref<256x16xbf16, #tpu.memory_space<vmem>>, %arg3: memref<16x9xbf16, #tpu.memory_space<vmem>>, %arg4: memref<1x9xf32, #tpu.memory_space<vmem>>, %arg5: memref<256x9xf32, #tpu.memory_space<vmem>>) attributes {dimension_semantics = [#tpu.dimension_semantics<parallel>, #tpu.dimension_semantics<parallel>], iteration_bounds = array<i64: 2, 1>, scalar_prefetch = 0 : i64, scratch_operands = 0 : i64, tpu.core_type = #tpu.core_type<tc>, window_params = [{transform_indices = @transform_0, window_bounds = array<i64: 256, 16>}, {transform_indices = @transform_1, window_bounds = array<i64: 16, 9>}, {transform_indices = @transform_2, window_bounds = array<i64: 1, 9>}, {transform_indices = @transform_3, window_bounds = array<i64: 256, 9>}]} {
    %c0 = arith.constant 0 : index
    %c0_0 = arith.constant 0 : index
    %0 = vector.load %arg2[%c0, %c0_0] : memref<256x16xbf16, #tpu.memory_space<vmem>>, vector<256x16xbf16>
    %c0_1 = arith.constant 0 : index
    %c0_2 = arith.constant 0 : index
    %1 = vector.load %arg3[%c0_1, %c0_2] : memref<16x9xbf16, #tpu.memory_space<vmem>>, vector<16x9xbf16>
    %cst = arith.constant dense<0.000000e+00> : vector<256x9xf32>
    %2 = tpu.matmul %0, %1, %cst {dimension_numbers = #tpu.dot_dimension_numbers<[1], [0], [0], [1], [0, 0, 1, 1], [], []>} : vector<256x16xbf16>, vector<16x9xbf16>, vector<256x9xf32> -> vector<256x9xf32>
    %c0_3 = arith.constant 0 : index
    %c0_4 = arith.constant 0 : index
    %3 = vector.load %arg4[%c0_3, %c0_4] : memref<1x9xf32, #tpu.memory_space<vmem>>, vector<1x9xf32>
    %4 = vector.broadcast %3 : vector<1x9xf32> to vector<256x9xf32>
    %5 = arith.addf %2, %4 : vector<256x9xf32>
    %c0_5 = arith.constant 0 : index
    %c0_6 = arith.constant 0 : index
    %6 = vector.load %arg5[%c0_5, %c0_6] : memref<256x9xf32, #tpu.memory_space<vmem>>, vector<256x9xf32>
    tpu.vector_store %arg5[%c0_5, %c0_6], %5 {strides = array<i32>} : memref<256x9xf32, #tpu.memory_space<vmem>>, vector<256x9xf32>,
    return
  }
  func.func @transform_0(%arg0: i32, %arg1: i32) -> (i32, i32) {
    %c0_i32 = arith.constant 0 : i32
    %c0_i32_0 = arith.constant 0 : i32
    return %arg0, %c0_i32 : i32, i32
  }
  func.func @transform_1(%arg0: i32, %arg1: i32) -> (i32, i32) {
    %c0_i32 = arith.constant 0 : i32
    %c0_i32_0 = arith.constant 0 : i32
    return %c0_i32, %arg1 : i32, i32
  }
  func.func @transform_2(%arg0: i32, %arg1: i32) -> (i32, i32) {
    %c0_i32 = arith.constant 0 : i32
    %c0_i32_0 = arith.constant 0 : i32
    return %c0_i32, %arg1 : i32, i32
  }
  func.func @transform_3(%arg0: i32, %arg1: i32) -> (i32, i32) {
    %c0_i32 = arith.constant 0 : i32
    return %arg0, %arg1 : i32, i32
  }
}

</mosaic_0001>

<llo_original>
// kernel: yolov8_head_forward.29
$region0: #{yolov8_head_forward.29}
  #allocation0 [shape = 'u32[]', space=smem, size = 0x4, offset = 0x4, fixed_abs, tag = 'smem constant byte address 0x4 - core index']
  #allocation1 [shape = 'u32[144,128]{1,0:T(1,128)}', space=vmem, size = 0x12000, scoped, tag = 'internal scratch']
  %s0 = inlined_call_operand.vmem [shape: bf16[128,64], index: 0, kind: input, shape index: {}]
  %s1 = inlined_call_operand.vmem [shape: bf16[64,32], index: 1, kind: input, shape index: {}]
  %s2 = inlined_call_operand.vmem [shape: f32[1,32], index: 2, kind: input, shape index: {}]
  %s3 = inlined_call_operand.vmem [shape: bf16[128,32], index: 3, kind: output, shape index: {}]
  %s4 = sld [smem:[#allocation0]]
  $region22: #{yolov8_head_forward.29} parent=0
    _
  %s6 = ssub.s32 1, %s4
  %s7 = scalar_select 0, %s6, %s4
  // Predicated region
  $region2: #{yolov8_head_forward.29} parent=0 // pred_check
    _
  $region3: #{yolov8_head_forward.29} parent=0 // pred_check_branch
    %9 = sbr.rel (0) target = $region5
  $region4: #{yolov8_head_forward.29} parent=0 // pred_region
    _
  $region5: #{yolov8_head_forward.29} parent=0 // pred_fallthru
    _
  // Predicated region
  $region6: #{yolov8_head_forward.29} parent=0 // pred_check
    _
  $region7: #{yolov8_head_forward.29} parent=0 // pred_check_branch
    %11 = sbr.rel (0) target = $region9
  $region8: #{yolov8_head_forward.29} parent=0 // pred_region
    _
  $region9: #{yolov8_head_forward.29} parent=0 // pred_fallthru
    _
  // Predicated region
  $region10: #{yolov8_head_forward.29} parent=0 // pred_check
    _
  $region11: #{yolov8_head_forward.29} parent=0 // pred_check_branch
    %13 = sbr.rel (0) target = $region13
  $region12: #{yolov8_head_forward.29} parent=0 // pred_region
    _
  $region13: #{yolov8_head_forward.29} parent=0 // pred_fallthru
    _
  %v15 = vld [vmem:[%s0] sm:$0xf]
  %v16 = vld [vmem:[%s0 + $0x4] sm:$0xf]
  %v17 = vld [vmem:[%s0 + $0x8] sm:$0xf]
  %v18 = vld [vmem:[%s0 + $0xc] sm:$0xf]
  %v19 = vld [vmem:[%s0 + $0x10] sm:$0xf]
  %v20 = vld [vmem:[%s0 + $0x14] sm:$0xf]
  %v21 = vld [vmem:[%s0 + $0x18] sm:$0xf]
  %v22 = vld [vmem:[%s0 + $0x1c] sm:$0xf]
  %v23 = vld [vmem:[%s0 + $0x20] sm:$0xf]
  %v24 = vld [vmem:[%s0 + $0x24] sm:$0xf]
  %v25 = vld [vmem:[%s0 + $0x28] sm:$0xf]
  %v26 = vld [vmem:[%s0 + $0x2c] sm:$0xf]
  %v27 = vld [vmem:[%s0 + $0x30] sm:$0xf]
  %v28 = vld [vmem:[%s0 + $0x34] sm:$0xf]
  %v29 = vld [vmem:[%s0 + $0x38] sm:$0xf]
  %v30 = vld [vmem:[%s0 + $0x3c] sm:$0xf]
  %v31 = vld [vmem:[%s1] sm:$0xf]
  %v32 = vld [vmem:[%s1 + $0x4] sm:$0xf]
  %v33 = vld [vmem:[%s1 + $0x8] sm:$0xf]
  %v34 = vld [vmem:[%s1 + $0xc] sm:$0xf]
  %v35 = vld [vmem:[%s1 + $0x10] sm:$0xf]
  %v36 = vld [vmem:[%s1 + $0x14] sm:$0xf]
  %v37 = vld [vmem:[%s1 + $0x18] sm:$0xf]
  %v38 = vld [vmem:[%s1 + $0x1c] sm:$0xf]
  %v39 = vld [vmem:[%s2] sm:$0x1]
  %v41 = vlaneseq
  %v42 = vshrl.u32 %v41, 7
  %v43 = vsub.s32 0, %v42
  %v44 = vrot.slane %v39, %v43
  %v62 = vunpack.c.l.b16 %v15
  %v63 = vunpack.c.l.b16 %v16
  %v64 = vunpack.c.l.b16 %v17
  %v65 = vunpack.c.l.b16 %v18
  %v66 = vunpack.c.l.b16 %v19
  %v67 = vunpack.c.l.b16 %v20
  %v68 = vunpack.c.l.b16 %v21
  %v69 = vunpack.c.l.b16 %v22
  %v70 = vunpack.c.l.b16 %v23
  %v71 = vunpack.c.l.b16 %v24
  %v72 = vunpack.c.l.b16 %v25
  %v73 = vunpack.c.l.b16 %v26
  %v74 = vunpack.c.l.b16 %v27
  %v75 = vunpack.c.l.b16 %v28
  %v76 = vunpack.c.l.b16 %v29
  %v77 = vunpack.c.l.b16 %v30
  %v78 = vpack.c.b16 %v63, %v62
  %v79 = vpack.c.b16 %v65, %v64
  %v80 = vpack.c.b16 %v67, %v66
  %v81 = vpack.c.b16 %v69, %v68
  %v82 = vpack.c.b16 %v71, %v70
  %v83 = vpack.c.b16 %v73, %v72
  %v84 = vpack.c.b16 %v75, %v74
  %v85 = vpack.c.b16 %v77, %v76
  %v94 = vunpack.c.l.b16 %v31
  %v95 = vunpack.c.l.b16 %v32
  %v96 = vunpack.c.l.b16 %v33
  %v97 = vunpack.c.l.b16 %v34
  %v98 = vunpack.c.l.b16 %v35
  %v99 = vunpack.c.l.b16 %v36
  %v100 = vunpack.c.l.b16 %v37
  %v101 = vunpack.c.l.b16 %v38
  %v102 = vpack.c.b16 %v95, %v94
  %v103 = vpack.c.b16 %v97, %v96
  %v104 = vpack.c.b16 %v99, %v98
  %v105 = vpack.c.b16 %v101, %v100
  %vm110 = vcmask 523264
  %v112 = vsel %vm110, %v78, 0
  %v115 = vsel %vm110, %v79, 0
  %v118 = vsel %vm110, %v80, 0
  %v121 = vsel %vm110, %v81, 0
  %v124 = vsel %vm110, %v82, 0
  %v127 = vsel %vm110, %v83, 0
  %v130 = vsel %vm110, %v84, 0
  %v133 = vsel %vm110, %v85, 0
  %135 = vmatprep.subr.bf16.mxu0 0
  %136 = vmatpush1.bf16.msra.mxu0 0
  %137 = vmatprep.subr.bf16.mxu0 0
  %138 = vmatpush1.bf16.msra.mxu0 0
  %139 = vmatprep.subr.bf16.mxu0 0
  %140 = vmatpush1.bf16.msra.mxu0 0
  %141 = vmatprep.subr.bf16.mxu0 0
  %142 = vmatpush1.bf16.msra.mxu0 0
  %143 = vmatprep.subr.bf16.mxu0 0
  %144 = vmatpush1.bf16.msra.mxu0 %v105
  %145 = vmatprep.subr.bf16.mxu0 0
  %146 = vmatpush1.bf16.msra.mxu0 %v104
  %147 = vmatprep.subr.bf16.mxu0 0
  %148 = vmatpush1.bf16.msra.mxu0 %v103
  %149 = vmatprep.subr.bf16.mxu0 0
  %150 = vmatpush1.bf16.msra.mxu0 %v102
  %151 = vmatprep.subr.bf16.mxu0 0
  %152 = vmatpush2.bf16.msra.mxu0 0
  %153 = vmatprep.subr.bf16.mxu0 0
  %154 = vmatpush2.bf16.msra.mxu0 0
  %155 = vmatprep.subr.bf16.mxu0 0
  %156 = vmatpush2.bf16.msra.mxu0 0
  %157 = vmatprep.subr.bf16.mxu0 0
  %158 = vmatpush2.bf16.msra.mxu0 0
  %159 = vmatprep.subr.bf16.mxu0 0
  %160 = vmatpush2.bf16.msra.mxu0 0
  %161 = vmatprep.subr.bf16.mxu0 0
  %162 = vmatpush2.bf16.msra.mxu0 0
  %163 = vmatprep.subr.bf16.mxu0 0
  %164 = vmatpush2.bf16.msra.mxu0 0
  %165 = vmatprep.subr.bf16.mxu0 0
  %166 = vmatpush2.bf16.msra.mxu0 0
  %167 = vmatprep.mubr.bf16.mxu0 0
  %168 = vmatmul.mubr.bf16.gmra.mxu0 %v112
  %v169 = vpop.f32.mrf.mxu0
  %v170 = vadd.f32 %v44, %v169
  %v171 = vpop.f32.mrf.mxu0
  %v172 = vpop.f32.mrf.mxu0
  %v173 = vadd.f32 %v44, %v172
  %v174 = vpop.f32.mrf.mxu0
  %175 = vmatprep.mubr.bf16.mxu0 0
  %176 = vmatmul.mubr.bf16.gmra.mxu0 %v115
  %v177 = vpop.f32.mrf.mxu0
  %v178 = vadd.f32 %v44, %v177
  %v179 = vpop.f32.mrf.mxu0
  %v180 = vpop.f32.mrf.mxu0
  %v181 = vadd.f32 %v44, %v180
  %v182 = vpop.f32.mrf.mxu0
  %183 = vmatprep.mubr.bf16.mxu0 0
  %184 = vmatmul.mubr.bf16.gmra.mxu0 %v118
  %v185 = vpop.f32.mrf.mxu0
  %v186 = vadd.f32 %v44, %v185
  %v187 = vpop.f32.mrf.mxu0
  %v188 = vpop.f32.mrf.mxu0
  %v189 = vadd.f32 %v44, %v188
  %v190 = vpop.f32.mrf.mxu0
  %191 = vmatprep.mubr.bf16.mxu0 0
  %192 = vmatmul.mubr.bf16.gmra.mxu0 %v121
  %v193 = vpop.f32.mrf.mxu0
  %v194 = vadd.f32 %v44, %v193
  %v195 = vpop.f32.mrf.mxu0
  %v196 = vpop.f32.mrf.mxu0
  %v197 = vadd.f32 %v44, %v196
  %v198 = vpop.f32.mrf.mxu0
  %199 = vmatprep.mubr.bf16.mxu0 0
  %200 = vmatmul.mubr.bf16.gmra.mxu0 %v124
  %v201 = vpop.f32.mrf.mxu0
  %v202 = vadd.f32 %v44, %v201
  %v203 = vpop.f32.mrf.mxu0
  %v204 = vpop.f32.mrf.mxu0
  %v205 = vadd.f32 %v44, %v204
  %v206 = vpop.f32.mrf.mxu0
  %207 = vmatprep.mubr.bf16.mxu0 0
  %208 = vmatmul.mubr.bf16.gmra.mxu0 %v127
  %v209 = vpop.f32.mrf.mxu0
  %v210 = vadd.f32 %v44, %v209
  %v211 = vpop.f32.mrf.mxu0
  %v212 = vpop.f32.mrf.mxu0
  %v213 = vadd.f32 %v44, %v212
  %v214 = vpop.f32.mrf.mxu0
  %215 = vmatprep.mubr.bf16.mxu0 0
  %216 = vmatmul.mubr.bf16.gmra.mxu0 %v130
  %v217 = vpop.f32.mrf.mxu0
  %v218 = vadd.f32 %v44, %v217
  %v219 = vpop.f32.mrf.mxu0
  %v220 = vpop.f32.mrf.mxu0
  %v221 = vadd.f32 %v44, %v220
  %v222 = vpop.f32.mrf.mxu0
  %223 = vmatprep.mubr.bf16.mxu0 0
  %224 = vmatmul.mubr.bf16.gmra.mxu0 %v133
  %v225 = vpop.f32.mrf.mxu0
  %v226 = vadd.f32 %v44, %v225
  %v227 = vpop.f32.mrf.mxu0
  %v228 = vpop.f32.mrf.mxu0
  %v229 = vadd.f32 %v44, %v228
  %v230 = vpop.f32.mrf.mxu0
  %231 = vdwg.mxu0
  %v232 = vxor.u32 %v170, 2147483648
  %v233 = vxor.u32 %v173, 2147483648
  %v234 = vxor.u32 %v178, 2147483648
  %v235 = vxor.u32 %v181, 2147483648
  %v236 = vxor.u32 %v186, 2147483648
  %v237 = vxor.u32 %v189, 2147483648
  %v238 = vxor.u32 %v194, 2147483648
  %v239 = vxor.u32 %v197, 2147483648
  %v240 = vxor.u32 %v202, 2147483648
  %v241 = vxor.u32 %v205, 2147483648
  %v242 = vxor.u32 %v210, 2147483648
  %v243 = vxor.u32 %v213, 2147483648
  %v244 = vxor.u32 %v218, 2147483648
  %v245 = vxor.u32 %v221, 2147483648
  %v246 = vxor.u32 %v226, 2147483648
  %v247 = vxor.u32 %v229, 2147483648
  %v248 = vmul.f32 %v232, 1.442695
  %v249 = vpow.pop %v248
  %v250 = vmul.f32 %v233, 1.442695
  %v251 = vpow.pop %v250
  %v252 = vmul.f32 %v234, 1.442695
  %v253 = vpow.pop %v252
  %v254 = vmul.f32 %v235, 1.442695
  %v255 = vpow.pop %v254
  %v256 = vmul.f32 %v236, 1.442695
  %v257 = vpow.pop %v256
  %v258 = vmul.f32 %v237, 1.442695
  %v259 = vpow.pop %v258
  %v260 = vmul.f32 %v238, 1.442695
  %v261 = vpow.pop %v260
  %v262 = vmul.f32 %v239, 1.442695
  %v263 = vpow.pop %v262
  %v264 = vmul.f32 %v240, 1.442695
  %v265 = vpow.pop %v264
  %v266 = vmul.f32 %v241, 1.442695
  %v267 = vpow.pop %v266
  %v268 = vmul.f32 %v242, 1.442695
  %v269 = vpow.pop %v268
  %v270 = vmul.f32 %v243, 1.442695
  %v271 = vpow.pop %v270
  %v272 = vmul.f32 %v244, 1.442695
  %v273 = vpow.pop %v272
  %v274 = vmul.f32 %v245, 1.442695
  %v275 = vpow.pop %v274
  %v276 = vmul.f32 %v246, 1.442695
  %v277 = vpow.pop %v276
  %v278 = vmul.f32 %v247, 1.442695
  %v279 = vpow.pop %v278
  %v280 = vadd.f32 %v249, 1.0
  %v281 = vadd.f32 %v251, 1.0
  %v282 = vadd.f32 %v253, 1.0
  %v283 = vadd.f32 %v255, 1.0
  %v284 = vadd.f32 %v257, 1.0
  %v285 = vadd.f32 %v259, 1.0
  %v286 = vadd.f32 %v261, 1.0
  %v287 = vadd.f32 %v263, 1.0
  %v288 = vadd.f32 %v265, 1.0
  %v289 = vadd.f32 %v267, 1.0
  %v290 = vadd.f32 %v269, 1.0
  %v291 = vadd.f32 %v271, 1.0
  %v292 = vadd.f32 %v273, 1.0
  %v293 = vadd.f32 %v275, 1.0
  %v294 = vadd.f32 %v277, 1.0
  %v295 = vadd.f32 %v279, 1.0
  %v296 = vrcp.pop %v280
  %v297 = vmul.f32 1.0, %v296
  %v298 = vrcp.pop %v281
  %v299 = vmul.f32 1.0, %v298
  %v300 = vrcp.pop %v282
  %v301 = vmul.f32 1.0, %v300
  %v302 = vrcp.pop %v283
  %v303 = vmul.f32 1.0, %v302
  %v304 = vrcp.pop %v284
  %v305 = vmul.f32 1.0, %v304
  %v306 = vrcp.pop %v285
  %v307 = vmul.f32 1.0, %v306
  %v308 = vrcp.pop %v286
  %v309 = vmul.f32 1.0, %v308
  %v310 = vrcp.pop %v287
  %v311 = vmul.f32 1.0, %v310
  %v312 = vrcp.pop %v288
  %v313 = vmul.f32 1.0, %v312
  %v314 = vrcp.pop %v289
  %v315 = vmul.f32 1.0, %v314
  %v316 = vrcp.pop %v290
  %v317 = vmul.f32 1.0, %v316
  %v318 = vrcp.pop %v291
  %v319 = vmul.f32 1.0, %v318
  %v320 = vrcp.pop %v292
  %v321 = vmul.f32 1.0, %v320
  %v322 = vrcp.pop %v293
  %v323 = vmul.f32 1.0, %v322
  %v324 = vrcp.pop %v294
  %v325 = vmul.f32 1.0, %v324
  %v326 = vrcp.pop %v295
  %v327 = vmul.f32 1.0, %v326
  %v328 = vmul.f32 %v170, %v297
  %v329 = vmul.f32 %v173, %v299
  %v330 = vmul.f32 %v178, %v301
  %v331 = vmul.f32 %v181, %v303
  %v332 = vmul.f32 %v186, %v305
  %v333 = vmul.f32 %v189, %v307
  %v334 = vmul.f32 %v194, %v309
  %v335 = vmul.f32 %v197, %v311
  %v336 = vmul.f32 %v202, %v313
  %v337 = vmul.f32 %v205, %v315
  %v338 = vmul.f32 %v210, %v317
  %v339 = vmul.f32 %v213, %v319
  %v340 = vmul.f32 %v218, %v321
  %v341 = vmul.f32 %v221, %v323
  %v342 = vmul.f32 %v226, %v325
  %v343 = vmul.f32 %v229, %v327
  %v344 = vpack.c.bf16 %v329, %v328
  %v345 = vpack.c.bf16 %v331, %v330
  %v346 = vpack.c.bf16 %v333, %v332
  %v347 = vpack.c.bf16 %v335, %v334
  %v348 = vpack.c.bf16 %v337, %v336
  %v349 = vpack.c.bf16 %v339, %v338
  %v350 = vpack.c.bf16 %v341, %v340
  %v351 = vpack.c.bf16 %v343, %v342
  %v360 = vunpack.c.l.b16 %v344
  %v361 = vunpack.c.h.b16 %v344
  %v362 = vunpack.c.l.b16 %v345
  %v363 = vunpack.c.h.b16 %v345
  %v364 = vunpack.c.l.b16 %v346
  %v365 = vunpack.c.h.b16 %v346
  %v366 = vunpack.c.l.b16 %v347
  %v367 = vunpack.c.h.b16 %v347
  %v368 = vunpack.c.l.b16 %v348
  %v369 = vunpack.c.h.b16 %v348
  %v370 = vunpack.c.l.b16 %v349
  %v371 = vunpack.c.h.b16 %v349
  %v372 = vunpack.c.l.b16 %v350
  %v373 = vunpack.c.h.b16 %v350
  %v374 = vunpack.c.l.b16 %v351
  %v375 = vunpack.c.h.b16 %v351
  %v376 = vpack.c.b16 %v360, %v360
  %v377 = vpack.c.b16 %v361, %v361
  %v378 = vpack.c.b16 %v362, %v362
  %v379 = vpack.c.b16 %v363, %v363
  %v380 = vpack.c.b16 %v364, %v364
  %v381 = vpack.c.b16 %v365, %v365
  %v382 = vpack.c.b16 %v366, %v366
  %v383 = vpack.c.b16 %v367, %v367
  %v384 = vpack.c.b16 %v368, %v368
  %v385 = vpack.c.b16 %v369, %v369
  %v386 = vpack.c.b16 %v370, %v370
  %v387 = vpack.c.b16 %v371, %v371
  %v388 = vpack.c.b16 %v372, %v372
  %v389 = vpack.c.b16 %v373, %v373
  %v390 = vpack.c.b16 %v374, %v374
  %v391 = vpack.c.b16 %v375, %v375
  %vm408 = vcmask 257024
  %409 = vst.msk [vmem:[%s3] sm:$0xf] %vm408, %v376
  %410 = vst.msk [vmem:[%s3 + $0x4] sm:$0xf] %vm408, %v377
  %411 = vst.msk [vmem:[%s3 + $0x8] sm:$0xf] %vm408, %v378
  %412 = vst.msk [vmem:[%s3 + $0xc] sm:$0xf] %vm408, %v379
  %413 = vst.msk [vmem:[%s3 + $0x10] sm:$0xf] %vm408, %v380
  %414 = vst.msk [vmem:[%s3 + $0x14] sm:$0xf] %vm408, %v381
  %415 = vst.msk [vmem:[%s3 + $0x18] sm:$0xf] %vm408, %v382
  %416 = vst.msk [vmem:[%s3 + $0x1c] sm:$0xf] %vm408, %v383
  %417 = vst.msk [vmem:[%s3 + $0x20] sm:$0xf] %vm408, %v384
  %418 = vst.msk [vmem:[%s3 + $0x24] sm:$0xf] %vm408, %v385
  %419 = vst.msk [vmem:[%s3 + $0x28] sm:$0xf] %vm408, %v386
  %420 = vst.msk [vmem:[%s3 + $0x2c] sm:$0xf] %vm408, %v387
  %421 = vst.msk [vmem:[%s3 + $0x30] sm:$0xf] %vm408, %v388
  %422 = vst.msk [vmem:[%s3 + $0x34] sm:$0xf] %vm408, %v389
  %423 = vst.msk [vmem:[%s3 + $0x38] sm:$0xf] %vm408, %v390
  %424 = vst.msk [vmem:[%s3 + $0x3c] sm:$0xf] %vm408, %v391
  // Predicated region
  $region14: #{yolov8_head_forward.29} parent=0 // pred_check
    _
  $region15: #{yolov8_head_forward.29} parent=0 // pred_check_branch
    %426 = sbr.rel (0) target = $region17
  $region16: #{yolov8_head_forward.29} parent=0 // pred_region
    _
  $region17: #{yolov8_head_forward.29} parent=0 // pred_fallthru
    _
  // Predicated region
  $region18: #{yolov8_head_forward.29} parent=0 // pred_check
    _
  $region19: #{yolov8_head_forward.29} parent=0 // pred_check_branch
    %428 = sbr.rel (0) target = $region21
  $region20: #{yolov8_head_forward.29} parent=0 // pred_region
    _
  $region21: #{yolov8_head_forward.29} parent=0 // pred_fallthru
    _

// kernel: yolov8_head_forward.28
$region0: #{yolov8_head_forward.28}
  #allocation0 [shape = 'u32[]', space=smem, size = 0x4, offset = 0x4, fixed_abs, tag = 'smem constant byte address 0x4 - core index']
  #allocation1 [shape = 'u32[144,128]{1,0:T(1,128)}', space=vmem, size = 0x12000, scoped, tag = 'internal scratch']
  %s0 = inlined_call_operand.vmem [shape: bf16[128,64], index: 0, kind: input, shape index: {}]
  %s1 = inlined_call_operand.vmem [shape: bf16[64,64], index: 1, kind: input, shape index: {}]
  %s2 = inlined_call_operand.vmem [shape: f32[1,64], index: 2, kind: input, shape index: {}]
  %s3 = inlined_call_operand.vmem [shape: bf16[128,64], index: 3, kind: output, shape index: {}]
  %s4 = sld [smem:[#allocation0]]
  $region22: #{yolov8_head_forward.28} parent=0
    _
  %s6 = ssub.s32 1, %s4
  %s7 = scalar_select 0, %s6, %s4
  // Predicated region
  $region2: #{yolov8_head_forward.28} parent=0 // pred_check
    _
  $region3: #{yolov8_head_forward.28} parent=0 // pred_check_branch
    %9 = sbr.rel (0) target = $region5
  $region4: #{yolov8_head_forward.28} parent=0 // pred_region
    _
  $region5: #{yolov8_head_forward.28} parent=0 // pred_fallthru
    _
  // Predicated region
  $region6: #{yolov8_head_forward.28} parent=0 // pred_check
    _
  $region7: #{yolov8_head_forward.28} parent=0 // pred_check_branch
    %11 = sbr.rel (0) target = $region9
  $region8: #{yolov8_head_forward.28} parent=0 // pred_region
    _
  $region9: #{yolov8_head_forward.28} parent=0 // pred_fallthru
    _
  // Predicated region
  $region10: #{yolov8_head_forward.28} parent=0 // pred_check
    _
  $region11: #{yolov8_head_forward.28} parent=0 // pred_check_branch
    %13 = sbr.rel (0) target = $region13
  $region12: #{yolov8_head_forward.28} parent=0 // pred_region
    _
  $region13: #{yolov8_head_forward.28} parent=0 // pred_fallthru
    _
  %v15 = vld [vmem:[%s0] sm:$0xf]
  %v16 = vld [vmem:[%s0 + $0x4] sm:$0xf]
  %v17 = vld [vmem:[%s0 + $0x8] sm:$0xf]
  %v18 = vld [vmem:[%s0 + $0xc] sm:$0xf]
  %v19 = vld [vmem:[%s0 + $0x10] sm:$0xf]
  %v20 = vld [vmem:[%s0 + $0x14] sm:$0xf]
  %v21 = vld [vmem:[%s0 + $0x18] sm:$0xf]
  %v22 = vld [vmem:[%s0 + $0x1c] sm:$0xf]
  %v23 = vld [vmem:[%s0 + $0x20] sm:$0xf]
  %v24 = vld [vmem:[%s0 + $0x24] sm:$0xf]
  %v25 = vld [vmem:[%s0 + $0x28] sm:$0xf]
  %v26 = vld [vmem:[%s0 + $0x2c] sm:$0xf]
  %v27 = vld [vmem:[%s0 + $0x30] sm:$0xf]
  %v28 = vld [vmem:[%s0 + $0x34] sm:$0xf]
  %v29 = vld [vmem:[%s0 + $0x38] sm:$0xf]
  %v30 = vld [vmem:[%s0 + $0x3c] sm:$0xf]
  %v31 = vld [vmem:[%s1] sm:$0xf]
  %v32 = vld [vmem:[%s1 + $0x4] sm:$0xf]
  %v33 = vld [vmem:[%s1 + $0x8] sm:$0xf]
  %v34 = vld [vmem:[%s1 + $0xc] sm:$0xf]
  %v35 = vld [vmem:[%s1 + $0x10] sm:$0xf]
  %v36 = vld [vmem:[%s1 + $0x14] sm:$0xf]
  %v37 = vld [vmem:[%s1 + $0x18] sm:$0xf]
  %v38 = vld [vmem:[%s1 + $0x1c] sm:$0xf]
  %v39 = vld [vmem:[%s2] sm:$0x1]
  %v41 = vlaneseq
  %v42 = vshrl.u32 %v41, 7
  %v43 = vsub.s32 0, %v42
  %v44 = vrot.slane %v39, %v43
  %v62 = vunpack.c.l.b16 %v15
  %v63 = vunpack.c.l.b16 %v16
  %v64 = vunpack.c.l.b16 %v17
  %v65 = vunpack.c.l.b16 %v18
  %v66 = vunpack.c.l.b16 %v19
  %v67 = vunpack.c.l.b16 %v20
  %v68 = vunpack.c.l.b16 %v21
  %v69 = vunpack.c.l.b16 %v22
  %v70 = vunpack.c.l.b16 %v23
  %v71 = vunpack.c.l.b16 %v24
  %v72 = vunpack.c.l.b16 %v25
  %v73 = vunpack.c.l.b16 %v26
  %v74 = vunpack.c.l.b16 %v27
  %v75 = vunpack.c.l.b16 %v28
  %v76 = vunpack.c.l.b16 %v29
  %v77 = vunpack.c.l.b16 %v30
  %v78 = vpack.c.b16 %v63, %v62
  %v79 = vpack.c.b16 %v65, %v64
  %v80 = vpack.c.b16 %v67, %v66
  %v81 = vpack.c.b16 %v69, %v68
  %v82 = vpack.c.b16 %v71, %v70
  %v83 = vpack.c.b16 %v73, %v72
  %v84 = vpack.c.b16 %v75, %v74
  %v85 = vpack.c.b16 %v77, %v76
  %v94 = vunpack.c.l.b16 %v31
  %v95 = vunpack.c.l.b16 %v32
  %v96 = vunpack.c.l.b16 %v33
  %v97 = vunpack.c.l.b16 %v34
  %v98 = vunpack.c.l.b16 %v35
  %v99 = vunpack.c.l.b16 %v36
  %v100 = vunpack.c.l.b16 %v37
  %v101 = vunpack.c.l.b16 %v38
  %v102 = vpack.c.b16 %v95, %v94
  %v103 = vpack.c.b16 %v97, %v96
  %v104 = vpack.c.b16 %v99, %v98
  %v105 = vpack.c.b16 %v101, %v100
  %vm110 = vcmask 523264
  %v112 = vsel %vm110, %v78, 0
  %v115 = vsel %vm110, %v79, 0
  %v118 = vsel %vm110, %v80, 0
  %v121 = vsel %vm110, %v81, 0
  %v124 = vsel %vm110, %v82, 0
  %v127 = vsel %vm110, %v83, 0
  %v130 = vsel %vm110, %v84, 0
  %v133 = vsel %vm110, %v85, 0
  %135 = vmatprep.subr.bf16.mxu0 0
  %136 = vmatpush1.bf16.msra.mxu0 0
  %137 = vmatprep.subr.bf16.mxu0 0
  %138 = vmatpush1.bf16.msra.mxu0 0
  %139 = vmatprep.subr.bf16.mxu0 0
  %140 = vmatpush1.bf16.msra.mxu0 0
  %141 = vmatprep.subr.bf16.mxu0 0
  %142 = vmatpush1.bf16.msra.mxu0 0
  %143 = vmatprep.subr.bf16.mxu0 0
  %144 = vmatpush1.bf16.msra.mxu0 %v105
  %145 = vmatprep.subr.bf16.mxu0 0
  %146 = vmatpush1.bf16.msra.mxu0 %v104
  %147 = vmatprep.subr.bf16.mxu0 0
  %148 = vmatpush1.bf16.msra.mxu0 %v103
  %149 = vmatprep.subr.bf16.mxu0 0
  %150 = vmatpush1.bf16.msra.mxu0 %v102
  %151 = vmatprep.subr.bf16.mxu0 0
  %152 = vmatpush2.bf16.msra.mxu0 0
  %153 = vmatprep.subr.bf16.mxu0 0
  %154 = vmatpush2.bf16.msra.mxu0 0
  %155 = vmatprep.subr.bf16.mxu0 0
  %156 = vmatpush2.bf16.msra.mxu0 0
  %157 = vmatprep.subr.bf16.mxu0 0
  %158 = vmatpush2.bf16.msra.mxu0 0
  %159 = vmatprep.subr.bf16.mxu0 0
  %160 = vmatpush2.bf16.msra.mxu0 0
  %161 = vmatprep.subr.bf16.mxu0 0
  %162 = vmatpush2.bf16.msra.mxu0 0
  %163 = vmatprep.subr.bf16.mxu0 0
  %164 = vmatpush2.bf16.msra.mxu0 0
  %165 = vmatprep.subr.bf16.mxu0 0
  %166 = vmatpush2.bf16.msra.mxu0 0
  %167 = vmatprep.mubr.bf16.mxu0 0
  %168 = vmatmul.mubr.bf16.gmra.mxu0 %v112
  %v169 = vpop.f32.mrf.mxu0
  %v170 = vadd.f32 %v44, %v169
  %v171 = vpop.f32.mrf.mxu0
  %v172 = vpop.f32.mrf.mxu0
  %v173 = vadd.f32 %v44, %v172
  %v174 = vpop.f32.mrf.mxu0
  %175 = vmatprep.mubr.bf16.mxu0 0
  %176 = vmatmul.mubr.bf16.gmra.mxu0 %v115
  %v177 = vpop.f32.mrf.mxu0
  %v178 = vadd.f32 %v44, %v177
  %v179 = vpop.f32.mrf.mxu0
  %v180 = vpop.f32.mrf.mxu0
  %v181 = vadd.f32 %v44, %v180
  %v182 = vpop.f32.mrf.mxu0
  %183 = vmatprep.mubr.bf16.mxu0 0
  %184 = vmatmul.mubr.bf16.gmra.mxu0 %v118
  %v185 = vpop.f32.mrf.mxu0
  %v186 = vadd.f32 %v44, %v185
  %v187 = vpop.f32.mrf.mxu0
  %v188 = vpop.f32.mrf.mxu0
  %v189 = vadd.f32 %v44, %v188
  %v190 = vpop.f32.mrf.mxu0
  %191 = vmatprep.mubr.bf16.mxu0 0
  %192 = vmatmul.mubr.bf16.gmra.mxu0 %v121
  %v193 = vpop.f32.mrf.mxu0
  %v194 = vadd.f32 %v44, %v193
  %v195 = vpop.f32.mrf.mxu0
  %v196 = vpop.f32.mrf.mxu0
  %v197 = vadd.f32 %v44, %v196
  %v198 = vpop.f32.mrf.mxu0
  %199 = vmatprep.mubr.bf16.mxu0 0
  %200 = vmatmul.mubr.bf16.gmra.mxu0 %v124
  %v201 = vpop.f32.mrf.mxu0
  %v202 = vadd.f32 %v44, %v201
  %v203 = vpop.f32.mrf.mxu0
  %v204 = vpop.f32.mrf.mxu0
  %v205 = vadd.f32 %v44, %v204
  %v206 = vpop.f32.mrf.mxu0
  %207 = vmatprep.mubr.bf16.mxu0 0
  %208 = vmatmul.mubr.bf16.gmra.mxu0 %v127
  %v209 = vpop.f32.mrf.mxu0
  %v210 = vadd.f32 %v44, %v209
  %v211 = vpop.f32.mrf.mxu0
  %v212 = vpop.f32.mrf.mxu0
  %v213 = vadd.f32 %v44, %v212
  %v214 = vpop.f32.mrf.mxu0
  %215 = vmatprep.mubr.bf16.mxu0 0
  %216 = vmatmul.mubr.bf16.gmra.mxu0 %v130
  %v217 = vpop.f32.mrf.mxu0
  %v218 = vadd.f32 %v44, %v217
  %v219 = vpop.f32.mrf.mxu0
  %v220 = vpop.f32.mrf.mxu0
  %v221 = vadd.f32 %v44, %v220
  %v222 = vpop.f32.mrf.mxu0
  %223 = vmatprep.mubr.bf16.mxu0 0
  %224 = vmatmul.mubr.bf16.gmra.mxu0 %v133
  %v225 = vpop.f32.mrf.mxu0
  %v226 = vadd.f32 %v44, %v225
  %v227 = vpop.f32.mrf.mxu0
  %v228 = vpop.f32.mrf.mxu0
  %v229 = vadd.f32 %v44, %v228
  %v230 = vpop.f32.mrf.mxu0
  %231 = vdwg.mxu0
  %v232 = vxor.u32 %v170, 2147483648
  %v233 = vxor.u32 %v173, 2147483648
  %v234 = vxor.u32 %v178, 2147483648
  %v235 = vxor.u32 %v181, 2147483648
  %v236 = vxor.u32 %v186, 2147483648
  %v237 = vxor.u32 %v189, 2147483648
  %v238 = vxor.u32 %v194, 2147483648
  %v239 = vxor.u32 %v197, 2147483648
  %v240 = vxor.u32 %v202, 2147483648
  %v241 = vxor.u32 %v205, 2147483648
  %v242 = vxor.u32 %v210, 2147483648
  %v243 = vxor.u32 %v213, 2147483648
  %v244 = vxor.u32 %v218, 2147483648
  %v245 = vxor.u32 %v221, 2147483648
  %v246 = vxor.u32 %v226, 2147483648
  %v247 = vxor.u32 %v229, 2147483648
  %v248 = vmul.f32 %v232, 1.442695
  %v249 = vpow.pop %v248
  %v250 = vmul.f32 %v233, 1.442695
  %v251 = vpow.pop %v250
  %v252 = vmul.f32 %v234, 1.442695
  %v253 = vpow.pop %v252
  %v254 = vmul.f32 %v235, 1.442695
  %v255 = vpow.pop %v254
  %v256 = vmul.f32 %v236, 1.442695
  %v257 = vpow.pop %v256
  %v258 = vmul.f32 %v237, 1.442695
  %v259 = vpow.pop %v258
  %v260 = vmul.f32 %v238, 1.442695
  %v261 = vpow.pop %v260
  %v262 = vmul.f32 %v239, 1.442695
  %v263 = vpow.pop %v262
  %v264 = vmul.f32 %v240, 1.442695
  %v265 = vpow.pop %v264
  %v266 = vmul.f32 %v241, 1.442695
  %v267 = vpow.pop %v266
  %v268 = vmul.f32 %v242, 1.442695
  %v269 = vpow.pop %v268
  %v270 = vmul.f32 %v243, 1.442695
  %v271 = vpow.pop %v270
  %v272 = vmul.f32 %v244, 1.442695
  %v273 = vpow.pop %v272
  %v274 = vmul.f32 %v245, 1.442695
  %v275 = vpow.pop %v274
  %v276 = vmul.f32 %v246, 1.442695
  %v277 = vpow.pop %v276
  %v278 = vmul.f32 %v247, 1.442695
  %v279 = vpow.pop %v278
  %v280 = vadd.f32 %v249, 1.0
  %v281 = vadd.f32 %v251, 1.0
  %v282 = vadd.f32 %v253, 1.0
  %v283 = vadd.f32 %v255, 1.0
  %v284 = vadd.f32 %v257, 1.0
  %v285 = vadd.f32 %v259, 1.0
  %v286 = vadd.f32 %v261, 1.0
  %v287 = vadd.f32 %v263, 1.0
  %v288 = vadd.f32 %v265, 1.0
  %v289 = vadd.f32 %v267, 1.0
  %v290 = vadd.f32 %v269, 1.0
  %v291 = vadd.f32 %v271, 1.0
  %v292 = vadd.f32 %v273, 1.0
  %v293 = vadd.f32 %v275, 1.0
  %v294 = vadd.f32 %v277, 1.0
  %v295 = vadd.f32 %v279, 1.0
  %v296 = vrcp.pop %v280
  %v297 = vmul.f32 1.0, %v296
  %v298 = vrcp.pop %v281
  %v299 = vmul.f32 1.0, %v298
  %v300 = vrcp.pop %v282
  %v301 = vmul.f32 1.0, %v300
  %v302 = vrcp.pop %v283
  %v303 = vmul.f32 1.0, %v302
  %v304 = vrcp.pop %v284
  %v305 = vmul.f32 1.0, %v304
  %v306 = vrcp.pop %v285
  %v307 = vmul.f32 1.0, %v306
  %v308 = vrcp.pop %v286
  %v309 = vmul.f32 1.0, %v308
  %v310 = vrcp.pop %v287
  %v311 = vmul.f32 1.0, %v310
  %v312 = vrcp.pop %v288
  %v313 = vmul.f32 1.0, %v312
  %v314 = vrcp.pop %v289
  %v315 = vmul.f32 1.0, %v314
  %v316 = vrcp.pop %v290
  %v317 = vmul.f32 1.0, %v316
  %v318 = vrcp.pop %v291
  %v319 = vmul.f32 1.0, %v318
  %v320 = vrcp.pop %v292
  %v321 = vmul.f32 1.0, %v320
  %v322 = vrcp.pop %v293
  %v323 = vmul.f32 1.0, %v322
  %v324 = vrcp.pop %v294
  %v325 = vmul.f32 1.0, %v324
  %v326 = vrcp.pop %v295
  %v327 = vmul.f32 1.0, %v326
  %v328 = vmul.f32 %v170, %v297
  %v329 = vmul.f32 %v173, %v299
  %v330 = vmul.f32 %v178, %v301
  %v331 = vmul.f32 %v181, %v303
  %v332 = vmul.f32 %v186, %v305
  %v333 = vmul.f32 %v189, %v307
  %v334 = vmul.f32 %v194, %v309
  %v335 = vmul.f32 %v197, %v311
  %v336 = vmul.f32 %v202, %v313
  %v337 = vmul.f32 %v205, %v315
  %v338 = vmul.f32 %v210, %v317
  %v339 = vmul.f32 %v213, %v319
  %v340 = vmul.f32 %v218, %v321
  %v341 = vmul.f32 %v221, %v323
  %v342 = vmul.f32 %v226, %v325
  %v343 = vmul.f32 %v229, %v327
  %v344 = vpack.c.bf16 %v329, %v328
  %v345 = vpack.c.bf16 %v331, %v330
  %v346 = vpack.c.bf16 %v333, %v332
  %v347 = vpack.c.bf16 %v335, %v334
  %v348 = vpack.c.bf16 %v337, %v336
  %v349 = vpack.c.bf16 %v339, %v338
  %v350 = vpack.c.bf16 %v341, %v340
  %v351 = vpack.c.bf16 %v343, %v342
  %v360 = vunpack.c.l.b16 %v344
  %v361 = vunpack.c.h.b16 %v344
  %v362 = vunpack.c.l.b16 %v345
  %v363 = vunpack.c.h.b16 %v345
  %v364 = vunpack.c.l.b16 %v346
  %v365 = vunpack.c.h.b16 %v346
  %v366 = vunpack.c.l.b16 %v347
  %v367 = vunpack.c.h.b16 %v347
  %v368 = vunpack.c.l.b16 %v348
  %v369 = vunpack.c.h.b16 %v348
  %v370 = vunpack.c.l.b16 %v349
  %v371 = vunpack.c.h.b16 %v349
  %v372 = vunpack.c.l.b16 %v350
  %v373 = vunpack.c.h.b16 %v350
  %v374 = vunpack.c.l.b16 %v351
  %v375 = vunpack.c.h.b16 %v351
  %v376 = vpack.c.b16 %v360, %v360
  %v377 = vpack.c.b16 %v361, %v361
  %v378 = vpack.c.b16 %v362, %v362
  %v379 = vpack.c.b16 %v363, %v363
  %v380 = vpack.c.b16 %v364, %v364
  %v381 = vpack.c.b16 %v365, %v365
  %v382 = vpack.c.b16 %v366, %v366
  %v383 = vpack.c.b16 %v367, %v367
  %v384 = vpack.c.b16 %v368, %v368
  %v385 = vpack.c.b16 %v369, %v369
  %v386 = vpack.c.b16 %v370, %v370
  %v387 = vpack.c.b16 %v371, %v371
  %v388 = vpack.c.b16 %v372, %v372
  %v389 = vpack.c.b16 %v373, %v373
  %v390 = vpack.c.b16 %v374, %v374
  %v391 = vpack.c.b16 %v375, %v375
  %vm408 = vcmask 519168
  %409 = vst.msk [vmem:[%s3] sm:$0xf] %vm408, %v376
  %410 = vst.msk [vmem:[%s3 + $0x4] sm:$0xf] %vm408, %v377
  %411 = vst.msk [vmem:[%s3 + $0x8] sm:$0xf] %vm408, %v378
  %412 = vst.msk [vmem:[%s3 + $0xc] sm:$0xf] %vm408, %v379
  %413 = vst.msk [vmem:[%s3 + $0x10] sm:$0xf] %vm408, %v380
  %414 = vst.msk [vmem:[%s3 + $0x14] sm:$0xf] %vm408, %v381
  %415 = vst.msk [vmem:[%s3 + $0x18] sm:$0xf] %vm408, %v382
  %416 = vst.msk [vmem:[%s3 + $0x1c] sm:$0xf] %vm408, %v383
  %417 = vst.msk [vmem:[%s3 + $0x20] sm:$0xf] %vm408, %v384
  %418 = vst.msk [vmem:[%s3 + $0x24] sm:$0xf] %vm408, %v385
  %419 = vst.msk [vmem:[%s3 + $0x28] sm:$0xf] %vm408, %v386
  %420 = vst.msk [vmem:[%s3 + $0x2c] sm:$0xf] %vm408, %v387
  %421 = vst.msk [vmem:[%s3 + $0x30] sm:$0xf] %vm408, %v388
  %422 = vst.msk [vmem:[%s3 + $0x34] sm:$0xf] %vm408, %v389
  %423 = vst.msk [vmem:[%s3 + $0x38] sm:$0xf] %vm408, %v390
  %424 = vst.msk [vmem:[%s3 + $0x3c] sm:$0xf] %vm408, %v391
  // Predicated region
  $region14: #{yolov8_head_forward.28} parent=0 // pred_check
    _
  $region15: #{yolov8_head_forward.28} parent=0 // pred_check_branch
    %426 = sbr.rel (0) target = $region17
  $region16: #{yolov8_head_forward.28} parent=0 // pred_region
    _
  $region17: #{yolov8_head_forward.28} parent=0 // pred_fallthru
    _
  // Predicated region
  $region18: #{yolov8_head_forward.28} parent=0 // pred_check
    _
  $region19: #{yolov8_head_forward.28} parent=0 // pred_check_branch
    %428 = sbr.rel (0) target = $region21
  $region20: #{yolov8_head_forward.28} parent=0 // pred_region
    _
  $region21: #{yolov8_head_forward.28} parent=0 // pred_fallthru
    _

// kernel: yolov8_head_forward.27
$region0: #{yolov8_head_forward.27}
  #allocation0 [shape = 'u32[]', space=smem, size = 0x4, offset = 0x4, fixed_abs, tag = 'smem constant byte address 0x4 - core index']
  #allocation1 [shape = 'u32[144,128]{1,0:T(1,128)}', space=vmem, size = 0x12000, scoped, tag = 'internal scratch']
  %s0 = inlined_call_operand.vmem [shape: bf16[32,288], index: 0, kind: input, shape index: {}]
  %s1 = inlined_call_operand.vmem [shape: bf16[288,128], index: 1, kind: input, shape index: {}]
  %s2 = inlined_call_operand.vmem [shape: f32[1,128], index: 2, kind: input, shape index: {}]
  %s3 = inlined_call_operand.vmem [shape: bf16[32,128], index: 3, kind: output, shape index: {}]
  %s4 = sld [smem:[#allocation0]]
  $region22: #{yolov8_head_forward.27} parent=0
    _
  %s6 = ssub.s32 1, %s4
  %s7 = scalar_select 0, %s6, %s4
  // Predicated region
  $region2: #{yolov8_head_forward.27} parent=0 // pred_check
    _
  $region3: #{yolov8_head_forward.27} parent=0 // pred_check_branch
    %9 = sbr.rel (0) target = $region5
  $region4: #{yolov8_head_forward.27} parent=0 // pred_region
    _
  $region5: #{yolov8_head_forward.27} parent=0 // pred_fallthru
    _
  // Predicated region
  $region6: #{yolov8_head_forward.27} parent=0 // pred_check
    _
  $region7: #{yolov8_head_forward.27} parent=0 // pred_check_branch
    %11 = sbr.rel (0) target = $region9
  $region8: #{yolov8_head_forward.27} parent=0 // pred_region
    _
  $region9: #{yolov8_head_forward.27} parent=0 // pred_fallthru
    _
  // Predicated region
  $region10: #{yolov8_head_forward.27} parent=0 // pred_check
    _
  $region11: #{yolov8_head_forward.27} parent=0 // pred_check_branch
    %13 = sbr.rel (0) target = $region13
  $region12: #{yolov8_head_forward.27} parent=0 // pred_region
    _
  $region13: #{yolov8_head_forward.27} parent=0 // pred_fallthru
    _
  %v15 = vld [vmem:[%s0] sm:$0xff]
  %v16 = vld [vmem:[%s0 + $0x8] sm:$0xf]
  %v17 = vld [vmem:[%s0 + $0xc] sm:$0xff]
  %v18 = vld [vmem:[%s0 + $0x14] sm:$0xf]
  %v19 = vld [vmem:[%s0 + $0x18] sm:$0xff]
  %v20 = vld [vmem:[%s0 + $0x20] sm:$0xf]
  %v21 = vld [vmem:[%s0 + $0x24] sm:$0xff]
  %v22 = vld [vmem:[%s0 + $0x2c] sm:$0xf]
  %v23 = vld [vmem:[%s1] sm:$0xf]
  %v24 = vld [vmem:[%s1 + $0x4] sm:$0xf]
  %v25 = vld [vmem:[%s1 + $0x8] sm:$0xf]
  %v26 = vld [vmem:[%s1 + $0xc] sm:$0xf]
  %v27 = vld [vmem:[%s1 + $0x10] sm:$0xf]
  %v28 = vld [vmem:[%s1 + $0x14] sm:$0xf]
  %v29 = vld [vmem:[%s1 + $0x18] sm:$0xf]
  %v30 = vld [vmem:[%s1 + $0x1c] sm:$0xf]
  %v31 = vld [vmem:[%s1 + $0x20] sm:$0xf]
  %v32 = vld [vmem:[%s1 + $0x24] sm:$0xf]
  %v33 = vld [vmem:[%s1 + $0x28] sm:$0xf]
  %v34 = vld [vmem:[%s1 + $0x2c] sm:$0xf]
  %v35 = vld [vmem:[%s1 + $0x30] sm:$0xf]
  %v36 = vld [vmem:[%s1 + $0x34] sm:$0xf]
  %v37 = vld [vmem:[%s1 + $0x38] sm:$0xf]
  %v38 = vld [vmem:[%s1 + $0x3c] sm:$0xf]
  %v39 = vld [vmem:[%s1 + $0x40] sm:$0xf]
  %v40 = vld [vmem:[%s1 + $0x44] sm:$0xf]
  %v41 = vld [vmem:[%s1 + $0x48] sm:$0xf]
  %v42 = vld [vmem:[%s1 + $0x4c] sm:$0xf]
  %v43 = vld [vmem:[%s1 + $0x50] sm:$0xf]
  %v44 = vld [vmem:[%s1 + $0x54] sm:$0xf]
  %v45 = vld [vmem:[%s1 + $0x58] sm:$0xf]
  %v46 = vld [vmem:[%s1 + $0x5c] sm:$0xf]
  %v47 = vld [vmem:[%s1 + $0x60] sm:$0xf]
  %v48 = vld [vmem:[%s1 + $0x64] sm:$0xf]
  %v49 = vld [vmem:[%s1 + $0x68] sm:$0xf]
  %v50 = vld [vmem:[%s1 + $0x6c] sm:$0xf]
  %v51 = vld [vmem:[%s1 + $0x70] sm:$0xf]
  %v52 = vld [vmem:[%s1 + $0x74] sm:$0xf]
  %v53 = vld [vmem:[%s1 + $0x78] sm:$0xf]
  %v54 = vld [vmem:[%s1 + $0x7c] sm:$0xf]
  %v55 = vld [vmem:[%s1 + $0x80] sm:$0xf]
  %v56 = vld [vmem:[%s1 + $0x84] sm:$0xf]
  %v57 = vld [vmem:[%s1 + $0x88] sm:$0xf]
  %v58 = vld [vmem:[%s1 + $0x8c] sm:$0xf]
  %v59 = vld [vmem:[%s2] sm:$0x1]
  %v61 = vlaneseq
  %v62 = vshrl.u32 %v61, 7
  %v63 = vsub.s32 0, %v62
  %v64 = vrot.slane %v59, %v63
  %v74 = vunpack.c.l.b16 %v15
  %v75 = vunpack.c.h.b16 %v15
  %v76 = vunpack.c.l.b16 %v16
  %v77 = vunpack.c.l.b16 %v17
  %v78 = vunpack.c.h.b16 %v17
  %v79 = vunpack.c.l.b16 %v18
  %v80 = vunpack.c.l.b16 %v19
  %v81 = vunpack.c.h.b16 %v19
  %v82 = vunpack.c.l.b16 %v20
  %v83 = vunpack.c.l.b16 %v21
  %v84 = vunpack.c.h.b16 %v21
  %v85 = vunpack.c.l.b16 %v22
  %v86 = vpack.c.b16 %v77, %v74
  %v87 = vpack.c.b16 %v78, %v75
  %v88 = vpack.c.b16 %v79, %v76
  %v89 = vpack.c.b16 %v83, %v80
  %v90 = vpack.c.b16 %v84, %v81
  %v91 = vpack.c.b16 %v85, %v82
  %v132 = vunpack.c.l.b16 %v23
  %v133 = vunpack.c.l.b16 %v24
  %v134 = vunpack.c.l.b16 %v25
  %v135 = vunpack.c.l.b16 %v26
  %v136 = vunpack.c.l.b16 %v27
  %v137 = vunpack.c.l.b16 %v28
  %v138 = vunpack.c.l.b16 %v29
  %v139 = vunpack.c.l.b16 %v30
  %v140 = vunpack.c.l.b16 %v31
  %v141 = vunpack.c.l.b16 %v32
  %v142 = vunpack.c.l.b16 %v33
  %v143 = vunpack.c.l.b16 %v34
  %v144 = vunpack.c.l.b16 %v35
  %v145 = vunpack.c.l.b16 %v36
  %v146 = vunpack.c.l.b16 %v37
  %v147 = vunpack.c.l.b16 %v38
  %v148 = vunpack.c.l.b16 %v39
  %v149 = vunpack.c.l.b16 %v40
  %v150 = vunpack.c.l.b16 %v41
  %v151 = vunpack.c.l.b16 %v42
  %v152 = vunpack.c.l.b16 %v43
  %v153 = vunpack.c.l.b16 %v44
  %v154 = vunpack.c.l.b16 %v45
  %v155 = vunpack.c.l.b16 %v46
  %v156 = vunpack.c.l.b16 %v47
  %v157 = vunpack.c.l.b16 %v48
  %v158 = vunpack.c.l.b16 %v49
  %v159 = vunpack.c.l.b16 %v50
  %v160 = vunpack.c.l.b16 %v51
  %v161 = vunpack.c.l.b16 %v52
  %v162 = vunpack.c.l.b16 %v53
  %v163 = vunpack.c.l.b16 %v54
  %v164 = vunpack.c.l.b16 %v55
  %v165 = vunpack.c.l.b16 %v56
  %v166 = vunpack.c.l.b16 %v57
  %v167 = vunpack.c.l.b16 %v58
  %v168 = vpack.c.b16 %v133, %v132
  %v169 = vpack.c.b16 %v135, %v134
  %v170 = vpack.c.b16 %v137, %v136
  %v171 = vpack.c.b16 %v139, %v138
  %v172 = vpack.c.b16 %v141, %v140
  %v173 = vpack.c.b16 %v143, %v142
  %v174 = vpack.c.b16 %v145, %v144
  %v175 = vpack.c.b16 %v147, %v146
  %v176 = vpack.c.b16 %v149, %v148
  %v177 = vpack.c.b16 %v151, %v150
  %v178 = vpack.c.b16 %v153, %v152
  %v179 = vpack.c.b16 %v155, %v154
  %v180 = vpack.c.b16 %v157, %v156
  %v181 = vpack.c.b16 %v159, %v158
  %v182 = vpack.c.b16 %v161, %v160
  %v183 = vpack.c.b16 %v163, %v162
  %v184 = vpack.c.b16 %v165, %v164
  %v185 = vpack.c.b16 %v167, %v166
  %vm204 = vcmask 261120
  %v206 = vsel %vm204, %v88, 0
  %v209 = vsel %vm204, %v91, 0
  %211 = vmatprep.subr.bf16.mxu0 0
  %212 = vmatpush1.bf16.msra.mxu0 %v175
  %213 = vmatprep.subr.bf16.mxu0 0
  %214 = vmatpush1.bf16.msra.mxu0 %v174
  %215 = vmatprep.subr.bf16.mxu0 0
  %216 = vmatpush1.bf16.msra.mxu0 %v173
  %217 = vmatprep.subr.bf16.mxu0 0
  %218 = vmatpush1.bf16.msra.mxu0 %v172
  %219 = vmatprep.subr.bf16.mxu0 0
  %220 = vmatpush1.bf16.msra.mxu0 %v171
  %221 = vmatprep.subr.bf16.mxu0 0
  %222 = vmatpush1.bf16.msra.mxu0 %v170
  %223 = vmatprep.subr.bf16.mxu0 0
  %224 = vmatpush1.bf16.msra.mxu0 %v169
  %225 = vmatprep.subr.bf16.mxu0 0
  %226 = vmatpush1.bf16.msra.mxu0 %v168
  %227 = vmatprep.subr.bf16.mxu0 0
  %228 = vmatpush2.bf16.msra.mxu0 %v183
  %229 = vmatprep.subr.bf16.mxu0 0
  %230 = vmatpush2.bf16.msra.mxu0 %v182
  %231 = vmatprep.subr.bf16.mxu0 0
  %232 = vmatpush2.bf16.msra.mxu0 %v181
  %233 = vmatprep.subr.bf16.mxu0 0
  %234 = vmatpush2.bf16.msra.mxu0 %v180
  %235 = vmatprep.subr.bf16.mxu0 0
  %236 = vmatpush2.bf16.msra.mxu0 %v179
  %237 = vmatprep.subr.bf16.mxu0 0
  %238 = vmatpush2.bf16.msra.mxu0 %v178
  %239 = vmatprep.subr.bf16.mxu0 0
  %240 = vmatpush2.bf16.msra.mxu0 %v177
  %241 = vmatprep.subr.bf16.mxu0 0
  %242 = vmatpush2.bf16.msra.mxu0 %v176
  %243 = vmatprep.mubr.bf16.mxu0 %v87
  %244 = vmatmul.mubr.bf16.gmra.mxu0 %v86
  %v245 = vpop.f32.mrf.mxu0
  %v246 = vadd.f32 %v64, %v245
  %v247 = vpop.f32.mrf.mxu0
  %v248 = vpop.f32.mrf.mxu0
  %v249 = vadd.f32 %v64, %v248
  %v250 = vpop.f32.mrf.mxu0
  %251 = vmatprep.mubr.bf16.mxu0 %v90
  %252 = vmatmul.mubr.bf16.gmra.mxu0 %v89
  %v253 = vpop.f32.mrf.mxu0
  %v254 = vadd.f32 %v64, %v253
  %v255 = vpop.f32.mrf.mxu0
  %v256 = vpop.f32.mrf.mxu0
  %v257 = vadd.f32 %v64, %v256
  %v258 = vpop.f32.mrf.mxu0
  %259 = vdwg.mxu0
  %260 = vmatprep.subr.bf16.mxu0 0
  %261 = vmatpush1.bf16.msra.mxu0 0
  %262 = vmatprep.subr.bf16.mxu0 0
  %263 = vmatpush1.bf16.msra.mxu0 0
  %264 = vmatprep.subr.bf16.mxu0 0
  %265 = vmatpush1.bf16.msra.mxu0 0
  %266 = vmatprep.subr.bf16.mxu0 0
  %267 = vmatpush1.bf16.msra.mxu0 0
  %268 = vmatprep.subr.bf16.mxu0 0
  %269 = vmatpush1.bf16.msra.mxu0 0
  %270 = vmatprep.subr.bf16.mxu0 0
  %271 = vmatpush1.bf16.msra.mxu0 0
  %272 = vmatprep.subr.bf16.mxu0 0
  %273 = vmatpush1.bf16.msra.mxu0 %v185
  %274 = vmatprep.subr.bf16.mxu0 0
  %275 = vmatpush1.bf16.msra.mxu0 %v184
  %276 = vmatprep.subr.bf16.mxu0 0
  %277 = vmatpush2.bf16.msra.mxu0 0
  %278 = vmatprep.subr.bf16.mxu0 0
  %279 = vmatpush2.bf16.msra.mxu0 0
  %280 = vmatprep.subr.bf16.mxu0 0
  %281 = vmatpush2.bf16.msra.mxu0 0
  %282 = vmatprep.subr.bf16.mxu0 0
  %283 = vmatpush2.bf16.msra.mxu0 0
  %284 = vmatprep.subr.bf16.mxu0 0
  %285 = vmatpush2.bf16.msra.mxu0 0
  %286 = vmatprep.subr.bf16.mxu0 0
  %287 = vmatpush2.bf16.msra.mxu0 0
  %288 = vmatprep.subr.bf16.mxu0 0
  %289 = vmatpush2.bf16.msra.mxu0 0
  %290 = vmatprep.subr.bf16.mxu0 0
  %291 = vmatpush2.bf16.msra.mxu0 0
  %292 = vmatprep.mubr.bf16.mxu0 0
  %293 = vmatmul.mubr.bf16.gmra.mxu0 %v206
  %v294 = vpop.f32.mrf.mxu0
  %v295 = vadd.f32 %v246, %v294
  %v296 = vpop.f32.mrf.mxu0
  %v297 = vpop.f32.mrf.mxu0
  %v298 = vadd.f32 %v249, %v297
  %v299 = vpop.f32.mrf.mxu0
  %300 = vmatprep.mubr.bf16.mxu0 0
  %301 = vmatmul.mubr.bf16.gmra.mxu0 %v209
  %v302 = vpop.f32.mrf.mxu0
  %v303 = vadd.f32 %v254, %v302
  %v304 = vpop.f32.mrf.mxu0
  %v305 = vpop.f32.mrf.mxu0
  %v306 = vadd.f32 %v257, %v305
  %v307 = vpop.f32.mrf.mxu0
  %308 = vdwg.mxu0
  %v309 = vpack.c.bf16 %v298, %v295
  %v310 = vpack.c.bf16 %v306, %v303
  %v313 = vunpack.c.l.b16 %v309
  %v314 = vunpack.c.h.b16 %v309
  %v315 = vunpack.c.l.b16 %v310
  %v316 = vunpack.c.h.b16 %v310
  %v317 = vpack.c.b16 %v313, %v313
  %v318 = vpack.c.b16 %v314, %v314
  %v319 = vpack.c.b16 %v315, %v315
  %v320 = vpack.c.b16 %v316, %v316
  %325 = vst [vmem:[%s3] sm:$0xf] %v317
  %326 = vst [vmem:[%s3 + $0x4] sm:$0xf] %v318
  %327 = vst [vmem:[%s3 + $0x8] sm:$0xf] %v319
  %328 = vst [vmem:[%s3 + $0xc] sm:$0xf] %v320
  // Predicated region
  $region14: #{yolov8_head_forward.27} parent=0 // pred_check
    _
  $region15: #{yolov8_head_forward.27} parent=0 // pred_check_branch
    %330 = sbr.rel (0) target = $region17
  $region16: #{yolov8_head_forward.27} parent=0 // pred_region
    _
  $region17: #{yolov8_head_forward.27} parent=0 // pred_fallthru
    _
  // Predicated region
  $region18: #{yolov8_head_forward.27} parent=0 // pred_check
    _
  $region19: #{yolov8_head_forward.27} parent=0 // pred_check_branch
    %332 = sbr.rel (0) target = $region21
  $region20: #{yolov8_head_forward.27} parent=0 // pred_region
    _
  $region21: #{yolov8_head_forward.27} parent=0 // pred_fallthru
    _

// kernel: yolov8_head_forward.30
$region0: #{yolov8_head_forward.30}
  #allocation0 [shape = 'u32[]', space=smem, size = 0x4, offset = 0x4, fixed_abs, tag = 'smem constant byte address 0x4 - core index']
  #allocation1 [shape = 'u32[144,128]{1,0:T(1,128)}', space=vmem, size = 0x12000, scoped, tag = 'internal scratch']
  %s0 = inlined_call_operand.vmem [shape: bf16[128,144], index: 0, kind: input, shape index: {}]
  %s1 = inlined_call_operand.vmem [shape: bf16[144,8], index: 1, kind: input, shape index: {}]
  %s2 = inlined_call_operand.vmem [shape: f32[1,8], index: 2, kind: input, shape index: {}]
  %s3 = inlined_call_operand.vmem [shape: bf16[128,8], index: 3, kind: output, shape index: {}]
  %s4 = sld [smem:[#allocation0]]
  $region22: #{yolov8_head_forward.30} parent=0
    _
  %s6 = ssub.s32 1, %s4
  %s7 = scalar_select 0, %s6, %s4
  // Predicated region
  $region2: #{yolov8_head_forward.30} parent=0 // pred_check
    _
  $region3: #{yolov8_head_forward.30} parent=0 // pred_check_branch
    %9 = sbr.rel (0) target = $region5
  $region4: #{yolov8_head_forward.30} parent=0 // pred_region
    _
  $region5: #{yolov8_head_forward.30} parent=0 // pred_fallthru
    _
  // Predicated region
  $region6: #{yolov8_head_forward.30} parent=0 // pred_check
    _
  $region7: #{yolov8_head_forward.30} parent=0 // pred_check_branch
    %11 = sbr.rel (0) target = $region9
  $region8: #{yolov8_head_forward.30} parent=0 // pred_region
    _
  $region9: #{yolov8_head_forward.30} parent=0 // pred_fallthru
    _
  // Predicated region
  $region10: #{yolov8_head_forward.30} parent=0 // pred_check
    _
  $region11: #{yolov8_head_forward.30} parent=0 // pred_check_branch
    %13 = sbr.rel (0) target = $region13
  $region12: #{yolov8_head_forward.30} parent=0 // pred_region
    _
  $region13: #{yolov8_head_forward.30} parent=0 // pred_fallthru
    _
  %v15 = vld [vmem:[%s0] sm:$0xff]
  %v16 = vld [vmem:[%s0 + $0x8] sm:$0xff]
  %v17 = vld [vmem:[%s0 + $0x10] sm:$0xff]
  %v18 = vld [vmem:[%s0 + $0x18] sm:$0xff]
  %v19 = vld [vmem:[%s0 + $0x20] sm:$0xff]
  %v20 = vld [vmem:[%s0 + $0x28] sm:$0xff]
  %v21 = vld [vmem:[%s0 + $0x30] sm:$0xff]
  %v22 = vld [vmem:[%s0 + $0x38] sm:$0xff]
  %v23 = vld [vmem:[%s0 + $0x40] sm:$0xff]
  %v24 = vld [vmem:[%s0 + $0x48] sm:$0xff]
  %v25 = vld [vmem:[%s0 + $0x50] sm:$0xff]
  %v26 = vld [vmem:[%s0 + $0x58] sm:$0xff]
  %v27 = vld [vmem:[%s0 + $0x60] sm:$0xff]
  %v28 = vld [vmem:[%s0 + $0x68] sm:$0xff]
  %v29 = vld [vmem:[%s0 + $0x70] sm:$0xff]
  %v30 = vld [vmem:[%s0 + $0x78] sm:$0xff]
  %v31 = vld [vmem:[%s1] sm:$0xf]
  %v32 = vld [vmem:[%s1 + $0x4] sm:$0xf]
  %v33 = vld [vmem:[%s1 + $0x8] sm:$0xf]
  %v34 = vld [vmem:[%s1 + $0xc] sm:$0xf]
  %v35 = vld [vmem:[%s1 + $0x10] sm:$0xf]
  %v36 = vld [vmem:[%s1 + $0x14] sm:$0xf]
  %v37 = vld [vmem:[%s1 + $0x18] sm:$0xf]
  %v38 = vld [vmem:[%s1 + $0x1c] sm:$0xf]
  %v39 = vld [vmem:[%s1 + $0x20] sm:$0xf]
  %v40 = vld [vmem:[%s1 + $0x24] sm:$0xf]
  %v41 = vld [vmem:[%s1 + $0x28] sm:$0xf]
  %v42 = vld [vmem:[%s1 + $0x2c] sm:$0xf]
  %v43 = vld [vmem:[%s1 + $0x30] sm:$0xf]
  %v44 = vld [vmem:[%s1 + $0x34] sm:$0xf]
  %v45 = vld [vmem:[%s1 + $0x38] sm:$0xf]
  %v46 = vld [vmem:[%s1 + $0x3c] sm:$0xf]
  %v47 = vld [vmem:[%s1 + $0x40] sm:$0xf]
  %v48 = vld [vmem:[%s1 + $0x44] sm:$0xf]
  %v49 = vld [vmem:[%s2] sm:$0x1]
  %v51 = vlaneseq
  %v52 = vshrl.u32 %v51, 7
  %v53 = vsub.s32 0, %v52
  %v54 = vrot.slane %v49, %v53
  %v72 = vunpack.c.l.b16 %v15
  %v73 = vunpack.c.h.b16 %v15
  %v74 = vunpack.c.l.b16 %v16
  %v75 = vunpack.c.h.b16 %v16
  %v76 = vunpack.c.l.b16 %v17
  %v77 = vunpack.c.h.b16 %v17
  %v78 = vunpack.c.l.b16 %v18
  %v79 = vunpack.c.h.b16 %v18
  %v80 = vunpack.c.l.b16 %v19
  %v81 = vunpack.c.h.b16 %v19
  %v82 = vunpack.c.l.b16 %v20
  %v83 = vunpack.c.h.b16 %v20
  %v84 = vunpack.c.l.b16 %v21
  %v85 = vunpack.c.h.b16 %v21
  %v86 = vunpack.c.l.b16 %v22
  %v87 = vunpack.c.h.b16 %v22
  %v88 = vunpack.c.l.b16 %v23
  %v89 = vunpack.c.h.b16 %v23
  %v90 = vunpack.c.l.b16 %v24
  %v91 = vunpack.c.h.b16 %v24
  %v92 = vunpack.c.l.b16 %v25
  %v93 = vunpack.c.h.b16 %v25
  %v94 = vunpack.c.l.b16 %v26
  %v95 = vunpack.c.h.b16 %v26
  %v96 = vunpack.c.l.b16 %v27
  %v97 = vunpack.c.h.b16 %v27
  %v98 = vunpack.c.l.b16 %v28
  %v99 = vunpack.c.h.b16 %v28
  %v100 = vunpack.c.l.b16 %v29
  %v101 = vunpack.c.h.b16 %v29
  %v102 = vunpack.c.l.b16 %v30
  %v103 = vunpack.c.h.b16 %v30
  %v104 = vpack.c.b16 %v74, %v72
  %v105 = vpack.c.b16 %v75, %v73
  %v106 = vpack.c.b16 %v78, %v76
  %v107 = vpack.c.b16 %v79, %v77
  %v108 = vpack.c.b16 %v82, %v80
  %v109 = vpack.c.b16 %v83, %v81
  %v110 = vpack.c.b16 %v86, %v84
  %v111 = vpack.c.b16 %v87, %v85
  %v112 = vpack.c.b16 %v90, %v88
  %v113 = vpack.c.b16 %v91, %v89
  %v114 = vpack.c.b16 %v94, %v92
  %v115 = vpack.c.b16 %v95, %v93
  %v116 = vpack.c.b16 %v98, %v96
  %v117 = vpack.c.b16 %v99, %v97
  %v118 = vpack.c.b16 %v102, %v100
  %v119 = vpack.c.b16 %v103, %v101
  %v146 = vunpack.c.l.b16 %v31
  %v147 = vunpack.c.l.b16 %v32
  %v148 = vunpack.c.l.b16 %v33
  %v149 = vunpack.c.l.b16 %v34
  %v150 = vunpack.c.l.b16 %v35
  %v151 = vunpack.c.l.b16 %v36
  %v152 = vunpack.c.l.b16 %v37
  %v153 = vunpack.c.l.b16 %v38
  %v154 = vunpack.c.l.b16 %v39
  %v155 = vunpack.c.l.b16 %v40
  %v156 = vunpack.c.l.b16 %v41
  %v157 = vunpack.c.l.b16 %v42
  %v158 = vunpack.c.l.b16 %v43
  %v159 = vunpack.c.l.b16 %v44
  %v160 = vunpack.c.l.b16 %v45
  %v161 = vunpack.c.l.b16 %v46
  %v162 = vunpack.c.l.b16 %v47
  %v163 = vunpack.c.l.b16 %v48
  %v164 = vpack.c.b16 %v147, %v146
  %v165 = vpack.c.b16 %v149, %v148
  %v166 = vpack.c.b16 %v151, %v150
  %v167 = vpack.c.b16 %v153, %v152
  %v168 = vpack.c.b16 %v155, %v154
  %v169 = vpack.c.b16 %v157, %v156
  %v170 = vpack.c.b16 %v159, %v158
  %v171 = vpack.c.b16 %v161, %v160
  %v172 = vpack.c.b16 %v163, %v162
  %vm182 = vcmask 130048
  %v184 = vsel %vm182, %v105, 0
  %v187 = vsel %vm182, %v107, 0
  %v190 = vsel %vm182, %v109, 0
  %v193 = vsel %vm182, %v111, 0
  %v196 = vsel %vm182, %v113, 0
  %v199 = vsel %vm182, %v115, 0
  %v202 = vsel %vm182, %v117, 0
  %v205 = vsel %vm182, %v119, 0
  %207 = vmatprep.subr.bf16.mxu0 0
  %208 = vmatpush1.bf16.msra.mxu0 %v171
  %209 = vmatprep.subr.bf16.mxu0 0
  %210 = vmatpush1.bf16.msra.mxu0 %v170
  %211 = vmatprep.subr.bf16.mxu0 0
  %212 = vmatpush1.bf16.msra.mxu0 %v169
  %213 = vmatprep.subr.bf16.mxu0 0
  %214 = vmatpush1.bf16.msra.mxu0 %v168
  %215 = vmatprep.subr.bf16.mxu0 0
  %216 = vmatpush1.bf16.msra.mxu0 %v167
  %217 = vmatprep.subr.bf16.mxu0 0
  %218 = vmatpush1.bf16.msra.mxu0 %v166
  %219 = vmatprep.subr.bf16.mxu0 0
  %220 = vmatpush1.bf16.msra.mxu0 %v165
  %221 = vmatprep.subr.bf16.mxu0 0
  %222 = vmatpush1.bf16.msra.mxu0 %v164
  %223 = vmatprep.subr.bf16.mxu0 0
  %224 = vmatpush2.bf16.msra.mxu0 0
  %225 = vmatprep.subr.bf16.mxu0 0
  %226 = vmatpush2.bf16.msra.mxu0 0
  %227 = vmatprep.subr.bf16.mxu0 0
  %228 = vmatpush2.bf16.msra.mxu0 0
  %229 = vmatprep.subr.bf16.mxu0 0
  %230 = vmatpush2.bf16.msra.mxu0 0
  %231 = vmatprep.subr.bf16.mxu0 0
  %232 = vmatpush2.bf16.msra.mxu0 0
  %233 = vmatprep.subr.bf16.mxu0 0
  %234 = vmatpush2.bf16.msra.mxu0 0
  %235 = vmatprep.subr.bf16.mxu0 0
  %236 = vmatpush2.bf16.msra.mxu0 0
  %237 = vmatprep.subr.bf16.mxu0 0
  %238 = vmatpush2.bf16.msra.mxu0 %v172
  %239 = vmatprep.mubr.bf16.mxu0 %v184
  %240 = vmatmul.mubr.bf16.gmra.mxu0 %v104
  %v241 = vpop.f32.mrf.mxu0
  %v242 = vadd.f32 %v54, %v241
  %v243 = vpop.f32.mrf.mxu0
  %v244 = vpop.f32.mrf.mxu0
  %v245 = vadd.f32 %v54, %v244
  %v246 = vpop.f32.mrf.mxu0
  %247 = vmatprep.mubr.bf16.mxu0 %v187
  %248 = vmatmul.mubr.bf16.gmra.mxu0 %v106
  %v249 = vpop.f32.mrf.mxu0
  %v250 = vadd.f32 %v54, %v249
  %v251 = vpop.f32.mrf.mxu0
  %v252 = vpop.f32.mrf.mxu0
  %v253 = vadd.f32 %v54, %v252
  %v254 = vpop.f32.mrf.mxu0
  %255 = vmatprep.mubr.bf16.mxu0 %v190
  %256 = vmatmul.mubr.bf16.gmra.mxu0 %v108
  %v257 = vpop.f32.mrf.mxu0
  %v258 = vadd.f32 %v54, %v257
  %v259 = vpop.f32.mrf.mxu0
  %v260 = vpop.f32.mrf.mxu0
  %v261 = vadd.f32 %v54, %v260
  %v262 = vpop.f32.mrf.mxu0
  %263 = vmatprep.mubr.bf16.mxu0 %v193
  %264 = vmatmul.mubr.bf16.gmra.mxu0 %v110
  %v265 = vpop.f32.mrf.mxu0
  %v266 = vadd.f32 %v54, %v265
  %v267 = vpop.f32.mrf.mxu0
  %v268 = vpop.f32.mrf.mxu0
  %v269 = vadd.f32 %v54, %v268
  %v270 = vpop.f32.mrf.mxu0
  %271 = vmatprep.mubr.bf16.mxu0 %v196
  %272 = vmatmul.mubr.bf16.gmra.mxu0 %v112
  %v273 = vpop.f32.mrf.mxu0
  %v274 = vadd.f32 %v54, %v273
  %v275 = vpop.f32.mrf.mxu0
  %v276 = vpop.f32.mrf.mxu0
  %v277 = vadd.f32 %v54, %v276
  %v278 = vpop.f32.mrf.mxu0
  %279 = vmatprep.mubr.bf16.mxu0 %v199
  %280 = vmatmul.mubr.bf16.gmra.mxu0 %v114
  %v281 = vpop.f32.mrf.mxu0
  %v282 = vadd.f32 %v54, %v281
  %v283 = vpop.f32.mrf.mxu0
  %v284 = vpop.f32.mrf.mxu0
  %v285 = vadd.f32 %v54, %v284
  %v286 = vpop.f32.mrf.mxu0
  %287 = vmatprep.mubr.bf16.mxu0 %v202
  %288 = vmatmul.mubr.bf16.gmra.mxu0 %v116
  %v289 = vpop.f32.mrf.mxu0
  %v290 = vadd.f32 %v54, %v289
  %v291 = vpop.f32.mrf.mxu0
  %v292 = vpop.f32.mrf.mxu0
  %v293 = vadd.f32 %v54, %v292
  %v294 = vpop.f32.mrf.mxu0
  %295 = vmatprep.mubr.bf16.mxu0 %v205
  %296 = vmatmul.mubr.bf16.gmra.mxu0 %v118
  %v297 = vpop.f32.mrf.mxu0
  %v298 = vadd.f32 %v54, %v297
  %v299 = vpop.f32.mrf.mxu0
  %v300 = vpop.f32.mrf.mxu0
  %v301 = vadd.f32 %v54, %v300
  %v302 = vpop.f32.mrf.mxu0
  %303 = vdwg.mxu0
  %v304 = vxor.u32 %v242, 2147483648
  %v305 = vxor.u32 %v245, 2147483648
  %v306 = vxor.u32 %v250, 2147483648
  %v307 = vxor.u32 %v253, 2147483648
  %v308 = vxor.u32 %v258, 2147483648
  %v309 = vxor.u32 %v261, 2147483648
  %v310 = vxor.u32 %v266, 2147483648
  %v311 = vxor.u32 %v269, 2147483648
  %v312 = vxor.u32 %v274, 2147483648
  %v313 = vxor.u32 %v277, 2147483648
  %v314 = vxor.u32 %v282, 2147483648
  %v315 = vxor.u32 %v285, 2147483648
  %v316 = vxor.u32 %v290, 2147483648
  %v317 = vxor.u32 %v293, 2147483648
  %v318 = vxor.u32 %v298, 2147483648
  %v319 = vxor.u32 %v301, 2147483648
  %v320 = vmul.f32 %v304, 1.442695
  %v321 = vpow.pop %v320
  %v322 = vmul.f32 %v305, 1.442695
  %v323 = vpow.pop %v322
  %v324 = vmul.f32 %v306, 1.442695
  %v325 = vpow.pop %v324
  %v326 = vmul.f32 %v307, 1.442695
  %v327 = vpow.pop %v326
  %v328 = vmul.f32 %v308, 1.442695
  %v329 = vpow.pop %v328
  %v330 = vmul.f32 %v309, 1.442695
  %v331 = vpow.pop %v330
  %v332 = vmul.f32 %v310, 1.442695
  %v333 = vpow.pop %v332
  %v334 = vmul.f32 %v311, 1.442695
  %v335 = vpow.pop %v334
  %v336 = vmul.f32 %v312, 1.442695
  %v337 = vpow.pop %v336
  %v338 = vmul.f32 %v313, 1.442695
  %v339 = vpow.pop %v338
  %v340 = vmul.f32 %v314, 1.442695
  %v341 = vpow.pop %v340
  %v342 = vmul.f32 %v315, 1.442695
  %v343 = vpow.pop %v342
  %v344 = vmul.f32 %v316, 1.442695
  %v345 = vpow.pop %v344
  %v346 = vmul.f32 %v317, 1.442695
  %v347 = vpow.pop %v346
  %v348 = vmul.f32 %v318, 1.442695
  %v349 = vpow.pop %v348
  %v350 = vmul.f32 %v319, 1.442695
  %v351 = vpow.pop %v350
  %v352 = vadd.f32 %v321, 1.0
  %v353 = vadd.f32 %v323, 1.0
  %v354 = vadd.f32 %v325, 1.0
  %v355 = vadd.f32 %v327, 1.0
  %v356 = vadd.f32 %v329, 1.0
  %v357 = vadd.f32 %v331, 1.0
  %v358 = vadd.f32 %v333, 1.0
  %v359 = vadd.f32 %v335, 1.0
  %v360 = vadd.f32 %v337, 1.0
  %v361 = vadd.f32 %v339, 1.0
  %v362 = vadd.f32 %v341, 1.0
  %v363 = vadd.f32 %v343, 1.0
  %v364 = vadd.f32 %v345, 1.0
  %v365 = vadd.f32 %v347, 1.0
  %v366 = vadd.f32 %v349, 1.0
  %v367 = vadd.f32 %v351, 1.0
  %v368 = vrcp.pop %v352
  %v369 = vmul.f32 1.0, %v368
  %v370 = vrcp.pop %v353
  %v371 = vmul.f32 1.0, %v370
  %v372 = vrcp.pop %v354
  %v373 = vmul.f32 1.0, %v372
  %v374 = vrcp.pop %v355
  %v375 = vmul.f32 1.0, %v374
  %v376 = vrcp.pop %v356
  %v377 = vmul.f32 1.0, %v376
  %v378 = vrcp.pop %v357
  %v379 = vmul.f32 1.0, %v378
  %v380 = vrcp.pop %v358
  %v381 = vmul.f32 1.0, %v380
  %v382 = vrcp.pop %v359
  %v383 = vmul.f32 1.0, %v382
  %v384 = vrcp.pop %v360
  %v385 = vmul.f32 1.0, %v384
  %v386 = vrcp.pop %v361
  %v387 = vmul.f32 1.0, %v386
  %v388 = vrcp.pop %v362
  %v389 = vmul.f32 1.0, %v388
  %v390 = vrcp.pop %v363
  %v391 = vmul.f32 1.0, %v390
  %v392 = vrcp.pop %v364
  %v393 = vmul.f32 1.0, %v392
  %v394 = vrcp.pop %v365
  %v395 = vmul.f32 1.0, %v394
  %v396 = vrcp.pop %v366
  %v397 = vmul.f32 1.0, %v396
  %v398 = vrcp.pop %v367
  %v399 = vmul.f32 1.0, %v398
  %v400 = vmul.f32 %v242, %v369
  %v401 = vmul.f32 %v245, %v371
  %v402 = vmul.f32 %v250, %v373
  %v403 = vmul.f32 %v253, %v375
  %v404 = vmul.f32 %v258, %v377
  %v405 = vmul.f32 %v261, %v379
  %v406 = vmul.f32 %v266, %v381
  %v407 = vmul.f32 %v269, %v383
  %v408 = vmul.f32 %v274, %v385
  %v409 = vmul.f32 %v277, %v387
  %v410 = vmul.f32 %v282, %v389
  %v411 = vmul.f32 %v285, %v391
  %v412 = vmul.f32 %v290, %v393
  %v413 = vmul.f32 %v293, %v395
  %v414 = vmul.f32 %v298, %v397
  %v415 = vmul.f32 %v301, %v399
  %v416 = vpack.c.bf16 %v401, %v400
  %v417 = vpack.c.bf16 %v403, %v402
  %v418 = vpack.c.bf16 %v405, %v404
  %v419 = vpack.c.bf16 %v407, %v406
  %v420 = vpack.c.bf16 %v409, %v408
  %v421 = vpack.c.bf16 %v411, %v410
  %v422 = vpack.c.bf16 %v413, %v412
  %v423 = vpack.c.bf16 %v415, %v414
  %v432 = vunpack.c.l.b16 %v416
  %v433 = vunpack.c.h.b16 %v416
  %v434 = vunpack.c.l.b16 %v417
  %v435 = vunpack.c.h.b16 %v417
  %v436 = vunpack.c.l.b16 %v418
  %v437 = vunpack.c.h.b16 %v418
  %v438 = vunpack.c.l.b16 %v419
  %v439 = vunpack.c.h.b16 %v419
  %v440 = vunpack.c.l.b16 %v420
  %v441 = vunpack.c.h.b16 %v420
  %v442 = vunpack.c.l.b16 %v421
  %v443 = vunpack.c.h.b16 %v421
  %v444 = vunpack.c.l.b16 %v422
  %v445 = vunpack.c.h.b16 %v422
  %v446 = vunpack.c.l.b16 %v423
  %v447 = vunpack.c.h.b16 %v423
  %v448 = vpack.c.b16 %v432, %v432
  %v449 = vpack.c.b16 %v433, %v433
  %v450 = vpack.c.b16 %v434, %v434
  %v451 = vpack.c.b16 %v435, %v435
  %v452 = vpack.c.b16 %v436, %v436
  %v453 = vpack.c.b16 %v437, %v437
  %v454 = vpack.c.b16 %v438, %v438
  %v455 = vpack.c.b16 %v439, %v439
  %v456 = vpack.c.b16 %v440, %v440
  %v457 = vpack.c.b16 %v441, %v441
  %v458 = vpack.c.b16 %v442, %v442
  %v459 = vpack.c.b16 %v443, %v443
  %v460 = vpack.c.b16 %v444, %v444
  %v461 = vpack.c.b16 %v445, %v445
  %v462 = vpack.c.b16 %v446, %v446
  %v463 = vpack.c.b16 %v447, %v447
  %vm480 = vcmask 60416
  %481 = vst.msk [vmem:[%s3] sm:$0xf] %vm480, %v448
  %482 = vst.msk [vmem:[%s3 + $0x4] sm:$0xf] %vm480, %v449
  %483 = vst.msk [vmem:[%s3 + $0x8] sm:$0xf] %vm480, %v450
  %484 = vst.msk [vmem:[%s3 + $0xc] sm:$0xf] %vm480, %v451
  %485 = vst.msk [vmem:[%s3 + $0x10] sm:$0xf] %vm480, %v452
  %486 = vst.msk [vmem:[%s3 + $0x14] sm:$0xf] %vm480, %v453
  %487 = vst.msk [vmem:[%s3 + $0x18] sm:$0xf] %vm480, %v454
  %488 = vst.msk [vmem:[%s3 + $0x1c] sm:$0xf] %vm480, %v455
  %489 = vst.msk [vmem:[%s3 + $0x20] sm:$0xf] %vm480, %v456
  %490 = vst.msk [vmem:[%s3 + $0x24] sm:$0xf] %vm480, %v457
  %491 = vst.msk [vmem:[%s3 + $0x28] sm:$0xf] %vm480, %v458
  %492 = vst.msk [vmem:[%s3 + $0x2c] sm:$0xf] %vm480, %v459
  %493 = vst.msk [vmem:[%s3 + $0x30] sm:$0xf] %vm480, %v460
  %494 = vst.msk [vmem:[%s3 + $0x34] sm:$0xf] %vm480, %v461
  %495 = vst.msk [vmem:[%s3 + $0x38] sm:$0xf] %vm480, %v462
  %496 = vst.msk [vmem:[%s3 + $0x3c] sm:$0xf] %vm480, %v463
  // Predicated region
  $region14: #{yolov8_head_forward.30} parent=0 // pred_check
    _
  $region15: #{yolov8_head_forward.30} parent=0 // pred_check_branch
    %498 = sbr.rel (0) target = $region17
  $region16: #{yolov8_head_forward.30} parent=0 // pred_region
    _
  $region17: #{yolov8_head_forward.30} parent=0 // pred_fallthru
    _
  // Predicated region
  $region18: #{yolov8_head_forward.30} parent=0 // pred_check
    _
  $region19: #{yolov8_head_forward.30} parent=0 // pred_check_branch
    %500 = sbr.rel (0) target = $region21
  $region20: #{yolov8_head_forward.30} parent=0 // pred_region
    _
  $region21: #{yolov8_head_forward.30} parent=0 // pred_fallthru
    _

// kernel: yolov8_head_forward.31
$region0: #{yolov8_head_forward.31}
  #allocation0 [shape = 'u32[]', space=smem, size = 0x4, offset = 0x4, fixed_abs, tag = 'smem constant byte address 0x4 - core index']
  #allocation1 [shape = 'u32[144,128]{1,0:T(1,128)}', space=vmem, size = 0x12000, scoped, tag = 'internal scratch']
  %s0 = inlined_call_operand.vmem [shape: bf16[128,72], index: 0, kind: input, shape index: {}]
  %s1 = inlined_call_operand.vmem [shape: bf16[72,16], index: 1, kind: input, shape index: {}]
  %s2 = inlined_call_operand.vmem [shape: f32[1,16], index: 2, kind: input, shape index: {}]
  %s3 = inlined_call_operand.vmem [shape: bf16[128,16], index: 3, kind: output, shape index: {}]
  %s4 = sld [smem:[#allocation0]]
  $region22: #{yolov8_head_forward.31} parent=0
    _
  %s6 = ssub.s32 1, %s4
  %s7 = scalar_select 0, %s6, %s4
  // Predicated region
  $region2: #{yolov8_head_forward.31} parent=0 // pred_check
    _
  $region3: #{yolov8_head_forward.31} parent=0 // pred_check_branch
    %9 = sbr.rel (0) target = $region5
  $region4: #{yolov8_head_forward.31} parent=0 // pred_region
    _
  $region5: #{yolov8_head_forward.31} parent=0 // pred_fallthru
    _
  // Predicated region
  $region6: #{yolov8_head_forward.31} parent=0 // pred_check
    _
  $region7: #{yolov8_head_forward.31} parent=0 // pred_check_branch
    %11 = sbr.rel (0) target = $region9
  $region8: #{yolov8_head_forward.31} parent=0 // pred_region
    _
  $region9: #{yolov8_head_forward.31} parent=0 // pred_fallthru
    _
  // Predicated region
  $region10: #{yolov8_head_forward.31} parent=0 // pred_check
    _
  $region11: #{yolov8_head_forward.31} parent=0 // pred_check_branch
    %13 = sbr.rel (0) target = $region13
  $region12: #{yolov8_head_forward.31} parent=0 // pred_region
    _
  $region13: #{yolov8_head_forward.31} parent=0 // pred_fallthru
    _
  %v15 = vld [vmem:[%s0] sm:$0xf]
  %v16 = vld [vmem:[%s0 + $0x4] sm:$0xf]
  %v17 = vld [vmem:[%s0 + $0x8] sm:$0xf]
  %v18 = vld [vmem:[%s0 + $0xc] sm:$0xf]
  %v19 = vld [vmem:[%s0 + $0x10] sm:$0xf]
  %v20 = vld [vmem:[%s0 + $0x14] sm:$0xf]
  %v21 = vld [vmem:[%s0 + $0x18] sm:$0xf]
  %v22 = vld [vmem:[%s0 + $0x1c] sm:$0xf]
  %v23 = vld [vmem:[%s0 + $0x20] sm:$0xf]
  %v24 = vld [vmem:[%s0 + $0x24] sm:$0xf]
  %v25 = vld [vmem:[%s0 + $0x28] sm:$0xf]
  %v26 = vld [vmem:[%s0 + $0x2c] sm:$0xf]
  %v27 = vld [vmem:[%s0 + $0x30] sm:$0xf]
  %v28 = vld [vmem:[%s0 + $0x34] sm:$0xf]
  %v29 = vld [vmem:[%s0 + $0x38] sm:$0xf]
  %v30 = vld [vmem:[%s0 + $0x3c] sm:$0xf]
  %v31 = vld [vmem:[%s1] sm:$0xf]
  %v32 = vld [vmem:[%s1 + $0x4] sm:$0xf]
  %v33 = vld [vmem:[%s1 + $0x8] sm:$0xf]
  %v34 = vld [vmem:[%s1 + $0xc] sm:$0xf]
  %v35 = vld [vmem:[%s1 + $0x10] sm:$0xf]
  %v36 = vld [vmem:[%s1 + $0x14] sm:$0xf]
  %v37 = vld [vmem:[%s1 + $0x18] sm:$0xf]
  %v38 = vld [vmem:[%s1 + $0x1c] sm:$0xf]
  %v39 = vld [vmem:[%s1 + $0x20] sm:$0xf]
  %v40 = vld [vmem:[%s2] sm:$0x1]
  %v42 = vlaneseq
  %v43 = vshrl.u32 %v42, 7
  %v44 = vsub.s32 0, %v43
  %v45 = vrot.slane %v40, %v44
  %v63 = vunpack.c.l.b16 %v15
  %v64 = vunpack.c.l.b16 %v16
  %v65 = vunpack.c.l.b16 %v17
  %v66 = vunpack.c.l.b16 %v18
  %v67 = vunpack.c.l.b16 %v19
  %v68 = vunpack.c.l.b16 %v20
  %v69 = vunpack.c.l.b16 %v21
  %v70 = vunpack.c.l.b16 %v22
  %v71 = vunpack.c.l.b16 %v23
  %v72 = vunpack.c.l.b16 %v24
  %v73 = vunpack.c.l.b16 %v25
  %v74 = vunpack.c.l.b16 %v26
  %v75 = vunpack.c.l.b16 %v27
  %v76 = vunpack.c.l.b16 %v28
  %v77 = vunpack.c.l.b16 %v29
  %v78 = vunpack.c.l.b16 %v30
  %v79 = vpack.c.b16 %v64, %v63
  %v80 = vpack.c.b16 %v66, %v65
  %v81 = vpack.c.b16 %v68, %v67
  %v82 = vpack.c.b16 %v70, %v69
  %v83 = vpack.c.b16 %v72, %v71
  %v84 = vpack.c.b16 %v74, %v73
  %v85 = vpack.c.b16 %v76, %v75
  %v86 = vpack.c.b16 %v78, %v77
  %v96 = vunpack.c.l.b16 %v31
  %v97 = vunpack.c.l.b16 %v32
  %v98 = vunpack.c.l.b16 %v33
  %v99 = vunpack.c.l.b16 %v34
  %v100 = vunpack.c.l.b16 %v35
  %v101 = vunpack.c.l.b16 %v36
  %v102 = vunpack.c.l.b16 %v37
  %v103 = vunpack.c.l.b16 %v38
  %v104 = vunpack.c.l.b16 %v39
  %v105 = vpack.c.b16 %v97, %v96
  %v106 = vpack.c.b16 %v99, %v98
  %v107 = vpack.c.b16 %v101, %v100
  %v108 = vpack.c.b16 %v103, %v102
  %v109 = vpack.c.b16 %v104, %v104
  %vm114 = vcmask 588800
  %v116 = vsel %vm114, %v79, 0
  %v119 = vsel %vm114, %v80, 0
  %v122 = vsel %vm114, %v81, 0
  %v125 = vsel %vm114, %v82, 0
  %v128 = vsel %vm114, %v83, 0
  %v131 = vsel %vm114, %v84, 0
  %v134 = vsel %vm114, %v85, 0
  %v137 = vsel %vm114, %v86, 0
  %vm139 = vcmask 1043456
  %v141 = vsel %vm139, %v109, 0
  %143 = vmatprep.subr.bf16.mxu0 0
  %144 = vmatpush1.bf16.msra.mxu0 0
  %145 = vmatprep.subr.bf16.mxu0 0
  %146 = vmatpush1.bf16.msra.mxu0 0
  %147 = vmatprep.subr.bf16.mxu0 0
  %148 = vmatpush1.bf16.msra.mxu0 0
  %149 = vmatprep.subr.bf16.mxu0 0
  %150 = vmatpush1.bf16.msra.mxu0 %v141
  %151 = vmatprep.subr.bf16.mxu0 0
  %152 = vmatpush1.bf16.msra.mxu0 %v108
  %153 = vmatprep.subr.bf16.mxu0 0
  %154 = vmatpush1.bf16.msra.mxu0 %v107
  %155 = vmatprep.subr.bf16.mxu0 0
  %156 = vmatpush1.bf16.msra.mxu0 %v106
  %157 = vmatprep.subr.bf16.mxu0 0
  %158 = vmatpush1.bf16.msra.mxu0 %v105
  %159 = vmatprep.subr.bf16.mxu0 0
  %160 = vmatpush2.bf16.msra.mxu0 0
  %161 = vmatprep.subr.bf16.mxu0 0
  %162 = vmatpush2.bf16.msra.mxu0 0
  %163 = vmatprep.subr.bf16.mxu0 0
  %164 = vmatpush2.bf16.msra.mxu0 0
  %165 = vmatprep.subr.bf16.mxu0 0
  %166 = vmatpush2.bf16.msra.mxu0 0
  %167 = vmatprep.subr.bf16.mxu0 0
  %168 = vmatpush2.bf16.msra.mxu0 0
  %169 = vmatprep.subr.bf16.mxu0 0
  %170 = vmatpush2.bf16.msra.mxu0 0
  %171 = vmatprep.subr.bf16.mxu0 0
  %172 = vmatpush2.bf16.msra.mxu0 0
  %173 = vmatprep.subr.bf16.mxu0 0
  %174 = vmatpush2.bf16.msra.mxu0 0
  %175 = vmatprep.mubr.bf16.mxu0 0
  %176 = vmatmul.mubr.bf16.gmra.mxu0 %v116
  %v177 = vpop.f32.mrf.mxu0
  %v178 = vadd.f32 %v45, %v177
  %v179 = vpop.f32.mrf.mxu0
  %v180 = vpop.f32.mrf.mxu0
  %v181 = vadd.f32 %v45, %v180
  %v182 = vpop.f32.mrf.mxu0
  %183 = vmatprep.mubr.bf16.mxu0 0
  %184 = vmatmul.mubr.bf16.gmra.mxu0 %v119
  %v185 = vpop.f32.mrf.mxu0
  %v186 = vadd.f32 %v45, %v185
  %v187 = vpop.f32.mrf.mxu0
  %v188 = vpop.f32.mrf.mxu0
  %v189 = vadd.f32 %v45, %v188
  %v190 = vpop.f32.mrf.mxu0
  %191 = vmatprep.mubr.bf16.mxu0 0
  %192 = vmatmul.mubr.bf16.gmra.mxu0 %v122
  %v193 = vpop.f32.mrf.mxu0
  %v194 = vadd.f32 %v45, %v193
  %v195 = vpop.f32.mrf.mxu0
  %v196 = vpop.f32.mrf.mxu0
  %v197 = vadd.f32 %v45, %v196
  %v198 = vpop.f32.mrf.mxu0
  %199 = vmatprep.mubr.bf16.mxu0 0
  %200 = vmatmul.mubr.bf16.gmra.mxu0 %v125
  %v201 = vpop.f32.mrf.mxu0
  %v202 = vadd.f32 %v45, %v201
  %v203 = vpop.f32.mrf.mxu0
  %v204 = vpop.f32.mrf.mxu0
  %v205 = vadd.f32 %v45, %v204
  %v206 = vpop.f32.mrf.mxu0
  %207 = vmatprep.mubr.bf16.mxu0 0
  %208 = vmatmul.mubr.bf16.gmra.mxu0 %v128
  %v209 = vpop.f32.mrf.mxu0
  %v210 = vadd.f32 %v45, %v209
  %v211 = vpop.f32.mrf.mxu0
  %v212 = vpop.f32.mrf.mxu0
  %v213 = vadd.f32 %v45, %v212
  %v214 = vpop.f32.mrf.mxu0
  %215 = vmatprep.mubr.bf16.mxu0 0
  %216 = vmatmul.mubr.bf16.gmra.mxu0 %v131
  %v217 = vpop.f32.mrf.mxu0
  %v218 = vadd.f32 %v45, %v217
  %v219 = vpop.f32.mrf.mxu0
  %v220 = vpop.f32.mrf.mxu0
  %v221 = vadd.f32 %v45, %v220
  %v222 = vpop.f32.mrf.mxu0
  %223 = vmatprep.mubr.bf16.mxu0 0
  %224 = vmatmul.mubr.bf16.gmra.mxu0 %v134
  %v225 = vpop.f32.mrf.mxu0
  %v226 = vadd.f32 %v45, %v225
  %v227 = vpop.f32.mrf.mxu0
  %v228 = vpop.f32.mrf.mxu0
  %v229 = vadd.f32 %v45, %v228
  %v230 = vpop.f32.mrf.mxu0
  %231 = vmatprep.mubr.bf16.mxu0 0
  %232 = vmatmul.mubr.bf16.gmra.mxu0 %v137
  %v233 = vpop.f32.mrf.mxu0
  %v234 = vadd.f32 %v45, %v233
  %v235 = vpop.f32.mrf.mxu0
  %v236 = vpop.f32.mrf.mxu0
  %v237 = vadd.f32 %v45, %v236
  %v238 = vpop.f32.mrf.mxu0
  %239 = vdwg.mxu0
  %v240 = vxor.u32 %v178, 2147483648
  %v241 = vxor.u32 %v181, 2147483648
  %v242 = vxor.u32 %v186, 2147483648
  %v243 = vxor.u32 %v189, 2147483648
  %v244 = vxor.u32 %v194, 2147483648
  %v245 = vxor.u32 %v197, 2147483648
  %v246 = vxor.u32 %v202, 2147483648
  %v247 = vxor.u32 %v205, 2147483648
  %v248 = vxor.u32 %v210, 2147483648
  %v249 = vxor.u32 %v213, 2147483648
  %v250 = vxor.u32 %v218, 2147483648
  %v251 = vxor.u32 %v221, 2147483648
  %v252 = vxor.u32 %v226, 2147483648
  %v253 = vxor.u32 %v229, 2147483648
  %v254 = vxor.u32 %v234, 2147483648
  %v255 = vxor.u32 %v237, 2147483648
  %v256 = vmul.f32 %v240, 1.442695
  %v257 = vpow.pop %v256
  %v258 = vmul.f32 %v241, 1.442695
  %v259 = vpow.pop %v258
  %v260 = vmul.f32 %v242, 1.442695
  %v261 = vpow.pop %v260
  %v262 = vmul.f32 %v243, 1.442695
  %v263 = vpow.pop %v262
  %v264 = vmul.f32 %v244, 1.442695
  %v265 = vpow.pop %v264
  %v266 = vmul.f32 %v245, 1.442695
  %v267 = vpow.pop %v266
  %v268 = vmul.f32 %v246, 1.442695
  %v269 = vpow.pop %v268
  %v270 = vmul.f32 %v247, 1.442695
  %v271 = vpow.pop %v270
  %v272 = vmul.f32 %v248, 1.442695
  %v273 = vpow.pop %v272
  %v274 = vmul.f32 %v249, 1.442695
  %v275 = vpow.pop %v274
  %v276 = vmul.f32 %v250, 1.442695
  %v277 = vpow.pop %v276
  %v278 = vmul.f32 %v251, 1.442695
  %v279 = vpow.pop %v278
  %v280 = vmul.f32 %v252, 1.442695
  %v281 = vpow.pop %v280
  %v282 = vmul.f32 %v253, 1.442695
  %v283 = vpow.pop %v282
  %v284 = vmul.f32 %v254, 1.442695
  %v285 = vpow.pop %v284
  %v286 = vmul.f32 %v255, 1.442695
  %v287 = vpow.pop %v286
  %v288 = vadd.f32 %v257, 1.0
  %v289 = vadd.f32 %v259, 1.0
  %v290 = vadd.f32 %v261, 1.0
  %v291 = vadd.f32 %v263, 1.0
  %v292 = vadd.f32 %v265, 1.0
  %v293 = vadd.f32 %v267, 1.0
  %v294 = vadd.f32 %v269, 1.0
  %v295 = vadd.f32 %v271, 1.0
  %v296 = vadd.f32 %v273, 1.0
  %v297 = vadd.f32 %v275, 1.0
  %v298 = vadd.f32 %v277, 1.0
  %v299 = vadd.f32 %v279, 1.0
  %v300 = vadd.f32 %v281, 1.0
  %v301 = vadd.f32 %v283, 1.0
  %v302 = vadd.f32 %v285, 1.0
  %v303 = vadd.f32 %v287, 1.0
  %v304 = vrcp.pop %v288
  %v305 = vmul.f32 1.0, %v304
  %v306 = vrcp.pop %v289
  %v307 = vmul.f32 1.0, %v306
  %v308 = vrcp.pop %v290
  %v309 = vmul.f32 1.0, %v308
  %v310 = vrcp.pop %v291
  %v311 = vmul.f32 1.0, %v310
  %v312 = vrcp.pop %v292
  %v313 = vmul.f32 1.0, %v312
  %v314 = vrcp.pop %v293
  %v315 = vmul.f32 1.0, %v314
  %v316 = vrcp.pop %v294
  %v317 = vmul.f32 1.0, %v316
  %v318 = vrcp.pop %v295
  %v319 = vmul.f32 1.0, %v318
  %v320 = vrcp.pop %v296
  %v321 = vmul.f32 1.0, %v320
  %v322 = vrcp.pop %v297
  %v323 = vmul.f32 1.0, %v322
  %v324 = vrcp.pop %v298
  %v325 = vmul.f32 1.0, %v324
  %v326 = vrcp.pop %v299
  %v327 = vmul.f32 1.0, %v326
  %v328 = vrcp.pop %v300
  %v329 = vmul.f32 1.0, %v328
  %v330 = vrcp.pop %v301
  %v331 = vmul.f32 1.0, %v330
  %v332 = vrcp.pop %v302
  %v333 = vmul.f32 1.0, %v332
  %v334 = vrcp.pop %v303
  %v335 = vmul.f32 1.0, %v334
  %v336 = vmul.f32 %v178, %v305
  %v337 = vmul.f32 %v181, %v307
  %v338 = vmul.f32 %v186, %v309
  %v339 = vmul.f32 %v189, %v311
  %v340 = vmul.f32 %v194, %v313
  %v341 = vmul.f32 %v197, %v315
  %v342 = vmul.f32 %v202, %v317
  %v343 = vmul.f32 %v205, %v319
  %v344 = vmul.f32 %v210, %v321
  %v345 = vmul.f32 %v213, %v323
  %v346 = vmul.f32 %v218, %v325
  %v347 = vmul.f32 %v221, %v327
  %v348 = vmul.f32 %v226, %v329
  %v349 = vmul.f32 %v229, %v331
  %v350 = vmul.f32 %v234, %v333
  %v351 = vmul.f32 %v237, %v335
  %v352 = vpack.c.bf16 %v337, %v336
  %v353 = vpack.c.bf16 %v339, %v338
  %v354 = vpack.c.bf16 %v341, %v340
  %v355 = vpack.c.bf16 %v343, %v342
  %v356 = vpack.c.bf16 %v345, %v344
  %v357 = vpack.c.bf16 %v347, %v346
  %v358 = vpack.c.bf16 %v349, %v348
  %v359 = vpack.c.bf16 %v351, %v350
  %v368 = vunpack.c.l.b16 %v352
  %v369 = vunpack.c.h.b16 %v352
  %v370 = vunpack.c.l.b16 %v353
  %v371 = vunpack.c.h.b16 %v353
  %v372 = vunpack.c.l.b16 %v354
  %v373 = vunpack.c.h.b16 %v354
  %v374 = vunpack.c.l.b16 %v355
  %v375 = vunpack.c.h.b16 %v355
  %v376 = vunpack.c.l.b16 %v356
  %v377 = vunpack.c.h.b16 %v356
  %v378 = vunpack.c.l.b16 %v357
  %v379 = vunpack.c.h.b16 %v357
  %v380 = vunpack.c.l.b16 %v358
  %v381 = vunpack.c.h.b16 %v358
  %v382 = vunpack.c.l.b16 %v359
  %v383 = vunpack.c.h.b16 %v359
  %v384 = vpack.c.b16 %v368, %v368
  %v385 = vpack.c.b16 %v369, %v369
  %v386 = vpack.c.b16 %v370, %v370
  %v387 = vpack.c.b16 %v371, %v371
  %v388 = vpack.c.b16 %v372, %v372
  %v389 = vpack.c.b16 %v373, %v373
  %v390 = vpack.c.b16 %v374, %v374
  %v391 = vpack.c.b16 %v375, %v375
  %v392 = vpack.c.b16 %v376, %v376
  %v393 = vpack.c.b16 %v377, %v377
  %v394 = vpack.c.b16 %v378, %v378
  %v395 = vpack.c.b16 %v379, %v379
  %v396 = vpack.c.b16 %v380, %v380
  %v397 = vpack.c.b16 %v381, %v381
  %v398 = vpack.c.b16 %v382, %v382
  %v399 = vpack.c.b16 %v383, %v383
  %vm416 = vcmask 125952
  %417 = vst.msk [vmem:[%s3] sm:$0xf] %vm416, %v384
  %418 = vst.msk [vmem:[%s3 + $0x4] sm:$0xf] %vm416, %v385
  %419 = vst.msk [vmem:[%s3 + $0x8] sm:$0xf] %vm416, %v386
  %420 = vst.msk [vmem:[%s3 + $0xc] sm:$0xf] %vm416, %v387
  %421 = vst.msk [vmem:[%s3 + $0x10] sm:$0xf] %vm416, %v388
  %422 = vst.msk [vmem:[%s3 + $0x14] sm:$0xf] %vm416, %v389
  %423 = vst.msk [vmem:[%s3 + $0x18] sm:$0xf] %vm416, %v390
  %424 = vst.msk [vmem:[%s3 + $0x1c] sm:$0xf] %vm416, %v391
  %425 = vst.msk [vmem:[%s3 + $0x20] sm:$0xf] %vm416, %v392
  %426 = vst.msk [vmem:[%s3 + $0x24] sm:$0xf] %vm416, %v393
  %427 = vst.msk [vmem:[%s3 + $0x28] sm:$0xf] %vm416, %v394
  %428 = vst.msk [vmem:[%s3 + $0x2c] sm:$0xf] %vm416, %v395
  %429 = vst.msk [vmem:[%s3 + $0x30] sm:$0xf] %vm416, %v396
  %430 = vst.msk [vmem:[%s3 + $0x34] sm:$0xf] %vm416, %v397
  %431 = vst.msk [vmem:[%s3 + $0x38] sm:$0xf] %vm416, %v398
  %432 = vst.msk [vmem:[%s3 + $0x3c] sm:$0xf] %vm416, %v399
  // Predicated region
  $region14: #{yolov8_head_forward.31} parent=0 // pred_check
    _
  $region15: #{yolov8_head_forward.31} parent=0 // pred_check_branch
    %434 = sbr.rel (0) target = $region17
  $region16: #{yolov8_head_forward.31} parent=0 // pred_region
    _
  $region17: #{yolov8_head_forward.31} parent=0 // pred_fallthru
    _
  // Predicated region
  $region18: #{yolov8_head_forward.31} parent=0 // pred_check
    _
  $region19: #{yolov8_head_forward.31} parent=0 // pred_check_branch
    %436 = sbr.rel (0) target = $region21
  $region20: #{yolov8_head_forward.31} parent=0 // pred_region
    _
  $region21: #{yolov8_head_forward.31} parent=0 // pred_fallthru
    _

// kernel: yolov8_head_forward.32
$region0: #{yolov8_head_forward.32}
  #allocation0 [shape = 'u32[]', space=smem, size = 0x4, offset = 0x4, fixed_abs, tag = 'smem constant byte address 0x4 - core index']
  #allocation1 [shape = 'u32[144,128]{1,0:T(1,128)}', space=vmem, size = 0x12000, scoped, tag = 'internal scratch']
  %s0 = inlined_call_operand.vmem [shape: bf16[128,48], index: 0, kind: input, shape index: {}]
  %s1 = inlined_call_operand.vmem [shape: bf16[48,32], index: 1, kind: input, shape index: {}]
  %s2 = inlined_call_operand.vmem [shape: f32[1,32], index: 2, kind: input, shape index: {}]
  %s3 = inlined_call_operand.vmem [shape: bf16[128,32], index: 3, kind: output, shape index: {}]
  %s4 = sld [smem:[#allocation0]]
  $region22: #{yolov8_head_forward.32} parent=0
    _
  %s6 = ssub.s32 1, %s4
  %s7 = scalar_select 0, %s6, %s4
  // Predicated region
  $region2: #{yolov8_head_forward.32} parent=0 // pred_check
    _
  $region3: #{yolov8_head_forward.32} parent=0 // pred_check_branch
    %9 = sbr.rel (0) target = $region5
  $region4: #{yolov8_head_forward.32} parent=0 // pred_region
    _
  $region5: #{yolov8_head_forward.32} parent=0 // pred_fallthru
    _
  // Predicated region
  $region6: #{yolov8_head_forward.32} parent=0 // pred_check
    _
  $region7: #{yolov8_head_forward.32} parent=0 // pred_check_branch
    %11 = sbr.rel (0) target = $region9
  $region8: #{yolov8_head_forward.32} parent=0 // pred_region
    _
  $region9: #{yolov8_head_forward.32} parent=0 // pred_fallthru
    _
  // Predicated region
  $region10: #{yolov8_head_forward.32} parent=0 // pred_check
    _
  $region11: #{yolov8_head_forward.32} parent=0 // pred_check_branch
    %13 = sbr.rel (0) target = $region13
  $region12: #{yolov8_head_forward.32} parent=0 // pred_region
    _
  $region13: #{yolov8_head_forward.32} parent=0 // pred_fallthru
    _
  %v15 = vld [vmem:[%s0] sm:$0xf]
  %v16 = vld [vmem:[%s0 + $0x4] sm:$0xf]
  %v17 = vld [vmem:[%s0 + $0x8] sm:$0xf]
  %v18 = vld [vmem:[%s0 + $0xc] sm:$0xf]
  %v19 = vld [vmem:[%s0 + $0x10] sm:$0xf]
  %v20 = vld [vmem:[%s0 + $0x14] sm:$0xf]
  %v21 = vld [vmem:[%s0 + $0x18] sm:$0xf]
  %v22 = vld [vmem:[%s0 + $0x1c] sm:$0xf]
  %v23 = vld [vmem:[%s0 + $0x20] sm:$0xf]
  %v24 = vld [vmem:[%s0 + $0x24] sm:$0xf]
  %v25 = vld [vmem:[%s0 + $0x28] sm:$0xf]
  %v26 = vld [vmem:[%s0 + $0x2c] sm:$0xf]
  %v27 = vld [vmem:[%s0 + $0x30] sm:$0xf]
  %v28 = vld [vmem:[%s0 + $0x34] sm:$0xf]
  %v29 = vld [vmem:[%s0 + $0x38] sm:$0xf]
  %v30 = vld [vmem:[%s0 + $0x3c] sm:$0xf]
  %v31 = vld [vmem:[%s1] sm:$0xf]
  %v32 = vld [vmem:[%s1 + $0x4] sm:$0xf]
  %v33 = vld [vmem:[%s1 + $0x8] sm:$0xf]
  %v34 = vld [vmem:[%s1 + $0xc] sm:$0xf]
  %v35 = vld [vmem:[%s1 + $0x10] sm:$0xf]
  %v36 = vld [vmem:[%s1 + $0x14] sm:$0xf]
  %v37 = vld [vmem:[%s2] sm:$0x1]
  %v39 = vlaneseq
  %v40 = vshrl.u32 %v39, 7
  %v41 = vsub.s32 0, %v40
  %v42 = vrot.slane %v37, %v41
  %v60 = vunpack.c.l.b16 %v15
  %v61 = vunpack.c.l.b16 %v16
  %v62 = vunpack.c.l.b16 %v17
  %v63 = vunpack.c.l.b16 %v18
  %v64 = vunpack.c.l.b16 %v19
  %v65 = vunpack.c.l.b16 %v20
  %v66 = vunpack.c.l.b16 %v21
  %v67 = vunpack.c.l.b16 %v22
  %v68 = vunpack.c.l.b16 %v23
  %v69 = vunpack.c.l.b16 %v24
  %v70 = vunpack.c.l.b16 %v25
  %v71 = vunpack.c.l.b16 %v26
  %v72 = vunpack.c.l.b16 %v27
  %v73 = vunpack.c.l.b16 %v28
  %v74 = vunpack.c.l.b16 %v29
  %v75 = vunpack.c.l.b16 %v30
  %v76 = vpack.c.b16 %v61, %v60
  %v77 = vpack.c.b16 %v63, %v62
  %v78 = vpack.c.b16 %v65, %v64
  %v79 = vpack.c.b16 %v67, %v66
  %v80 = vpack.c.b16 %v69, %v68
  %v81 = vpack.c.b16 %v71, %v70
  %v82 = vpack.c.b16 %v73, %v72
  %v83 = vpack.c.b16 %v75, %v74
  %v90 = vunpack.c.l.b16 %v31
  %v91 = vunpack.c.l.b16 %v32
  %v92 = vunpack.c.l.b16 %v33
  %v93 = vunpack.c.l.b16 %v34
  %v94 = vunpack.c.l.b16 %v35
  %v95 = vunpack.c.l.b16 %v36
  %v96 = vpack.c.b16 %v91, %v90
  %v97 = vpack.c.b16 %v93, %v92
  %v98 = vpack.c.b16 %v95, %v94
  %vm102 = vcmask 392192
  %v104 = vsel %vm102, %v76, 0
  %v107 = vsel %vm102, %v77, 0
  %v110 = vsel %vm102, %v78, 0
  %v113 = vsel %vm102, %v79, 0
  %v116 = vsel %vm102, %v80, 0
  %v119 = vsel %vm102, %v81, 0
  %v122 = vsel %vm102, %v82, 0
  %v125 = vsel %vm102, %v83, 0
  %127 = vmatprep.subr.bf16.mxu0 0
  %128 = vmatpush1.bf16.msra.mxu0 0
  %129 = vmatprep.subr.bf16.mxu0 0
  %130 = vmatpush1.bf16.msra.mxu0 0
  %131 = vmatprep.subr.bf16.mxu0 0
  %132 = vmatpush1.bf16.msra.mxu0 0
  %133 = vmatprep.subr.bf16.mxu0 0
  %134 = vmatpush1.bf16.msra.mxu0 0
  %135 = vmatprep.subr.bf16.mxu0 0
  %136 = vmatpush1.bf16.msra.mxu0 0
  %137 = vmatprep.subr.bf16.mxu0 0
  %138 = vmatpush1.bf16.msra.mxu0 %v98
  %139 = vmatprep.subr.bf16.mxu0 0
  %140 = vmatpush1.bf16.msra.mxu0 %v97
  %141 = vmatprep.subr.bf16.mxu0 0
  %142 = vmatpush1.bf16.msra.mxu0 %v96
  %143 = vmatprep.subr.bf16.mxu0 0
  %144 = vmatpush2.bf16.msra.mxu0 0
  %145 = vmatprep.subr.bf16.mxu0 0
  %146 = vmatpush2.bf16.msra.mxu0 0
  %147 = vmatprep.subr.bf16.mxu0 0
  %148 = vmatpush2.bf16.msra.mxu0 0
  %149 = vmatprep.subr.bf16.mxu0 0
  %150 = vmatpush2.bf16.msra.mxu0 0
  %151 = vmatprep.subr.bf16.mxu0 0
  %152 = vmatpush2.bf16.msra.mxu0 0
  %153 = vmatprep.subr.bf16.mxu0 0
  %154 = vmatpush2.bf16.msra.mxu0 0
  %155 = vmatprep.subr.bf16.mxu0 0
  %156 = vmatpush2.bf16.msra.mxu0 0
  %157 = vmatprep.subr.bf16.mxu0 0
  %158 = vmatpush2.bf16.msra.mxu0 0
  %159 = vmatprep.mubr.bf16.mxu0 0
  %160 = vmatmul.mubr.bf16.gmra.mxu0 %v104
  %v161 = vpop.f32.mrf.mxu0
  %v162 = vadd.f32 %v42, %v161
  %v163 = vpop.f32.mrf.mxu0
  %v164 = vpop.f32.mrf.mxu0
  %v165 = vadd.f32 %v42, %v164
  %v166 = vpop.f32.mrf.mxu0
  %167 = vmatprep.mubr.bf16.mxu0 0
  %168 = vmatmul.mubr.bf16.gmra.mxu0 %v107
  %v169 = vpop.f32.mrf.mxu0
  %v170 = vadd.f32 %v42, %v169
  %v171 = vpop.f32.mrf.mxu0
  %v172 = vpop.f32.mrf.mxu0
  %v173 = vadd.f32 %v42, %v172
  %v174 = vpop.f32.mrf.mxu0
  %175 = vmatprep.mubr.bf16.mxu0 0
  %176 = vmatmul.mubr.bf16.gmra.mxu0 %v110
  %v177 = vpop.f32.mrf.mxu0
  %v178 = vadd.f32 %v42, %v177
  %v179 = vpop.f32.mrf.mxu0
  %v180 = vpop.f32.mrf.mxu0
  %v181 = vadd.f32 %v42, %v180
  %v182 = vpop.f32.mrf.mxu0
  %183 = vmatprep.mubr.bf16.mxu0 0
  %184 = vmatmul.mubr.bf16.gmra.mxu0 %v113
  %v185 = vpop.f32.mrf.mxu0
  %v186 = vadd.f32 %v42, %v185
  %v187 = vpop.f32.mrf.mxu0
  %v188 = vpop.f32.mrf.mxu0
  %v189 = vadd.f32 %v42, %v188
  %v190 = vpop.f32.mrf.mxu0
  %191 = vmatprep.mubr.bf16.mxu0 0
  %192 = vmatmul.mubr.bf16.gmra.mxu0 %v116
  %v193 = vpop.f32.mrf.mxu0
  %v194 = vadd.f32 %v42, %v193
  %v195 = vpop.f32.mrf.mxu0
  %v196 = vpop.f32.mrf.mxu0
  %v197 = vadd.f32 %v42, %v196
  %v198 = vpop.f32.mrf.mxu0
  %199 = vmatprep.mubr.bf16.mxu0 0
  %200 = vmatmul.mubr.bf16.gmra.mxu0 %v119
  %v201 = vpop.f32.mrf.mxu0
  %v202 = vadd.f32 %v42, %v201
  %v203 = vpop.f32.mrf.mxu0
  %v204 = vpop.f32.mrf.mxu0
  %v205 = vadd.f32 %v42, %v204
  %v206 = vpop.f32.mrf.mxu0
  %207 = vmatprep.mubr.bf16.mxu0 0
  %208 = vmatmul.mubr.bf16.gmra.mxu0 %v122
  %v209 = vpop.f32.mrf.mxu0
  %v210 = vadd.f32 %v42, %v209
  %v211 = vpop.f32.mrf.mxu0
  %v212 = vpop.f32.mrf.mxu0
  %v213 = vadd.f32 %v42, %v212
  %v214 = vpop.f32.mrf.mxu0
  %215 = vmatprep.mubr.bf16.mxu0 0
  %216 = vmatmul.mubr.bf16.gmra.mxu0 %v125
  %v217 = vpop.f32.mrf.mxu0
  %v218 = vadd.f32 %v42, %v217
  %v219 = vpop.f32.mrf.mxu0
  %v220 = vpop.f32.mrf.mxu0
  %v221 = vadd.f32 %v42, %v220
  %v222 = vpop.f32.mrf.mxu0
  %223 = vdwg.mxu0
  %v224 = vxor.u32 %v162, 2147483648
  %v225 = vxor.u32 %v165, 2147483648
  %v226 = vxor.u32 %v170, 2147483648
  %v227 = vxor.u32 %v173, 2147483648
  %v228 = vxor.u32 %v178, 2147483648
  %v229 = vxor.u32 %v181, 2147483648
  %v230 = vxor.u32 %v186, 2147483648
  %v231 = vxor.u32 %v189, 2147483648
  %v232 = vxor.u32 %v194, 2147483648
  %v233 = vxor.u32 %v197, 2147483648
  %v234 = vxor.u32 %v202, 2147483648
  %v235 = vxor.u32 %v205, 2147483648
  %v236 = vxor.u32 %v210, 2147483648
  %v237 = vxor.u32 %v213, 2147483648
  %v238 = vxor.u32 %v218, 2147483648
  %v239 = vxor.u32 %v221, 2147483648
  %v240 = vmul.f32 %v224, 1.442695
  %v241 = vpow.pop %v240
  %v242 = vmul.f32 %v225, 1.442695
  %v243 = vpow.pop %v242
  %v244 = vmul.f32 %v226, 1.442695
  %v245 = vpow.pop %v244
  %v246 = vmul.f32 %v227, 1.442695
  %v247 = vpow.pop %v246
  %v248 = vmul.f32 %v228, 1.442695
  %v249 = vpow.pop %v248
  %v250 = vmul.f32 %v229, 1.442695
  %v251 = vpow.pop %v250
  %v252 = vmul.f32 %v230, 1.442695
  %v253 = vpow.pop %v252
  %v254 = vmul.f32 %v231, 1.442695
  %v255 = vpow.pop %v254
  %v256 = vmul.f32 %v232, 1.442695
  %v257 = vpow.pop %v256
  %v258 = vmul.f32 %v233, 1.442695
  %v259 = vpow.pop %v258
  %v260 = vmul.f32 %v234, 1.442695
  %v261 = vpow.pop %v260
  %v262 = vmul.f32 %v235, 1.442695
  %v263 = vpow.pop %v262
  %v264 = vmul.f32 %v236, 1.442695
  %v265 = vpow.pop %v264
  %v266 = vmul.f32 %v237, 1.442695
  %v267 = vpow.pop %v266
  %v268 = vmul.f32 %v238, 1.442695
  %v269 = vpow.pop %v268
  %v270 = vmul.f32 %v239, 1.442695
  %v271 = vpow.pop %v270
  %v272 = vadd.f32 %v241, 1.0
  %v273 = vadd.f32 %v243, 1.0
  %v274 = vadd.f32 %v245, 1.0
  %v275 = vadd.f32 %v247, 1.0
  %v276 = vadd.f32 %v249, 1.0
  %v277 = vadd.f32 %v251, 1.0
  %v278 = vadd.f32 %v253, 1.0
  %v279 = vadd.f32 %v255, 1.0
  %v280 = vadd.f32 %v257, 1.0
  %v281 = vadd.f32 %v259, 1.0
  %v282 = vadd.f32 %v261, 1.0
  %v283 = vadd.f32 %v263, 1.0
  %v284 = vadd.f32 %v265, 1.0
  %v285 = vadd.f32 %v267, 1.0
  %v286 = vadd.f32 %v269, 1.0
  %v287 = vadd.f32 %v271, 1.0
  %v288 = vrcp.pop %v272
  %v289 = vmul.f32 1.0, %v288
  %v290 = vrcp.pop %v273
  %v291 = vmul.f32 1.0, %v290
  %v292 = vrcp.pop %v274
  %v293 = vmul.f32 1.0, %v292
  %v294 = vrcp.pop %v275
  %v295 = vmul.f32 1.0, %v294
  %v296 = vrcp.pop %v276
  %v297 = vmul.f32 1.0, %v296
  %v298 = vrcp.pop %v277
  %v299 = vmul.f32 1.0, %v298
  %v300 = vrcp.pop %v278
  %v301 = vmul.f32 1.0, %v300
  %v302 = vrcp.pop %v279
  %v303 = vmul.f32 1.0, %v302
  %v304 = vrcp.pop %v280
  %v305 = vmul.f32 1.0, %v304
  %v306 = vrcp.pop %v281
  %v307 = vmul.f32 1.0, %v306
  %v308 = vrcp.pop %v282
  %v309 = vmul.f32 1.0, %v308
  %v310 = vrcp.pop %v283
  %v311 = vmul.f32 1.0, %v310
  %v312 = vrcp.pop %v284
  %v313 = vmul.f32 1.0, %v312
  %v314 = vrcp.pop %v285
  %v315 = vmul.f32 1.0, %v314
  %v316 = vrcp.pop %v286
  %v317 = vmul.f32 1.0, %v316
  %v318 = vrcp.pop %v287
  %v319 = vmul.f32 1.0, %v318
  %v320 = vmul.f32 %v162, %v289
  %v321 = vmul.f32 %v165, %v291
  %v322 = vmul.f32 %v170, %v293
  %v323 = vmul.f32 %v173, %v295
  %v324 = vmul.f32 %v178, %v297
  %v325 = vmul.f32 %v181, %v299
  %v326 = vmul.f32 %v186, %v301
  %v327 = vmul.f32 %v189, %v303
  %v328 = vmul.f32 %v194, %v305
  %v329 = vmul.f32 %v197, %v307
  %v330 = vmul.f32 %v202, %v309
  %v331 = vmul.f32 %v205, %v311
  %v332 = vmul.f32 %v210, %v313
  %v333 = vmul.f32 %v213, %v315
  %v334 = vmul.f32 %v218, %v317
  %v335 = vmul.f32 %v221, %v319
  %v336 = vpack.c.bf16 %v321, %v320
  %v337 = vpack.c.bf16 %v323, %v322
  %v338 = vpack.c.bf16 %v325, %v324
  %v339 = vpack.c.bf16 %v327, %v326
  %v340 = vpack.c.bf16 %v329, %v328
  %v341 = vpack.c.bf16 %v331, %v330
  %v342 = vpack.c.bf16 %v333, %v332
  %v343 = vpack.c.bf16 %v335, %v334
  %v352 = vunpack.c.l.b16 %v336
  %v353 = vunpack.c.h.b16 %v336
  %v354 = vunpack.c.l.b16 %v337
  %v355 = vunpack.c.h.b16 %v337
  %v356 = vunpack.c.l.b16 %v338
  %v357 = vunpack.c.h.b16 %v338
  %v358 = vunpack.c.l.b16 %v339
  %v359 = vunpack.c.h.b16 %v339
  %v360 = vunpack.c.l.b16 %v340
  %v361 = vunpack.c.h.b16 %v340
  %v362 = vunpack.c.l.b16 %v341
  %v363 = vunpack.c.h.b16 %v341
  %v364 = vunpack.c.l.b16 %v342
  %v365 = vunpack.c.h.b16 %v342
  %v366 = vunpack.c.l.b16 %v343
  %v367 = vunpack.c.h.b16 %v343
  %v368 = vpack.c.b16 %v352, %v352
  %v369 = vpack.c.b16 %v353, %v353
  %v370 = vpack.c.b16 %v354, %v354
  %v371 = vpack.c.b16 %v355, %v355
  %v372 = vpack.c.b16 %v356, %v356
  %v373 = vpack.c.b16 %v357, %v357
  %v374 = vpack.c.b16 %v358, %v358
  %v375 = vpack.c.b16 %v359, %v359
  %v376 = vpack.c.b16 %v360, %v360
  %v377 = vpack.c.b16 %v361, %v361
  %v378 = vpack.c.b16 %v362, %v362
  %v379 = vpack.c.b16 %v363, %v363
  %v380 = vpack.c.b16 %v364, %v364
  %v381 = vpack.c.b16 %v365, %v365
  %v382 = vpack.c.b16 %v366, %v366
  %v383 = vpack.c.b16 %v367, %v367
  %vm400 = vcmask 257024
  %401 = vst.msk [vmem:[%s3] sm:$0xf] %vm400, %v368
  %402 = vst.msk [vmem:[%s3 + $0x4] sm:$0xf] %vm400, %v369
  %403 = vst.msk [vmem:[%s3 + $0x8] sm:$0xf] %vm400, %v370
  %404 = vst.msk [vmem:[%s3 + $0xc] sm:$0xf] %vm400, %v371
  %405 = vst.msk [vmem:[%s3 + $0x10] sm:$0xf] %vm400, %v372
  %406 = vst.msk [vmem:[%s3 + $0x14] sm:$0xf] %vm400, %v373
  %407 = vst.msk [vmem:[%s3 + $0x18] sm:$0xf] %vm400, %v374
  %408 = vst.msk [vmem:[%s3 + $0x1c] sm:$0xf] %vm400, %v375
  %409 = vst.msk [vmem:[%s3 + $0x20] sm:$0xf] %vm400, %v376
  %410 = vst.msk [vmem:[%s3 + $0x24] sm:$0xf] %vm400, %v377
  %411 = vst.msk [vmem:[%s3 + $0x28] sm:$0xf] %vm400, %v378
  %412 = vst.msk [vmem:[%s3 + $0x2c] sm:$0xf] %vm400, %v379
  %413 = vst.msk [vmem:[%s3 + $0x30] sm:$0xf] %vm400, %v380
  %414 = vst.msk [vmem:[%s3 + $0x34] sm:$0xf] %vm400, %v381
  %415 = vst.msk [vmem:[%s3 + $0x38] sm:$0xf] %vm400, %v382
  %416 = vst.msk [vmem:[%s3 + $0x3c] sm:$0xf] %vm400, %v383
  // Predicated region
  $region14: #{yolov8_head_forward.32} parent=0 // pred_check
    _
  $region15: #{yolov8_head_forward.32} parent=0 // pred_check_branch
    %418 = sbr.rel (0) target = $region17
  $region16: #{yolov8_head_forward.32} parent=0 // pred_region
    _
  $region17: #{yolov8_head_forward.32} parent=0 // pred_fallthru
    _
  // Predicated region
  $region18: #{yolov8_head_forward.32} parent=0 // pred_check
    _
  $region19: #{yolov8_head_forward.32} parent=0 // pred_check_branch
    %420 = sbr.rel (0) target = $region21
  $region20: #{yolov8_head_forward.32} parent=0 // pred_region
    _
  $region21: #{yolov8_head_forward.32} parent=0 // pred_fallthru
    _

// kernel: yolov8_head_forward.33
$region0: #{yolov8_head_forward.33}
  #allocation0 [shape = 'u32[]', space=smem, size = 0x4, offset = 0x4, fixed_abs, tag = 'smem constant byte address 0x4 - core index']
  #allocation1 [shape = 'u32[144,128]{1,0:T(1,128)}', space=vmem, size = 0x12000, scoped, tag = 'internal scratch']
  %s0 = inlined_call_operand.vmem [shape: bf16[128,288], index: 0, kind: input, shape index: {}]
  %s1 = inlined_call_operand.vmem [shape: bf16[288,64], index: 1, kind: input, shape index: {}]
  %s2 = inlined_call_operand.vmem [shape: f32[1,64], index: 2, kind: input, shape index: {}]
  %s3 = inlined_call_operand.vmem [shape: bf16[128,64], index: 3, kind: output, shape index: {}]
  %s4 = sld [smem:[#allocation0]]
  $region22: #{yolov8_head_forward.33} parent=0
    _
  %s6 = ssub.s32 1, %s4
  %s7 = scalar_select 0, %s6, %s4
  // Predicated region
  $region2: #{yolov8_head_forward.33} parent=0 // pred_check
    _
  $region3: #{yolov8_head_forward.33} parent=0 // pred_check_branch
    %9 = sbr.rel (0) target = $region5
  $region4: #{yolov8_head_forward.33} parent=0 // pred_region
    _
  $region5: #{yolov8_head_forward.33} parent=0 // pred_fallthru
    _
  // Predicated region
  $region6: #{yolov8_head_forward.33} parent=0 // pred_check
    _
  $region7: #{yolov8_head_forward.33} parent=0 // pred_check_branch
    %11 = sbr.rel (0) target = $region9
  $region8: #{yolov8_head_forward.33} parent=0 // pred_region
    _
  $region9: #{yolov8_head_forward.33} parent=0 // pred_fallthru
    _
  // Predicated region
  $region10: #{yolov8_head_forward.33} parent=0 // pred_check
    _
  $region11: #{yolov8_head_forward.33} parent=0 // pred_check_branch
    %13 = sbr.rel (0) target = $region13
  $region12: #{yolov8_head_forward.33} parent=0 // pred_region
    _
  $region13: #{yolov8_head_forward.33} parent=0 // pred_fallthru
    _
  %v15 = vld [vmem:[%s0] sm:$0xff]
  %v16 = vld [vmem:[%s0 + $0x8] sm:$0xf]
  %v17 = vld [vmem:[%s0 + $0xc] sm:$0xff]
  %v18 = vld [vmem:[%s0 + $0x14] sm:$0xf]
  %v19 = vld [vmem:[%s0 + $0x18] sm:$0xff]
  %v20 = vld [vmem:[%s0 + $0x20] sm:$0xf]
  %v21 = vld [vmem:[%s0 + $0x24] sm:$0xff]
  %v22 = vld [vmem:[%s0 + $0x2c] sm:$0xf]
  %v23 = vld [vmem:[%s0 + $0x30] sm:$0xff]
  %v24 = vld [vmem:[%s0 + $0x38] sm:$0xf]
  %v25 = vld [vmem:[%s0 + $0x3c] sm:$0xff]
  %v26 = vld [vmem:[%s0 + $0x44] sm:$0xf]
  %v27 = vld [vmem:[%s0 + $0x48] sm:$0xff]
  %v28 = vld [vmem:[%s0 + $0x50] sm:$0xf]
  %v29 = vld [vmem:[%s0 + $0x54] sm:$0xff]
  %v30 = vld [vmem:[%s0 + $0x5c] sm:$0xf]
  %v31 = vld [vmem:[%s0 + $0x60] sm:$0xff]
  %v32 = vld [vmem:[%s0 + $0x68] sm:$0xf]
  %v33 = vld [vmem:[%s0 + $0x6c] sm:$0xff]
  %v34 = vld [vmem:[%s0 + $0x74] sm:$0xf]
  %v35 = vld [vmem:[%s0 + $0x78] sm:$0xff]
  %v36 = vld [vmem:[%s0 + $0x80] sm:$0xf]
  %v37 = vld [vmem:[%s0 + $0x84] sm:$0xff]
  %v38 = vld [vmem:[%s0 + $0x8c] sm:$0xf]
  %v39 = vld [vmem:[%s0 + $0x90] sm:$0xff]
  %v40 = vld [vmem:[%s0 + $0x98] sm:$0xf]
  %v41 = vld [vmem:[%s0 + $0x9c] sm:$0xff]
  %v42 = vld [vmem:[%s0 + $0xa4] sm:$0xf]
  %v43 = vld [vmem:[%s0 + $0xa8] sm:$0xff]
  %v44 = vld [vmem:[%s0 + $0xb0] sm:$0xf]
  %v45 = vld [vmem:[%s0 + $0xb4] sm:$0xff]
  %v46 = vld [vmem:[%s0 + $0xbc] sm:$0xf]
  %v47 = vld [vmem:[%s1] sm:$0xf]
  %v48 = vld [vmem:[%s1 + $0x4] sm:$0xf]
  %v49 = vld [vmem:[%s1 + $0x8] sm:$0xf]
  %v50 = vld [vmem:[%s1 + $0xc] sm:$0xf]
  %v51 = vld [vmem:[%s1 + $0x10] sm:$0xf]
  %v52 = vld [vmem:[%s1 + $0x14] sm:$0xf]
  %v53 = vld [vmem:[%s1 + $0x18] sm:$0xf]
  %v54 = vld [vmem:[%s1 + $0x1c] sm:$0xf]
  %v55 = vld [vmem:[%s1 + $0x20] sm:$0xf]
  %v56 = vld [vmem:[%s1 + $0x24] sm:$0xf]
  %v57 = vld [vmem:[%s1 + $0x28] sm:$0xf]
  %v58 = vld [vmem:[%s1 + $0x2c] sm:$0xf]
  %v59 = vld [vmem:[%s1 + $0x30] sm:$0xf]
  %v60 = vld [vmem:[%s1 + $0x34] sm:$0xf]
  %v61 = vld [vmem:[%s1 + $0x38] sm:$0xf]
  %v62 = vld [vmem:[%s1 + $0x3c] sm:$0xf]
  %v63 = vld [vmem:[%s1 + $0x40] sm:$0xf]
  %v64 = vld [vmem:[%s1 + $0x44] sm:$0xf]
  %v65 = vld [vmem:[%s1 + $0x48] sm:$0xf]
  %v66 = vld [vmem:[%s1 + $0x4c] sm:$0xf]
  %v67 = vld [vmem:[%s1 + $0x50] sm:$0xf]
  %v68 = vld [vmem:[%s1 + $0x54] sm:$0xf]
  %v69 = vld [vmem:[%s1 + $0x58] sm:$0xf]
  %v70 = vld [vmem:[%s1 + $0x5c] sm:$0xf]
  %v71 = vld [vmem:[%s1 + $0x60] sm:$0xf]
  %v72 = vld [vmem:[%s1 + $0x64] sm:$0xf]
  %v73 = vld [vmem:[%s1 + $0x68] sm:$0xf]
  %v74 = vld [vmem:[%s1 + $0x6c] sm:$0xf]
  %v75 = vld [vmem:[%s1 + $0x70] sm:$0xf]
  %v76 = vld [vmem:[%s1 + $0x74] sm:$0xf]
  %v77 = vld [vmem:[%s1 + $0x78] sm:$0xf]
  %v78 = vld [vmem:[%s1 + $0x7c] sm:$0xf]
  %v79 = vld [vmem:[%s1 + $0x80] sm:$0xf]
  %v80 = vld [vmem:[%s1 + $0x84] sm:$0xf]
  %v81 = vld [vmem:[%s1 + $0x88] sm:$0xf]
  %v82 = vld [vmem:[%s1 + $0x8c] sm:$0xf]
  %v83 = vld [vmem:[%s2] sm:$0x1]
  %v85 = vlaneseq
  %v86 = vshrl.u32 %v85, 7
  %v87 = vsub.s32 0, %v86
  %v88 = vrot.slane %v83, %v87
  %v122 = vunpack.c.l.b16 %v15
  %v123 = vunpack.c.h.b16 %v15
  %v124 = vunpack.c.l.b16 %v16
  %v125 = vunpack.c.l.b16 %v17
  %v126 = vunpack.c.h.b16 %v17
  %v127 = vunpack.c.l.b16 %v18
  %v128 = vunpack.c.l.b16 %v19
  %v129 = vunpack.c.h.b16 %v19
  %v130 = vunpack.c.l.b16 %v20
  %v131 = vunpack.c.l.b16 %v21
  %v132 = vunpack.c.h.b16 %v21
  %v133 = vunpack.c.l.b16 %v22
  %v134 = vunpack.c.l.b16 %v23
  %v135 = vunpack.c.h.b16 %v23
  %v136 = vunpack.c.l.b16 %v24
  %v137 = vunpack.c.l.b16 %v25
  %v138 = vunpack.c.h.b16 %v25
  %v139 = vunpack.c.l.b16 %v26
  %v140 = vunpack.c.l.b16 %v27
  %v141 = vunpack.c.h.b16 %v27
  %v142 = vunpack.c.l.b16 %v28
  %v143 = vunpack.c.l.b16 %v29
  %v144 = vunpack.c.h.b16 %v29
  %v145 = vunpack.c.l.b16 %v30
  %v146 = vunpack.c.l.b16 %v31
  %v147 = vunpack.c.h.b16 %v31
  %v148 = vunpack.c.l.b16 %v32
  %v149 = vunpack.c.l.b16 %v33
  %v150 = vunpack.c.h.b16 %v33
  %v151 = vunpack.c.l.b16 %v34
  %v152 = vunpack.c.l.b16 %v35
  %v153 = vunpack.c.h.b16 %v35
  %v154 = vunpack.c.l.b16 %v36
  %v155 = vunpack.c.l.b16 %v37
  %v156 = vunpack.c.h.b16 %v37
  %v157 = vunpack.c.l.b16 %v38
  %v158 = vunpack.c.l.b16 %v39
  %v159 = vunpack.c.h.b16 %v39
  %v160 = vunpack.c.l.b16 %v40
  %v161 = vunpack.c.l.b16 %v41
  %v162 = vunpack.c.h.b16 %v41
  %v163 = vunpack.c.l.b16 %v42
  %v164 = vunpack.c.l.b16 %v43
  %v165 = vunpack.c.h.b16 %v43
  %v166 = vunpack.c.l.b16 %v44
  %v167 = vunpack.c.l.b16 %v45
  %v168 = vunpack.c.h.b16 %v45
  %v169 = vunpack.c.l.b16 %v46
  %v170 = vpack.c.b16 %v125, %v122
  %v171 = vpack.c.b16 %v126, %v123
  %v172 = vpack.c.b16 %v127, %v124
  %v173 = vpack.c.b16 %v131, %v128
  %v174 = vpack.c.b16 %v132, %v129
  %v175 = vpack.c.b16 %v133, %v130
  %v176 = vpack.c.b16 %v137, %v134
  %v177 = vpack.c.b16 %v138, %v135
  %v178 = vpack.c.b16 %v139, %v136
  %v179 = vpack.c.b16 %v143, %v140
  %v180 = vpack.c.b16 %v144, %v141
  %v181 = vpack.c.b16 %v145, %v142
  %v182 = vpack.c.b16 %v149, %v146
  %v183 = vpack.c.b16 %v150, %v147
  %v184 = vpack.c.b16 %v151, %v148
  %v185 = vpack.c.b16 %v155, %v152
  %v186 = vpack.c.b16 %v156, %v153
  %v187 = vpack.c.b16 %v157, %v154
  %v188 = vpack.c.b16 %v161, %v158
  %v189 = vpack.c.b16 %v162, %v159
  %v190 = vpack.c.b16 %v163, %v160
  %v191 = vpack.c.b16 %v167, %v164
  %v192 = vpack.c.b16 %v168, %v165
  %v193 = vpack.c.b16 %v169, %v166
  %v246 = vunpack.c.l.b16 %v47
  %v247 = vunpack.c.l.b16 %v48
  %v248 = vunpack.c.l.b16 %v49
  %v249 = vunpack.c.l.b16 %v50
  %v250 = vunpack.c.l.b16 %v51
  %v251 = vunpack.c.l.b16 %v52
  %v252 = vunpack.c.l.b16 %v53
  %v253 = vunpack.c.l.b16 %v54
  %v254 = vunpack.c.l.b16 %v55
  %v255 = vunpack.c.l.b16 %v56
  %v256 = vunpack.c.l.b16 %v57
  %v257 = vunpack.c.l.b16 %v58
  %v258 = vunpack.c.l.b16 %v59
  %v259 = vunpack.c.l.b16 %v60
  %v260 = vunpack.c.l.b16 %v61
  %v261 = vunpack.c.l.b16 %v62
  %v262 = vunpack.c.l.b16 %v63
  %v263 = vunpack.c.l.b16 %v64
  %v264 = vunpack.c.l.b16 %v65
  %v265 = vunpack.c.l.b16 %v66
  %v266 = vunpack.c.l.b16 %v67
  %v267 = vunpack.c.l.b16 %v68
  %v268 = vunpack.c.l.b16 %v69
  %v269 = vunpack.c.l.b16 %v70
  %v270 = vunpack.c.l.b16 %v71
  %v271 = vunpack.c.l.b16 %v72
  %v272 = vunpack.c.l.b16 %v73
  %v273 = vunpack.c.l.b16 %v74
  %v274 = vunpack.c.l.b16 %v75
  %v275 = vunpack.c.l.b16 %v76
  %v276 = vunpack.c.l.b16 %v77
  %v277 = vunpack.c.l.b16 %v78
  %v278 = vunpack.c.l.b16 %v79
  %v279 = vunpack.c.l.b16 %v80
  %v280 = vunpack.c.l.b16 %v81
  %v281 = vunpack.c.l.b16 %v82
  %v282 = vpack.c.b16 %v247, %v246
  %v283 = vpack.c.b16 %v249, %v248
  %v284 = vpack.c.b16 %v251, %v250
  %v285 = vpack.c.b16 %v253, %v252
  %v286 = vpack.c.b16 %v255, %v254
  %v287 = vpack.c.b16 %v257, %v256
  %v288 = vpack.c.b16 %v259, %v258
  %v289 = vpack.c.b16 %v261, %v260
  %v290 = vpack.c.b16 %v263, %v262
  %v291 = vpack.c.b16 %v265, %v264
  %v292 = vpack.c.b16 %v267, %v266
  %v293 = vpack.c.b16 %v269, %v268
  %v294 = vpack.c.b16 %v271, %v270
  %v295 = vpack.c.b16 %v273, %v272
  %v296 = vpack.c.b16 %v275, %v274
  %v297 = vpack.c.b16 %v277, %v276
  %v298 = vpack.c.b16 %v279, %v278
  %v299 = vpack.c.b16 %v281, %v280
  %vm318 = vcmask 261120
  %v320 = vsel %vm318, %v172, 0
  %v323 = vsel %vm318, %v175, 0
  %v326 = vsel %vm318, %v178, 0
  %v329 = vsel %vm318, %v181, 0
  %v332 = vsel %vm318, %v184, 0
  %v335 = vsel %vm318, %v187, 0
  %v338 = vsel %vm318, %v190, 0
  %v341 = vsel %vm318, %v193, 0
  %343 = vmatprep.subr.bf16.mxu0 0
  %344 = vmatpush1.bf16.msra.mxu0 %v289
  %345 = vmatprep.subr.bf16.mxu0 0
  %346 = vmatpush1.bf16.msra.mxu0 %v288
  %347 = vmatprep.subr.bf16.mxu0 0
  %348 = vmatpush1.bf16.msra.mxu0 %v287
  %349 = vmatprep.subr.bf16.mxu0 0
  %350 = vmatpush1.bf16.msra.mxu0 %v286
  %351 = vmatprep.subr.bf16.mxu0 0
  %352 = vmatpush1.bf16.msra.mxu0 %v285
  %353 = vmatprep.subr.bf16.mxu0 0
  %354 = vmatpush1.bf16.msra.mxu0 %v284
  %355 = vmatprep.subr.bf16.mxu0 0
  %356 = vmatpush1.bf16.msra.mxu0 %v283
  %357 = vmatprep.subr.bf16.mxu0 0
  %358 = vmatpush1.bf16.msra.mxu0 %v282
  %359 = vmatprep.subr.bf16.mxu0 0
  %360 = vmatpush2.bf16.msra.mxu0 %v297
  %361 = vmatprep.subr.bf16.mxu0 0
  %362 = vmatpush2.bf16.msra.mxu0 %v296
  %363 = vmatprep.subr.bf16.mxu0 0
  %364 = vmatpush2.bf16.msra.mxu0 %v295
  %365 = vmatprep.subr.bf16.mxu0 0
  %366 = vmatpush2.bf16.msra.mxu0 %v294
  %367 = vmatprep.subr.bf16.mxu0 0
  %368 = vmatpush2.bf16.msra.mxu0 %v293
  %369 = vmatprep.subr.bf16.mxu0 0
  %370 = vmatpush2.bf16.msra.mxu0 %v292
  %371 = vmatprep.subr.bf16.mxu0 0
  %372 = vmatpush2.bf16.msra.mxu0 %v291
  %373 = vmatprep.subr.bf16.mxu0 0
  %374 = vmatpush2.bf16.msra.mxu0 %v290
  %375 = vmatprep.mubr.bf16.mxu0 %v171
  %376 = vmatmul.mubr.bf16.gmra.mxu0 %v170
  %v377 = vpop.f32.mrf.mxu0
  %v378 = vadd.f32 %v88, %v377
  %v379 = vpop.f32.mrf.mxu0
  %v380 = vpop.f32.mrf.mxu0
  %v381 = vadd.f32 %v88, %v380
  %v382 = vpop.f32.mrf.mxu0
  %383 = vmatprep.mubr.bf16.mxu0 %v174
  %384 = vmatmul.mubr.bf16.gmra.mxu0 %v173
  %v385 = vpop.f32.mrf.mxu0
  %v386 = vadd.f32 %v88, %v385
  %v387 = vpop.f32.mrf.mxu0
  %v388 = vpop.f32.mrf.mxu0
  %v389 = vadd.f32 %v88, %v388
  %v390 = vpop.f32.mrf.mxu0
  %391 = vmatprep.mubr.bf16.mxu0 %v177
  %392 = vmatmul.mubr.bf16.gmra.mxu0 %v176
  %v393 = vpop.f32.mrf.mxu0
  %v394 = vadd.f32 %v88, %v393
  %v395 = vpop.f32.mrf.mxu0
  %v396 = vpop.f32.mrf.mxu0
  %v397 = vadd.f32 %v88, %v396
  %v398 = vpop.f32.mrf.mxu0
  %399 = vmatprep.mubr.bf16.mxu0 %v180
  %400 = vmatmul.mubr.bf16.gmra.mxu0 %v179
  %v401 = vpop.f32.mrf.mxu0
  %v402 = vadd.f32 %v88, %v401
  %v403 = vpop.f32.mrf.mxu0
  %v404 = vpop.f32.mrf.mxu0
  %v405 = vadd.f32 %v88, %v404
  %v406 = vpop.f32.mrf.mxu0
  %407 = vmatprep.mubr.bf16.mxu0 %v183
  %408 = vmatmul.mubr.bf16.gmra.mxu0 %v182
  %v409 = vpop.f32.mrf.mxu0
  %v410 = vadd.f32 %v88, %v409
  %v411 = vpop.f32.mrf.mxu0
  %v412 = vpop.f32.mrf.mxu0
  %v413 = vadd.f32 %v88, %v412
  %v414 = vpop.f32.mrf.mxu0
  %415 = vmatprep.mubr.bf16.mxu0 %v186
  %416 = vmatmul.mubr.bf16.gmra.mxu0 %v185
  %v417 = vpop.f32.mrf.mxu0
  %v418 = vadd.f32 %v88, %v417
  %v419 = vpop.f32.mrf.mxu0
  %v420 = vpop.f32.mrf.mxu0
  %v421 = vadd.f32 %v88, %v420
  %v422 = vpop.f32.mrf.mxu0
  %423 = vmatprep.mubr.bf16.mxu0 %v189
  %424 = vmatmul.mubr.bf16.gmra.mxu0 %v188
  %v425 = vpop.f32.mrf.mxu0
  %v426 = vadd.f32 %v88, %v425
  %v427 = vpop.f32.mrf.mxu0
  %v428 = vpop.f32.mrf.mxu0
  %v429 = vadd.f32 %v88, %v428
  %v430 = vpop.f32.mrf.mxu0
  %431 = vmatprep.mubr.bf16.mxu0 %v192
  %432 = vmatmul.mubr.bf16.gmra.mxu0 %v191
  %v433 = vpop.f32.mrf.mxu0
  %v434 = vadd.f32 %v88, %v433
  %v435 = vpop.f32.mrf.mxu0
  %v436 = vpop.f32.mrf.mxu0
  %v437 = vadd.f32 %v88, %v436
  %v438 = vpop.f32.mrf.mxu0
  %439 = vdwg.mxu0
  %440 = vmatprep.subr.bf16.mxu0 0
  %441 = vmatpush1.bf16.msra.mxu0 0
  %442 = vmatprep.subr.bf16.mxu0 0
  %443 = vmatpush1.bf16.msra.mxu0 0
  %444 = vmatprep.subr.bf16.mxu0 0
  %445 = vmatpush1.bf16.msra.mxu0 0
  %446 = vmatprep.subr.bf16.mxu0 0
  %447 = vmatpush1.bf16.msra.mxu0 0
  %448 = vmatprep.subr.bf16.mxu0 0
  %449 = vmatpush1.bf16.msra.mxu0 0
  %450 = vmatprep.subr.bf16.mxu0 0
  %451 = vmatpush1.bf16.msra.mxu0 0
  %452 = vmatprep.subr.bf16.mxu0 0
  %453 = vmatpush1.bf16.msra.mxu0 %v299
  %454 = vmatprep.subr.bf16.mxu0 0
  %455 = vmatpush1.bf16.msra.mxu0 %v298
  %456 = vmatprep.subr.bf16.mxu0 0
  %457 = vmatpush2.bf16.msra.mxu0 0
  %458 = vmatprep.subr.bf16.mxu0 0
  %459 = vmatpush2.bf16.msra.mxu0 0
  %460 = vmatprep.subr.bf16.mxu0 0
  %461 = vmatpush2.bf16.msra.mxu0 0
  %462 = vmatprep.subr.bf16.mxu0 0
  %463 = vmatpush2.bf16.msra.mxu0 0
  %464 = vmatprep.subr.bf16.mxu0 0
  %465 = vmatpush2.bf16.msra.mxu0 0
  %466 = vmatprep.subr.bf16.mxu0 0
  %467 = vmatpush2.bf16.msra.mxu0 0
  %468 = vmatprep.subr.bf16.mxu0 0
  %469 = vmatpush2.bf16.msra.mxu0 0
  %470 = vmatprep.subr.bf16.mxu0 0
  %471 = vmatpush2.bf16.msra.mxu0 0
  %472 = vmatprep.mubr.bf16.mxu0 0
  %473 = vmatmul.mubr.bf16.gmra.mxu0 %v320
  %v474 = vpop.f32.mrf.mxu0
  %v475 = vadd.f32 %v378, %v474
  %v476 = vpop.f32.mrf.mxu0
  %v477 = vpop.f32.mrf.mxu0
  %v478 = vadd.f32 %v381, %v477
  %v479 = vpop.f32.mrf.mxu0
  %480 = vmatprep.mubr.bf16.mxu0 0
  %481 = vmatmul.mubr.bf16.gmra.mxu0 %v323
  %v482 = vpop.f32.mrf.mxu0
  %v483 = vadd.f32 %v386, %v482
  %v484 = vpop.f32.mrf.mxu0
  %v485 = vpop.f32.mrf.mxu0
  %v486 = vadd.f32 %v389, %v485
  %v487 = vpop.f32.mrf.mxu0
  %488 = vmatprep.mubr.bf16.mxu0 0
  %489 = vmatmul.mubr.bf16.gmra.mxu0 %v326
  %v490 = vpop.f32.mrf.mxu0
  %v491 = vadd.f32 %v394, %v490
  %v492 = vpop.f32.mrf.mxu0
  %v493 = vpop.f32.mrf.mxu0
  %v494 = vadd.f32 %v397, %v493
  %v495 = vpop.f32.mrf.mxu0
  %496 = vmatprep.mubr.bf16.mxu0 0
  %497 = vmatmul.mubr.bf16.gmra.mxu0 %v329
  %v498 = vpop.f32.mrf.mxu0
  %v499 = vadd.f32 %v402, %v498
  %v500 = vpop.f32.mrf.mxu0
  %v501 = vpop.f32.mrf.mxu0
  %v502 = vadd.f32 %v405, %v501
  %v503 = vpop.f32.mrf.mxu0
  %504 = vmatprep.mubr.bf16.mxu0 0
  %505 = vmatmul.mubr.bf16.gmra.mxu0 %v332
  %v506 = vpop.f32.mrf.mxu0
  %v507 = vadd.f32 %v410, %v506
  %v508 = vpop.f32.mrf.mxu0
  %v509 = vpop.f32.mrf.mxu0
  %v510 = vadd.f32 %v413, %v509
  %v511 = vpop.f32.mrf.mxu0
  %512 = vmatprep.mubr.bf16.mxu0 0
  %513 = vmatmul.mubr.bf16.gmra.mxu0 %v335
  %v514 = vpop.f32.mrf.mxu0
  %v515 = vadd.f32 %v418, %v514
  %v516 = vpop.f32.mrf.mxu0
  %v517 = vpop.f32.mrf.mxu0
  %v518 = vadd.f32 %v421, %v517
  %v519 = vpop.f32.mrf.mxu0
  %520 = vmatprep.mubr.bf16.mxu0 0
  %521 = vmatmul.mubr.bf16.gmra.mxu0 %v338
  %v522 = vpop.f32.mrf.mxu0
  %v523 = vadd.f32 %v426, %v522
  %v524 = vpop.f32.mrf.mxu0
  %v525 = vpop.f32.mrf.mxu0
  %v526 = vadd.f32 %v429, %v525
  %v527 = vpop.f32.mrf.mxu0
  %528 = vmatprep.mubr.bf16.mxu0 0
  %529 = vmatmul.mubr.bf16.gmra.mxu0 %v341
  %v530 = vpop.f32.mrf.mxu0
  %v531 = vadd.f32 %v434, %v530
  %v532 = vpop.f32.mrf.mxu0
  %v533 = vpop.f32.mrf.mxu0
  %v534 = vadd.f32 %v437, %v533
  %v535 = vpop.f32.mrf.mxu0
  %536 = vdwg.mxu0
  %v537 = vpack.c.bf16 %v478, %v475
  %v538 = vpack.c.bf16 %v486, %v483
  %v539 = vpack.c.bf16 %v494, %v491
  %v540 = vpack.c.bf16 %v502, %v499
  %v541 = vpack.c.bf16 %v510, %v507
  %v542 = vpack.c.bf16 %v518, %v515
  %v543 = vpack.c.bf16 %v526, %v523
  %v544 = vpack.c.bf16 %v534, %v531
  %v553 = vunpack.c.l.b16 %v537
  %v554 = vunpack.c.h.b16 %v537
  %v555 = vunpack.c.l.b16 %v538
  %v556 = vunpack.c.h.b16 %v538
  %v557 = vunpack.c.l.b16 %v539
  %v558 = vunpack.c.h.b16 %v539
  %v559 = vunpack.c.l.b16 %v540
  %v560 = vunpack.c.h.b16 %v540
  %v561 = vunpack.c.l.b16 %v541
  %v562 = vunpack.c.h.b16 %v541
  %v563 = vunpack.c.l.b16 %v542
  %v564 = vunpack.c.h.b16 %v542
  %v565 = vunpack.c.l.b16 %v543
  %v566 = vunpack.c.h.b16 %v543
  %v567 = vunpack.c.l.b16 %v544
  %v568 = vunpack.c.h.b16 %v544
  %v569 = vpack.c.b16 %v553, %v553
  %v570 = vpack.c.b16 %v554, %v554
  %v571 = vpack.c.b16 %v555, %v555
  %v572 = vpack.c.b16 %v556, %v556
  %v573 = vpack.c.b16 %v557, %v557
  %v574 = vpack.c.b16 %v558, %v558
  %v575 = vpack.c.b16 %v559, %v559
  %v576 = vpack.c.b16 %v560, %v560
  %v577 = vpack.c.b16 %v561, %v561
  %v578 = vpack.c.b16 %v562, %v562
  %v579 = vpack.c.b16 %v563, %v563
  %v580 = vpack.c.b16 %v564, %v564
  %v581 = vpack.c.b16 %v565, %v565
  %v582 = vpack.c.b16 %v566, %v566
  %v583 = vpack.c.b16 %v567, %v567
  %v584 = vpack.c.b16 %v568, %v568
  %vm601 = vcmask 519168
  %602 = vst.msk [vmem:[%s3] sm:$0xf] %vm601, %v569
  %603 = vst.msk [vmem:[%s3 + $0x4] sm:$0xf] %vm601, %v570
  %604 = vst.msk [vmem:[%s3 + $0x8] sm:$0xf] %vm601, %v571
  %605 = vst.msk [vmem:[%s3 + $0xc] sm:$0xf] %vm601, %v572
  %606 = vst.msk [vmem:[%s3 + $0x10] sm:$0xf] %vm601, %v573
  %607 = vst.msk [vmem:[%s3 + $0x14] sm:$0xf] %vm601, %v574
  %608 = vst.msk [vmem:[%s3 + $0x18] sm:$0xf] %vm601, %v575
  %609 = vst.msk [vmem:[%s3 + $0x1c] sm:$0xf] %vm601, %v576
  %610 = vst.msk [vmem:[%s3 + $0x20] sm:$0xf] %vm601, %v577
  %611 = vst.msk [vmem:[%s3 + $0x24] sm:$0xf] %vm601, %v578
  %612 = vst.msk [vmem:[%s3 + $0x28] sm:$0xf] %vm601, %v579
  %613 = vst.msk [vmem:[%s3 + $0x2c] sm:$0xf] %vm601, %v580
  %614 = vst.msk [vmem:[%s3 + $0x30] sm:$0xf] %vm601, %v581
  %615 = vst.msk [vmem:[%s3 + $0x34] sm:$0xf] %vm601, %v582
  %616 = vst.msk [vmem:[%s3 + $0x38] sm:$0xf] %vm601, %v583
  %617 = vst.msk [vmem:[%s3 + $0x3c] sm:$0xf] %vm601, %v584
  // Predicated region
  $region14: #{yolov8_head_forward.33} parent=0 // pred_check
    _
  $region15: #{yolov8_head_forward.33} parent=0 // pred_check_branch
    %619 = sbr.rel (0) target = $region17
  $region16: #{yolov8_head_forward.33} parent=0 // pred_region
    _
  $region17: #{yolov8_head_forward.33} parent=0 // pred_fallthru
    _
  // Predicated region
  $region18: #{yolov8_head_forward.33} parent=0 // pred_check
    _
  $region19: #{yolov8_head_forward.33} parent=0 // pred_check_branch
    %621 = sbr.rel (0) target = $region21
  $region20: #{yolov8_head_forward.33} parent=0 // pred_region
    _
  $region21: #{yolov8_head_forward.33} parent=0 // pred_fallthru
    _

// kernel: yolov8_head_forward.34
$region0: #{yolov8_head_forward.34}
  #allocation0 [shape = 'u32[]', space=smem, size = 0x4, offset = 0x4, fixed_abs, tag = 'smem constant byte address 0x4 - core index']
  #allocation1 [shape = 'u32[144,128]{1,0:T(1,128)}', space=vmem, size = 0x12000, scoped, tag = 'internal scratch']
  %s0 = inlined_call_operand.vmem [shape: bf16[512,32], index: 0, kind: input, shape index: {}]
  %s1 = inlined_call_operand.vmem [shape: bf16[32,32], index: 1, kind: input, shape index: {}]
  %s2 = inlined_call_operand.vmem [shape: f32[1,32], index: 2, kind: input, shape index: {}]
  %s3 = inlined_call_operand.vmem [shape: bf16[512,32], index: 3, kind: output, shape index: {}]
  %s4 = sld [smem:[#allocation0]]
  $region45: #{yolov8_head_forward.34} parent=0
    _
  %s6 = ssub.s32 1, %s4
  %s7 = scalar_select 0, %s6, %s4
  loop: start=0, step=1, limit=4
  $region2: #{yolov8_head_forward.34} parent=0 // loop_pre_header
    _
  $region3: #{yolov8_head_forward.34} parent=0 // loop_header
    %s9 = sphi 0, %s13
    %p10 = scmp.ge.s32.totalorder %s9, 4
    %s16 = sphi 0, %s28
    %s17 = sphi 0, %s24
    %s18 = sphi 0, %s16
    %s19 = sphi 0, %s17
    %s20 = sphi 0, %s18
    %s21 = sphi 0, %s19
    %s31 = sphi 0, %s33
    %s34 = sphi 0, %s31
    %s35 = sphi 0, %s34
    %s51 = sphi 0, %s35
    %s57 = sphi 0, %s59
    %s60 = sphi 0, %s57
    %s61 = sphi 0, %s60
    %s77 = sphi 0, %s61
    %s83 = sphi 0, %s85
    %s86 = sphi 0, %s83
    %s87 = sphi 0, %s86
    %s103 = sphi 0, %s87
    %s111 = sphi 0, %s113
    %s114 = sphi 0, %s111
    %s115 = sphi 0, %s114
    %s131 = sphi 0, %s115
  $region4: #{yolov8_head_forward.34} parent=0 // loop_header_branch
    %12 = sbr.rel (%p10) target = $region8
  $region5: #{yolov8_head_forward.34} parent=0 // loop_body
    %s14 = ssub.s32 %s9, 1
    %s15 = ssub.s32 %s9, 2
    %s22 = sadd.s32 1, %s17
    %p23 = scmp.ge.s32.totalorder %s22, 1
    %s24 = scalar_select %p23, 0, %s22
    %s25 = sadd.s32 1, %s16
    %s26 = scalar_select %p23, %s25, %s16
    %p27 = scmp.ge.s32.totalorder %s26, 2
    %s28 = scalar_select %p27, 0, %s26
    %s29 = ssub.s32 %s16, %s28
    %p30 = scmp.eq.s32.totalorder %s29, 0
    %s32 = sadd.s32 %s31, 1
    %s33 = scalar_select %p30, %s31, %s32
    %p36 = pneg %p30
    %p37 = scmp.eq.s32.totalorder %s9, 1
    %p38 = por %p36, %p37
    %p39 = scmp.ne.s32.totalorder %s31, %s34
    %p40 = scmp.eq.s32.totalorder %s9, 0
    %p41 = por %p39, %p40
    %p42 = scmp.ne.s32.totalorder %s31, %s34
    %p43 = scmp.eq.s32.totalorder %s14, 1
    %p44 = por %p42, %p43
    %p45 = scmp.ne.s32.totalorder %s34, %s35
    %p46 = scmp.eq.s32.totalorder %s14, 0
    %p47 = por %p45, %p46
    %p48 = scmp.ne.s32.totalorder %s34, %s35
    %p49 = scmp.eq.s32.totalorder %s15, 1
    %p50 = por %p48, %p49
    %p52 = scmp.ne.s32.totalorder %s35, %s51
    %p53 = scmp.eq.s32.totalorder %s15, 0
    %p54 = por %p52, %p53
    %s55 = ssub.s32 %s17, %s24
    %p56 = scmp.eq.s32.totalorder %s55, 0
    %s58 = sadd.s32 %s57, 1
    %s59 = scalar_select %p56, %s57, %s58
    %p62 = pneg %p56
    %p63 = scmp.eq.s32.totalorder %s9, 1
    %p64 = por %p62, %p63
    %p65 = scmp.ne.s32.totalorder %s57, %s60
    %p66 = scmp.eq.s32.totalorder %s9, 0
    %p67 = por %p65, %p66
    %p68 = scmp.ne.s32.totalorder %s57, %s60
    %p69 = scmp.eq.s32.totalorder %s14, 1
    %p70 = por %p68, %p69
    %p71 = scmp.ne.s32.totalorder %s60, %s61
    %p72 = scmp.eq.s32.totalorder %s14, 0
    %p73 = por %p71, %p72
    %p74 = scmp.ne.s32.totalorder %s60, %s61
    %p75 = scmp.eq.s32.totalorder %s15, 1
    %p76 = por %p74, %p75
    %p78 = scmp.ne.s32.totalorder %s61, %s77
    %p79 = scmp.eq.s32.totalorder %s15, 0
    %p80 = por %p78, %p79
    %s81 = ssub.s32 %s17, %s24
    %p82 = scmp.eq.s32.totalorder %s81, 0
    %s84 = sadd.s32 %s83, 1
    %s85 = scalar_select %p82, %s83, %s84
    %p88 = pneg %p82
    %p89 = scmp.eq.s32.totalorder %s9, 1
    %p90 = por %p88, %p89
    %p91 = scmp.ne.s32.totalorder %s83, %s86
    %p92 = scmp.eq.s32.totalorder %s9, 0
    %p93 = por %p91, %p92
    %p94 = scmp.ne.s32.totalorder %s83, %s86
    %p95 = scmp.eq.s32.totalorder %s14, 1
    %p96 = por %p94, %p95
    %p97 = scmp.ne.s32.totalorder %s86, %s87
    %p98 = scmp.eq.s32.totalorder %s14, 0
    %p99 = por %p97, %p98
    %p100 = scmp.ne.s32.totalorder %s86, %s87
    %p101 = scmp.eq.s32.totalorder %s15, 1
    %p102 = por %p100, %p101
    %p104 = scmp.ne.s32.totalorder %s87, %s103
    %p105 = scmp.eq.s32.totalorder %s15, 0
    %p106 = por %p104, %p105
    %s107 = ssub.s32 %s16, %s28
    %s108 = ssub.s32 %s17, %s24
    %s109 = sor.u32 %s107, %s108
    %p110 = scmp.eq.s32.totalorder %s109, 0
    %s112 = sadd.s32 %s111, 1
    %s113 = scalar_select %p110, %s111, %s112
    %p116 = pneg %p110
    %p117 = scmp.eq.s32.totalorder %s9, 1
    %p118 = por %p116, %p117
    %p119 = scmp.ne.s32.totalorder %s111, %s114
    %p120 = scmp.eq.s32.totalorder %s9, 0
    %p121 = por %p119, %p120
    %p122 = scmp.ne.s32.totalorder %s111, %s114
    %p123 = scmp.eq.s32.totalorder %s14, 1
    %p124 = por %p122, %p123
    %p125 = scmp.ne.s32.totalorder %s114, %s115
    %p126 = scmp.eq.s32.totalorder %s14, 0
    %p127 = por %p125, %p126
    %p128 = scmp.ne.s32.totalorder %s114, %s115
    %p129 = scmp.eq.s32.totalorder %s15, 1
    %p130 = por %p128, %p129
    %p132 = scmp.ne.s32.totalorder %s115, %s131
    %p133 = scmp.eq.s32.totalorder %s15, 0
    %p134 = por %p132, %p133
    %p135 = scmp.le.s32.totalorder 1, %s9
    %p136 = scmp.lt.s32.totalorder %s9, 3
    %p137 = pnand %p135, %p136
    %p138 = pneg %p137
    // Predicated region
    $region9: #{yolov8_head_forward.34} parent=5 // pred_check
      _
    $region10: #{yolov8_head_forward.34} parent=5 // pred_check_branch
      %140 = sbr.rel (%p137) target = $region12
    $region11: #{yolov8_head_forward.34} parent=5 // pred_region
      %s141 = ssub.s32 %s9, 1
      // Predicated region
      $region13: #{yolov8_head_forward.34} parent=11 // pred_check
        %p142 = pneg %p73
      $region14: #{yolov8_head_forward.34} parent=11 // pred_check_branch
        %144 = sbr.rel (%p142) target = $region16
      $region15: #{yolov8_head_forward.34} parent=11 // pred_region
        %p145 = scmp.lt.s32.totalorder %s19, 0
        %s146 = scalar_select %p145, %s19, 0
        %s147 = smul.addr %s146, 4
        %s148 = scalar_lea.vmem %s1, %s147
      $region16: #{yolov8_head_forward.34} parent=11 // pred_fallthru
        _
      // Predicated region
      $region17: #{yolov8_head_forward.34} parent=11 // pred_check
        %p149 = pneg %p99
      $region18: #{yolov8_head_forward.34} parent=11 // pred_check_branch
        %151 = sbr.rel (%p149) target = $region20
      $region19: #{yolov8_head_forward.34} parent=11 // pred_region
        %p152 = scmp.lt.s32.totalorder %s19, 0
        %s153 = scalar_select %p152, %s19, 0
        %s154 = scalar_lea.vmem %s2, %s153
      $region20: #{yolov8_head_forward.34} parent=11 // pred_fallthru
        _
    $region12: #{yolov8_head_forward.34} parent=5 // pred_fallthru
      _
    %p155 = scmp.lt.s32.totalorder %s9, 2
    // Predicated region
    $region21: #{yolov8_head_forward.34} parent=5 // pred_check
      %p156 = pneg %p155
    $region22: #{yolov8_head_forward.34} parent=5 // pred_check_branch
      %158 = sbr.rel (%p156) target = $region24
    $region23: #{yolov8_head_forward.34} parent=5 // pred_region
      // Predicated region
      $region25: #{yolov8_head_forward.34} parent=23 // pred_check
        %p159 = pneg %p41
      $region26: #{yolov8_head_forward.34} parent=23 // pred_check_branch
        %161 = sbr.rel (%p159) target = $region28
      $region27: #{yolov8_head_forward.34} parent=23 // pred_region
        %s162 = smul.u32 32, %s16
        %p163 = scmp.lt.s32.totalorder %s162, 63
        %s164 = scalar_select %p163, %s162, 63
        %s165 = smul.addr %s164, 4
        %s166 = scalar_lea.vmem %s0, %s165
        %s167 = smul.u32 32, %s16
      $region28: #{yolov8_head_forward.34} parent=23 // pred_fallthru
        _
    $region24: #{yolov8_head_forward.34} parent=5 // pred_fallthru
      _
    %p168 = scmp.le.s32.totalorder 1, %s9
    %p169 = scmp.lt.s32.totalorder %s9, 3
    %p170 = pnand %p168, %p169
    %p171 = pneg %p170
    // Predicated region
    $region29: #{yolov8_head_forward.34} parent=5 // pred_check
      _
    $region30: #{yolov8_head_forward.34} parent=5 // pred_check_branch
      %173 = sbr.rel (%p170) target = $region32
    $region31: #{yolov8_head_forward.34} parent=5 // pred_region
      %s174 = ssub.s32 %s9, 1
      %s175 = smul.u32 32, %s18
      %p176 = scmp.lt.s32.totalorder %s175, 63
      %s177 = scalar_select %p176, %s175, 63
      %s178 = smul.addr %s177, 4
      %s179 = scalar_lea.vmem %s0, %s178
      %p180 = pneg %p47
      %p181 = pneg %p44
      %p182 = scmp.lt.s32.totalorder %s19, 0
      %s183 = scalar_select %p182, %s19, 0
      %s184 = smul.addr %s183, 4
      %s185 = scalar_lea.vmem %s1, %s184
      %p186 = pneg %p73
      %p187 = pneg %p70
      %p188 = scmp.lt.s32.totalorder %s19, 0
      %s189 = scalar_select %p188, %s19, 0
      %s190 = scalar_lea.vmem %s2, %s189
      %p191 = pneg %p99
      %p192 = pneg %p96
      %p193 = pneg %p127
      %p194 = pneg %p124
      %s195 = smul.u32 32, %s18
      %p196 = scmp.lt.s32.totalorder %s195, 63
      %s197 = scalar_select %p196, %s195, 63
      %p198 = scmp.lt.s32.totalorder %s19, 0
      %s199 = scalar_select %p198, %s19, 0
      %s200 = sadd.s32 %s199, %s197
      %s201 = smul.addr %s200, 4
      %s202 = scalar_lea.vmem %s3, %s201
      %s203 = smul.u32 32, %s18
      %p204 = scmp.lt.s32.totalorder %s203, 63
      %s205 = scalar_select %p204, %s203, 63
      %s206 = smul.addr %s205, 4
      %s207 = scalar_lea.vmem %s0, %s206
      %s208 = smul.u32 32, %s18
      %p209 = scmp.lt.s32.totalorder %s19, 0
      %s210 = scalar_select %p209, %s19, 0
      %s211 = smul.addr %s210, 4
      %s212 = scalar_lea.vmem %s1, %s211
      %p213 = scmp.lt.s32.totalorder %s19, 0
      %s214 = scalar_select %p213, %s19, 0
      %s215 = scalar_lea.vmem %s2, %s214
      %s216 = smul.u32 32, %s18
      %p217 = scmp.lt.s32.totalorder %s216, 63
      %s218 = scalar_select %p217, %s216, 63
      %p219 = scmp.lt.s32.totalorder %s19, 0
      %s220 = scalar_select %p219, %s19, 0
      %s221 = sadd.s32 %s220, %s218
      %s222 = smul.addr %s221, 4
      %s223 = scalar_lea.vmem %s3, %s222
      %s224 = smul.u32 32, %s18
      %v226 = vld [vmem:[%s207] sm:$0xf]
      %v227 = vld [vmem:[%s207 + $0x4] sm:$0xf]
      %v228 = vld [vmem:[%s207 + $0x8] sm:$0xf]
      %v229 = vld [vmem:[%s207 + $0xc] sm:$0xf]
      %v230 = vld [vmem:[%s207 + $0x10] sm:$0xf]
      %v231 = vld [vmem:[%s207 + $0x14] sm:$0xf]
      %v232 = vld [vmem:[%s207 + $0x18] sm:$0xf]
      %v233 = vld [vmem:[%s207 + $0x1c] sm:$0xf]
      %v234 = vld [vmem:[%s207 + $0x20] sm:$0xf]
      %v235 = vld [vmem:[%s207 + $0x24] sm:$0xf]
      %v236 = vld [vmem:[%s207 + $0x28] sm:$0xf]
      %v237 = vld [vmem:[%s207 + $0x2c] sm:$0xf]
      %v238 = vld [vmem:[%s207 + $0x30] sm:$0xf]
      %v239 = vld [vmem:[%s207 + $0x34] sm:$0xf]
      %v240 = vld [vmem:[%s207 + $0x38] sm:$0xf]
      %v241 = vld [vmem:[%s207 + $0x3c] sm:$0xf]
      %v242 = vld [vmem:[%s207 + $0x40] sm:$0xf]
      %v243 = vld [vmem:[%s207 + $0x44] sm:$0xf]
      %v244 = vld [vmem:[%s207 + $0x48] sm:$0xf]
      %v245 = vld [vmem:[%s207 + $0x4c] sm:$0xf]
      %v246 = vld [vmem:[%s207 + $0x50] sm:$0xf]
      %v247 = vld [vmem:[%s207 + $0x54] sm:$0xf]
      %v248 = vld [vmem:[%s207 + $0x58] sm:$0xf]
      %v249 = vld [vmem:[%s207 + $0x5c] sm:$0xf]
      %v250 = vld [vmem:[%s207 + $0x60] sm:$0xf]
      %v251 = vld [vmem:[%s207 + $0x64] sm:$0xf]
      %v252 = vld [vmem:[%s207 + $0x68] sm:$0xf]
      %v253 = vld [vmem:[%s207 + $0x6c] sm:$0xf]
      %v254 = vld [vmem:[%s207 + $0x70] sm:$0xf]
      %v255 = vld [vmem:[%s207 + $0x74] sm:$0xf]
      %v256 = vld [vmem:[%s207 + $0x78] sm:$0xf]
      %v257 = vld [vmem:[%s207 + $0x7c] sm:$0xf]
      %v258 = vld [vmem:[%s212] sm:$0xf]
      %v259 = vld [vmem:[%s212 + $0x4] sm:$0xf]
      %v260 = vld [vmem:[%s212 + $0x8] sm:$0xf]
      %v261 = vld [vmem:[%s212 + $0xc] sm:$0xf]
      %v262 = vld [vmem:[%s215] sm:$0x1]
      %v264 = vlaneseq
      %v265 = vshrl.u32 %v264, 7
      %v266 = vsub.s32 0, %v265
      %v267 = vrot.slane %v262, %v266
      %v301 = vunpack.c.l.b16 %v226
      %v302 = vunpack.c.l.b16 %v227
      %v303 = vunpack.c.l.b16 %v228
      %v304 = vunpack.c.l.b16 %v229
      %v305 = vunpack.c.l.b16 %v230
      %v306 = vunpack.c.l.b16 %v231
      %v307 = vunpack.c.l.b16 %v232
      %v308 = vunpack.c.l.b16 %v233
      %v309 = vunpack.c.l.b16 %v234
      %v310 = vunpack.c.l.b16 %v235
      %v311 = vunpack.c.l.b16 %v236
      %v312 = vunpack.c.l.b16 %v237
      %v313 = vunpack.c.l.b16 %v238
      %v314 = vunpack.c.l.b16 %v239
      %v315 = vunpack.c.l.b16 %v240
      %v316 = vunpack.c.l.b16 %v241
      %v317 = vunpack.c.l.b16 %v242
      %v318 = vunpack.c.l.b16 %v243
      %v319 = vunpack.c.l.b16 %v244
      %v320 = vunpack.c.l.b16 %v245
      %v321 = vunpack.c.l.b16 %v246
      %v322 = vunpack.c.l.b16 %v247
      %v323 = vunpack.c.l.b16 %v248
      %v324 = vunpack.c.l.b16 %v249
      %v325 = vunpack.c.l.b16 %v250
      %v326 = vunpack.c.l.b16 %v251
      %v327 = vunpack.c.l.b16 %v252
      %v328 = vunpack.c.l.b16 %v253
      %v329 = vunpack.c.l.b16 %v254
      %v330 = vunpack.c.l.b16 %v255
      %v331 = vunpack.c.l.b16 %v256
      %v332 = vunpack.c.l.b16 %v257
      %v333 = vpack.c.b16 %v302, %v301
      %v334 = vpack.c.b16 %v304, %v303
      %v335 = vpack.c.b16 %v306, %v305
      %v336 = vpack.c.b16 %v308, %v307
      %v337 = vpack.c.b16 %v310, %v309
      %v338 = vpack.c.b16 %v312, %v311
      %v339 = vpack.c.b16 %v314, %v313
      %v340 = vpack.c.b16 %v316, %v315
      %v341 = vpack.c.b16 %v318, %v317
      %v342 = vpack.c.b16 %v320, %v319
      %v343 = vpack.c.b16 %v322, %v321
      %v344 = vpack.c.b16 %v324, %v323
      %v345 = vpack.c.b16 %v326, %v325
      %v346 = vpack.c.b16 %v328, %v327
      %v347 = vpack.c.b16 %v330, %v329
      %v348 = vpack.c.b16 %v332, %v331
      %v353 = vunpack.c.l.b16 %v258
      %v354 = vunpack.c.l.b16 %v259
      %v355 = vunpack.c.l.b16 %v260
      %v356 = vunpack.c.l.b16 %v261
      %v357 = vpack.c.b16 %v354, %v353
      %v358 = vpack.c.b16 %v356, %v355
      %vm361 = vcmask 261120
      %v363 = vsel %vm361, %v333, 0
      %v366 = vsel %vm361, %v334, 0
      %v369 = vsel %vm361, %v335, 0
      %v372 = vsel %vm361, %v336, 0
      %v375 = vsel %vm361, %v337, 0
      %v378 = vsel %vm361, %v338, 0
      %v381 = vsel %vm361, %v339, 0
      %v384 = vsel %vm361, %v340, 0
      %v387 = vsel %vm361, %v341, 0
      %v390 = vsel %vm361, %v342, 0
      %v393 = vsel %vm361, %v343, 0
      %v396 = vsel %vm361, %v344, 0
      %v399 = vsel %vm361, %v345, 0
      %v402 = vsel %vm361, %v346, 0
      %v405 = vsel %vm361, %v347, 0
      %v408 = vsel %vm361, %v348, 0
      %410 = vmatprep.subr.bf16.mxu0 0
      %411 = vmatpush1.bf16.msra.mxu0 0
      %412 = vmatprep.subr.bf16.mxu0 0
      %413 = vmatpush1.bf16.msra.mxu0 0
      %414 = vmatprep.subr.bf16.mxu0 0
      %415 = vmatpush1.bf16.msra.mxu0 0
      %416 = vmatprep.subr.bf16.mxu0 0
      %417 = vmatpush1.bf16.msra.mxu0 0
      %418 = vmatprep.subr.bf16.mxu0 0
      %419 = vmatpush1.bf16.msra.mxu0 0
      %420 = vmatprep.subr.bf16.mxu0 0
      %421 = vmatpush1.bf16.msra.mxu0 0
      %422 = vmatprep.subr.bf16.mxu0 0
      %423 = vmatpush1.bf16.msra.mxu0 %v358
      %424 = vmatprep.subr.bf16.mxu0 0
      %425 = vmatpush1.bf16.msra.mxu0 %v357
      %426 = vmatprep.subr.bf16.mxu0 0
      %427 = vmatpush2.bf16.msra.mxu0 0
      %428 = vmatprep.subr.bf16.mxu0 0
      %429 = vmatpush2.bf16.msra.mxu0 0
      %430 = vmatprep.subr.bf16.mxu0 0
      %431 = vmatpush2.bf16.msra.mxu0 0
      %432 = vmatprep.subr.bf16.mxu0 0
      %433 = vmatpush2.bf16.msra.mxu0 0
      %434 = vmatprep.subr.bf16.mxu0 0
      %435 = vmatpush2.bf16.msra.mxu0 0
      %436 = vmatprep.subr.bf16.mxu0 0
      %437 = vmatpush2.bf16.msra.mxu0 0
      %438 = vmatprep.subr.bf16.mxu0 0
      %439 = vmatpush2.bf16.msra.mxu0 0
      %440 = vmatprep.subr.bf16.mxu0 0
      %441 = vmatpush2.bf16.msra.mxu0 0
      %442 = vmatprep.mubr.bf16.mxu0 0
      %443 = vmatmul.mubr.bf16.gmra.mxu0 %v363
      %v444 = vpop.f32.mrf.mxu0
      %v445 = vadd.f32 %v267, %v444
      %v446 = vpop.f32.mrf.mxu0
      %v447 = vpop.f32.mrf.mxu0
      %v448 = vadd.f32 %v267, %v447
      %v449 = vpop.f32.mrf.mxu0
      %450 = vmatprep.mubr.bf16.mxu0 0
      %451 = vmatmul.mubr.bf16.gmra.mxu0 %v366
      %v452 = vpop.f32.mrf.mxu0
      %v453 = vadd.f32 %v267, %v452
      %v454 = vpop.f32.mrf.mxu0
      %v455 = vpop.f32.mrf.mxu0
      %v456 = vadd.f32 %v267, %v455
      %v457 = vpop.f32.mrf.mxu0
      %458 = vmatprep.mubr.bf16.mxu0 0
      %459 = vmatmul.mubr.bf16.gmra.mxu0 %v369
      %v460 = vpop.f32.mrf.mxu0
      %v461 = vadd.f32 %v267, %v460
      %v462 = vpop.f32.mrf.mxu0
      %v463 = vpop.f32.mrf.mxu0
      %v464 = vadd.f32 %v267, %v463
      %v465 = vpop.f32.mrf.mxu0
      %466 = vmatprep.mubr.bf16.mxu0 0
      %467 = vmatmul.mubr.bf16.gmra.mxu0 %v372
      %v468 = vpop.f32.mrf.mxu0
      %v469 = vadd.f32 %v267, %v468
      %v470 = vpop.f32.mrf.mxu0
      %v471 = vpop.f32.mrf.mxu0
      %v472 = vadd.f32 %v267, %v471
      %v473 = vpop.f32.mrf.mxu0
      %474 = vmatprep.mubr.bf16.mxu0 0
      %475 = vmatmul.mubr.bf16.gmra.mxu0 %v375
      %v476 = vpop.f32.mrf.mxu0
      %v477 = vadd.f32 %v267, %v476
      %v478 = vpop.f32.mrf.mxu0
      %v479 = vpop.f32.mrf.mxu0
      %v480 = vadd.f32 %v267, %v479
      %v481 = vpop.f32.mrf.mxu0
      %482 = vmatprep.mubr.bf16.mxu0 0
      %483 = vmatmul.mubr.bf16.gmra.mxu0 %v378
      %v484 = vpop.f32.mrf.mxu0
      %v485 = vadd.f32 %v267, %v484
      %v486 = vpop.f32.mrf.mxu0
      %v487 = vpop.f32.mrf.mxu0
      %v488 = vadd.f32 %v267, %v487
      %v489 = vpop.f32.mrf.mxu0
      %490 = vmatprep.mubr.bf16.mxu0 0
      %491 = vmatmul.mubr.bf16.gmra.mxu0 %v381
      %v492 = vpop.f32.mrf.mxu0
      %v493 = vadd.f32 %v267, %v492
      %v494 = vpop.f32.mrf.mxu0
      %v495 = vpop.f32.mrf.mxu0
      %v496 = vadd.f32 %v267, %v495
      %v497 = vpop.f32.mrf.mxu0
      %498 = vmatprep.mubr.bf16.mxu0 0
      %499 = vmatmul.mubr.bf16.gmra.mxu0 %v384
      %v500 = vpop.f32.mrf.mxu0
      %v501 = vadd.f32 %v267, %v500
      %v502 = vpop.f32.mrf.mxu0
      %v503 = vpop.f32.mrf.mxu0
      %v504 = vadd.f32 %v267, %v503
      %v505 = vpop.f32.mrf.mxu0
      %506 = vmatprep.mubr.bf16.mxu0 0
      %507 = vmatmul.mubr.bf16.gmra.mxu0 %v387
      %v508 = vpop.f32.mrf.mxu0
      %v509 = vadd.f32 %v267, %v508
      %v510 = vpop.f32.mrf.mxu0
      %v511 = vpop.f32.mrf.mxu0
      %v512 = vadd.f32 %v267, %v511
      %v513 = vpop.f32.mrf.mxu0
      %514 = vmatprep.mubr.bf16.mxu0 0
      %515 = vmatmul.mubr.bf16.gmra.mxu0 %v390
      %v516 = vpop.f32.mrf.mxu0
      %v517 = vadd.f32 %v267, %v516
      %v518 = vpop.f32.mrf.mxu0
      %v519 = vpop.f32.mrf.mxu0
      %v520 = vadd.f32 %v267, %v519
      %v521 = vpop.f32.mrf.mxu0
      %522 = vmatprep.mubr.bf16.mxu0 0
      %523 = vmatmul.mubr.bf16.gmra.mxu0 %v393
      %v524 = vpop.f32.mrf.mxu0
      %v525 = vadd.f32 %v267, %v524
      %v526 = vpop.f32.mrf.mxu0
      %v527 = vpop.f32.mrf.mxu0
      %v528 = vadd.f32 %v267, %v527
      %v529 = vpop.f32.mrf.mxu0
      %530 = vmatprep.mubr.bf16.mxu0 0
      %531 = vmatmul.mubr.bf16.gmra.mxu0 %v396
      %v532 = vpop.f32.mrf.mxu0
      %v533 = vadd.f32 %v267, %v532
      %v534 = vpop.f32.mrf.mxu0
      %v535 = vpop.f32.mrf.mxu0
      %v536 = vadd.f32 %v267, %v535
      %v537 = vpop.f32.mrf.mxu0
      %538 = vmatprep.mubr.bf16.mxu0 0
      %539 = vmatmul.mubr.bf16.gmra.mxu0 %v399
      %v540 = vpop.f32.mrf.mxu0
      %v541 = vadd.f32 %v267, %v540
      %v542 = vpop.f32.mrf.mxu0
      %v543 = vpop.f32.mrf.mxu0
      %v544 = vadd.f32 %v267, %v543
      %v545 = vpop.f32.mrf.mxu0
      %546 = vmatprep.mubr.bf16.mxu0 0
      %547 = vmatmul.mubr.bf16.gmra.mxu0 %v402
      %v548 = vpop.f32.mrf.mxu0
      %v549 = vadd.f32 %v267, %v548
      %v550 = vpop.f32.mrf.mxu0
      %v551 = vpop.f32.mrf.mxu0
      %v552 = vadd.f32 %v267, %v551
      %v553 = vpop.f32.mrf.mxu0
      %554 = vmatprep.mubr.bf16.mxu0 0
      %555 = vmatmul.mubr.bf16.gmra.mxu0 %v405
      %v556 = vpop.f32.mrf.mxu0
      %v557 = vadd.f32 %v267, %v556
      %v558 = vpop.f32.mrf.mxu0
      %v559 = vpop.f32.mrf.mxu0
      %v560 = vadd.f32 %v267, %v559
      %v561 = vpop.f32.mrf.mxu0
      %562 = vmatprep.mubr.bf16.mxu0 0
      %563 = vmatmul.mubr.bf16.gmra.mxu0 %v408
      %v564 = vpop.f32.mrf.mxu0
      %v565 = vadd.f32 %v267, %v564
      %v566 = vpop.f32.mrf.mxu0
      %v567 = vpop.f32.mrf.mxu0
      %v568 = vadd.f32 %v267, %v567
      %v569 = vpop.f32.mrf.mxu0
      %570 = vdwg.mxu0
      %v571 = vxor.u32 %v445, 2147483648
      %v572 = vxor.u32 %v448, 2147483648
      %v573 = vxor.u32 %v453, 2147483648
      %v574 = vxor.u32 %v456, 2147483648
      %v575 = vxor.u32 %v461, 2147483648
      %v576 = vxor.u32 %v464, 2147483648
      %v577 = vxor.u32 %v469, 2147483648
      %v578 = vxor.u32 %v472, 2147483648
      %v579 = vxor.u32 %v477, 2147483648
      %v580 = vxor.u32 %v480, 2147483648
      %v581 = vxor.u32 %v485, 2147483648
      %v582 = vxor.u32 %v488, 2147483648
      %v583 = vxor.u32 %v493, 2147483648
      %v584 = vxor.u32 %v496, 2147483648
      %v585 = vxor.u32 %v501, 2147483648
      %v586 = vxor.u32 %v504, 2147483648
      %v587 = vxor.u32 %v509, 2147483648
      %v588 = vxor.u32 %v512, 2147483648
      %v589 = vxor.u32 %v517, 2147483648
      %v590 = vxor.u32 %v520, 2147483648
      %v591 = vxor.u32 %v525, 2147483648
      %v592 = vxor.u32 %v528, 2147483648
      %v593 = vxor.u32 %v533, 2147483648
      %v594 = vxor.u32 %v536, 2147483648
      %v595 = vxor.u32 %v541, 2147483648
      %v596 = vxor.u32 %v544, 2147483648
      %v597 = vxor.u32 %v549, 2147483648
      %v598 = vxor.u32 %v552, 2147483648
      %v599 = vxor.u32 %v557, 2147483648
      %v600 = vxor.u32 %v560, 2147483648
      %v601 = vxor.u32 %v565, 2147483648
      %v602 = vxor.u32 %v568, 2147483648
      %v603 = vmul.f32 %v571, 1.442695
      %v604 = vpow.pop %v603
      %v605 = vmul.f32 %v572, 1.442695
      %v606 = vpow.pop %v605
      %v607 = vmul.f32 %v573, 1.442695
      %v608 = vpow.pop %v607
      %v609 = vmul.f32 %v574, 1.442695
      %v610 = vpow.pop %v609
      %v611 = vmul.f32 %v575, 1.442695
      %v612 = vpow.pop %v611
      %v613 = vmul.f32 %v576, 1.442695
      %v614 = vpow.pop %v613
      %v615 = vmul.f32 %v577, 1.442695
      %v616 = vpow.pop %v615
      %v617 = vmul.f32 %v578, 1.442695
      %v618 = vpow.pop %v617
      %v619 = vmul.f32 %v579, 1.442695
      %v620 = vpow.pop %v619
      %v621 = vmul.f32 %v580, 1.442695
      %v622 = vpow.pop %v621
      %v623 = vmul.f32 %v581, 1.442695
      %v624 = vpow.pop %v623
      %v625 = vmul.f32 %v582, 1.442695
      %v626 = vpow.pop %v625
      %v627 = vmul.f32 %v583, 1.442695
      %v628 = vpow.pop %v627
      %v629 = vmul.f32 %v584, 1.442695
      %v630 = vpow.pop %v629
      %v631 = vmul.f32 %v585, 1.442695
      %v632 = vpow.pop %v631
      %v633 = vmul.f32 %v586, 1.442695
      %v634 = vpow.pop %v633
      %v635 = vmul.f32 %v587, 1.442695
      %v636 = vpow.pop %v635
      %v637 = vmul.f32 %v588, 1.442695
      %v638 = vpow.pop %v637
      %v639 = vmul.f32 %v589, 1.442695
      %v640 = vpow.pop %v639
      %v641 = vmul.f32 %v590, 1.442695
      %v642 = vpow.pop %v641
      %v643 = vmul.f32 %v591, 1.442695
      %v644 = vpow.pop %v643
      %v645 = vmul.f32 %v592, 1.442695
      %v646 = vpow.pop %v645
      %v647 = vmul.f32 %v593, 1.442695
      %v648 = vpow.pop %v647
      %v649 = vmul.f32 %v594, 1.442695
      %v650 = vpow.pop %v649
      %v651 = vmul.f32 %v595, 1.442695
      %v652 = vpow.pop %v651
      %v653 = vmul.f32 %v596, 1.442695
      %v654 = vpow.pop %v653
      %v655 = vmul.f32 %v597, 1.442695
      %v656 = vpow.pop %v655
      %v657 = vmul.f32 %v598, 1.442695
      %v658 = vpow.pop %v657
      %v659 = vmul.f32 %v599, 1.442695
      %v660 = vpow.pop %v659
      %v661 = vmul.f32 %v600, 1.442695
      %v662 = vpow.pop %v661
      %v663 = vmul.f32 %v601, 1.442695
      %v664 = vpow.pop %v663
      %v665 = vmul.f32 %v602, 1.442695
      %v666 = vpow.pop %v665
      %v667 = vadd.f32 %v604, 1.0
      %v668 = vadd.f32 %v606, 1.0
      %v669 = vadd.f32 %v608, 1.0
      %v670 = vadd.f32 %v610, 1.0
      %v671 = vadd.f32 %v612, 1.0
      %v672 = vadd.f32 %v614, 1.0
      %v673 = vadd.f32 %v616, 1.0
      %v674 = vadd.f32 %v618, 1.0
      %v675 = vadd.f32 %v620, 1.0
      %v676 = vadd.f32 %v622, 1.0
      %v677 = vadd.f32 %v624, 1.0
      %v678 = vadd.f32 %v626, 1.0
      %v679 = vadd.f32 %v628, 1.0
      %v680 = vadd.f32 %v630, 1.0
      %v681 = vadd.f32 %v632, 1.0
      %v682 = vadd.f32 %v634, 1.0
      %v683 = vadd.f32 %v636, 1.0
      %v684 = vadd.f32 %v638, 1.0
      %v685 = vadd.f32 %v640, 1.0
      %v686 = vadd.f32 %v642, 1.0
      %v687 = vadd.f32 %v644, 1.0
      %v688 = vadd.f32 %v646, 1.0
      %v689 = vadd.f32 %v648, 1.0
      %v690 = vadd.f32 %v650, 1.0
      %v691 = vadd.f32 %v652, 1.0
      %v692 = vadd.f32 %v654, 1.0
      %v693 = vadd.f32 %v656, 1.0
      %v694 = vadd.f32 %v658, 1.0
      %v695 = vadd.f32 %v660, 1.0
      %v696 = vadd.f32 %v662, 1.0
      %v697 = vadd.f32 %v664, 1.0
      %v698 = vadd.f32 %v666, 1.0
      %v699 = vrcp.pop %v667
      %v700 = vmul.f32 1.0, %v699
      %v701 = vrcp.pop %v668
      %v702 = vmul.f32 1.0, %v701
      %v703 = vrcp.pop %v669
      %v704 = vmul.f32 1.0, %v703
      %v705 = vrcp.pop %v670
      %v706 = vmul.f32 1.0, %v705
      %v707 = vrcp.pop %v671
      %v708 = vmul.f32 1.0, %v707
      %v709 = vrcp.pop %v672
      %v710 = vmul.f32 1.0, %v709
      %v711 = vrcp.pop %v673
      %v712 = vmul.f32 1.0, %v711
      %v713 = vrcp.pop %v674
      %v714 = vmul.f32 1.0, %v713
      %v715 = vrcp.pop %v675
      %v716 = vmul.f32 1.0, %v715
      %v717 = vrcp.pop %v676
      %v718 = vmul.f32 1.0, %v717
      %v719 = vrcp.pop %v677
      %v720 = vmul.f32 1.0, %v719
      %v721 = vrcp.pop %v678
      %v722 = vmul.f32 1.0, %v721
      %v723 = vrcp.pop %v679
      %v724 = vmul.f32 1.0, %v723
      %v725 = vrcp.pop %v680
      %v726 = vmul.f32 1.0, %v725
      %v727 = vrcp.pop %v681
      %v728 = vmul.f32 1.0, %v727
      %v729 = vrcp.pop %v682
      %v730 = vmul.f32 1.0, %v729
      %v731 = vrcp.pop %v683
      %v732 = vmul.f32 1.0, %v731
      %v733 = vrcp.pop %v684
      %v734 = vmul.f32 1.0, %v733
      %v735 = vrcp.pop %v685
      %v736 = vmul.f32 1.0, %v735
      %v737 = vrcp.pop %v686
      %v738 = vmul.f32 1.0, %v737
      %v739 = vrcp.pop %v687
      %v740 = vmul.f32 1.0, %v739
      %v741 = vrcp.pop %v688
      %v742 = vmul.f32 1.0, %v741
      %v743 = vrcp.pop %v689
      %v744 = vmul.f32 1.0, %v743
      %v745 = vrcp.pop %v690
      %v746 = vmul.f32 1.0, %v745
      %v747 = vrcp.pop %v691
      %v748 = vmul.f32 1.0, %v747
      %v749 = vrcp.pop %v692
      %v750 = vmul.f32 1.0, %v749
      %v751 = vrcp.pop %v693
      %v752 = vmul.f32 1.0, %v751
      %v753 = vrcp.pop %v694
      %v754 = vmul.f32 1.0, %v753
      %v755 = vrcp.pop %v695
      %v756 = vmul.f32 1.0, %v755
      %v757 = vrcp.pop %v696
      %v758 = vmul.f32 1.0, %v757
      %v759 = vrcp.pop %v697
      %v760 = vmul.f32 1.0, %v759
      %v761 = vrcp.pop %v698
      %v762 = vmul.f32 1.0, %v761
      %v763 = vmul.f32 %v445, %v700
      %v764 = vmul.f32 %v448, %v702
      %v765 = vmul.f32 %v453, %v704
      %v766 = vmul.f32 %v456, %v706
      %v767 = vmul.f32 %v461, %v708
      %v768 = vmul.f32 %v464, %v710
      %v769 = vmul.f32 %v469, %v712
      %v770 = vmul.f32 %v472, %v714
      %v771 = vmul.f32 %v477, %v716
      %v772 = vmul.f32 %v480, %v718
      %v773 = vmul.f32 %v485, %v720
      %v774 = vmul.f32 %v488, %v722
      %v775 = vmul.f32 %v493, %v724
      %v776 = vmul.f32 %v496, %v726
      %v777 = vmul.f32 %v501, %v728
      %v778 = vmul.f32 %v504, %v730
      %v779 = vmul.f32 %v509, %v732
      %v780 = vmul.f32 %v512, %v734
      %v781 = vmul.f32 %v517, %v736
      %v782 = vmul.f32 %v520, %v738
      %v783 = vmul.f32 %v525, %v740
      %v784 = vmul.f32 %v528, %v742
      %v785 = vmul.f32 %v533, %v744
      %v786 = vmul.f32 %v536, %v746
      %v787 = vmul.f32 %v541, %v748
      %v788 = vmul.f32 %v544, %v750
      %v789 = vmul.f32 %v549, %v752
      %v790 = vmul.f32 %v552, %v754
      %v791 = vmul.f32 %v557, %v756
      %v792 = vmul.f32 %v560, %v758
      %v793 = vmul.f32 %v565, %v760
      %v794 = vmul.f32 %v568, %v762
      %v795 = vpack.c.bf16 %v764, %v763
      %v796 = vpack.c.bf16 %v766, %v765
      %v797 = vpack.c.bf16 %v768, %v767
      %v798 = vpack.c.bf16 %v770, %v769
      %v799 = vpack.c.bf16 %v772, %v771
      %v800 = vpack.c.bf16 %v774, %v773
      %v801 = vpack.c.bf16 %v776, %v775
      %v802 = vpack.c.bf16 %v778, %v777
      %v803 = vpack.c.bf16 %v780, %v779
      %v804 = vpack.c.bf16 %v782, %v781
      %v805 = vpack.c.bf16 %v784, %v783
      %v806 = vpack.c.bf16 %v786, %v785
      %v807 = vpack.c.bf16 %v788, %v787
      %v808 = vpack.c.bf16 %v790, %v789
      %v809 = vpack.c.bf16 %v792, %v791
      %v810 = vpack.c.bf16 %v794, %v793
      %v827 = vunpack.c.l.b16 %v795
      %v828 = vunpack.c.h.b16 %v795
      %v829 = vunpack.c.l.b16 %v796
      %v830 = vunpack.c.h.b16 %v796
      %v831 = vunpack.c.l.b16 %v797
      %v832 = vunpack.c.h.b16 %v797
      %v833 = vunpack.c.l.b16 %v798
      %v834 = vunpack.c.h.b16 %v798
      %v835 = vunpack.c.l.b16 %v799
      %v836 = vunpack.c.h.b16 %v799
      %v837 = vunpack.c.l.b16 %v800
      %v838 = vunpack.c.h.b16 %v800
      %v839 = vunpack.c.l.b16 %v801
      %v840 = vunpack.c.h.b16 %v801
      %v841 = vunpack.c.l.b16 %v802
      %v842 = vunpack.c.h.b16 %v802
      %v843 = vunpack.c.l.b16 %v803
      %v844 = vunpack.c.h.b16 %v803
      %v845 = vunpack.c.l.b16 %v804
      %v846 = vunpack.c.h.b16 %v804
      %v847 = vunpack.c.l.b16 %v805
      %v848 = vunpack.c.h.b16 %v805
      %v849 = vunpack.c.l.b16 %v806
      %v850 = vunpack.c.h.b16 %v806
      %v851 = vunpack.c.l.b16 %v807
      %v852 = vunpack.c.h.b16 %v807
      %v853 = vunpack.c.l.b16 %v808
      %v854 = vunpack.c.h.b16 %v808
      %v855 = vunpack.c.l.b16 %v809
      %v856 = vunpack.c.h.b16 %v809
      %v857 = vunpack.c.l.b16 %v810
      %v858 = vunpack.c.h.b16 %v810
      %v859 = vpack.c.b16 %v827, %v827
      %v860 = vpack.c.b16 %v828, %v828
      %v861 = vpack.c.b16 %v829, %v829
      %v862 = vpack.c.b16 %v830, %v830
      %v863 = vpack.c.b16 %v831, %v831
      %v864 = vpack.c.b16 %v832, %v832
      %v865 = vpack.c.b16 %v833, %v833
      %v866 = vpack.c.b16 %v834, %v834
      %v867 = vpack.c.b16 %v835, %v835
      %v868 = vpack.c.b16 %v836, %v836
      %v869 = vpack.c.b16 %v837, %v837
      %v870 = vpack.c.b16 %v838, %v838
      %v871 = vpack.c.b16 %v839, %v839
      %v872 = vpack.c.b16 %v840, %v840
      %v873 = vpack.c.b16 %v841, %v841
      %v874 = vpack.c.b16 %v842, %v842
      %v875 = vpack.c.b16 %v843, %v843
      %v876 = vpack.c.b16 %v844, %v844
      %v877 = vpack.c.b16 %v845, %v845
      %v878 = vpack.c.b16 %v846, %v846
      %v879 = vpack.c.b16 %v847, %v847
      %v880 = vpack.c.b16 %v848, %v848
      %v881 = vpack.c.b16 %v849, %v849
      %v882 = vpack.c.b16 %v850, %v850
      %v883 = vpack.c.b16 %v851, %v851
      %v884 = vpack.c.b16 %v852, %v852
      %v885 = vpack.c.b16 %v853, %v853
      %v886 = vpack.c.b16 %v854, %v854
      %v887 = vpack.c.b16 %v855, %v855
      %v888 = vpack.c.b16 %v856, %v856
      %v889 = vpack.c.b16 %v857, %v857
      %v890 = vpack.c.b16 %v858, %v858
      %vm923 = vcmask 257024
      %924 = vst.msk [vmem:[%s223] sm:$0xf] %vm923, %v859
      %925 = vst.msk [vmem:[%s223 + $0x4] sm:$0xf] %vm923, %v860
      %926 = vst.msk [vmem:[%s223 + $0x8] sm:$0xf] %vm923, %v861
      %927 = vst.msk [vmem:[%s223 + $0xc] sm:$0xf] %vm923, %v862
      %928 = vst.msk [vmem:[%s223 + $0x10] sm:$0xf] %vm923, %v863
      %929 = vst.msk [vmem:[%s223 + $0x14] sm:$0xf] %vm923, %v864
      %930 = vst.msk [vmem:[%s223 + $0x18] sm:$0xf] %vm923, %v865
      %931 = vst.msk [vmem:[%s223 + $0x1c] sm:$0xf] %vm923, %v866
      %932 = vst.msk [vmem:[%s223 + $0x20] sm:$0xf] %vm923, %v867
      %933 = vst.msk [vmem:[%s223 + $0x24] sm:$0xf] %vm923, %v868
      %934 = vst.msk [vmem:[%s223 + $0x28] sm:$0xf] %vm923, %v869
      %935 = vst.msk [vmem:[%s223 + $0x2c] sm:$0xf] %vm923, %v870
      %936 = vst.msk [vmem:[%s223 + $0x30] sm:$0xf] %vm923, %v871
      %937 = vst.msk [vmem:[%s223 + $0x34] sm:$0xf] %vm923, %v872
      %938 = vst.msk [vmem:[%s223 + $0x38] sm:$0xf] %vm923, %v873
      %939 = vst.msk [vmem:[%s223 + $0x3c] sm:$0xf] %vm923, %v874
      %940 = vst.msk [vmem:[%s223 + $0x40] sm:$0xf] %vm923, %v875
      %941 = vst.msk [vmem:[%s223 + $0x44] sm:$0xf] %vm923, %v876
      %942 = vst.msk [vmem:[%s223 + $0x48] sm:$0xf] %vm923, %v877
      %943 = vst.msk [vmem:[%s223 + $0x4c] sm:$0xf] %vm923, %v878
      %944 = vst.msk [vmem:[%s223 + $0x50] sm:$0xf] %vm923, %v879
      %945 = vst.msk [vmem:[%s223 + $0x54] sm:$0xf] %vm923, %v880
      %946 = vst.msk [vmem:[%s223 + $0x58] sm:$0xf] %vm923, %v881
      %947 = vst.msk [vmem:[%s223 + $0x5c] sm:$0xf] %vm923, %v882
      %948 = vst.msk [vmem:[%s223 + $0x60] sm:$0xf] %vm923, %v883
      %949 = vst.msk [vmem:[%s223 + $0x64] sm:$0xf] %vm923, %v884
      %950 = vst.msk [vmem:[%s223 + $0x68] sm:$0xf] %vm923, %v885
      %951 = vst.msk [vmem:[%s223 + $0x6c] sm:$0xf] %vm923, %v886
      %952 = vst.msk [vmem:[%s223 + $0x70] sm:$0xf] %vm923, %v887
      %953 = vst.msk [vmem:[%s223 + $0x74] sm:$0xf] %vm923, %v888
      %954 = vst.msk [vmem:[%s223 + $0x78] sm:$0xf] %vm923, %v889
      %955 = vst.msk [vmem:[%s223 + $0x7c] sm:$0xf] %vm923, %v890
      %s956 = smul.u32 32, %s18
      %p957 = scmp.lt.s32.totalorder %s956, 63
      %s958 = scalar_select %p957, %s956, 63
      %p959 = scmp.lt.s32.totalorder %s19, 0
      %s960 = scalar_select %p959, %s19, 0
      %s961 = sadd.s32 %s960, %s958
      %s962 = smul.addr %s961, 4
      %s963 = scalar_lea.vmem %s3, %s962
      // Predicated region
      $region33: #{yolov8_head_forward.34} parent=31 // pred_check
        %p964 = pneg %p124
      $region34: #{yolov8_head_forward.34} parent=31 // pred_check_branch
        %966 = sbr.rel (%p964) target = $region36
      $region35: #{yolov8_head_forward.34} parent=31 // pred_region
        %s967 = smul.u32 32, %s18
      $region36: #{yolov8_head_forward.34} parent=31 // pred_fallthru
        _
    $region32: #{yolov8_head_forward.34} parent=5 // pred_fallthru
      _
    %p968 = scmp.le.s32.totalorder 2, %s9
    // Predicated region
    $region37: #{yolov8_head_forward.34} parent=5 // pred_check
      %p969 = pneg %p968
    $region38: #{yolov8_head_forward.34} parent=5 // pred_check_branch
      %971 = sbr.rel (%p969) target = $region40
    $region39: #{yolov8_head_forward.34} parent=5 // pred_region
      %s972 = ssub.s32 %s9, 2
      // Predicated region
      $region41: #{yolov8_head_forward.34} parent=39 // pred_check
        %p973 = pneg %p130
      $region42: #{yolov8_head_forward.34} parent=39 // pred_check_branch
        %975 = sbr.rel (%p973) target = $region44
      $region43: #{yolov8_head_forward.34} parent=39 // pred_region
        %s976 = smul.u32 32, %s20
        %p977 = scmp.lt.s32.totalorder %s976, 63
        %s978 = scalar_select %p977, %s976, 63
        %p979 = scmp.lt.s32.totalorder %s21, 0
        %s980 = scalar_select %p979, %s21, 0
        %s981 = sadd.s32 %s980, %s978
        %s982 = smul.addr %s981, 4
        %s983 = scalar_lea.vmem %s3, %s982
      $region44: #{yolov8_head_forward.34} parent=39 // pred_fallthru
        _
    $region40: #{yolov8_head_forward.34} parent=5 // pred_fallthru
      _
  $region6: #{yolov8_head_forward.34} parent=0 // loop_footer
    %s13 = sadd.s32 1, %s9
  $region7: #{yolov8_head_forward.34} parent=0 // loop_footer_branch
    %8 = sbr.rel target = $region3
  $region8: #{yolov8_head_forward.34} parent=0 // loop_exit
    _

// kernel: yolov8_head_forward.35
$region0: #{yolov8_head_forward.35}
  #allocation0 [shape = 'u32[]', space=smem, size = 0x4, offset = 0x4, fixed_abs, tag = 'smem constant byte address 0x4 - core index']
  #allocation1 [shape = 'u32[144,128]{1,0:T(1,128)}', space=vmem, size = 0x12000, scoped, tag = 'internal scratch']
  %s0 = inlined_call_operand.vmem [shape: bf16[512,32], index: 0, kind: input, shape index: {}]
  %s1 = inlined_call_operand.vmem [shape: bf16[32,16], index: 1, kind: input, shape index: {}]
  %s2 = inlined_call_operand.vmem [shape: f32[1,16], index: 2, kind: input, shape index: {}]
  %s3 = inlined_call_operand.vmem [shape: bf16[512,16], index: 3, kind: output, shape index: {}]
  %s4 = sld [smem:[#allocation0]]
  $region45: #{yolov8_head_forward.35} parent=0
    _
  %s6 = ssub.s32 1, %s4
  %s7 = scalar_select 0, %s6, %s4
  loop: start=0, step=1, limit=4
  $region2: #{yolov8_head_forward.35} parent=0 // loop_pre_header
    _
  $region3: #{yolov8_head_forward.35} parent=0 // loop_header
    %s9 = sphi 0, %s13
    %p10 = scmp.ge.s32.totalorder %s9, 4
    %s16 = sphi 0, %s28
    %s17 = sphi 0, %s24
    %s18 = sphi 0, %s16
    %s19 = sphi 0, %s17
    %s20 = sphi 0, %s18
    %s21 = sphi 0, %s19
    %s31 = sphi 0, %s33
    %s34 = sphi 0, %s31
    %s35 = sphi 0, %s34
    %s51 = sphi 0, %s35
    %s57 = sphi 0, %s59
    %s60 = sphi 0, %s57
    %s61 = sphi 0, %s60
    %s77 = sphi 0, %s61
    %s83 = sphi 0, %s85
    %s86 = sphi 0, %s83
    %s87 = sphi 0, %s86
    %s103 = sphi 0, %s87
    %s111 = sphi 0, %s113
    %s114 = sphi 0, %s111
    %s115 = sphi 0, %s114
    %s131 = sphi 0, %s115
  $region4: #{yolov8_head_forward.35} parent=0 // loop_header_branch
    %12 = sbr.rel (%p10) target = $region8
  $region5: #{yolov8_head_forward.35} parent=0 // loop_body
    %s14 = ssub.s32 %s9, 1
    %s15 = ssub.s32 %s9, 2
    %s22 = sadd.s32 1, %s17
    %p23 = scmp.ge.s32.totalorder %s22, 1
    %s24 = scalar_select %p23, 0, %s22
    %s25 = sadd.s32 1, %s16
    %s26 = scalar_select %p23, %s25, %s16
    %p27 = scmp.ge.s32.totalorder %s26, 2
    %s28 = scalar_select %p27, 0, %s26
    %s29 = ssub.s32 %s16, %s28
    %p30 = scmp.eq.s32.totalorder %s29, 0
    %s32 = sadd.s32 %s31, 1
    %s33 = scalar_select %p30, %s31, %s32
    %p36 = pneg %p30
    %p37 = scmp.eq.s32.totalorder %s9, 1
    %p38 = por %p36, %p37
    %p39 = scmp.ne.s32.totalorder %s31, %s34
    %p40 = scmp.eq.s32.totalorder %s9, 0
    %p41 = por %p39, %p40
    %p42 = scmp.ne.s32.totalorder %s31, %s34
    %p43 = scmp.eq.s32.totalorder %s14, 1
    %p44 = por %p42, %p43
    %p45 = scmp.ne.s32.totalorder %s34, %s35
    %p46 = scmp.eq.s32.totalorder %s14, 0
    %p47 = por %p45, %p46
    %p48 = scmp.ne.s32.totalorder %s34, %s35
    %p49 = scmp.eq.s32.totalorder %s15, 1
    %p50 = por %p48, %p49
    %p52 = scmp.ne.s32.totalorder %s35, %s51
    %p53 = scmp.eq.s32.totalorder %s15, 0
    %p54 = por %p52, %p53
    %s55 = ssub.s32 %s17, %s24
    %p56 = scmp.eq.s32.totalorder %s55, 0
    %s58 = sadd.s32 %s57, 1
    %s59 = scalar_select %p56, %s57, %s58
    %p62 = pneg %p56
    %p63 = scmp.eq.s32.totalorder %s9, 1
    %p64 = por %p62, %p63
    %p65 = scmp.ne.s32.totalorder %s57, %s60
    %p66 = scmp.eq.s32.totalorder %s9, 0
    %p67 = por %p65, %p66
    %p68 = scmp.ne.s32.totalorder %s57, %s60
    %p69 = scmp.eq.s32.totalorder %s14, 1
    %p70 = por %p68, %p69
    %p71 = scmp.ne.s32.totalorder %s60, %s61
    %p72 = scmp.eq.s32.totalorder %s14, 0
    %p73 = por %p71, %p72
    %p74 = scmp.ne.s32.totalorder %s60, %s61
    %p75 = scmp.eq.s32.totalorder %s15, 1
    %p76 = por %p74, %p75
    %p78 = scmp.ne.s32.totalorder %s61, %s77
    %p79 = scmp.eq.s32.totalorder %s15, 0
    %p80 = por %p78, %p79
    %s81 = ssub.s32 %s17, %s24
    %p82 = scmp.eq.s32.totalorder %s81, 0
    %s84 = sadd.s32 %s83, 1
    %s85 = scalar_select %p82, %s83, %s84
    %p88 = pneg %p82
    %p89 = scmp.eq.s32.totalorder %s9, 1
    %p90 = por %p88, %p89
    %p91 = scmp.ne.s32.totalorder %s83, %s86
    %p92 = scmp.eq.s32.totalorder %s9, 0
    %p93 = por %p91, %p92
    %p94 = scmp.ne.s32.totalorder %s83, %s86
    %p95 = scmp.eq.s32.totalorder %s14, 1
    %p96 = por %p94, %p95
    %p97 = scmp.ne.s32.totalorder %s86, %s87
    %p98 = scmp.eq.s32.totalorder %s14, 0
    %p99 = por %p97, %p98
    %p100 = scmp.ne.s32.totalorder %s86, %s87
    %p101 = scmp.eq.s32.totalorder %s15, 1
    %p102 = por %p100, %p101
    %p104 = scmp.ne.s32.totalorder %s87, %s103
    %p105 = scmp.eq.s32.totalorder %s15, 0
    %p106 = por %p104, %p105
    %s107 = ssub.s32 %s16, %s28
    %s108 = ssub.s32 %s17, %s24
    %s109 = sor.u32 %s107, %s108
    %p110 = scmp.eq.s32.totalorder %s109, 0
    %s112 = sadd.s32 %s111, 1
    %s113 = scalar_select %p110, %s111, %s112
    %p116 = pneg %p110
    %p117 = scmp.eq.s32.totalorder %s9, 1
    %p118 = por %p116, %p117
    %p119 = scmp.ne.s32.totalorder %s111, %s114
    %p120 = scmp.eq.s32.totalorder %s9, 0
    %p121 = por %p119, %p120
    %p122 = scmp.ne.s32.totalorder %s111, %s114
    %p123 = scmp.eq.s32.totalorder %s14, 1
    %p124 = por %p122, %p123
    %p125 = scmp.ne.s32.totalorder %s114, %s115
    %p126 = scmp.eq.s32.totalorder %s14, 0
    %p127 = por %p125, %p126
    %p128 = scmp.ne.s32.totalorder %s114, %s115
    %p129 = scmp.eq.s32.totalorder %s15, 1
    %p130 = por %p128, %p129
    %p132 = scmp.ne.s32.totalorder %s115, %s131
    %p133 = scmp.eq.s32.totalorder %s15, 0
    %p134 = por %p132, %p133
    %p135 = scmp.le.s32.totalorder 1, %s9
    %p136 = scmp.lt.s32.totalorder %s9, 3
    %p137 = pnand %p135, %p136
    %p138 = pneg %p137
    // Predicated region
    $region9: #{yolov8_head_forward.35} parent=5 // pred_check
      _
    $region10: #{yolov8_head_forward.35} parent=5 // pred_check_branch
      %140 = sbr.rel (%p137) target = $region12
    $region11: #{yolov8_head_forward.35} parent=5 // pred_region
      %s141 = ssub.s32 %s9, 1
      // Predicated region
      $region13: #{yolov8_head_forward.35} parent=11 // pred_check
        %p142 = pneg %p73
      $region14: #{yolov8_head_forward.35} parent=11 // pred_check_branch
        %144 = sbr.rel (%p142) target = $region16
      $region15: #{yolov8_head_forward.35} parent=11 // pred_region
        %p145 = scmp.lt.s32.totalorder %s19, 0
        %s146 = scalar_select %p145, %s19, 0
        %s147 = smul.addr %s146, 4
        %s148 = scalar_lea.vmem %s1, %s147
      $region16: #{yolov8_head_forward.35} parent=11 // pred_fallthru
        _
      // Predicated region
      $region17: #{yolov8_head_forward.35} parent=11 // pred_check
        %p149 = pneg %p99
      $region18: #{yolov8_head_forward.35} parent=11 // pred_check_branch
        %151 = sbr.rel (%p149) target = $region20
      $region19: #{yolov8_head_forward.35} parent=11 // pred_region
        %p152 = scmp.lt.s32.totalorder %s19, 0
        %s153 = scalar_select %p152, %s19, 0
        %s154 = scalar_lea.vmem %s2, %s153
      $region20: #{yolov8_head_forward.35} parent=11 // pred_fallthru
        _
    $region12: #{yolov8_head_forward.35} parent=5 // pred_fallthru
      _
    %p155 = scmp.lt.s32.totalorder %s9, 2
    // Predicated region
    $region21: #{yolov8_head_forward.35} parent=5 // pred_check
      %p156 = pneg %p155
    $region22: #{yolov8_head_forward.35} parent=5 // pred_check_branch
      %158 = sbr.rel (%p156) target = $region24
    $region23: #{yolov8_head_forward.35} parent=5 // pred_region
      // Predicated region
      $region25: #{yolov8_head_forward.35} parent=23 // pred_check
        %p159 = pneg %p41
      $region26: #{yolov8_head_forward.35} parent=23 // pred_check_branch
        %161 = sbr.rel (%p159) target = $region28
      $region27: #{yolov8_head_forward.35} parent=23 // pred_region
        %s162 = smul.u32 32, %s16
        %p163 = scmp.lt.s32.totalorder %s162, 63
        %s164 = scalar_select %p163, %s162, 63
        %s165 = smul.addr %s164, 4
        %s166 = scalar_lea.vmem %s0, %s165
        %s167 = smul.u32 32, %s16
      $region28: #{yolov8_head_forward.35} parent=23 // pred_fallthru
        _
    $region24: #{yolov8_head_forward.35} parent=5 // pred_fallthru
      _
    %p168 = scmp.le.s32.totalorder 1, %s9
    %p169 = scmp.lt.s32.totalorder %s9, 3
    %p170 = pnand %p168, %p169
    %p171 = pneg %p170
    // Predicated region
    $region29: #{yolov8_head_forward.35} parent=5 // pred_check
      _
    $region30: #{yolov8_head_forward.35} parent=5 // pred_check_branch
      %173 = sbr.rel (%p170) target = $region32
    $region31: #{yolov8_head_forward.35} parent=5 // pred_region
      %s174 = ssub.s32 %s9, 1
      %s175 = smul.u32 32, %s18
      %p176 = scmp.lt.s32.totalorder %s175, 63
      %s177 = scalar_select %p176, %s175, 63
      %s178 = smul.addr %s177, 4
      %s179 = scalar_lea.vmem %s0, %s178
      %p180 = pneg %p47
      %p181 = pneg %p44
      %p182 = scmp.lt.s32.totalorder %s19, 0
      %s183 = scalar_select %p182, %s19, 0
      %s184 = smul.addr %s183, 4
      %s185 = scalar_lea.vmem %s1, %s184
      %p186 = pneg %p73
      %p187 = pneg %p70
      %p188 = scmp.lt.s32.totalorder %s19, 0
      %s189 = scalar_select %p188, %s19, 0
      %s190 = scalar_lea.vmem %s2, %s189
      %p191 = pneg %p99
      %p192 = pneg %p96
      %p193 = pneg %p127
      %p194 = pneg %p124
      %s195 = smul.u32 32, %s18
      %p196 = scmp.lt.s32.totalorder %s195, 63
      %s197 = scalar_select %p196, %s195, 63
      %p198 = scmp.lt.s32.totalorder %s19, 0
      %s199 = scalar_select %p198, %s19, 0
      %s200 = sadd.s32 %s199, %s197
      %s201 = smul.addr %s200, 4
      %s202 = scalar_lea.vmem %s3, %s201
      %s203 = smul.u32 32, %s18
      %p204 = scmp.lt.s32.totalorder %s203, 63
      %s205 = scalar_select %p204, %s203, 63
      %s206 = smul.addr %s205, 4
      %s207 = scalar_lea.vmem %s0, %s206
      %s208 = smul.u32 32, %s18
      %p209 = scmp.lt.s32.totalorder %s19, 0
      %s210 = scalar_select %p209, %s19, 0
      %s211 = smul.addr %s210, 4
      %s212 = scalar_lea.vmem %s1, %s211
      %p213 = scmp.lt.s32.totalorder %s19, 0
      %s214 = scalar_select %p213, %s19, 0
      %s215 = scalar_lea.vmem %s2, %s214
      %s216 = smul.u32 32, %s18
      %p217 = scmp.lt.s32.totalorder %s216, 63
      %s218 = scalar_select %p217, %s216, 63
      %p219 = scmp.lt.s32.totalorder %s19, 0
      %s220 = scalar_select %p219, %s19, 0
      %s221 = sadd.s32 %s220, %s218
      %s222 = smul.addr %s221, 4
      %s223 = scalar_lea.vmem %s3, %s222
      %s224 = smul.u32 32, %s18
      %v226 = vld [vmem:[%s207] sm:$0xf]
      %v227 = vld [vmem:[%s207 + $0x4] sm:$0xf]
      %v228 = vld [vmem:[%s207 + $0x8] sm:$0xf]
      %v229 = vld [vmem:[%s207 + $0xc] sm:$0xf]
      %v230 = vld [vmem:[%s207 + $0x10] sm:$0xf]
      %v231 = vld [vmem:[%s207 + $0x14] sm:$0xf]
      %v232 = vld [vmem:[%s207 + $0x18] sm:$0xf]
      %v233 = vld [vmem:[%s207 + $0x1c] sm:$0xf]
      %v234 = vld [vmem:[%s207 + $0x20] sm:$0xf]
      %v235 = vld [vmem:[%s207 + $0x24] sm:$0xf]
      %v236 = vld [vmem:[%s207 + $0x28] sm:$0xf]
      %v237 = vld [vmem:[%s207 + $0x2c] sm:$0xf]
      %v238 = vld [vmem:[%s207 + $0x30] sm:$0xf]
      %v239 = vld [vmem:[%s207 + $0x34] sm:$0xf]
      %v240 = vld [vmem:[%s207 + $0x38] sm:$0xf]
      %v241 = vld [vmem:[%s207 + $0x3c] sm:$0xf]
      %v242 = vld [vmem:[%s207 + $0x40] sm:$0xf]
      %v243 = vld [vmem:[%s207 + $0x44] sm:$0xf]
      %v244 = vld [vmem:[%s207 + $0x48] sm:$0xf]
      %v245 = vld [vmem:[%s207 + $0x4c] sm:$0xf]
      %v246 = vld [vmem:[%s207 + $0x50] sm:$0xf]
      %v247 = vld [vmem:[%s207 + $0x54] sm:$0xf]
      %v248 = vld [vmem:[%s207 + $0x58] sm:$0xf]
      %v249 = vld [vmem:[%s207 + $0x5c] sm:$0xf]
      %v250 = vld [vmem:[%s207 + $0x60] sm:$0xf]
      %v251 = vld [vmem:[%s207 + $0x64] sm:$0xf]
      %v252 = vld [vmem:[%s207 + $0x68] sm:$0xf]
      %v253 = vld [vmem:[%s207 + $0x6c] sm:$0xf]
      %v254 = vld [vmem:[%s207 + $0x70] sm:$0xf]
      %v255 = vld [vmem:[%s207 + $0x74] sm:$0xf]
      %v256 = vld [vmem:[%s207 + $0x78] sm:$0xf]
      %v257 = vld [vmem:[%s207 + $0x7c] sm:$0xf]
      %v258 = vld [vmem:[%s212] sm:$0xf]
      %v259 = vld [vmem:[%s212 + $0x4] sm:$0xf]
      %v260 = vld [vmem:[%s212 + $0x8] sm:$0xf]
      %v261 = vld [vmem:[%s212 + $0xc] sm:$0xf]
      %v262 = vld [vmem:[%s215] sm:$0x1]
      %v264 = vlaneseq
      %v265 = vshrl.u32 %v264, 7
      %v266 = vsub.s32 0, %v265
      %v267 = vrot.slane %v262, %v266
      %v301 = vunpack.c.l.b16 %v226
      %v302 = vunpack.c.l.b16 %v227
      %v303 = vunpack.c.l.b16 %v228
      %v304 = vunpack.c.l.b16 %v229
      %v305 = vunpack.c.l.b16 %v230
      %v306 = vunpack.c.l.b16 %v231
      %v307 = vunpack.c.l.b16 %v232
      %v308 = vunpack.c.l.b16 %v233
      %v309 = vunpack.c.l.b16 %v234
      %v310 = vunpack.c.l.b16 %v235
      %v311 = vunpack.c.l.b16 %v236
      %v312 = vunpack.c.l.b16 %v237
      %v313 = vunpack.c.l.b16 %v238
      %v314 = vunpack.c.l.b16 %v239
      %v315 = vunpack.c.l.b16 %v240
      %v316 = vunpack.c.l.b16 %v241
      %v317 = vunpack.c.l.b16 %v242
      %v318 = vunpack.c.l.b16 %v243
      %v319 = vunpack.c.l.b16 %v244
      %v320 = vunpack.c.l.b16 %v245
      %v321 = vunpack.c.l.b16 %v246
      %v322 = vunpack.c.l.b16 %v247
      %v323 = vunpack.c.l.b16 %v248
      %v324 = vunpack.c.l.b16 %v249
      %v325 = vunpack.c.l.b16 %v250
      %v326 = vunpack.c.l.b16 %v251
      %v327 = vunpack.c.l.b16 %v252
      %v328 = vunpack.c.l.b16 %v253
      %v329 = vunpack.c.l.b16 %v254
      %v330 = vunpack.c.l.b16 %v255
      %v331 = vunpack.c.l.b16 %v256
      %v332 = vunpack.c.l.b16 %v257
      %v333 = vpack.c.b16 %v302, %v301
      %v334 = vpack.c.b16 %v304, %v303
      %v335 = vpack.c.b16 %v306, %v305
      %v336 = vpack.c.b16 %v308, %v307
      %v337 = vpack.c.b16 %v310, %v309
      %v338 = vpack.c.b16 %v312, %v311
      %v339 = vpack.c.b16 %v314, %v313
      %v340 = vpack.c.b16 %v316, %v315
      %v341 = vpack.c.b16 %v318, %v317
      %v342 = vpack.c.b16 %v320, %v319
      %v343 = vpack.c.b16 %v322, %v321
      %v344 = vpack.c.b16 %v324, %v323
      %v345 = vpack.c.b16 %v326, %v325
      %v346 = vpack.c.b16 %v328, %v327
      %v347 = vpack.c.b16 %v330, %v329
      %v348 = vpack.c.b16 %v332, %v331
      %v353 = vunpack.c.l.b16 %v258
      %v354 = vunpack.c.l.b16 %v259
      %v355 = vunpack.c.l.b16 %v260
      %v356 = vunpack.c.l.b16 %v261
      %v357 = vpack.c.b16 %v354, %v353
      %v358 = vpack.c.b16 %v356, %v355
      %vm361 = vcmask 261120
      %v363 = vsel %vm361, %v333, 0
      %v366 = vsel %vm361, %v334, 0
      %v369 = vsel %vm361, %v335, 0
      %v372 = vsel %vm361, %v336, 0
      %v375 = vsel %vm361, %v337, 0
      %v378 = vsel %vm361, %v338, 0
      %v381 = vsel %vm361, %v339, 0
      %v384 = vsel %vm361, %v340, 0
      %v387 = vsel %vm361, %v341, 0
      %v390 = vsel %vm361, %v342, 0
      %v393 = vsel %vm361, %v343, 0
      %v396 = vsel %vm361, %v344, 0
      %v399 = vsel %vm361, %v345, 0
      %v402 = vsel %vm361, %v346, 0
      %v405 = vsel %vm361, %v347, 0
      %v408 = vsel %vm361, %v348, 0
      %410 = vmatprep.subr.bf16.mxu0 0
      %411 = vmatpush1.bf16.msra.mxu0 0
      %412 = vmatprep.subr.bf16.mxu0 0
      %413 = vmatpush1.bf16.msra.mxu0 0
      %414 = vmatprep.subr.bf16.mxu0 0
      %415 = vmatpush1.bf16.msra.mxu0 0
      %416 = vmatprep.subr.bf16.mxu0 0
      %417 = vmatpush1.bf16.msra.mxu0 0
      %418 = vmatprep.subr.bf16.mxu0 0
      %419 = vmatpush1.bf16.msra.mxu0 0
      %420 = vmatprep.subr.bf16.mxu0 0
      %421 = vmatpush1.bf16.msra.mxu0 0
      %422 = vmatprep.subr.bf16.mxu0 0
      %423 = vmatpush1.bf16.msra.mxu0 %v358
      %424 = vmatprep.subr.bf16.mxu0 0
      %425 = vmatpush1.bf16.msra.mxu0 %v357
      %426 = vmatprep.subr.bf16.mxu0 0
      %427 = vmatpush2.bf16.msra.mxu0 0
      %428 = vmatprep.subr.bf16.mxu0 0
      %429 = vmatpush2.bf16.msra.mxu0 0
      %430 = vmatprep.subr.bf16.mxu0 0
      %431 = vmatpush2.bf16.msra.mxu0 0
      %432 = vmatprep.subr.bf16.mxu0 0
      %433 = vmatpush2.bf16.msra.mxu0 0
      %434 = vmatprep.subr.bf16.mxu0 0
      %435 = vmatpush2.bf16.msra.mxu0 0
      %436 = vmatprep.subr.bf16.mxu0 0
      %437 = vmatpush2.bf16.msra.mxu0 0
      %438 = vmatprep.subr.bf16.mxu0 0
      %439 = vmatpush2.bf16.msra.mxu0 0
      %440 = vmatprep.subr.bf16.mxu0 0
      %441 = vmatpush2.bf16.msra.mxu0 0
      %442 = vmatprep.mubr.bf16.mxu0 0
      %443 = vmatmul.mubr.bf16.gmra.mxu0 %v363
      %v444 = vpop.f32.mrf.mxu0
      %v445 = vadd.f32 %v267, %v444
      %v446 = vpop.f32.mrf.mxu0
      %v447 = vpop.f32.mrf.mxu0
      %v448 = vadd.f32 %v267, %v447
      %v449 = vpop.f32.mrf.mxu0
      %450 = vmatprep.mubr.bf16.mxu0 0
      %451 = vmatmul.mubr.bf16.gmra.mxu0 %v366
      %v452 = vpop.f32.mrf.mxu0
      %v453 = vadd.f32 %v267, %v452
      %v454 = vpop.f32.mrf.mxu0
      %v455 = vpop.f32.mrf.mxu0
      %v456 = vadd.f32 %v267, %v455
      %v457 = vpop.f32.mrf.mxu0
      %458 = vmatprep.mubr.bf16.mxu0 0
      %459 = vmatmul.mubr.bf16.gmra.mxu0 %v369
      %v460 = vpop.f32.mrf.mxu0
      %v461 = vadd.f32 %v267, %v460
      %v462 = vpop.f32.mrf.mxu0
      %v463 = vpop.f32.mrf.mxu0
      %v464 = vadd.f32 %v267, %v463
      %v465 = vpop.f32.mrf.mxu0
      %466 = vmatprep.mubr.bf16.mxu0 0
      %467 = vmatmul.mubr.bf16.gmra.mxu0 %v372
      %v468 = vpop.f32.mrf.mxu0
      %v469 = vadd.f32 %v267, %v468
      %v470 = vpop.f32.mrf.mxu0
      %v471 = vpop.f32.mrf.mxu0
      %v472 = vadd.f32 %v267, %v471
      %v473 = vpop.f32.mrf.mxu0
      %474 = vmatprep.mubr.bf16.mxu0 0
      %475 = vmatmul.mubr.bf16.gmra.mxu0 %v375
      %v476 = vpop.f32.mrf.mxu0
      %v477 = vadd.f32 %v267, %v476
      %v478 = vpop.f32.mrf.mxu0
      %v479 = vpop.f32.mrf.mxu0
      %v480 = vadd.f32 %v267, %v479
      %v481 = vpop.f32.mrf.mxu0
      %482 = vmatprep.mubr.bf16.mxu0 0
      %483 = vmatmul.mubr.bf16.gmra.mxu0 %v378
      %v484 = vpop.f32.mrf.mxu0
      %v485 = vadd.f32 %v267, %v484
      %v486 = vpop.f32.mrf.mxu0
      %v487 = vpop.f32.mrf.mxu0
      %v488 = vadd.f32 %v267, %v487
      %v489 = vpop.f32.mrf.mxu0
      %490 = vmatprep.mubr.bf16.mxu0 0
      %491 = vmatmul.mubr.bf16.gmra.mxu0 %v381
      %v492 = vpop.f32.mrf.mxu0
      %v493 = vadd.f32 %v267, %v492
      %v494 = vpop.f32.mrf.mxu0
      %v495 = vpop.f32.mrf.mxu0
      %v496 = vadd.f32 %v267, %v495
      %v497 = vpop.f32.mrf.mxu0
      %498 = vmatprep.mubr.bf16.mxu0 0
      %499 = vmatmul.mubr.bf16.gmra.mxu0 %v384
      %v500 = vpop.f32.mrf.mxu0
      %v501 = vadd.f32 %v267, %v500
      %v502 = vpop.f32.mrf.mxu0
      %v503 = vpop.f32.mrf.mxu0
      %v504 = vadd.f32 %v267, %v503
      %v505 = vpop.f32.mrf.mxu0
      %506 = vmatprep.mubr.bf16.mxu0 0
      %507 = vmatmul.mubr.bf16.gmra.mxu0 %v387
      %v508 = vpop.f32.mrf.mxu0
      %v509 = vadd.f32 %v267, %v508
      %v510 = vpop.f32.mrf.mxu0
      %v511 = vpop.f32.mrf.mxu0
      %v512 = vadd.f32 %v267, %v511
      %v513 = vpop.f32.mrf.mxu0
      %514 = vmatprep.mubr.bf16.mxu0 0
      %515 = vmatmul.mubr.bf16.gmra.mxu0 %v390
      %v516 = vpop.f32.mrf.mxu0
      %v517 = vadd.f32 %v267, %v516
      %v518 = vpop.f32.mrf.mxu0
      %v519 = vpop.f32.mrf.mxu0
      %v520 = vadd.f32 %v267, %v519
      %v521 = vpop.f32.mrf.mxu0
      %522 = vmatprep.mubr.bf16.mxu0 0
      %523 = vmatmul.mubr.bf16.gmra.mxu0 %v393
      %v524 = vpop.f32.mrf.mxu0
      %v525 = vadd.f32 %v267, %v524
      %v526 = vpop.f32.mrf.mxu0
      %v527 = vpop.f32.mrf.mxu0
      %v528 = vadd.f32 %v267, %v527
      %v529 = vpop.f32.mrf.mxu0
      %530 = vmatprep.mubr.bf16.mxu0 0
      %531 = vmatmul.mubr.bf16.gmra.mxu0 %v396
      %v532 = vpop.f32.mrf.mxu0
      %v533 = vadd.f32 %v267, %v532
      %v534 = vpop.f32.mrf.mxu0
      %v535 = vpop.f32.mrf.mxu0
      %v536 = vadd.f32 %v267, %v535
      %v537 = vpop.f32.mrf.mxu0
      %538 = vmatprep.mubr.bf16.mxu0 0
      %539 = vmatmul.mubr.bf16.gmra.mxu0 %v399
      %v540 = vpop.f32.mrf.mxu0
      %v541 = vadd.f32 %v267, %v540
      %v542 = vpop.f32.mrf.mxu0
      %v543 = vpop.f32.mrf.mxu0
      %v544 = vadd.f32 %v267, %v543
      %v545 = vpop.f32.mrf.mxu0
      %546 = vmatprep.mubr.bf16.mxu0 0
      %547 = vmatmul.mubr.bf16.gmra.mxu0 %v402
      %v548 = vpop.f32.mrf.mxu0
      %v549 = vadd.f32 %v267, %v548
      %v550 = vpop.f32.mrf.mxu0
      %v551 = vpop.f32.mrf.mxu0
      %v552 = vadd.f32 %v267, %v551
      %v553 = vpop.f32.mrf.mxu0
      %554 = vmatprep.mubr.bf16.mxu0 0
      %555 = vmatmul.mubr.bf16.gmra.mxu0 %v405
      %v556 = vpop.f32.mrf.mxu0
      %v557 = vadd.f32 %v267, %v556
      %v558 = vpop.f32.mrf.mxu0
      %v559 = vpop.f32.mrf.mxu0
      %v560 = vadd.f32 %v267, %v559
      %v561 = vpop.f32.mrf.mxu0
      %562 = vmatprep.mubr.bf16.mxu0 0
      %563 = vmatmul.mubr.bf16.gmra.mxu0 %v408
      %v564 = vpop.f32.mrf.mxu0
      %v565 = vadd.f32 %v267, %v564
      %v566 = vpop.f32.mrf.mxu0
      %v567 = vpop.f32.mrf.mxu0
      %v568 = vadd.f32 %v267, %v567
      %v569 = vpop.f32.mrf.mxu0
      %570 = vdwg.mxu0
      %v571 = vxor.u32 %v445, 2147483648
      %v572 = vxor.u32 %v448, 2147483648
      %v573 = vxor.u32 %v453, 2147483648
      %v574 = vxor.u32 %v456, 2147483648
      %v575 = vxor.u32 %v461, 2147483648
      %v576 = vxor.u32 %v464, 2147483648
      %v577 = vxor.u32 %v469, 2147483648
      %v578 = vxor.u32 %v472, 2147483648
      %v579 = vxor.u32 %v477, 2147483648
      %v580 = vxor.u32 %v480, 2147483648
      %v581 = vxor.u32 %v485, 2147483648
      %v582 = vxor.u32 %v488, 2147483648
      %v583 = vxor.u32 %v493, 2147483648
      %v584 = vxor.u32 %v496, 2147483648
      %v585 = vxor.u32 %v501, 2147483648
      %v586 = vxor.u32 %v504, 2147483648
      %v587 = vxor.u32 %v509, 2147483648
      %v588 = vxor.u32 %v512, 2147483648
      %v589 = vxor.u32 %v517, 2147483648
      %v590 = vxor.u32 %v520, 2147483648
      %v591 = vxor.u32 %v525, 2147483648
      %v592 = vxor.u32 %v528, 2147483648
      %v593 = vxor.u32 %v533, 2147483648
      %v594 = vxor.u32 %v536, 2147483648
      %v595 = vxor.u32 %v541, 2147483648
      %v596 = vxor.u32 %v544, 2147483648
      %v597 = vxor.u32 %v549, 2147483648
      %v598 = vxor.u32 %v552, 2147483648
      %v599 = vxor.u32 %v557, 2147483648
      %v600 = vxor.u32 %v560, 2147483648
      %v601 = vxor.u32 %v565, 2147483648
      %v602 = vxor.u32 %v568, 2147483648
      %v603 = vmul.f32 %v571, 1.442695
      %v604 = vpow.pop %v603
      %v605 = vmul.f32 %v572, 1.442695
      %v606 = vpow.pop %v605
      %v607 = vmul.f32 %v573, 1.442695
      %v608 = vpow.pop %v607
      %v609 = vmul.f32 %v574, 1.442695
      %v610 = vpow.pop %v609
      %v611 = vmul.f32 %v575, 1.442695
      %v612 = vpow.pop %v611
      %v613 = vmul.f32 %v576, 1.442695
      %v614 = vpow.pop %v613
      %v615 = vmul.f32 %v577, 1.442695
      %v616 = vpow.pop %v615
      %v617 = vmul.f32 %v578, 1.442695
      %v618 = vpow.pop %v617
      %v619 = vmul.f32 %v579, 1.442695
      %v620 = vpow.pop %v619
      %v621 = vmul.f32 %v580, 1.442695
      %v622 = vpow.pop %v621
      %v623 = vmul.f32 %v581, 1.442695
      %v624 = vpow.pop %v623
      %v625 = vmul.f32 %v582, 1.442695
      %v626 = vpow.pop %v625
      %v627 = vmul.f32 %v583, 1.442695
      %v628 = vpow.pop %v627
      %v629 = vmul.f32 %v584, 1.442695
      %v630 = vpow.pop %v629
      %v631 = vmul.f32 %v585, 1.442695
      %v632 = vpow.pop %v631
      %v633 = vmul.f32 %v586, 1.442695
      %v634 = vpow.pop %v633
      %v635 = vmul.f32 %v587, 1.442695
      %v636 = vpow.pop %v635
      %v637 = vmul.f32 %v588, 1.442695
      %v638 = vpow.pop %v637
      %v639 = vmul.f32 %v589, 1.442695
      %v640 = vpow.pop %v639
      %v641 = vmul.f32 %v590, 1.442695
      %v642 = vpow.pop %v641
      %v643 = vmul.f32 %v591, 1.442695
      %v644 = vpow.pop %v643
      %v645 = vmul.f32 %v592, 1.442695
      %v646 = vpow.pop %v645
      %v647 = vmul.f32 %v593, 1.442695
      %v648 = vpow.pop %v647
      %v649 = vmul.f32 %v594, 1.442695
      %v650 = vpow.pop %v649
      %v651 = vmul.f32 %v595, 1.442695
      %v652 = vpow.pop %v651
      %v653 = vmul.f32 %v596, 1.442695
      %v654 = vpow.pop %v653
      %v655 = vmul.f32 %v597, 1.442695
      %v656 = vpow.pop %v655
      %v657 = vmul.f32 %v598, 1.442695
      %v658 = vpow.pop %v657
      %v659 = vmul.f32 %v599, 1.442695
      %v660 = vpow.pop %v659
      %v661 = vmul.f32 %v600, 1.442695
      %v662 = vpow.pop %v661
      %v663 = vmul.f32 %v601, 1.442695
      %v664 = vpow.pop %v663
      %v665 = vmul.f32 %v602, 1.442695
      %v666 = vpow.pop %v665
      %v667 = vadd.f32 %v604, 1.0
      %v668 = vadd.f32 %v606, 1.0
      %v669 = vadd.f32 %v608, 1.0
      %v670 = vadd.f32 %v610, 1.0
      %v671 = vadd.f32 %v612, 1.0
      %v672 = vadd.f32 %v614, 1.0
      %v673 = vadd.f32 %v616, 1.0
      %v674 = vadd.f32 %v618, 1.0
      %v675 = vadd.f32 %v620, 1.0
      %v676 = vadd.f32 %v622, 1.0
      %v677 = vadd.f32 %v624, 1.0
      %v678 = vadd.f32 %v626, 1.0
      %v679 = vadd.f32 %v628, 1.0
      %v680 = vadd.f32 %v630, 1.0
      %v681 = vadd.f32 %v632, 1.0
      %v682 = vadd.f32 %v634, 1.0
      %v683 = vadd.f32 %v636, 1.0
      %v684 = vadd.f32 %v638, 1.0
      %v685 = vadd.f32 %v640, 1.0
      %v686 = vadd.f32 %v642, 1.0
      %v687 = vadd.f32 %v644, 1.0
      %v688 = vadd.f32 %v646, 1.0
      %v689 = vadd.f32 %v648, 1.0
      %v690 = vadd.f32 %v650, 1.0
      %v691 = vadd.f32 %v652, 1.0
      %v692 = vadd.f32 %v654, 1.0
      %v693 = vadd.f32 %v656, 1.0
      %v694 = vadd.f32 %v658, 1.0
      %v695 = vadd.f32 %v660, 1.0
      %v696 = vadd.f32 %v662, 1.0
      %v697 = vadd.f32 %v664, 1.0
      %v698 = vadd.f32 %v666, 1.0
      %v699 = vrcp.pop %v667
      %v700 = vmul.f32 1.0, %v699
      %v701 = vrcp.pop %v668
      %v702 = vmul.f32 1.0, %v701
      %v703 = vrcp.pop %v669
      %v704 = vmul.f32 1.0, %v703
      %v705 = vrcp.pop %v670
      %v706 = vmul.f32 1.0, %v705
      %v707 = vrcp.pop %v671
      %v708 = vmul.f32 1.0, %v707
      %v709 = vrcp.pop %v672
      %v710 = vmul.f32 1.0, %v709
      %v711 = vrcp.pop %v673
      %v712 = vmul.f32 1.0, %v711
      %v713 = vrcp.pop %v674
      %v714 = vmul.f32 1.0, %v713
      %v715 = vrcp.pop %v675
      %v716 = vmul.f32 1.0, %v715
      %v717 = vrcp.pop %v676
      %v718 = vmul.f32 1.0, %v717
      %v719 = vrcp.pop %v677
      %v720 = vmul.f32 1.0, %v719
      %v721 = vrcp.pop %v678
      %v722 = vmul.f32 1.0, %v721
      %v723 = vrcp.pop %v679
      %v724 = vmul.f32 1.0, %v723
      %v725 = vrcp.pop %v680
      %v726 = vmul.f32 1.0, %v725
      %v727 = vrcp.pop %v681
      %v728 = vmul.f32 1.0, %v727
      %v729 = vrcp.pop %v682
      %v730 = vmul.f32 1.0, %v729
      %v731 = vrcp.pop %v683
      %v732 = vmul.f32 1.0, %v731
      %v733 = vrcp.pop %v684
      %v734 = vmul.f32 1.0, %v733
      %v735 = vrcp.pop %v685
      %v736 = vmul.f32 1.0, %v735
      %v737 = vrcp.pop %v686
      %v738 = vmul.f32 1.0, %v737
      %v739 = vrcp.pop %v687
      %v740 = vmul.f32 1.0, %v739
      %v741 = vrcp.pop %v688
      %v742 = vmul.f32 1.0, %v741
      %v743 = vrcp.pop %v689
      %v744 = vmul.f32 1.0, %v743
      %v745 = vrcp.pop %v690
      %v746 = vmul.f32 1.0, %v745
      %v747 = vrcp.pop %v691
      %v748 = vmul.f32 1.0, %v747
      %v749 = vrcp.pop %v692
      %v750 = vmul.f32 1.0, %v749
      %v751 = vrcp.pop %v693
      %v752 = vmul.f32 1.0, %v751
      %v753 = vrcp.pop %v694
      %v754 = vmul.f32 1.0, %v753
      %v755 = vrcp.pop %v695
      %v756 = vmul.f32 1.0, %v755
      %v757 = vrcp.pop %v696
      %v758 = vmul.f32 1.0, %v757
      %v759 = vrcp.pop %v697
      %v760 = vmul.f32 1.0, %v759
      %v761 = vrcp.pop %v698
      %v762 = vmul.f32 1.0, %v761
      %v763 = vmul.f32 %v445, %v700
      %v764 = vmul.f32 %v448, %v702
      %v765 = vmul.f32 %v453, %v704
      %v766 = vmul.f32 %v456, %v706
      %v767 = vmul.f32 %v461, %v708
      %v768 = vmul.f32 %v464, %v710
      %v769 = vmul.f32 %v469, %v712
      %v770 = vmul.f32 %v472, %v714
      %v771 = vmul.f32 %v477, %v716
      %v772 = vmul.f32 %v480, %v718
      %v773 = vmul.f32 %v485, %v720
      %v774 = vmul.f32 %v488, %v722
      %v775 = vmul.f32 %v493, %v724
      %v776 = vmul.f32 %v496, %v726
      %v777 = vmul.f32 %v501, %v728
      %v778 = vmul.f32 %v504, %v730
      %v779 = vmul.f32 %v509, %v732
      %v780 = vmul.f32 %v512, %v734
      %v781 = vmul.f32 %v517, %v736
      %v782 = vmul.f32 %v520, %v738
      %v783 = vmul.f32 %v525, %v740
      %v784 = vmul.f32 %v528, %v742
      %v785 = vmul.f32 %v533, %v744
      %v786 = vmul.f32 %v536, %v746
      %v787 = vmul.f32 %v541, %v748
      %v788 = vmul.f32 %v544, %v750
      %v789 = vmul.f32 %v549, %v752
      %v790 = vmul.f32 %v552, %v754
      %v791 = vmul.f32 %v557, %v756
      %v792 = vmul.f32 %v560, %v758
      %v793 = vmul.f32 %v565, %v760
      %v794 = vmul.f32 %v568, %v762
      %v795 = vpack.c.bf16 %v764, %v763
      %v796 = vpack.c.bf16 %v766, %v765
      %v797 = vpack.c.bf16 %v768, %v767
      %v798 = vpack.c.bf16 %v770, %v769
      %v799 = vpack.c.bf16 %v772, %v771
      %v800 = vpack.c.bf16 %v774, %v773
      %v801 = vpack.c.bf16 %v776, %v775
      %v802 = vpack.c.bf16 %v778, %v777
      %v803 = vpack.c.bf16 %v780, %v779
      %v804 = vpack.c.bf16 %v782, %v781
      %v805 = vpack.c.bf16 %v784, %v783
      %v806 = vpack.c.bf16 %v786, %v785
      %v807 = vpack.c.bf16 %v788, %v787
      %v808 = vpack.c.bf16 %v790, %v789
      %v809 = vpack.c.bf16 %v792, %v791
      %v810 = vpack.c.bf16 %v794, %v793
      %v827 = vunpack.c.l.b16 %v795
      %v828 = vunpack.c.h.b16 %v795
      %v829 = vunpack.c.l.b16 %v796
      %v830 = vunpack.c.h.b16 %v796
      %v831 = vunpack.c.l.b16 %v797
      %v832 = vunpack.c.h.b16 %v797
      %v833 = vunpack.c.l.b16 %v798
      %v834 = vunpack.c.h.b16 %v798
      %v835 = vunpack.c.l.b16 %v799
      %v836 = vunpack.c.h.b16 %v799
      %v837 = vunpack.c.l.b16 %v800
      %v838 = vunpack.c.h.b16 %v800
      %v839 = vunpack.c.l.b16 %v801
      %v840 = vunpack.c.h.b16 %v801
      %v841 = vunpack.c.l.b16 %v802
      %v842 = vunpack.c.h.b16 %v802
      %v843 = vunpack.c.l.b16 %v803
      %v844 = vunpack.c.h.b16 %v803
      %v845 = vunpack.c.l.b16 %v804
      %v846 = vunpack.c.h.b16 %v804
      %v847 = vunpack.c.l.b16 %v805
      %v848 = vunpack.c.h.b16 %v805
      %v849 = vunpack.c.l.b16 %v806
      %v850 = vunpack.c.h.b16 %v806
      %v851 = vunpack.c.l.b16 %v807
      %v852 = vunpack.c.h.b16 %v807
      %v853 = vunpack.c.l.b16 %v808
      %v854 = vunpack.c.h.b16 %v808
      %v855 = vunpack.c.l.b16 %v809
      %v856 = vunpack.c.h.b16 %v809
      %v857 = vunpack.c.l.b16 %v810
      %v858 = vunpack.c.h.b16 %v810
      %v859 = vpack.c.b16 %v827, %v827
      %v860 = vpack.c.b16 %v828, %v828
      %v861 = vpack.c.b16 %v829, %v829
      %v862 = vpack.c.b16 %v830, %v830
      %v863 = vpack.c.b16 %v831, %v831
      %v864 = vpack.c.b16 %v832, %v832
      %v865 = vpack.c.b16 %v833, %v833
      %v866 = vpack.c.b16 %v834, %v834
      %v867 = vpack.c.b16 %v835, %v835
      %v868 = vpack.c.b16 %v836, %v836
      %v869 = vpack.c.b16 %v837, %v837
      %v870 = vpack.c.b16 %v838, %v838
      %v871 = vpack.c.b16 %v839, %v839
      %v872 = vpack.c.b16 %v840, %v840
      %v873 = vpack.c.b16 %v841, %v841
      %v874 = vpack.c.b16 %v842, %v842
      %v875 = vpack.c.b16 %v843, %v843
      %v876 = vpack.c.b16 %v844, %v844
      %v877 = vpack.c.b16 %v845, %v845
      %v878 = vpack.c.b16 %v846, %v846
      %v879 = vpack.c.b16 %v847, %v847
      %v880 = vpack.c.b16 %v848, %v848
      %v881 = vpack.c.b16 %v849, %v849
      %v882 = vpack.c.b16 %v850, %v850
      %v883 = vpack.c.b16 %v851, %v851
      %v884 = vpack.c.b16 %v852, %v852
      %v885 = vpack.c.b16 %v853, %v853
      %v886 = vpack.c.b16 %v854, %v854
      %v887 = vpack.c.b16 %v855, %v855
      %v888 = vpack.c.b16 %v856, %v856
      %v889 = vpack.c.b16 %v857, %v857
      %v890 = vpack.c.b16 %v858, %v858
      %vm923 = vcmask 125952
      %924 = vst.msk [vmem:[%s223] sm:$0xf] %vm923, %v859
      %925 = vst.msk [vmem:[%s223 + $0x4] sm:$0xf] %vm923, %v860
      %926 = vst.msk [vmem:[%s223 + $0x8] sm:$0xf] %vm923, %v861
      %927 = vst.msk [vmem:[%s223 + $0xc] sm:$0xf] %vm923, %v862
      %928 = vst.msk [vmem:[%s223 + $0x10] sm:$0xf] %vm923, %v863
      %929 = vst.msk [vmem:[%s223 + $0x14] sm:$0xf] %vm923, %v864
      %930 = vst.msk [vmem:[%s223 + $0x18] sm:$0xf] %vm923, %v865
      %931 = vst.msk [vmem:[%s223 + $0x1c] sm:$0xf] %vm923, %v866
      %932 = vst.msk [vmem:[%s223 + $0x20] sm:$0xf] %vm923, %v867
      %933 = vst.msk [vmem:[%s223 + $0x24] sm:$0xf] %vm923, %v868
      %934 = vst.msk [vmem:[%s223 + $0x28] sm:$0xf] %vm923, %v869
      %935 = vst.msk [vmem:[%s223 + $0x2c] sm:$0xf] %vm923, %v870
      %936 = vst.msk [vmem:[%s223 + $0x30] sm:$0xf] %vm923, %v871
      %937 = vst.msk [vmem:[%s223 + $0x34] sm:$0xf] %vm923, %v872
      %938 = vst.msk [vmem:[%s223 + $0x38] sm:$0xf] %vm923, %v873
      %939 = vst.msk [vmem:[%s223 + $0x3c] sm:$0xf] %vm923, %v874
      %940 = vst.msk [vmem:[%s223 + $0x40] sm:$0xf] %vm923, %v875
      %941 = vst.msk [vmem:[%s223 + $0x44] sm:$0xf] %vm923, %v876
      %942 = vst.msk [vmem:[%s223 + $0x48] sm:$0xf] %vm923, %v877
      %943 = vst.msk [vmem:[%s223 + $0x4c] sm:$0xf] %vm923, %v878
      %944 = vst.msk [vmem:[%s223 + $0x50] sm:$0xf] %vm923, %v879
      %945 = vst.msk [vmem:[%s223 + $0x54] sm:$0xf] %vm923, %v880
      %946 = vst.msk [vmem:[%s223 + $0x58] sm:$0xf] %vm923, %v881
      %947 = vst.msk [vmem:[%s223 + $0x5c] sm:$0xf] %vm923, %v882
      %948 = vst.msk [vmem:[%s223 + $0x60] sm:$0xf] %vm923, %v883
      %949 = vst.msk [vmem:[%s223 + $0x64] sm:$0xf] %vm923, %v884
      %950 = vst.msk [vmem:[%s223 + $0x68] sm:$0xf] %vm923, %v885
      %951 = vst.msk [vmem:[%s223 + $0x6c] sm:$0xf] %vm923, %v886
      %952 = vst.msk [vmem:[%s223 + $0x70] sm:$0xf] %vm923, %v887
      %953 = vst.msk [vmem:[%s223 + $0x74] sm:$0xf] %vm923, %v888
      %954 = vst.msk [vmem:[%s223 + $0x78] sm:$0xf] %vm923, %v889
      %955 = vst.msk [vmem:[%s223 + $0x7c] sm:$0xf] %vm923, %v890
      %s956 = smul.u32 32, %s18
      %p957 = scmp.lt.s32.totalorder %s956, 63
      %s958 = scalar_select %p957, %s956, 63
      %p959 = scmp.lt.s32.totalorder %s19, 0
      %s960 = scalar_select %p959, %s19, 0
      %s961 = sadd.s32 %s960, %s958
      %s962 = smul.addr %s961, 4
      %s963 = scalar_lea.vmem %s3, %s962
      // Predicated region
      $region33: #{yolov8_head_forward.35} parent=31 // pred_check
        %p964 = pneg %p124
      $region34: #{yolov8_head_forward.35} parent=31 // pred_check_branch
        %966 = sbr.rel (%p964) target = $region36
      $region35: #{yolov8_head_forward.35} parent=31 // pred_region
        %s967 = smul.u32 32, %s18
      $region36: #{yolov8_head_forward.35} parent=31 // pred_fallthru
        _
    $region32: #{yolov8_head_forward.35} parent=5 // pred_fallthru
      _
    %p968 = scmp.le.s32.totalorder 2, %s9
    // Predicated region
    $region37: #{yolov8_head_forward.35} parent=5 // pred_check
      %p969 = pneg %p968
    $region38: #{yolov8_head_forward.35} parent=5 // pred_check_branch
      %971 = sbr.rel (%p969) target = $region40
    $region39: #{yolov8_head_forward.35} parent=5 // pred_region
      %s972 = ssub.s32 %s9, 2
      // Predicated region
      $region41: #{yolov8_head_forward.35} parent=39 // pred_check
        %p973 = pneg %p130
      $region42: #{yolov8_head_forward.35} parent=39 // pred_check_branch
        %975 = sbr.rel (%p973) target = $region44
      $region43: #{yolov8_head_forward.35} parent=39 // pred_region
        %s976 = smul.u32 32, %s20
        %p977 = scmp.lt.s32.totalorder %s976, 63
        %s978 = scalar_select %p977, %s976, 63
        %p979 = scmp.lt.s32.totalorder %s21, 0
        %s980 = scalar_select %p979, %s21, 0
        %s981 = sadd.s32 %s980, %s978
        %s982 = smul.addr %s981, 4
        %s983 = scalar_lea.vmem %s3, %s982
      $region44: #{yolov8_head_forward.35} parent=39 // pred_fallthru
        _
    $region40: #{yolov8_head_forward.35} parent=5 // pred_fallthru
      _
  $region6: #{yolov8_head_forward.35} parent=0 // loop_footer
    %s13 = sadd.s32 1, %s9
  $region7: #{yolov8_head_forward.35} parent=0 // loop_footer_branch
    %8 = sbr.rel target = $region3
  $region8: #{yolov8_head_forward.35} parent=0 // loop_exit
    _

// kernel: yolov8_head_forward.36
$region0: #{yolov8_head_forward.36}
  #allocation0 [shape = 'u32[]', space=smem, size = 0x4, offset = 0x4, fixed_abs, tag = 'smem constant byte address 0x4 - core index']
  #allocation1 [shape = 'u32[144,128]{1,0:T(1,128)}', space=vmem, size = 0x12000, scoped, tag = 'internal scratch']
  %s0 = inlined_call_operand.vmem [shape: bf16[512,72], index: 0, kind: input, shape index: {}]
  %s1 = inlined_call_operand.vmem [shape: bf16[72,4], index: 1, kind: input, shape index: {}]
  %s2 = inlined_call_operand.vmem [shape: f32[1,4], index: 2, kind: input, shape index: {}]
  %s3 = inlined_call_operand.vmem [shape: bf16[512,4], index: 3, kind: output, shape index: {}]
  %s4 = sld [smem:[#allocation0]]
  $region45: #{yolov8_head_forward.36} parent=0
    _
  %s6 = ssub.s32 1, %s4
  %s7 = scalar_select 0, %s6, %s4
  loop: start=0, step=1, limit=4
  $region2: #{yolov8_head_forward.36} parent=0 // loop_pre_header
    _
  $region3: #{yolov8_head_forward.36} parent=0 // loop_header
    %s9 = sphi 0, %s13
    %p10 = scmp.ge.s32.totalorder %s9, 4
    %s16 = sphi 0, %s28
    %s17 = sphi 0, %s24
    %s18 = sphi 0, %s16
    %s19 = sphi 0, %s17
    %s20 = sphi 0, %s18
    %s21 = sphi 0, %s19
    %s31 = sphi 0, %s33
    %s34 = sphi 0, %s31
    %s35 = sphi 0, %s34
    %s51 = sphi 0, %s35
    %s57 = sphi 0, %s59
    %s60 = sphi 0, %s57
    %s61 = sphi 0, %s60
    %s77 = sphi 0, %s61
    %s83 = sphi 0, %s85
    %s86 = sphi 0, %s83
    %s87 = sphi 0, %s86
    %s103 = sphi 0, %s87
    %s111 = sphi 0, %s113
    %s114 = sphi 0, %s111
    %s115 = sphi 0, %s114
    %s131 = sphi 0, %s115
  $region4: #{yolov8_head_forward.36} parent=0 // loop_header_branch
    %12 = sbr.rel (%p10) target = $region8
  $region5: #{yolov8_head_forward.36} parent=0 // loop_body
    %s14 = ssub.s32 %s9, 1
    %s15 = ssub.s32 %s9, 2
    %s22 = sadd.s32 1, %s17
    %p23 = scmp.ge.s32.totalorder %s22, 1
    %s24 = scalar_select %p23, 0, %s22
    %s25 = sadd.s32 1, %s16
    %s26 = scalar_select %p23, %s25, %s16
    %p27 = scmp.ge.s32.totalorder %s26, 2
    %s28 = scalar_select %p27, 0, %s26
    %s29 = ssub.s32 %s16, %s28
    %p30 = scmp.eq.s32.totalorder %s29, 0
    %s32 = sadd.s32 %s31, 1
    %s33 = scalar_select %p30, %s31, %s32
    %p36 = pneg %p30
    %p37 = scmp.eq.s32.totalorder %s9, 1
    %p38 = por %p36, %p37
    %p39 = scmp.ne.s32.totalorder %s31, %s34
    %p40 = scmp.eq.s32.totalorder %s9, 0
    %p41 = por %p39, %p40
    %p42 = scmp.ne.s32.totalorder %s31, %s34
    %p43 = scmp.eq.s32.totalorder %s14, 1
    %p44 = por %p42, %p43
    %p45 = scmp.ne.s32.totalorder %s34, %s35
    %p46 = scmp.eq.s32.totalorder %s14, 0
    %p47 = por %p45, %p46
    %p48 = scmp.ne.s32.totalorder %s34, %s35
    %p49 = scmp.eq.s32.totalorder %s15, 1
    %p50 = por %p48, %p49
    %p52 = scmp.ne.s32.totalorder %s35, %s51
    %p53 = scmp.eq.s32.totalorder %s15, 0
    %p54 = por %p52, %p53
    %s55 = ssub.s32 %s17, %s24
    %p56 = scmp.eq.s32.totalorder %s55, 0
    %s58 = sadd.s32 %s57, 1
    %s59 = scalar_select %p56, %s57, %s58
    %p62 = pneg %p56
    %p63 = scmp.eq.s32.totalorder %s9, 1
    %p64 = por %p62, %p63
    %p65 = scmp.ne.s32.totalorder %s57, %s60
    %p66 = scmp.eq.s32.totalorder %s9, 0
    %p67 = por %p65, %p66
    %p68 = scmp.ne.s32.totalorder %s57, %s60
    %p69 = scmp.eq.s32.totalorder %s14, 1
    %p70 = por %p68, %p69
    %p71 = scmp.ne.s32.totalorder %s60, %s61
    %p72 = scmp.eq.s32.totalorder %s14, 0
    %p73 = por %p71, %p72
    %p74 = scmp.ne.s32.totalorder %s60, %s61
    %p75 = scmp.eq.s32.totalorder %s15, 1
    %p76 = por %p74, %p75
    %p78 = scmp.ne.s32.totalorder %s61, %s77
    %p79 = scmp.eq.s32.totalorder %s15, 0
    %p80 = por %p78, %p79
    %s81 = ssub.s32 %s17, %s24
    %p82 = scmp.eq.s32.totalorder %s81, 0
    %s84 = sadd.s32 %s83, 1
    %s85 = scalar_select %p82, %s83, %s84
    %p88 = pneg %p82
    %p89 = scmp.eq.s32.totalorder %s9, 1
    %p90 = por %p88, %p89
    %p91 = scmp.ne.s32.totalorder %s83, %s86
    %p92 = scmp.eq.s32.totalorder %s9, 0
    %p93 = por %p91, %p92
    %p94 = scmp.ne.s32.totalorder %s83, %s86
    %p95 = scmp.eq.s32.totalorder %s14, 1
    %p96 = por %p94, %p95
    %p97 = scmp.ne.s32.totalorder %s86, %s87
    %p98 = scmp.eq.s32.totalorder %s14, 0
    %p99 = por %p97, %p98
    %p100 = scmp.ne.s32.totalorder %s86, %s87
    %p101 = scmp.eq.s32.totalorder %s15, 1
    %p102 = por %p100, %p101
    %p104 = scmp.ne.s32.totalorder %s87, %s103
    %p105 = scmp.eq.s32.totalorder %s15, 0
    %p106 = por %p104, %p105
    %s107 = ssub.s32 %s16, %s28
    %s108 = ssub.s32 %s17, %s24
    %s109 = sor.u32 %s107, %s108
    %p110 = scmp.eq.s32.totalorder %s109, 0
    %s112 = sadd.s32 %s111, 1
    %s113 = scalar_select %p110, %s111, %s112
    %p116 = pneg %p110
    %p117 = scmp.eq.s32.totalorder %s9, 1
    %p118 = por %p116, %p117
    %p119 = scmp.ne.s32.totalorder %s111, %s114
    %p120 = scmp.eq.s32.totalorder %s9, 0
    %p121 = por %p119, %p120
    %p122 = scmp.ne.s32.totalorder %s111, %s114
    %p123 = scmp.eq.s32.totalorder %s14, 1
    %p124 = por %p122, %p123
    %p125 = scmp.ne.s32.totalorder %s114, %s115
    %p126 = scmp.eq.s32.totalorder %s14, 0
    %p127 = por %p125, %p126
    %p128 = scmp.ne.s32.totalorder %s114, %s115
    %p129 = scmp.eq.s32.totalorder %s15, 1
    %p130 = por %p128, %p129
    %p132 = scmp.ne.s32.totalorder %s115, %s131
    %p133 = scmp.eq.s32.totalorder %s15, 0
    %p134 = por %p132, %p133
    %p135 = scmp.le.s32.totalorder 1, %s9
    %p136 = scmp.lt.s32.totalorder %s9, 3
    %p137 = pnand %p135, %p136
    %p138 = pneg %p137
    // Predicated region
    $region9: #{yolov8_head_forward.36} parent=5 // pred_check
      _
    $region10: #{yolov8_head_forward.36} parent=5 // pred_check_branch
      %140 = sbr.rel (%p137) target = $region12
    $region11: #{yolov8_head_forward.36} parent=5 // pred_region
      %s141 = ssub.s32 %s9, 1
      // Predicated region
      $region13: #{yolov8_head_forward.36} parent=11 // pred_check
        %p142 = pneg %p73
      $region14: #{yolov8_head_forward.36} parent=11 // pred_check_branch
        %144 = sbr.rel (%p142) target = $region16
      $region15: #{yolov8_head_forward.36} parent=11 // pred_region
        %p145 = scmp.lt.s32.totalorder %s19, 0
        %s146 = scalar_select %p145, %s19, 0
        %s147 = smul.addr %s146, 4
        %s148 = scalar_lea.vmem %s1, %s147
      $region16: #{yolov8_head_forward.36} parent=11 // pred_fallthru
        _
      // Predicated region
      $region17: #{yolov8_head_forward.36} parent=11 // pred_check
        %p149 = pneg %p99
      $region18: #{yolov8_head_forward.36} parent=11 // pred_check_branch
        %151 = sbr.rel (%p149) target = $region20
      $region19: #{yolov8_head_forward.36} parent=11 // pred_region
        %p152 = scmp.lt.s32.totalorder %s19, 0
        %s153 = scalar_select %p152, %s19, 0
        %s154 = scalar_lea.vmem %s2, %s153
      $region20: #{yolov8_head_forward.36} parent=11 // pred_fallthru
        _
    $region12: #{yolov8_head_forward.36} parent=5 // pred_fallthru
      _
    %p155 = scmp.lt.s32.totalorder %s9, 2
    // Predicated region
    $region21: #{yolov8_head_forward.36} parent=5 // pred_check
      %p156 = pneg %p155
    $region22: #{yolov8_head_forward.36} parent=5 // pred_check_branch
      %158 = sbr.rel (%p156) target = $region24
    $region23: #{yolov8_head_forward.36} parent=5 // pred_region
      // Predicated region
      $region25: #{yolov8_head_forward.36} parent=23 // pred_check
        %p159 = pneg %p41
      $region26: #{yolov8_head_forward.36} parent=23 // pred_check_branch
        %161 = sbr.rel (%p159) target = $region28
      $region27: #{yolov8_head_forward.36} parent=23 // pred_region
        %s162 = smul.u32 32, %s16
        %p163 = scmp.lt.s32.totalorder %s162, 63
        %s164 = scalar_select %p163, %s162, 63
        %s165 = smul.addr %s164, 4
        %s166 = scalar_lea.vmem %s0, %s165
        %s167 = smul.u32 32, %s16
      $region28: #{yolov8_head_forward.36} parent=23 // pred_fallthru
        _
    $region24: #{yolov8_head_forward.36} parent=5 // pred_fallthru
      _
    %p168 = scmp.le.s32.totalorder 1, %s9
    %p169 = scmp.lt.s32.totalorder %s9, 3
    %p170 = pnand %p168, %p169
    %p171 = pneg %p170
    // Predicated region
    $region29: #{yolov8_head_forward.36} parent=5 // pred_check
      _
    $region30: #{yolov8_head_forward.36} parent=5 // pred_check_branch
      %173 = sbr.rel (%p170) target = $region32
    $region31: #{yolov8_head_forward.36} parent=5 // pred_region
      %s174 = ssub.s32 %s9, 1
      %s175 = smul.u32 32, %s18
      %p176 = scmp.lt.s32.totalorder %s175, 63
      %s177 = scalar_select %p176, %s175, 63
      %s178 = smul.addr %s177, 4
      %s179 = scalar_lea.vmem %s0, %s178
      %p180 = pneg %p47
      %p181 = pneg %p44
      %p182 = scmp.lt.s32.totalorder %s19, 0
      %s183 = scalar_select %p182, %s19, 0
      %s184 = smul.addr %s183, 4
      %s185 = scalar_lea.vmem %s1, %s184
      %p186 = pneg %p73
      %p187 = pneg %p70
      %p188 = scmp.lt.s32.totalorder %s19, 0
      %s189 = scalar_select %p188, %s19, 0
      %s190 = scalar_lea.vmem %s2, %s189
      %p191 = pneg %p99
      %p192 = pneg %p96
      %p193 = pneg %p127
      %p194 = pneg %p124
      %s195 = smul.u32 32, %s18
      %p196 = scmp.lt.s32.totalorder %s195, 63
      %s197 = scalar_select %p196, %s195, 63
      %p198 = scmp.lt.s32.totalorder %s19, 0
      %s199 = scalar_select %p198, %s19, 0
      %s200 = sadd.s32 %s199, %s197
      %s201 = smul.addr %s200, 4
      %s202 = scalar_lea.vmem %s3, %s201
      %s203 = smul.u32 32, %s18
      %p204 = scmp.lt.s32.totalorder %s203, 63
      %s205 = scalar_select %p204, %s203, 63
      %s206 = smul.addr %s205, 4
      %s207 = scalar_lea.vmem %s0, %s206
      %s208 = smul.u32 32, %s18
      %p209 = scmp.lt.s32.totalorder %s19, 0
      %s210 = scalar_select %p209, %s19, 0
      %s211 = smul.addr %s210, 4
      %s212 = scalar_lea.vmem %s1, %s211
      %p213 = scmp.lt.s32.totalorder %s19, 0
      %s214 = scalar_select %p213, %s19, 0
      %s215 = scalar_lea.vmem %s2, %s214
      %s216 = smul.u32 32, %s18
      %p217 = scmp.lt.s32.totalorder %s216, 63
      %s218 = scalar_select %p217, %s216, 63
      %p219 = scmp.lt.s32.totalorder %s19, 0
      %s220 = scalar_select %p219, %s19, 0
      %s221 = sadd.s32 %s220, %s218
      %s222 = smul.addr %s221, 4
      %s223 = scalar_lea.vmem %s3, %s222
      %s224 = smul.u32 32, %s18
      %v226 = vld [vmem:[%s207] sm:$0xf]
      %v227 = vld [vmem:[%s207 + $0x4] sm:$0xf]
      %v228 = vld [vmem:[%s207 + $0x8] sm:$0xf]
      %v229 = vld [vmem:[%s207 + $0xc] sm:$0xf]
      %v230 = vld [vmem:[%s207 + $0x10] sm:$0xf]
      %v231 = vld [vmem:[%s207 + $0x14] sm:$0xf]
      %v232 = vld [vmem:[%s207 + $0x18] sm:$0xf]
      %v233 = vld [vmem:[%s207 + $0x1c] sm:$0xf]
      %v234 = vld [vmem:[%s207 + $0x20] sm:$0xf]
      %v235 = vld [vmem:[%s207 + $0x24] sm:$0xf]
      %v236 = vld [vmem:[%s207 + $0x28] sm:$0xf]
      %v237 = vld [vmem:[%s207 + $0x2c] sm:$0xf]
      %v238 = vld [vmem:[%s207 + $0x30] sm:$0xf]
      %v239 = vld [vmem:[%s207 + $0x34] sm:$0xf]
      %v240 = vld [vmem:[%s207 + $0x38] sm:$0xf]
      %v241 = vld [vmem:[%s207 + $0x3c] sm:$0xf]
      %v242 = vld [vmem:[%s207 + $0x40] sm:$0xf]
      %v243 = vld [vmem:[%s207 + $0x44] sm:$0xf]
      %v244 = vld [vmem:[%s207 + $0x48] sm:$0xf]
      %v245 = vld [vmem:[%s207 + $0x4c] sm:$0xf]
      %v246 = vld [vmem:[%s207 + $0x50] sm:$0xf]
      %v247 = vld [vmem:[%s207 + $0x54] sm:$0xf]
      %v248 = vld [vmem:[%s207 + $0x58] sm:$0xf]
      %v249 = vld [vmem:[%s207 + $0x5c] sm:$0xf]
      %v250 = vld [vmem:[%s207 + $0x60] sm:$0xf]
      %v251 = vld [vmem:[%s207 + $0x64] sm:$0xf]
      %v252 = vld [vmem:[%s207 + $0x68] sm:$0xf]
      %v253 = vld [vmem:[%s207 + $0x6c] sm:$0xf]
      %v254 = vld [vmem:[%s207 + $0x70] sm:$0xf]
      %v255 = vld [vmem:[%s207 + $0x74] sm:$0xf]
      %v256 = vld [vmem:[%s207 + $0x78] sm:$0xf]
      %v257 = vld [vmem:[%s207 + $0x7c] sm:$0xf]
      %v258 = vld [vmem:[%s212] sm:$0xf]
      %v259 = vld [vmem:[%s212 + $0x4] sm:$0xf]
      %v260 = vld [vmem:[%s212 + $0x8] sm:$0xf]
      %v261 = vld [vmem:[%s212 + $0xc] sm:$0xf]
      %v262 = vld [vmem:[%s212 + $0x10] sm:$0xf]
      %v263 = vld [vmem:[%s212 + $0x14] sm:$0xf]
      %v264 = vld [vmem:[%s212 + $0x18] sm:$0xf]
      %v265 = vld [vmem:[%s212 + $0x1c] sm:$0xf]
      %v266 = vld [vmem:[%s212 + $0x20] sm:$0xf]
      %v267 = vld [vmem:[%s215] sm:$0x1]
      %v269 = vlaneseq
      %v270 = vshrl.u32 %v269, 7
      %v271 = vsub.s32 0, %v270
      %v272 = vrot.slane %v267, %v271
      %v306 = vunpack.c.l.b16 %v226
      %v307 = vunpack.c.l.b16 %v227
      %v308 = vunpack.c.l.b16 %v228
      %v309 = vunpack.c.l.b16 %v229
      %v310 = vunpack.c.l.b16 %v230
      %v311 = vunpack.c.l.b16 %v231
      %v312 = vunpack.c.l.b16 %v232
      %v313 = vunpack.c.l.b16 %v233
      %v314 = vunpack.c.l.b16 %v234
      %v315 = vunpack.c.l.b16 %v235
      %v316 = vunpack.c.l.b16 %v236
      %v317 = vunpack.c.l.b16 %v237
      %v318 = vunpack.c.l.b16 %v238
      %v319 = vunpack.c.l.b16 %v239
      %v320 = vunpack.c.l.b16 %v240
      %v321 = vunpack.c.l.b16 %v241
      %v322 = vunpack.c.l.b16 %v242
      %v323 = vunpack.c.l.b16 %v243
      %v324 = vunpack.c.l.b16 %v244
      %v325 = vunpack.c.l.b16 %v245
      %v326 = vunpack.c.l.b16 %v246
      %v327 = vunpack.c.l.b16 %v247
      %v328 = vunpack.c.l.b16 %v248
      %v329 = vunpack.c.l.b16 %v249
      %v330 = vunpack.c.l.b16 %v250
      %v331 = vunpack.c.l.b16 %v251
      %v332 = vunpack.c.l.b16 %v252
      %v333 = vunpack.c.l.b16 %v253
      %v334 = vunpack.c.l.b16 %v254
      %v335 = vunpack.c.l.b16 %v255
      %v336 = vunpack.c.l.b16 %v256
      %v337 = vunpack.c.l.b16 %v257
      %v338 = vpack.c.b16 %v307, %v306
      %v339 = vpack.c.b16 %v309, %v308
      %v340 = vpack.c.b16 %v311, %v310
      %v341 = vpack.c.b16 %v313, %v312
      %v342 = vpack.c.b16 %v315, %v314
      %v343 = vpack.c.b16 %v317, %v316
      %v344 = vpack.c.b16 %v319, %v318
      %v345 = vpack.c.b16 %v321, %v320
      %v346 = vpack.c.b16 %v323, %v322
      %v347 = vpack.c.b16 %v325, %v324
      %v348 = vpack.c.b16 %v327, %v326
      %v349 = vpack.c.b16 %v329, %v328
      %v350 = vpack.c.b16 %v331, %v330
      %v351 = vpack.c.b16 %v333, %v332
      %v352 = vpack.c.b16 %v335, %v334
      %v353 = vpack.c.b16 %v337, %v336
      %v363 = vunpack.c.l.b16 %v258
      %v364 = vunpack.c.l.b16 %v259
      %v365 = vunpack.c.l.b16 %v260
      %v366 = vunpack.c.l.b16 %v261
      %v367 = vunpack.c.l.b16 %v262
      %v368 = vunpack.c.l.b16 %v263
      %v369 = vunpack.c.l.b16 %v264
      %v370 = vunpack.c.l.b16 %v265
      %v371 = vunpack.c.l.b16 %v266
      %v372 = vpack.c.b16 %v364, %v363
      %v373 = vpack.c.b16 %v366, %v365
      %v374 = vpack.c.b16 %v368, %v367
      %v375 = vpack.c.b16 %v370, %v369
      %v376 = vpack.c.b16 %v371, %v371
      %vm381 = vcmask 588800
      %v383 = vsel %vm381, %v338, 0
      %v386 = vsel %vm381, %v339, 0
      %v389 = vsel %vm381, %v340, 0
      %v392 = vsel %vm381, %v341, 0
      %v395 = vsel %vm381, %v342, 0
      %v398 = vsel %vm381, %v343, 0
      %v401 = vsel %vm381, %v344, 0
      %v404 = vsel %vm381, %v345, 0
      %v407 = vsel %vm381, %v346, 0
      %v410 = vsel %vm381, %v347, 0
      %v413 = vsel %vm381, %v348, 0
      %v416 = vsel %vm381, %v349, 0
      %v419 = vsel %vm381, %v350, 0
      %v422 = vsel %vm381, %v351, 0
      %v425 = vsel %vm381, %v352, 0
      %v428 = vsel %vm381, %v353, 0
      %vm430 = vcmask 1043456
      %v432 = vsel %vm430, %v376, 0
      %434 = vmatprep.subr.bf16.mxu0 0
      %435 = vmatpush1.bf16.msra.mxu0 0
      %436 = vmatprep.subr.bf16.mxu0 0
      %437 = vmatpush1.bf16.msra.mxu0 0
      %438 = vmatprep.subr.bf16.mxu0 0
      %439 = vmatpush1.bf16.msra.mxu0 0
      %440 = vmatprep.subr.bf16.mxu0 0
      %441 = vmatpush1.bf16.msra.mxu0 %v432
      %442 = vmatprep.subr.bf16.mxu0 0
      %443 = vmatpush1.bf16.msra.mxu0 %v375
      %444 = vmatprep.subr.bf16.mxu0 0
      %445 = vmatpush1.bf16.msra.mxu0 %v374
      %446 = vmatprep.subr.bf16.mxu0 0
      %447 = vmatpush1.bf16.msra.mxu0 %v373
      %448 = vmatprep.subr.bf16.mxu0 0
      %449 = vmatpush1.bf16.msra.mxu0 %v372
      %450 = vmatprep.subr.bf16.mxu0 0
      %451 = vmatpush2.bf16.msra.mxu0 0
      %452 = vmatprep.subr.bf16.mxu0 0
      %453 = vmatpush2.bf16.msra.mxu0 0
      %454 = vmatprep.subr.bf16.mxu0 0
      %455 = vmatpush2.bf16.msra.mxu0 0
      %456 = vmatprep.subr.bf16.mxu0 0
      %457 = vmatpush2.bf16.msra.mxu0 0
      %458 = vmatprep.subr.bf16.mxu0 0
      %459 = vmatpush2.bf16.msra.mxu0 0
      %460 = vmatprep.subr.bf16.mxu0 0
      %461 = vmatpush2.bf16.msra.mxu0 0
      %462 = vmatprep.subr.bf16.mxu0 0
      %463 = vmatpush2.bf16.msra.mxu0 0
      %464 = vmatprep.subr.bf16.mxu0 0
      %465 = vmatpush2.bf16.msra.mxu0 0
      %466 = vmatprep.mubr.bf16.mxu0 0
      %467 = vmatmul.mubr.bf16.gmra.mxu0 %v383
      %v468 = vpop.f32.mrf.mxu0
      %v469 = vadd.f32 %v272, %v468
      %v470 = vpop.f32.mrf.mxu0
      %v471 = vpop.f32.mrf.mxu0
      %v472 = vadd.f32 %v272, %v471
      %v473 = vpop.f32.mrf.mxu0
      %474 = vmatprep.mubr.bf16.mxu0 0
      %475 = vmatmul.mubr.bf16.gmra.mxu0 %v386
      %v476 = vpop.f32.mrf.mxu0
      %v477 = vadd.f32 %v272, %v476
      %v478 = vpop.f32.mrf.mxu0
      %v479 = vpop.f32.mrf.mxu0
      %v480 = vadd.f32 %v272, %v479
      %v481 = vpop.f32.mrf.mxu0
      %482 = vmatprep.mubr.bf16.mxu0 0
      %483 = vmatmul.mubr.bf16.gmra.mxu0 %v389
      %v484 = vpop.f32.mrf.mxu0
      %v485 = vadd.f32 %v272, %v484
      %v486 = vpop.f32.mrf.mxu0
      %v487 = vpop.f32.mrf.mxu0
      %v488 = vadd.f32 %v272, %v487
      %v489 = vpop.f32.mrf.mxu0
      %490 = vmatprep.mubr.bf16.mxu0 0
      %491 = vmatmul.mubr.bf16.gmra.mxu0 %v392
      %v492 = vpop.f32.mrf.mxu0
      %v493 = vadd.f32 %v272, %v492
      %v494 = vpop.f32.mrf.mxu0
      %v495 = vpop.f32.mrf.mxu0
      %v496 = vadd.f32 %v272, %v495
      %v497 = vpop.f32.mrf.mxu0
      %498 = vmatprep.mubr.bf16.mxu0 0
      %499 = vmatmul.mubr.bf16.gmra.mxu0 %v395
      %v500 = vpop.f32.mrf.mxu0
      %v501 = vadd.f32 %v272, %v500
      %v502 = vpop.f32.mrf.mxu0
      %v503 = vpop.f32.mrf.mxu0
      %v504 = vadd.f32 %v272, %v503
      %v505 = vpop.f32.mrf.mxu0
      %506 = vmatprep.mubr.bf16.mxu0 0
      %507 = vmatmul.mubr.bf16.gmra.mxu0 %v398
      %v508 = vpop.f32.mrf.mxu0
      %v509 = vadd.f32 %v272, %v508
      %v510 = vpop.f32.mrf.mxu0
      %v511 = vpop.f32.mrf.mxu0
      %v512 = vadd.f32 %v272, %v511
      %v513 = vpop.f32.mrf.mxu0
      %514 = vmatprep.mubr.bf16.mxu0 0
      %515 = vmatmul.mubr.bf16.gmra.mxu0 %v401
      %v516 = vpop.f32.mrf.mxu0
      %v517 = vadd.f32 %v272, %v516
      %v518 = vpop.f32.mrf.mxu0
      %v519 = vpop.f32.mrf.mxu0
      %v520 = vadd.f32 %v272, %v519
      %v521 = vpop.f32.mrf.mxu0
      %522 = vmatprep.mubr.bf16.mxu0 0
      %523 = vmatmul.mubr.bf16.gmra.mxu0 %v404
      %v524 = vpop.f32.mrf.mxu0
      %v525 = vadd.f32 %v272, %v524
      %v526 = vpop.f32.mrf.mxu0
      %v527 = vpop.f32.mrf.mxu0
      %v528 = vadd.f32 %v272, %v527
      %v529 = vpop.f32.mrf.mxu0
      %530 = vmatprep.mubr.bf16.mxu0 0
      %531 = vmatmul.mubr.bf16.gmra.mxu0 %v407
      %v532 = vpop.f32.mrf.mxu0
      %v533 = vadd.f32 %v272, %v532
      %v534 = vpop.f32.mrf.mxu0
      %v535 = vpop.f32.mrf.mxu0
      %v536 = vadd.f32 %v272, %v535
      %v537 = vpop.f32.mrf.mxu0
      %538 = vmatprep.mubr.bf16.mxu0 0
      %539 = vmatmul.mubr.bf16.gmra.mxu0 %v410
      %v540 = vpop.f32.mrf.mxu0
      %v541 = vadd.f32 %v272, %v540
      %v542 = vpop.f32.mrf.mxu0
      %v543 = vpop.f32.mrf.mxu0
      %v544 = vadd.f32 %v272, %v543
      %v545 = vpop.f32.mrf.mxu0
      %546 = vmatprep.mubr.bf16.mxu0 0
      %547 = vmatmul.mubr.bf16.gmra.mxu0 %v413
      %v548 = vpop.f32.mrf.mxu0
      %v549 = vadd.f32 %v272, %v548
      %v550 = vpop.f32.mrf.mxu0
      %v551 = vpop.f32.mrf.mxu0
      %v552 = vadd.f32 %v272, %v551
      %v553 = vpop.f32.mrf.mxu0
      %554 = vmatprep.mubr.bf16.mxu0 0
      %555 = vmatmul.mubr.bf16.gmra.mxu0 %v416
      %v556 = vpop.f32.mrf.mxu0
      %v557 = vadd.f32 %v272, %v556
      %v558 = vpop.f32.mrf.mxu0
      %v559 = vpop.f32.mrf.mxu0
      %v560 = vadd.f32 %v272, %v559
      %v561 = vpop.f32.mrf.mxu0
      %562 = vmatprep.mubr.bf16.mxu0 0
      %563 = vmatmul.mubr.bf16.gmra.mxu0 %v419
      %v564 = vpop.f32.mrf.mxu0
      %v565 = vadd.f32 %v272, %v564
      %v566 = vpop.f32.mrf.mxu0
      %v567 = vpop.f32.mrf.mxu0
      %v568 = vadd.f32 %v272, %v567
      %v569 = vpop.f32.mrf.mxu0
      %570 = vmatprep.mubr.bf16.mxu0 0
      %571 = vmatmul.mubr.bf16.gmra.mxu0 %v422
      %v572 = vpop.f32.mrf.mxu0
      %v573 = vadd.f32 %v272, %v572
      %v574 = vpop.f32.mrf.mxu0
      %v575 = vpop.f32.mrf.mxu0
      %v576 = vadd.f32 %v272, %v575
      %v577 = vpop.f32.mrf.mxu0
      %578 = vmatprep.mubr.bf16.mxu0 0
      %579 = vmatmul.mubr.bf16.gmra.mxu0 %v425
      %v580 = vpop.f32.mrf.mxu0
      %v581 = vadd.f32 %v272, %v580
      %v582 = vpop.f32.mrf.mxu0
      %v583 = vpop.f32.mrf.mxu0
      %v584 = vadd.f32 %v272, %v583
      %v585 = vpop.f32.mrf.mxu0
      %586 = vmatprep.mubr.bf16.mxu0 0
      %587 = vmatmul.mubr.bf16.gmra.mxu0 %v428
      %v588 = vpop.f32.mrf.mxu0
      %v589 = vadd.f32 %v272, %v588
      %v590 = vpop.f32.mrf.mxu0
      %v591 = vpop.f32.mrf.mxu0
      %v592 = vadd.f32 %v272, %v591
      %v593 = vpop.f32.mrf.mxu0
      %594 = vdwg.mxu0
      %v595 = vxor.u32 %v469, 2147483648
      %v596 = vxor.u32 %v472, 2147483648
      %v597 = vxor.u32 %v477, 2147483648
      %v598 = vxor.u32 %v480, 2147483648
      %v599 = vxor.u32 %v485, 2147483648
      %v600 = vxor.u32 %v488, 2147483648
      %v601 = vxor.u32 %v493, 2147483648
      %v602 = vxor.u32 %v496, 2147483648
      %v603 = vxor.u32 %v501, 2147483648
      %v604 = vxor.u32 %v504, 2147483648
      %v605 = vxor.u32 %v509, 2147483648
      %v606 = vxor.u32 %v512, 2147483648
      %v607 = vxor.u32 %v517, 2147483648
      %v608 = vxor.u32 %v520, 2147483648
      %v609 = vxor.u32 %v525, 2147483648
      %v610 = vxor.u32 %v528, 2147483648
      %v611 = vxor.u32 %v533, 2147483648
      %v612 = vxor.u32 %v536, 2147483648
      %v613 = vxor.u32 %v541, 2147483648
      %v614 = vxor.u32 %v544, 2147483648
      %v615 = vxor.u32 %v549, 2147483648
      %v616 = vxor.u32 %v552, 2147483648
      %v617 = vxor.u32 %v557, 2147483648
      %v618 = vxor.u32 %v560, 2147483648
      %v619 = vxor.u32 %v565, 2147483648
      %v620 = vxor.u32 %v568, 2147483648
      %v621 = vxor.u32 %v573, 2147483648
      %v622 = vxor.u32 %v576, 2147483648
      %v623 = vxor.u32 %v581, 2147483648
      %v624 = vxor.u32 %v584, 2147483648
      %v625 = vxor.u32 %v589, 2147483648
      %v626 = vxor.u32 %v592, 2147483648
      %v627 = vmul.f32 %v595, 1.442695
      %v628 = vpow.pop %v627
      %v629 = vmul.f32 %v596, 1.442695
      %v630 = vpow.pop %v629
      %v631 = vmul.f32 %v597, 1.442695
      %v632 = vpow.pop %v631
      %v633 = vmul.f32 %v598, 1.442695
      %v634 = vpow.pop %v633
      %v635 = vmul.f32 %v599, 1.442695
      %v636 = vpow.pop %v635
      %v637 = vmul.f32 %v600, 1.442695
      %v638 = vpow.pop %v637
      %v639 = vmul.f32 %v601, 1.442695
      %v640 = vpow.pop %v639
      %v641 = vmul.f32 %v602, 1.442695
      %v642 = vpow.pop %v641
      %v643 = vmul.f32 %v603, 1.442695
      %v644 = vpow.pop %v643
      %v645 = vmul.f32 %v604, 1.442695
      %v646 = vpow.pop %v645
      %v647 = vmul.f32 %v605, 1.442695
      %v648 = vpow.pop %v647
      %v649 = vmul.f32 %v606, 1.442695
      %v650 = vpow.pop %v649
      %v651 = vmul.f32 %v607, 1.442695
      %v652 = vpow.pop %v651
      %v653 = vmul.f32 %v608, 1.442695
      %v654 = vpow.pop %v653
      %v655 = vmul.f32 %v609, 1.442695
      %v656 = vpow.pop %v655
      %v657 = vmul.f32 %v610, 1.442695
      %v658 = vpow.pop %v657
      %v659 = vmul.f32 %v611, 1.442695
      %v660 = vpow.pop %v659
      %v661 = vmul.f32 %v612, 1.442695
      %v662 = vpow.pop %v661
      %v663 = vmul.f32 %v613, 1.442695
      %v664 = vpow.pop %v663
      %v665 = vmul.f32 %v614, 1.442695
      %v666 = vpow.pop %v665
      %v667 = vmul.f32 %v615, 1.442695
      %v668 = vpow.pop %v667
      %v669 = vmul.f32 %v616, 1.442695
      %v670 = vpow.pop %v669
      %v671 = vmul.f32 %v617, 1.442695
      %v672 = vpow.pop %v671
      %v673 = vmul.f32 %v618, 1.442695
      %v674 = vpow.pop %v673
      %v675 = vmul.f32 %v619, 1.442695
      %v676 = vpow.pop %v675
      %v677 = vmul.f32 %v620, 1.442695
      %v678 = vpow.pop %v677
      %v679 = vmul.f32 %v621, 1.442695
      %v680 = vpow.pop %v679
      %v681 = vmul.f32 %v622, 1.442695
      %v682 = vpow.pop %v681
      %v683 = vmul.f32 %v623, 1.442695
      %v684 = vpow.pop %v683
      %v685 = vmul.f32 %v624, 1.442695
      %v686 = vpow.pop %v685
      %v687 = vmul.f32 %v625, 1.442695
      %v688 = vpow.pop %v687
      %v689 = vmul.f32 %v626, 1.442695
      %v690 = vpow.pop %v689
      %v691 = vadd.f32 %v628, 1.0
      %v692 = vadd.f32 %v630, 1.0
      %v693 = vadd.f32 %v632, 1.0
      %v694 = vadd.f32 %v634, 1.0
      %v695 = vadd.f32 %v636, 1.0
      %v696 = vadd.f32 %v638, 1.0
      %v697 = vadd.f32 %v640, 1.0
      %v698 = vadd.f32 %v642, 1.0
      %v699 = vadd.f32 %v644, 1.0
      %v700 = vadd.f32 %v646, 1.0
      %v701 = vadd.f32 %v648, 1.0
      %v702 = vadd.f32 %v650, 1.0
      %v703 = vadd.f32 %v652, 1.0
      %v704 = vadd.f32 %v654, 1.0
      %v705 = vadd.f32 %v656, 1.0
      %v706 = vadd.f32 %v658, 1.0
      %v707 = vadd.f32 %v660, 1.0
      %v708 = vadd.f32 %v662, 1.0
      %v709 = vadd.f32 %v664, 1.0
      %v710 = vadd.f32 %v666, 1.0
      %v711 = vadd.f32 %v668, 1.0
      %v712 = vadd.f32 %v670, 1.0
      %v713 = vadd.f32 %v672, 1.0
      %v714 = vadd.f32 %v674, 1.0
      %v715 = vadd.f32 %v676, 1.0
      %v716 = vadd.f32 %v678, 1.0
      %v717 = vadd.f32 %v680, 1.0
      %v718 = vadd.f32 %v682, 1.0
      %v719 = vadd.f32 %v684, 1.0
      %v720 = vadd.f32 %v686, 1.0
      %v721 = vadd.f32 %v688, 1.0
      %v722 = vadd.f32 %v690, 1.0
      %v723 = vrcp.pop %v691
      %v724 = vmul.f32 1.0, %v723
      %v725 = vrcp.pop %v692
      %v726 = vmul.f32 1.0, %v725
      %v727 = vrcp.pop %v693
      %v728 = vmul.f32 1.0, %v727
      %v729 = vrcp.pop %v694
      %v730 = vmul.f32 1.0, %v729
      %v731 = vrcp.pop %v695
      %v732 = vmul.f32 1.0, %v731
      %v733 = vrcp.pop %v696
      %v734 = vmul.f32 1.0, %v733
      %v735 = vrcp.pop %v697
      %v736 = vmul.f32 1.0, %v735
      %v737 = vrcp.pop %v698
      %v738 = vmul.f32 1.0, %v737
      %v739 = vrcp.pop %v699
      %v740 = vmul.f32 1.0, %v739
      %v741 = vrcp.pop %v700
      %v742 = vmul.f32 1.0, %v741
      %v743 = vrcp.pop %v701
      %v744 = vmul.f32 1.0, %v743
      %v745 = vrcp.pop %v702
      %v746 = vmul.f32 1.0, %v745
      %v747 = vrcp.pop %v703
      %v748 = vmul.f32 1.0, %v747
      %v749 = vrcp.pop %v704
      %v750 = vmul.f32 1.0, %v749
      %v751 = vrcp.pop %v705
      %v752 = vmul.f32 1.0, %v751
      %v753 = vrcp.pop %v706
      %v754 = vmul.f32 1.0, %v753
      %v755 = vrcp.pop %v707
      %v756 = vmul.f32 1.0, %v755
      %v757 = vrcp.pop %v708
      %v758 = vmul.f32 1.0, %v757
      %v759 = vrcp.pop %v709
      %v760 = vmul.f32 1.0, %v759
      %v761 = vrcp.pop %v710
      %v762 = vmul.f32 1.0, %v761
      %v763 = vrcp.pop %v711
      %v764 = vmul.f32 1.0, %v763
      %v765 = vrcp.pop %v712
      %v766 = vmul.f32 1.0, %v765
      %v767 = vrcp.pop %v713
      %v768 = vmul.f32 1.0, %v767
      %v769 = vrcp.pop %v714
      %v770 = vmul.f32 1.0, %v769
      %v771 = vrcp.pop %v715
      %v772 = vmul.f32 1.0, %v771
      %v773 = vrcp.pop %v716
      %v774 = vmul.f32 1.0, %v773
      %v775 = vrcp.pop %v717
      %v776 = vmul.f32 1.0, %v775
      %v777 = vrcp.pop %v718
      %v778 = vmul.f32 1.0, %v777
      %v779 = vrcp.pop %v719
      %v780 = vmul.f32 1.0, %v779
      %v781 = vrcp.pop %v720
      %v782 = vmul.f32 1.0, %v781
      %v783 = vrcp.pop %v721
      %v784 = vmul.f32 1.0, %v783
      %v785 = vrcp.pop %v722
      %v786 = vmul.f32 1.0, %v785
      %v787 = vmul.f32 %v469, %v724
      %v788 = vmul.f32 %v472, %v726
      %v789 = vmul.f32 %v477, %v728
      %v790 = vmul.f32 %v480, %v730
      %v791 = vmul.f32 %v485, %v732
      %v792 = vmul.f32 %v488, %v734
      %v793 = vmul.f32 %v493, %v736
      %v794 = vmul.f32 %v496, %v738
      %v795 = vmul.f32 %v501, %v740
      %v796 = vmul.f32 %v504, %v742
      %v797 = vmul.f32 %v509, %v744
      %v798 = vmul.f32 %v512, %v746
      %v799 = vmul.f32 %v517, %v748
      %v800 = vmul.f32 %v520, %v750
      %v801 = vmul.f32 %v525, %v752
      %v802 = vmul.f32 %v528, %v754
      %v803 = vmul.f32 %v533, %v756
      %v804 = vmul.f32 %v536, %v758
      %v805 = vmul.f32 %v541, %v760
      %v806 = vmul.f32 %v544, %v762
      %v807 = vmul.f32 %v549, %v764
      %v808 = vmul.f32 %v552, %v766
      %v809 = vmul.f32 %v557, %v768
      %v810 = vmul.f32 %v560, %v770
      %v811 = vmul.f32 %v565, %v772
      %v812 = vmul.f32 %v568, %v774
      %v813 = vmul.f32 %v573, %v776
      %v814 = vmul.f32 %v576, %v778
      %v815 = vmul.f32 %v581, %v780
      %v816 = vmul.f32 %v584, %v782
      %v817 = vmul.f32 %v589, %v784
      %v818 = vmul.f32 %v592, %v786
      %v819 = vpack.c.bf16 %v788, %v787
      %v820 = vpack.c.bf16 %v790, %v789
      %v821 = vpack.c.bf16 %v792, %v791
      %v822 = vpack.c.bf16 %v794, %v793
      %v823 = vpack.c.bf16 %v796, %v795
      %v824 = vpack.c.bf16 %v798, %v797
      %v825 = vpack.c.bf16 %v800, %v799
      %v826 = vpack.c.bf16 %v802, %v801
      %v827 = vpack.c.bf16 %v804, %v803
      %v828 = vpack.c.bf16 %v806, %v805
      %v829 = vpack.c.bf16 %v808, %v807
      %v830 = vpack.c.bf16 %v810, %v809
      %v831 = vpack.c.bf16 %v812, %v811
      %v832 = vpack.c.bf16 %v814, %v813
      %v833 = vpack.c.bf16 %v816, %v815
      %v834 = vpack.c.bf16 %v818, %v817
      %v851 = vunpack.c.l.b16 %v819
      %v852 = vunpack.c.h.b16 %v819
      %v853 = vunpack.c.l.b16 %v820
      %v854 = vunpack.c.h.b16 %v820
      %v855 = vunpack.c.l.b16 %v821
      %v856 = vunpack.c.h.b16 %v821
      %v857 = vunpack.c.l.b16 %v822
      %v858 = vunpack.c.h.b16 %v822
      %v859 = vunpack.c.l.b16 %v823
      %v860 = vunpack.c.h.b16 %v823
      %v861 = vunpack.c.l.b16 %v824
      %v862 = vunpack.c.h.b16 %v824
      %v863 = vunpack.c.l.b16 %v825
      %v864 = vunpack.c.h.b16 %v825
      %v865 = vunpack.c.l.b16 %v826
      %v866 = vunpack.c.h.b16 %v826
      %v867 = vunpack.c.l.b16 %v827
      %v868 = vunpack.c.h.b16 %v827
      %v869 = vunpack.c.l.b16 %v828
      %v870 = vunpack.c.h.b16 %v828
      %v871 = vunpack.c.l.b16 %v829
      %v872 = vunpack.c.h.b16 %v829
      %v873 = vunpack.c.l.b16 %v830
      %v874 = vunpack.c.h.b16 %v830
      %v875 = vunpack.c.l.b16 %v831
      %v876 = vunpack.c.h.b16 %v831
      %v877 = vunpack.c.l.b16 %v832
      %v878 = vunpack.c.h.b16 %v832
      %v879 = vunpack.c.l.b16 %v833
      %v880 = vunpack.c.h.b16 %v833
      %v881 = vunpack.c.l.b16 %v834
      %v882 = vunpack.c.h.b16 %v834
      %v883 = vpack.c.b16 %v851, %v851
      %v884 = vpack.c.b16 %v852, %v852
      %v885 = vpack.c.b16 %v853, %v853
      %v886 = vpack.c.b16 %v854, %v854
      %v887 = vpack.c.b16 %v855, %v855
      %v888 = vpack.c.b16 %v856, %v856
      %v889 = vpack.c.b16 %v857, %v857
      %v890 = vpack.c.b16 %v858, %v858
      %v891 = vpack.c.b16 %v859, %v859
      %v892 = vpack.c.b16 %v860, %v860
      %v893 = vpack.c.b16 %v861, %v861
      %v894 = vpack.c.b16 %v862, %v862
      %v895 = vpack.c.b16 %v863, %v863
      %v896 = vpack.c.b16 %v864, %v864
      %v897 = vpack.c.b16 %v865, %v865
      %v898 = vpack.c.b16 %v866, %v866
      %v899 = vpack.c.b16 %v867, %v867
      %v900 = vpack.c.b16 %v868, %v868
      %v901 = vpack.c.b16 %v869, %v869
      %v902 = vpack.c.b16 %v870, %v870
      %v903 = vpack.c.b16 %v871, %v871
      %v904 = vpack.c.b16 %v872, %v872
      %v905 = vpack.c.b16 %v873, %v873
      %v906 = vpack.c.b16 %v874, %v874
      %v907 = vpack.c.b16 %v875, %v875
      %v908 = vpack.c.b16 %v876, %v876
      %v909 = vpack.c.b16 %v877, %v877
      %v910 = vpack.c.b16 %v878, %v878
      %v911 = vpack.c.b16 %v879, %v879
      %v912 = vpack.c.b16 %v880, %v880
      %v913 = vpack.c.b16 %v881, %v881
      %v914 = vpack.c.b16 %v882, %v882
      %vm947 = vcmask 27648
      %948 = vst.msk [vmem:[%s223] sm:$0xf] %vm947, %v883
      %949 = vst.msk [vmem:[%s223 + $0x4] sm:$0xf] %vm947, %v884
      %950 = vst.msk [vmem:[%s223 + $0x8] sm:$0xf] %vm947, %v885
      %951 = vst.msk [vmem:[%s223 + $0xc] sm:$0xf] %vm947, %v886
      %952 = vst.msk [vmem:[%s223 + $0x10] sm:$0xf] %vm947, %v887
      %953 = vst.msk [vmem:[%s223 + $0x14] sm:$0xf] %vm947, %v888
      %954 = vst.msk [vmem:[%s223 + $0x18] sm:$0xf] %vm947, %v889
      %955 = vst.msk [vmem:[%s223 + $0x1c] sm:$0xf] %vm947, %v890
      %956 = vst.msk [vmem:[%s223 + $0x20] sm:$0xf] %vm947, %v891
      %957 = vst.msk [vmem:[%s223 + $0x24] sm:$0xf] %vm947, %v892
      %958 = vst.msk [vmem:[%s223 + $0x28] sm:$0xf] %vm947, %v893
      %959 = vst.msk [vmem:[%s223 + $0x2c] sm:$0xf] %vm947, %v894
      %960 = vst.msk [vmem:[%s223 + $0x30] sm:$0xf] %vm947, %v895
      %961 = vst.msk [vmem:[%s223 + $0x34] sm:$0xf] %vm947, %v896
      %962 = vst.msk [vmem:[%s223 + $0x38] sm:$0xf] %vm947, %v897
      %963 = vst.msk [vmem:[%s223 + $0x3c] sm:$0xf] %vm947, %v898
      %964 = vst.msk [vmem:[%s223 + $0x40] sm:$0xf] %vm947, %v899
      %965 = vst.msk [vmem:[%s223 + $0x44] sm:$0xf] %vm947, %v900
      %966 = vst.msk [vmem:[%s223 + $0x48] sm:$0xf] %vm947, %v901
      %967 = vst.msk [vmem:[%s223 + $0x4c] sm:$0xf] %vm947, %v902
      %968 = vst.msk [vmem:[%s223 + $0x50] sm:$0xf] %vm947, %v903
      %969 = vst.msk [vmem:[%s223 + $0x54] sm:$0xf] %vm947, %v904
      %970 = vst.msk [vmem:[%s223 + $0x58] sm:$0xf] %vm947, %v905
      %971 = vst.msk [vmem:[%s223 + $0x5c] sm:$0xf] %vm947, %v906
      %972 = vst.msk [vmem:[%s223 + $0x60] sm:$0xf] %vm947, %v907
      %973 = vst.msk [vmem:[%s223 + $0x64] sm:$0xf] %vm947, %v908
      %974 = vst.msk [vmem:[%s223 + $0x68] sm:$0xf] %vm947, %v909
      %975 = vst.msk [vmem:[%s223 + $0x6c] sm:$0xf] %vm947, %v910
      %976 = vst.msk [vmem:[%s223 + $0x70] sm:$0xf] %vm947, %v911
      %977 = vst.msk [vmem:[%s223 + $0x74] sm:$0xf] %vm947, %v912
      %978 = vst.msk [vmem:[%s223 + $0x78] sm:$0xf] %vm947, %v913
      %979 = vst.msk [vmem:[%s223 + $0x7c] sm:$0xf] %vm947, %v914
      %s980 = smul.u32 32, %s18
      %p981 = scmp.lt.s32.totalorder %s980, 63
      %s982 = scalar_select %p981, %s980, 63
      %p983 = scmp.lt.s32.totalorder %s19, 0
      %s984 = scalar_select %p983, %s19, 0
      %s985 = sadd.s32 %s984, %s982
      %s986 = smul.addr %s985, 4
      %s987 = scalar_lea.vmem %s3, %s986
      // Predicated region
      $region33: #{yolov8_head_forward.36} parent=31 // pred_check
        %p988 = pneg %p124
      $region34: #{yolov8_head_forward.36} parent=31 // pred_check_branch
        %990 = sbr.rel (%p988) target = $region36
      $region35: #{yolov8_head_forward.36} parent=31 // pred_region
        %s991 = smul.u32 32, %s18
      $region36: #{yolov8_head_forward.36} parent=31 // pred_fallthru
        _
    $region32: #{yolov8_head_forward.36} parent=5 // pred_fallthru
      _
    %p992 = scmp.le.s32.totalorder 2, %s9
    // Predicated region
    $region37: #{yolov8_head_forward.36} parent=5 // pred_check
      %p993 = pneg %p992
    $region38: #{yolov8_head_forward.36} parent=5 // pred_check_branch
      %995 = sbr.rel (%p993) target = $region40
    $region39: #{yolov8_head_forward.36} parent=5 // pred_region
      %s996 = ssub.s32 %s9, 2
      // Predicated region
      $region41: #{yolov8_head_forward.36} parent=39 // pred_check
        %p997 = pneg %p130
      $region42: #{yolov8_head_forward.36} parent=39 // pred_check_branch
        %999 = sbr.rel (%p997) target = $region44
      $region43: #{yolov8_head_forward.36} parent=39 // pred_region
        %s1000 = smul.u32 32, %s20
        %p1001 = scmp.lt.s32.totalorder %s1000, 63
        %s1002 = scalar_select %p1001, %s1000, 63
        %p1003 = scmp.lt.s32.totalorder %s21, 0
        %s1004 = scalar_select %p1003, %s21, 0
        %s1005 = sadd.s32 %s1004, %s1002
        %s1006 = smul.addr %s1005, 4
        %s1007 = scalar_lea.vmem %s3, %s1006
      $region44: #{yolov8_head_forward.36} parent=39 // pred_fallthru
        _
    $region40: #{yolov8_head_forward.36} parent=5 // pred_fallthru
      _
  $region6: #{yolov8_head_forward.36} parent=0 // loop_footer
    %s13 = sadd.s32 1, %s9
  $region7: #{yolov8_head_forward.36} parent=0 // loop_footer_branch
    %8 = sbr.rel target = $region3
  $region8: #{yolov8_head_forward.36} parent=0 // loop_exit
    _

// kernel: yolov8_head_forward.37
$region0: #{yolov8_head_forward.37}
  #allocation0 [shape = 'u32[]', space=smem, size = 0x4, offset = 0x4, fixed_abs, tag = 'smem constant byte address 0x4 - core index']
  #allocation1 [shape = 'u32[144,128]{1,0:T(1,128)}', space=vmem, size = 0x12000, scoped, tag = 'internal scratch']
  %s0 = inlined_call_operand.vmem [shape: bf16[512,36], index: 0, kind: input, shape index: {}]
  %s1 = inlined_call_operand.vmem [shape: bf16[36,8], index: 1, kind: input, shape index: {}]
  %s2 = inlined_call_operand.vmem [shape: f32[1,8], index: 2, kind: input, shape index: {}]
  %s3 = inlined_call_operand.vmem [shape: bf16[512,8], index: 3, kind: output, shape index: {}]
  %s4 = sld [smem:[#allocation0]]
  $region45: #{yolov8_head_forward.37} parent=0
    _
  %s6 = ssub.s32 1, %s4
  %s7 = scalar_select 0, %s6, %s4
  loop: start=0, step=1, limit=4
  $region2: #{yolov8_head_forward.37} parent=0 // loop_pre_header
    _
  $region3: #{yolov8_head_forward.37} parent=0 // loop_header
    %s9 = sphi 0, %s13
    %p10 = scmp.ge.s32.totalorder %s9, 4
    %s16 = sphi 0, %s28
    %s17 = sphi 0, %s24
    %s18 = sphi 0, %s16
    %s19 = sphi 0, %s17
    %s20 = sphi 0, %s18
    %s21 = sphi 0, %s19
    %s31 = sphi 0, %s33
    %s34 = sphi 0, %s31
    %s35 = sphi 0, %s34
    %s51 = sphi 0, %s35
    %s57 = sphi 0, %s59
    %s60 = sphi 0, %s57
    %s61 = sphi 0, %s60
    %s77 = sphi 0, %s61
    %s83 = sphi 0, %s85
    %s86 = sphi 0, %s83
    %s87 = sphi 0, %s86
    %s103 = sphi 0, %s87
    %s111 = sphi 0, %s113
    %s114 = sphi 0, %s111
    %s115 = sphi 0, %s114
    %s131 = sphi 0, %s115
  $region4: #{yolov8_head_forward.37} parent=0 // loop_header_branch
    %12 = sbr.rel (%p10) target = $region8
  $region5: #{yolov8_head_forward.37} parent=0 // loop_body
    %s14 = ssub.s32 %s9, 1
    %s15 = ssub.s32 %s9, 2
    %s22 = sadd.s32 1, %s17
    %p23 = scmp.ge.s32.totalorder %s22, 1
    %s24 = scalar_select %p23, 0, %s22
    %s25 = sadd.s32 1, %s16
    %s26 = scalar_select %p23, %s25, %s16
    %p27 = scmp.ge.s32.totalorder %s26, 2
    %s28 = scalar_select %p27, 0, %s26
    %s29 = ssub.s32 %s16, %s28
    %p30 = scmp.eq.s32.totalorder %s29, 0
    %s32 = sadd.s32 %s31, 1
    %s33 = scalar_select %p30, %s31, %s32
    %p36 = pneg %p30
    %p37 = scmp.eq.s32.totalorder %s9, 1
    %p38 = por %p36, %p37
    %p39 = scmp.ne.s32.totalorder %s31, %s34
    %p40 = scmp.eq.s32.totalorder %s9, 0
    %p41 = por %p39, %p40
    %p42 = scmp.ne.s32.totalorder %s31, %s34
    %p43 = scmp.eq.s32.totalorder %s14, 1
    %p44 = por %p42, %p43
    %p45 = scmp.ne.s32.totalorder %s34, %s35
    %p46 = scmp.eq.s32.totalorder %s14, 0
    %p47 = por %p45, %p46
    %p48 = scmp.ne.s32.totalorder %s34, %s35
    %p49 = scmp.eq.s32.totalorder %s15, 1
    %p50 = por %p48, %p49
    %p52 = scmp.ne.s32.totalorder %s35, %s51
    %p53 = scmp.eq.s32.totalorder %s15, 0
    %p54 = por %p52, %p53
    %s55 = ssub.s32 %s17, %s24
    %p56 = scmp.eq.s32.totalorder %s55, 0
    %s58 = sadd.s32 %s57, 1
    %s59 = scalar_select %p56, %s57, %s58
    %p62 = pneg %p56
    %p63 = scmp.eq.s32.totalorder %s9, 1
    %p64 = por %p62, %p63
    %p65 = scmp.ne.s32.totalorder %s57, %s60
    %p66 = scmp.eq.s32.totalorder %s9, 0
    %p67 = por %p65, %p66
    %p68 = scmp.ne.s32.totalorder %s57, %s60
    %p69 = scmp.eq.s32.totalorder %s14, 1
    %p70 = por %p68, %p69
    %p71 = scmp.ne.s32.totalorder %s60, %s61
    %p72 = scmp.eq.s32.totalorder %s14, 0
    %p73 = por %p71, %p72
    %p74 = scmp.ne.s32.totalorder %s60, %s61
    %p75 = scmp.eq.s32.totalorder %s15, 1
    %p76 = por %p74, %p75
    %p78 = scmp.ne.s32.totalorder %s61, %s77
    %p79 = scmp.eq.s32.totalorder %s15, 0
    %p80 = por %p78, %p79
    %s81 = ssub.s32 %s17, %s24
    %p82 = scmp.eq.s32.totalorder %s81, 0
    %s84 = sadd.s32 %s83, 1
    %s85 = scalar_select %p82, %s83, %s84
    %p88 = pneg %p82
    %p89 = scmp.eq.s32.totalorder %s9, 1
    %p90 = por %p88, %p89
    %p91 = scmp.ne.s32.totalorder %s83, %s86
    %p92 = scmp.eq.s32.totalorder %s9, 0
    %p93 = por %p91, %p92
    %p94 = scmp.ne.s32.totalorder %s83, %s86
    %p95 = scmp.eq.s32.totalorder %s14, 1
    %p96 = por %p94, %p95
    %p97 = scmp.ne.s32.totalorder %s86, %s87
    %p98 = scmp.eq.s32.totalorder %s14, 0
    %p99 = por %p97, %p98
    %p100 = scmp.ne.s32.totalorder %s86, %s87
    %p101 = scmp.eq.s32.totalorder %s15, 1
    %p102 = por %p100, %p101
    %p104 = scmp.ne.s32.totalorder %s87, %s103
    %p105 = scmp.eq.s32.totalorder %s15, 0
    %p106 = por %p104, %p105
    %s107 = ssub.s32 %s16, %s28
    %s108 = ssub.s32 %s17, %s24
    %s109 = sor.u32 %s107, %s108
    %p110 = scmp.eq.s32.totalorder %s109, 0
    %s112 = sadd.s32 %s111, 1
    %s113 = scalar_select %p110, %s111, %s112
    %p116 = pneg %p110
    %p117 = scmp.eq.s32.totalorder %s9, 1
    %p118 = por %p116, %p117
    %p119 = scmp.ne.s32.totalorder %s111, %s114
    %p120 = scmp.eq.s32.totalorder %s9, 0
    %p121 = por %p119, %p120
    %p122 = scmp.ne.s32.totalorder %s111, %s114
    %p123 = scmp.eq.s32.totalorder %s14, 1
    %p124 = por %p122, %p123
    %p125 = scmp.ne.s32.totalorder %s114, %s115
    %p126 = scmp.eq.s32.totalorder %s14, 0
    %p127 = por %p125, %p126
    %p128 = scmp.ne.s32.totalorder %s114, %s115
    %p129 = scmp.eq.s32.totalorder %s15, 1
    %p130 = por %p128, %p129
    %p132 = scmp.ne.s32.totalorder %s115, %s131
    %p133 = scmp.eq.s32.totalorder %s15, 0
    %p134 = por %p132, %p133
    %p135 = scmp.le.s32.totalorder 1, %s9
    %p136 = scmp.lt.s32.totalorder %s9, 3
    %p137 = pnand %p135, %p136
    %p138 = pneg %p137
    // Predicated region
    $region9: #{yolov8_head_forward.37} parent=5 // pred_check
      _
    $region10: #{yolov8_head_forward.37} parent=5 // pred_check_branch
      %140 = sbr.rel (%p137) target = $region12
    $region11: #{yolov8_head_forward.37} parent=5 // pred_region
      %s141 = ssub.s32 %s9, 1
      // Predicated region
      $region13: #{yolov8_head_forward.37} parent=11 // pred_check
        %p142 = pneg %p73
      $region14: #{yolov8_head_forward.37} parent=11 // pred_check_branch
        %144 = sbr.rel (%p142) target = $region16
      $region15: #{yolov8_head_forward.37} parent=11 // pred_region
        %p145 = scmp.lt.s32.totalorder %s19, 0
        %s146 = scalar_select %p145, %s19, 0
        %s147 = smul.addr %s146, 4
        %s148 = scalar_lea.vmem %s1, %s147
      $region16: #{yolov8_head_forward.37} parent=11 // pred_fallthru
        _
      // Predicated region
      $region17: #{yolov8_head_forward.37} parent=11 // pred_check
        %p149 = pneg %p99
      $region18: #{yolov8_head_forward.37} parent=11 // pred_check_branch
        %151 = sbr.rel (%p149) target = $region20
      $region19: #{yolov8_head_forward.37} parent=11 // pred_region
        %p152 = scmp.lt.s32.totalorder %s19, 0
        %s153 = scalar_select %p152, %s19, 0
        %s154 = scalar_lea.vmem %s2, %s153
      $region20: #{yolov8_head_forward.37} parent=11 // pred_fallthru
        _
    $region12: #{yolov8_head_forward.37} parent=5 // pred_fallthru
      _
    %p155 = scmp.lt.s32.totalorder %s9, 2
    // Predicated region
    $region21: #{yolov8_head_forward.37} parent=5 // pred_check
      %p156 = pneg %p155
    $region22: #{yolov8_head_forward.37} parent=5 // pred_check_branch
      %158 = sbr.rel (%p156) target = $region24
    $region23: #{yolov8_head_forward.37} parent=5 // pred_region
      // Predicated region
      $region25: #{yolov8_head_forward.37} parent=23 // pred_check
        %p159 = pneg %p41
      $region26: #{yolov8_head_forward.37} parent=23 // pred_check_branch
        %161 = sbr.rel (%p159) target = $region28
      $region27: #{yolov8_head_forward.37} parent=23 // pred_region
        %s162 = smul.u32 32, %s16
        %p163 = scmp.lt.s32.totalorder %s162, 63
        %s164 = scalar_select %p163, %s162, 63
        %s165 = smul.addr %s164, 4
        %s166 = scalar_lea.vmem %s0, %s165
        %s167 = smul.u32 32, %s16
      $region28: #{yolov8_head_forward.37} parent=23 // pred_fallthru
        _
    $region24: #{yolov8_head_forward.37} parent=5 // pred_fallthru
      _
    %p168 = scmp.le.s32.totalorder 1, %s9
    %p169 = scmp.lt.s32.totalorder %s9, 3
    %p170 = pnand %p168, %p169
    %p171 = pneg %p170
    // Predicated region
    $region29: #{yolov8_head_forward.37} parent=5 // pred_check
      _
    $region30: #{yolov8_head_forward.37} parent=5 // pred_check_branch
      %173 = sbr.rel (%p170) target = $region32
    $region31: #{yolov8_head_forward.37} parent=5 // pred_region
      %s174 = ssub.s32 %s9, 1
      %s175 = smul.u32 32, %s18
      %p176 = scmp.lt.s32.totalorder %s175, 63
      %s177 = scalar_select %p176, %s175, 63
      %s178 = smul.addr %s177, 4
      %s179 = scalar_lea.vmem %s0, %s178
      %p180 = pneg %p47
      %p181 = pneg %p44
      %p182 = scmp.lt.s32.totalorder %s19, 0
      %s183 = scalar_select %p182, %s19, 0
      %s184 = smul.addr %s183, 4
      %s185 = scalar_lea.vmem %s1, %s184
      %p186 = pneg %p73
      %p187 = pneg %p70
      %p188 = scmp.lt.s32.totalorder %s19, 0
      %s189 = scalar_select %p188, %s19, 0
      %s190 = scalar_lea.vmem %s2, %s189
      %p191 = pneg %p99
      %p192 = pneg %p96
      %p193 = pneg %p127
      %p194 = pneg %p124
      %s195 = smul.u32 32, %s18
      %p196 = scmp.lt.s32.totalorder %s195, 63
      %s197 = scalar_select %p196, %s195, 63
      %p198 = scmp.lt.s32.totalorder %s19, 0
      %s199 = scalar_select %p198, %s19, 0
      %s200 = sadd.s32 %s199, %s197
      %s201 = smul.addr %s200, 4
      %s202 = scalar_lea.vmem %s3, %s201
      %s203 = smul.u32 32, %s18
      %p204 = scmp.lt.s32.totalorder %s203, 63
      %s205 = scalar_select %p204, %s203, 63
      %s206 = smul.addr %s205, 4
      %s207 = scalar_lea.vmem %s0, %s206
      %s208 = smul.u32 32, %s18
      %p209 = scmp.lt.s32.totalorder %s19, 0
      %s210 = scalar_select %p209, %s19, 0
      %s211 = smul.addr %s210, 4
      %s212 = scalar_lea.vmem %s1, %s211
      %p213 = scmp.lt.s32.totalorder %s19, 0
      %s214 = scalar_select %p213, %s19, 0
      %s215 = scalar_lea.vmem %s2, %s214
      %s216 = smul.u32 32, %s18
      %p217 = scmp.lt.s32.totalorder %s216, 63
      %s218 = scalar_select %p217, %s216, 63
      %p219 = scmp.lt.s32.totalorder %s19, 0
      %s220 = scalar_select %p219, %s19, 0
      %s221 = sadd.s32 %s220, %s218
      %s222 = smul.addr %s221, 4
      %s223 = scalar_lea.vmem %s3, %s222
      %s224 = smul.u32 32, %s18
      %v226 = vld [vmem:[%s207] sm:$0xf]
      %v227 = vld [vmem:[%s207 + $0x4] sm:$0xf]
      %v228 = vld [vmem:[%s207 + $0x8] sm:$0xf]
      %v229 = vld [vmem:[%s207 + $0xc] sm:$0xf]
      %v230 = vld [vmem:[%s207 + $0x10] sm:$0xf]
      %v231 = vld [vmem:[%s207 + $0x14] sm:$0xf]
      %v232 = vld [vmem:[%s207 + $0x18] sm:$0xf]
      %v233 = vld [vmem:[%s207 + $0x1c] sm:$0xf]
      %v234 = vld [vmem:[%s207 + $0x20] sm:$0xf]
      %v235 = vld [vmem:[%s207 + $0x24] sm:$0xf]
      %v236 = vld [vmem:[%s207 + $0x28] sm:$0xf]
      %v237 = vld [vmem:[%s207 + $0x2c] sm:$0xf]
      %v238 = vld [vmem:[%s207 + $0x30] sm:$0xf]
      %v239 = vld [vmem:[%s207 + $0x34] sm:$0xf]
      %v240 = vld [vmem:[%s207 + $0x38] sm:$0xf]
      %v241 = vld [vmem:[%s207 + $0x3c] sm:$0xf]
      %v242 = vld [vmem:[%s207 + $0x40] sm:$0xf]
      %v243 = vld [vmem:[%s207 + $0x44] sm:$0xf]
      %v244 = vld [vmem:[%s207 + $0x48] sm:$0xf]
      %v245 = vld [vmem:[%s207 + $0x4c] sm:$0xf]
      %v246 = vld [vmem:[%s207 + $0x50] sm:$0xf]
      %v247 = vld [vmem:[%s207 + $0x54] sm:$0xf]
      %v248 = vld [vmem:[%s207 + $0x58] sm:$0xf]
      %v249 = vld [vmem:[%s207 + $0x5c] sm:$0xf]
      %v250 = vld [vmem:[%s207 + $0x60] sm:$0xf]
      %v251 = vld [vmem:[%s207 + $0x64] sm:$0xf]
      %v252 = vld [vmem:[%s207 + $0x68] sm:$0xf]
      %v253 = vld [vmem:[%s207 + $0x6c] sm:$0xf]
      %v254 = vld [vmem:[%s207 + $0x70] sm:$0xf]
      %v255 = vld [vmem:[%s207 + $0x74] sm:$0xf]
      %v256 = vld [vmem:[%s207 + $0x78] sm:$0xf]
      %v257 = vld [vmem:[%s207 + $0x7c] sm:$0xf]
      %v258 = vld [vmem:[%s212] sm:$0xf]
      %v259 = vld [vmem:[%s212 + $0x4] sm:$0xf]
      %v260 = vld [vmem:[%s212 + $0x8] sm:$0xf]
      %v261 = vld [vmem:[%s212 + $0xc] sm:$0xf]
      %v262 = vld [vmem:[%s212 + $0x10] sm:$0x3]
      %v263 = vld [vmem:[%s215] sm:$0x1]
      %v265 = vlaneseq
      %v266 = vshrl.u32 %v265, 7
      %v267 = vsub.s32 0, %v266
      %v268 = vrot.slane %v263, %v267
      %v302 = vunpack.c.l.b16 %v226
      %v303 = vunpack.c.l.b16 %v227
      %v304 = vunpack.c.l.b16 %v228
      %v305 = vunpack.c.l.b16 %v229
      %v306 = vunpack.c.l.b16 %v230
      %v307 = vunpack.c.l.b16 %v231
      %v308 = vunpack.c.l.b16 %v232
      %v309 = vunpack.c.l.b16 %v233
      %v310 = vunpack.c.l.b16 %v234
      %v311 = vunpack.c.l.b16 %v235
      %v312 = vunpack.c.l.b16 %v236
      %v313 = vunpack.c.l.b16 %v237
      %v314 = vunpack.c.l.b16 %v238
      %v315 = vunpack.c.l.b16 %v239
      %v316 = vunpack.c.l.b16 %v240
      %v317 = vunpack.c.l.b16 %v241
      %v318 = vunpack.c.l.b16 %v242
      %v319 = vunpack.c.l.b16 %v243
      %v320 = vunpack.c.l.b16 %v244
      %v321 = vunpack.c.l.b16 %v245
      %v322 = vunpack.c.l.b16 %v246
      %v323 = vunpack.c.l.b16 %v247
      %v324 = vunpack.c.l.b16 %v248
      %v325 = vunpack.c.l.b16 %v249
      %v326 = vunpack.c.l.b16 %v250
      %v327 = vunpack.c.l.b16 %v251
      %v328 = vunpack.c.l.b16 %v252
      %v329 = vunpack.c.l.b16 %v253
      %v330 = vunpack.c.l.b16 %v254
      %v331 = vunpack.c.l.b16 %v255
      %v332 = vunpack.c.l.b16 %v256
      %v333 = vunpack.c.l.b16 %v257
      %v334 = vpack.c.b16 %v303, %v302
      %v335 = vpack.c.b16 %v305, %v304
      %v336 = vpack.c.b16 %v307, %v306
      %v337 = vpack.c.b16 %v309, %v308
      %v338 = vpack.c.b16 %v311, %v310
      %v339 = vpack.c.b16 %v313, %v312
      %v340 = vpack.c.b16 %v315, %v314
      %v341 = vpack.c.b16 %v317, %v316
      %v342 = vpack.c.b16 %v319, %v318
      %v343 = vpack.c.b16 %v321, %v320
      %v344 = vpack.c.b16 %v323, %v322
      %v345 = vpack.c.b16 %v325, %v324
      %v346 = vpack.c.b16 %v327, %v326
      %v347 = vpack.c.b16 %v329, %v328
      %v348 = vpack.c.b16 %v331, %v330
      %v349 = vpack.c.b16 %v333, %v332
      %v355 = vunpack.c.l.b16 %v258
      %v356 = vunpack.c.l.b16 %v259
      %v357 = vunpack.c.l.b16 %v260
      %v358 = vunpack.c.l.b16 %v261
      %v359 = vunpack.c.l.b16 %v262
      %v360 = vpack.c.b16 %v356, %v355
      %v361 = vpack.c.b16 %v358, %v357
      %v362 = vpack.c.b16 %v359, %v359
      %vm365 = vcmask 293888
      %v367 = vsel %vm365, %v334, 0
      %v370 = vsel %vm365, %v335, 0
      %v373 = vsel %vm365, %v336, 0
      %v376 = vsel %vm365, %v337, 0
      %v379 = vsel %vm365, %v338, 0
      %v382 = vsel %vm365, %v339, 0
      %v385 = vsel %vm365, %v340, 0
      %v388 = vsel %vm365, %v341, 0
      %v391 = vsel %vm365, %v342, 0
      %v394 = vsel %vm365, %v343, 0
      %v397 = vsel %vm365, %v344, 0
      %v400 = vsel %vm365, %v345, 0
      %v403 = vsel %vm365, %v346, 0
      %v406 = vsel %vm365, %v347, 0
      %v409 = vsel %vm365, %v348, 0
      %v412 = vsel %vm365, %v349, 0
      %vm414 = vcmask 1041408
      %v416 = vsel %vm414, %v362, 0
      %418 = vmatprep.subr.bf16.mxu0 0
      %419 = vmatpush1.bf16.msra.mxu0 0
      %420 = vmatprep.subr.bf16.mxu0 0
      %421 = vmatpush1.bf16.msra.mxu0 0
      %422 = vmatprep.subr.bf16.mxu0 0
      %423 = vmatpush1.bf16.msra.mxu0 0
      %424 = vmatprep.subr.bf16.mxu0 0
      %425 = vmatpush1.bf16.msra.mxu0 0
      %426 = vmatprep.subr.bf16.mxu0 0
      %427 = vmatpush1.bf16.msra.mxu0 0
      %428 = vmatprep.subr.bf16.mxu0 0
      %429 = vmatpush1.bf16.msra.mxu0 %v416
      %430 = vmatprep.subr.bf16.mxu0 0
      %431 = vmatpush1.bf16.msra.mxu0 %v361
      %432 = vmatprep.subr.bf16.mxu0 0
      %433 = vmatpush1.bf16.msra.mxu0 %v360
      %434 = vmatprep.subr.bf16.mxu0 0
      %435 = vmatpush2.bf16.msra.mxu0 0
      %436 = vmatprep.subr.bf16.mxu0 0
      %437 = vmatpush2.bf16.msra.mxu0 0
      %438 = vmatprep.subr.bf16.mxu0 0
      %439 = vmatpush2.bf16.msra.mxu0 0
      %440 = vmatprep.subr.bf16.mxu0 0
      %441 = vmatpush2.bf16.msra.mxu0 0
      %442 = vmatprep.subr.bf16.mxu0 0
      %443 = vmatpush2.bf16.msra.mxu0 0
      %444 = vmatprep.subr.bf16.mxu0 0
      %445 = vmatpush2.bf16.msra.mxu0 0
      %446 = vmatprep.subr.bf16.mxu0 0
      %447 = vmatpush2.bf16.msra.mxu0 0
      %448 = vmatprep.subr.bf16.mxu0 0
      %449 = vmatpush2.bf16.msra.mxu0 0
      %450 = vmatprep.mubr.bf16.mxu0 0
      %451 = vmatmul.mubr.bf16.gmra.mxu0 %v367
      %v452 = vpop.f32.mrf.mxu0
      %v453 = vadd.f32 %v268, %v452
      %v454 = vpop.f32.mrf.mxu0
      %v455 = vpop.f32.mrf.mxu0
      %v456 = vadd.f32 %v268, %v455
      %v457 = vpop.f32.mrf.mxu0
      %458 = vmatprep.mubr.bf16.mxu0 0
      %459 = vmatmul.mubr.bf16.gmra.mxu0 %v370
      %v460 = vpop.f32.mrf.mxu0
      %v461 = vadd.f32 %v268, %v460
      %v462 = vpop.f32.mrf.mxu0
      %v463 = vpop.f32.mrf.mxu0
      %v464 = vadd.f32 %v268, %v463
      %v465 = vpop.f32.mrf.mxu0
      %466 = vmatprep.mubr.bf16.mxu0 0
      %467 = vmatmul.mubr.bf16.gmra.mxu0 %v373
      %v468 = vpop.f32.mrf.mxu0
      %v469 = vadd.f32 %v268, %v468
      %v470 = vpop.f32.mrf.mxu0
      %v471 = vpop.f32.mrf.mxu0
      %v472 = vadd.f32 %v268, %v471
      %v473 = vpop.f32.mrf.mxu0
      %474 = vmatprep.mubr.bf16.mxu0 0
      %475 = vmatmul.mubr.bf16.gmra.mxu0 %v376
      %v476 = vpop.f32.mrf.mxu0
      %v477 = vadd.f32 %v268, %v476
      %v478 = vpop.f32.mrf.mxu0
      %v479 = vpop.f32.mrf.mxu0
      %v480 = vadd.f32 %v268, %v479
      %v481 = vpop.f32.mrf.mxu0
      %482 = vmatprep.mubr.bf16.mxu0 0
      %483 = vmatmul.mubr.bf16.gmra.mxu0 %v379
      %v484 = vpop.f32.mrf.mxu0
      %v485 = vadd.f32 %v268, %v484
      %v486 = vpop.f32.mrf.mxu0
      %v487 = vpop.f32.mrf.mxu0
      %v488 = vadd.f32 %v268, %v487
      %v489 = vpop.f32.mrf.mxu0
      %490 = vmatprep.mubr.bf16.mxu0 0
      %491 = vmatmul.mubr.bf16.gmra.mxu0 %v382
      %v492 = vpop.f32.mrf.mxu0
      %v493 = vadd.f32 %v268, %v492
      %v494 = vpop.f32.mrf.mxu0
      %v495 = vpop.f32.mrf.mxu0
      %v496 = vadd.f32 %v268, %v495
      %v497 = vpop.f32.mrf.mxu0
      %498 = vmatprep.mubr.bf16.mxu0 0
      %499 = vmatmul.mubr.bf16.gmra.mxu0 %v385
      %v500 = vpop.f32.mrf.mxu0
      %v501 = vadd.f32 %v268, %v500
      %v502 = vpop.f32.mrf.mxu0
      %v503 = vpop.f32.mrf.mxu0
      %v504 = vadd.f32 %v268, %v503
      %v505 = vpop.f32.mrf.mxu0
      %506 = vmatprep.mubr.bf16.mxu0 0
      %507 = vmatmul.mubr.bf16.gmra.mxu0 %v388
      %v508 = vpop.f32.mrf.mxu0
      %v509 = vadd.f32 %v268, %v508
      %v510 = vpop.f32.mrf.mxu0
      %v511 = vpop.f32.mrf.mxu0
      %v512 = vadd.f32 %v268, %v511
      %v513 = vpop.f32.mrf.mxu0
      %514 = vmatprep.mubr.bf16.mxu0 0
      %515 = vmatmul.mubr.bf16.gmra.mxu0 %v391
      %v516 = vpop.f32.mrf.mxu0
      %v517 = vadd.f32 %v268, %v516
      %v518 = vpop.f32.mrf.mxu0
      %v519 = vpop.f32.mrf.mxu0
      %v520 = vadd.f32 %v268, %v519
      %v521 = vpop.f32.mrf.mxu0
      %522 = vmatprep.mubr.bf16.mxu0 0
      %523 = vmatmul.mubr.bf16.gmra.mxu0 %v394
      %v524 = vpop.f32.mrf.mxu0
      %v525 = vadd.f32 %v268, %v524
      %v526 = vpop.f32.mrf.mxu0
      %v527 = vpop.f32.mrf.mxu0
      %v528 = vadd.f32 %v268, %v527
      %v529 = vpop.f32.mrf.mxu0
      %530 = vmatprep.mubr.bf16.mxu0 0
      %531 = vmatmul.mubr.bf16.gmra.mxu0 %v397
      %v532 = vpop.f32.mrf.mxu0
      %v533 = vadd.f32 %v268, %v532
      %v534 = vpop.f32.mrf.mxu0
      %v535 = vpop.f32.mrf.mxu0
      %v536 = vadd.f32 %v268, %v535
      %v537 = vpop.f32.mrf.mxu0
      %538 = vmatprep.mubr.bf16.mxu0 0
      %539 = vmatmul.mubr.bf16.gmra.mxu0 %v400
      %v540 = vpop.f32.mrf.mxu0
      %v541 = vadd.f32 %v268, %v540
      %v542 = vpop.f32.mrf.mxu0
      %v543 = vpop.f32.mrf.mxu0
      %v544 = vadd.f32 %v268, %v543
      %v545 = vpop.f32.mrf.mxu0
      %546 = vmatprep.mubr.bf16.mxu0 0
      %547 = vmatmul.mubr.bf16.gmra.mxu0 %v403
      %v548 = vpop.f32.mrf.mxu0
      %v549 = vadd.f32 %v268, %v548
      %v550 = vpop.f32.mrf.mxu0
      %v551 = vpop.f32.mrf.mxu0
      %v552 = vadd.f32 %v268, %v551
      %v553 = vpop.f32.mrf.mxu0
      %554 = vmatprep.mubr.bf16.mxu0 0
      %555 = vmatmul.mubr.bf16.gmra.mxu0 %v406
      %v556 = vpop.f32.mrf.mxu0
      %v557 = vadd.f32 %v268, %v556
      %v558 = vpop.f32.mrf.mxu0
      %v559 = vpop.f32.mrf.mxu0
      %v560 = vadd.f32 %v268, %v559
      %v561 = vpop.f32.mrf.mxu0
      %562 = vmatprep.mubr.bf16.mxu0 0
      %563 = vmatmul.mubr.bf16.gmra.mxu0 %v409
      %v564 = vpop.f32.mrf.mxu0
      %v565 = vadd.f32 %v268, %v564
      %v566 = vpop.f32.mrf.mxu0
      %v567 = vpop.f32.mrf.mxu0
      %v568 = vadd.f32 %v268, %v567
      %v569 = vpop.f32.mrf.mxu0
      %570 = vmatprep.mubr.bf16.mxu0 0
      %571 = vmatmul.mubr.bf16.gmra.mxu0 %v412
      %v572 = vpop.f32.mrf.mxu0
      %v573 = vadd.f32 %v268, %v572
      %v574 = vpop.f32.mrf.mxu0
      %v575 = vpop.f32.mrf.mxu0
      %v576 = vadd.f32 %v268, %v575
      %v577 = vpop.f32.mrf.mxu0
      %578 = vdwg.mxu0
      %v579 = vxor.u32 %v453, 2147483648
      %v580 = vxor.u32 %v456, 2147483648
      %v581 = vxor.u32 %v461, 2147483648
      %v582 = vxor.u32 %v464, 2147483648
      %v583 = vxor.u32 %v469, 2147483648
      %v584 = vxor.u32 %v472, 2147483648
      %v585 = vxor.u32 %v477, 2147483648
      %v586 = vxor.u32 %v480, 2147483648
      %v587 = vxor.u32 %v485, 2147483648
      %v588 = vxor.u32 %v488, 2147483648
      %v589 = vxor.u32 %v493, 2147483648
      %v590 = vxor.u32 %v496, 2147483648
      %v591 = vxor.u32 %v501, 2147483648
      %v592 = vxor.u32 %v504, 2147483648
      %v593 = vxor.u32 %v509, 2147483648
      %v594 = vxor.u32 %v512, 2147483648
      %v595 = vxor.u32 %v517, 2147483648
      %v596 = vxor.u32 %v520, 2147483648
      %v597 = vxor.u32 %v525, 2147483648
      %v598 = vxor.u32 %v528, 2147483648
      %v599 = vxor.u32 %v533, 2147483648
      %v600 = vxor.u32 %v536, 2147483648
      %v601 = vxor.u32 %v541, 2147483648
      %v602 = vxor.u32 %v544, 2147483648
      %v603 = vxor.u32 %v549, 2147483648
      %v604 = vxor.u32 %v552, 2147483648
      %v605 = vxor.u32 %v557, 2147483648
      %v606 = vxor.u32 %v560, 2147483648
      %v607 = vxor.u32 %v565, 2147483648
      %v608 = vxor.u32 %v568, 2147483648
      %v609 = vxor.u32 %v573, 2147483648
      %v610 = vxor.u32 %v576, 2147483648
      %v611 = vmul.f32 %v579, 1.442695
      %v612 = vpow.pop %v611
      %v613 = vmul.f32 %v580, 1.442695
      %v614 = vpow.pop %v613
      %v615 = vmul.f32 %v581, 1.442695
      %v616 = vpow.pop %v615
      %v617 = vmul.f32 %v582, 1.442695
      %v618 = vpow.pop %v617
      %v619 = vmul.f32 %v583, 1.442695
      %v620 = vpow.pop %v619
      %v621 = vmul.f32 %v584, 1.442695
      %v622 = vpow.pop %v621
      %v623 = vmul.f32 %v585, 1.442695
      %v624 = vpow.pop %v623
      %v625 = vmul.f32 %v586, 1.442695
      %v626 = vpow.pop %v625
      %v627 = vmul.f32 %v587, 1.442695
      %v628 = vpow.pop %v627
      %v629 = vmul.f32 %v588, 1.442695
      %v630 = vpow.pop %v629
      %v631 = vmul.f32 %v589, 1.442695
      %v632 = vpow.pop %v631
      %v633 = vmul.f32 %v590, 1.442695
      %v634 = vpow.pop %v633
      %v635 = vmul.f32 %v591, 1.442695
      %v636 = vpow.pop %v635
      %v637 = vmul.f32 %v592, 1.442695
      %v638 = vpow.pop %v637
      %v639 = vmul.f32 %v593, 1.442695
      %v640 = vpow.pop %v639
      %v641 = vmul.f32 %v594, 1.442695
      %v642 = vpow.pop %v641
      %v643 = vmul.f32 %v595, 1.442695
      %v644 = vpow.pop %v643
      %v645 = vmul.f32 %v596, 1.442695
      %v646 = vpow.pop %v645
      %v647 = vmul.f32 %v597, 1.442695
      %v648 = vpow.pop %v647
      %v649 = vmul.f32 %v598, 1.442695
      %v650 = vpow.pop %v649
      %v651 = vmul.f32 %v599, 1.442695
      %v652 = vpow.pop %v651
      %v653 = vmul.f32 %v600, 1.442695
      %v654 = vpow.pop %v653
      %v655 = vmul.f32 %v601, 1.442695
      %v656 = vpow.pop %v655
      %v657 = vmul.f32 %v602, 1.442695
      %v658 = vpow.pop %v657
      %v659 = vmul.f32 %v603, 1.442695
      %v660 = vpow.pop %v659
      %v661 = vmul.f32 %v604, 1.442695
      %v662 = vpow.pop %v661
      %v663 = vmul.f32 %v605, 1.442695
      %v664 = vpow.pop %v663
      %v665 = vmul.f32 %v606, 1.442695
      %v666 = vpow.pop %v665
      %v667 = vmul.f32 %v607, 1.442695
      %v668 = vpow.pop %v667
      %v669 = vmul.f32 %v608, 1.442695
      %v670 = vpow.pop %v669
      %v671 = vmul.f32 %v609, 1.442695
      %v672 = vpow.pop %v671
      %v673 = vmul.f32 %v610, 1.442695
      %v674 = vpow.pop %v673
      %v675 = vadd.f32 %v612, 1.0
      %v676 = vadd.f32 %v614, 1.0
      %v677 = vadd.f32 %v616, 1.0
      %v678 = vadd.f32 %v618, 1.0
      %v679 = vadd.f32 %v620, 1.0
      %v680 = vadd.f32 %v622, 1.0
      %v681 = vadd.f32 %v624, 1.0
      %v682 = vadd.f32 %v626, 1.0
      %v683 = vadd.f32 %v628, 1.0
      %v684 = vadd.f32 %v630, 1.0
      %v685 = vadd.f32 %v632, 1.0
      %v686 = vadd.f32 %v634, 1.0
      %v687 = vadd.f32 %v636, 1.0
      %v688 = vadd.f32 %v638, 1.0
      %v689 = vadd.f32 %v640, 1.0
      %v690 = vadd.f32 %v642, 1.0
      %v691 = vadd.f32 %v644, 1.0
      %v692 = vadd.f32 %v646, 1.0
      %v693 = vadd.f32 %v648, 1.0
      %v694 = vadd.f32 %v650, 1.0
      %v695 = vadd.f32 %v652, 1.0
      %v696 = vadd.f32 %v654, 1.0
      %v697 = vadd.f32 %v656, 1.0
      %v698 = vadd.f32 %v658, 1.0
      %v699 = vadd.f32 %v660, 1.0
      %v700 = vadd.f32 %v662, 1.0
      %v701 = vadd.f32 %v664, 1.0
      %v702 = vadd.f32 %v666, 1.0
      %v703 = vadd.f32 %v668, 1.0
      %v704 = vadd.f32 %v670, 1.0
      %v705 = vadd.f32 %v672, 1.0
      %v706 = vadd.f32 %v674, 1.0
      %v707 = vrcp.pop %v675
      %v708 = vmul.f32 1.0, %v707
      %v709 = vrcp.pop %v676
      %v710 = vmul.f32 1.0, %v709
      %v711 = vrcp.pop %v677
      %v712 = vmul.f32 1.0, %v711
      %v713 = vrcp.pop %v678
      %v714 = vmul.f32 1.0, %v713
      %v715 = vrcp.pop %v679
      %v716 = vmul.f32 1.0, %v715
      %v717 = vrcp.pop %v680
      %v718 = vmul.f32 1.0, %v717
      %v719 = vrcp.pop %v681
      %v720 = vmul.f32 1.0, %v719
      %v721 = vrcp.pop %v682
      %v722 = vmul.f32 1.0, %v721
      %v723 = vrcp.pop %v683
      %v724 = vmul.f32 1.0, %v723
      %v725 = vrcp.pop %v684
      %v726 = vmul.f32 1.0, %v725
      %v727 = vrcp.pop %v685
      %v728 = vmul.f32 1.0, %v727
      %v729 = vrcp.pop %v686
      %v730 = vmul.f32 1.0, %v729
      %v731 = vrcp.pop %v687
      %v732 = vmul.f32 1.0, %v731
      %v733 = vrcp.pop %v688
      %v734 = vmul.f32 1.0, %v733
      %v735 = vrcp.pop %v689
      %v736 = vmul.f32 1.0, %v735
      %v737 = vrcp.pop %v690
      %v738 = vmul.f32 1.0, %v737
      %v739 = vrcp.pop %v691
      %v740 = vmul.f32 1.0, %v739
      %v741 = vrcp.pop %v692
      %v742 = vmul.f32 1.0, %v741
      %v743 = vrcp.pop %v693
      %v744 = vmul.f32 1.0, %v743
      %v745 = vrcp.pop %v694
      %v746 = vmul.f32 1.0, %v745
      %v747 = vrcp.pop %v695
      %v748 = vmul.f32 1.0, %v747
      %v749 = vrcp.pop %v696
      %v750 = vmul.f32 1.0, %v749
      %v751 = vrcp.pop %v697
      %v752 = vmul.f32 1.0, %v751
      %v753 = vrcp.pop %v698
      %v754 = vmul.f32 1.0, %v753
      %v755 = vrcp.pop %v699
      %v756 = vmul.f32 1.0, %v755
      %v757 = vrcp.pop %v700
      %v758 = vmul.f32 1.0, %v757
      %v759 = vrcp.pop %v701
      %v760 = vmul.f32 1.0, %v759
      %v761 = vrcp.pop %v702
      %v762 = vmul.f32 1.0, %v761
      %v763 = vrcp.pop %v703
      %v764 = vmul.f32 1.0, %v763
      %v765 = vrcp.pop %v704
      %v766 = vmul.f32 1.0, %v765
      %v767 = vrcp.pop %v705
      %v768 = vmul.f32 1.0, %v767
      %v769 = vrcp.pop %v706
      %v770 = vmul.f32 1.0, %v769
      %v771 = vmul.f32 %v453, %v708
      %v772 = vmul.f32 %v456, %v710
      %v773 = vmul.f32 %v461, %v712
      %v774 = vmul.f32 %v464, %v714
      %v775 = vmul.f32 %v469, %v716
      %v776 = vmul.f32 %v472, %v718
      %v777 = vmul.f32 %v477, %v720
      %v778 = vmul.f32 %v480, %v722
      %v779 = vmul.f32 %v485, %v724
      %v780 = vmul.f32 %v488, %v726
      %v781 = vmul.f32 %v493, %v728
      %v782 = vmul.f32 %v496, %v730
      %v783 = vmul.f32 %v501, %v732
      %v784 = vmul.f32 %v504, %v734
      %v785 = vmul.f32 %v509, %v736
      %v786 = vmul.f32 %v512, %v738
      %v787 = vmul.f32 %v517, %v740
      %v788 = vmul.f32 %v520, %v742
      %v789 = vmul.f32 %v525, %v744
      %v790 = vmul.f32 %v528, %v746
      %v791 = vmul.f32 %v533, %v748
      %v792 = vmul.f32 %v536, %v750
      %v793 = vmul.f32 %v541, %v752
      %v794 = vmul.f32 %v544, %v754
      %v795 = vmul.f32 %v549, %v756
      %v796 = vmul.f32 %v552, %v758
      %v797 = vmul.f32 %v557, %v760
      %v798 = vmul.f32 %v560, %v762
      %v799 = vmul.f32 %v565, %v764
      %v800 = vmul.f32 %v568, %v766
      %v801 = vmul.f32 %v573, %v768
      %v802 = vmul.f32 %v576, %v770
      %v803 = vpack.c.bf16 %v772, %v771
      %v804 = vpack.c.bf16 %v774, %v773
      %v805 = vpack.c.bf16 %v776, %v775
      %v806 = vpack.c.bf16 %v778, %v777
      %v807 = vpack.c.bf16 %v780, %v779
      %v808 = vpack.c.bf16 %v782, %v781
      %v809 = vpack.c.bf16 %v784, %v783
      %v810 = vpack.c.bf16 %v786, %v785
      %v811 = vpack.c.bf16 %v788, %v787
      %v812 = vpack.c.bf16 %v790, %v789
      %v813 = vpack.c.bf16 %v792, %v791
      %v814 = vpack.c.bf16 %v794, %v793
      %v815 = vpack.c.bf16 %v796, %v795
      %v816 = vpack.c.bf16 %v798, %v797
      %v817 = vpack.c.bf16 %v800, %v799
      %v818 = vpack.c.bf16 %v802, %v801
      %v835 = vunpack.c.l.b16 %v803
      %v836 = vunpack.c.h.b16 %v803
      %v837 = vunpack.c.l.b16 %v804
      %v838 = vunpack.c.h.b16 %v804
      %v839 = vunpack.c.l.b16 %v805
      %v840 = vunpack.c.h.b16 %v805
      %v841 = vunpack.c.l.b16 %v806
      %v842 = vunpack.c.h.b16 %v806
      %v843 = vunpack.c.l.b16 %v807
      %v844 = vunpack.c.h.b16 %v807
      %v845 = vunpack.c.l.b16 %v808
      %v846 = vunpack.c.h.b16 %v808
      %v847 = vunpack.c.l.b16 %v809
      %v848 = vunpack.c.h.b16 %v809
      %v849 = vunpack.c.l.b16 %v810
      %v850 = vunpack.c.h.b16 %v810
      %v851 = vunpack.c.l.b16 %v811
      %v852 = vunpack.c.h.b16 %v811
      %v853 = vunpack.c.l.b16 %v812
      %v854 = vunpack.c.h.b16 %v812
      %v855 = vunpack.c.l.b16 %v813
      %v856 = vunpack.c.h.b16 %v813
      %v857 = vunpack.c.l.b16 %v814
      %v858 = vunpack.c.h.b16 %v814
      %v859 = vunpack.c.l.b16 %v815
      %v860 = vunpack.c.h.b16 %v815
      %v861 = vunpack.c.l.b16 %v816
      %v862 = vunpack.c.h.b16 %v816
      %v863 = vunpack.c.l.b16 %v817
      %v864 = vunpack.c.h.b16 %v817
      %v865 = vunpack.c.l.b16 %v818
      %v866 = vunpack.c.h.b16 %v818
      %v867 = vpack.c.b16 %v835, %v835
      %v868 = vpack.c.b16 %v836, %v836
      %v869 = vpack.c.b16 %v837, %v837
      %v870 = vpack.c.b16 %v838, %v838
      %v871 = vpack.c.b16 %v839, %v839
      %v872 = vpack.c.b16 %v840, %v840
      %v873 = vpack.c.b16 %v841, %v841
      %v874 = vpack.c.b16 %v842, %v842
      %v875 = vpack.c.b16 %v843, %v843
      %v876 = vpack.c.b16 %v844, %v844
      %v877 = vpack.c.b16 %v845, %v845
      %v878 = vpack.c.b16 %v846, %v846
      %v879 = vpack.c.b16 %v847, %v847
      %v880 = vpack.c.b16 %v848, %v848
      %v881 = vpack.c.b16 %v849, %v849
      %v882 = vpack.c.b16 %v850, %v850
      %v883 = vpack.c.b16 %v851, %v851
      %v884 = vpack.c.b16 %v852, %v852
      %v885 = vpack.c.b16 %v853, %v853
      %v886 = vpack.c.b16 %v854, %v854
      %v887 = vpack.c.b16 %v855, %v855
      %v888 = vpack.c.b16 %v856, %v856
      %v889 = vpack.c.b16 %v857, %v857
      %v890 = vpack.c.b16 %v858, %v858
      %v891 = vpack.c.b16 %v859, %v859
      %v892 = vpack.c.b16 %v860, %v860
      %v893 = vpack.c.b16 %v861, %v861
      %v894 = vpack.c.b16 %v862, %v862
      %v895 = vpack.c.b16 %v863, %v863
      %v896 = vpack.c.b16 %v864, %v864
      %v897 = vpack.c.b16 %v865, %v865
      %v898 = vpack.c.b16 %v866, %v866
      %vm931 = vcmask 60416
      %932 = vst.msk [vmem:[%s223] sm:$0xf] %vm931, %v867
      %933 = vst.msk [vmem:[%s223 + $0x4] sm:$0xf] %vm931, %v868
      %934 = vst.msk [vmem:[%s223 + $0x8] sm:$0xf] %vm931, %v869
      %935 = vst.msk [vmem:[%s223 + $0xc] sm:$0xf] %vm931, %v870
      %936 = vst.msk [vmem:[%s223 + $0x10] sm:$0xf] %vm931, %v871
      %937 = vst.msk [vmem:[%s223 + $0x14] sm:$0xf] %vm931, %v872
      %938 = vst.msk [vmem:[%s223 + $0x18] sm:$0xf] %vm931, %v873
      %939 = vst.msk [vmem:[%s223 + $0x1c] sm:$0xf] %vm931, %v874
      %940 = vst.msk [vmem:[%s223 + $0x20] sm:$0xf] %vm931, %v875
      %941 = vst.msk [vmem:[%s223 + $0x24] sm:$0xf] %vm931, %v876
      %942 = vst.msk [vmem:[%s223 + $0x28] sm:$0xf] %vm931, %v877
      %943 = vst.msk [vmem:[%s223 + $0x2c] sm:$0xf] %vm931, %v878
      %944 = vst.msk [vmem:[%s223 + $0x30] sm:$0xf] %vm931, %v879
      %945 = vst.msk [vmem:[%s223 + $0x34] sm:$0xf] %vm931, %v880
      %946 = vst.msk [vmem:[%s223 + $0x38] sm:$0xf] %vm931, %v881
      %947 = vst.msk [vmem:[%s223 + $0x3c] sm:$0xf] %vm931, %v882
      %948 = vst.msk [vmem:[%s223 + $0x40] sm:$0xf] %vm931, %v883
      %949 = vst.msk [vmem:[%s223 + $0x44] sm:$0xf] %vm931, %v884
      %950 = vst.msk [vmem:[%s223 + $0x48] sm:$0xf] %vm931, %v885
      %951 = vst.msk [vmem:[%s223 + $0x4c] sm:$0xf] %vm931, %v886
      %952 = vst.msk [vmem:[%s223 + $0x50] sm:$0xf] %vm931, %v887
      %953 = vst.msk [vmem:[%s223 + $0x54] sm:$0xf] %vm931, %v888
      %954 = vst.msk [vmem:[%s223 + $0x58] sm:$0xf] %vm931, %v889
      %955 = vst.msk [vmem:[%s223 + $0x5c] sm:$0xf] %vm931, %v890
      %956 = vst.msk [vmem:[%s223 + $0x60] sm:$0xf] %vm931, %v891
      %957 = vst.msk [vmem:[%s223 + $0x64] sm:$0xf] %vm931, %v892
      %958 = vst.msk [vmem:[%s223 + $0x68] sm:$0xf] %vm931, %v893
      %959 = vst.msk [vmem:[%s223 + $0x6c] sm:$0xf] %vm931, %v894
      %960 = vst.msk [vmem:[%s223 + $0x70] sm:$0xf] %vm931, %v895
      %961 = vst.msk [vmem:[%s223 + $0x74] sm:$0xf] %vm931, %v896
      %962 = vst.msk [vmem:[%s223 + $0x78] sm:$0xf] %vm931, %v897
      %963 = vst.msk [vmem:[%s223 + $0x7c] sm:$0xf] %vm931, %v898
      %s964 = smul.u32 32, %s18
      %p965 = scmp.lt.s32.totalorder %s964, 63
      %s966 = scalar_select %p965, %s964, 63
      %p967 = scmp.lt.s32.totalorder %s19, 0
      %s968 = scalar_select %p967, %s19, 0
      %s969 = sadd.s32 %s968, %s966
      %s970 = smul.addr %s969, 4
      %s971 = scalar_lea.vmem %s3, %s970
      // Predicated region
      $region33: #{yolov8_head_forward.37} parent=31 // pred_check
        %p972 = pneg %p124
      $region34: #{yolov8_head_forward.37} parent=31 // pred_check_branch
        %974 = sbr.rel (%p972) target = $region36
      $region35: #{yolov8_head_forward.37} parent=31 // pred_region
        %s975 = smul.u32 32, %s18
      $region36: #{yolov8_head_forward.37} parent=31 // pred_fallthru
        _
    $region32: #{yolov8_head_forward.37} parent=5 // pred_fallthru
      _
    %p976 = scmp.le.s32.totalorder 2, %s9
    // Predicated region
    $region37: #{yolov8_head_forward.37} parent=5 // pred_check
      %p977 = pneg %p976
    $region38: #{yolov8_head_forward.37} parent=5 // pred_check_branch
      %979 = sbr.rel (%p977) target = $region40
    $region39: #{yolov8_head_forward.37} parent=5 // pred_region
      %s980 = ssub.s32 %s9, 2
      // Predicated region
      $region41: #{yolov8_head_forward.37} parent=39 // pred_check
        %p981 = pneg %p130
      $region42: #{yolov8_head_forward.37} parent=39 // pred_check_branch
        %983 = sbr.rel (%p981) target = $region44
      $region43: #{yolov8_head_forward.37} parent=39 // pred_region
        %s984 = smul.u32 32, %s20
        %p985 = scmp.lt.s32.totalorder %s984, 63
        %s986 = scalar_select %p985, %s984, 63
        %p987 = scmp.lt.s32.totalorder %s21, 0
        %s988 = scalar_select %p987, %s21, 0
        %s989 = sadd.s32 %s988, %s986
        %s990 = smul.addr %s989, 4
        %s991 = scalar_lea.vmem %s3, %s990
      $region44: #{yolov8_head_forward.37} parent=39 // pred_fallthru
        _
    $region40: #{yolov8_head_forward.37} parent=5 // pred_fallthru
      _
  $region6: #{yolov8_head_forward.37} parent=0 // loop_footer
    %s13 = sadd.s32 1, %s9
  $region7: #{yolov8_head_forward.37} parent=0 // loop_footer_branch
    %8 = sbr.rel target = $region3
  $region8: #{yolov8_head_forward.37} parent=0 // loop_exit
    _

// kernel: yolov8_head_forward.38
$region0: #{yolov8_head_forward.38}
  #allocation0 [shape = 'u32[]', space=smem, size = 0x4, offset = 0x4, fixed_abs, tag = 'smem constant byte address 0x4 - core index']
  #allocation1 [shape = 'u32[144,128]{1,0:T(1,128)}', space=vmem, size = 0x12000, scoped, tag = 'internal scratch']
  %s0 = inlined_call_operand.vmem [shape: bf16[512,24], index: 0, kind: input, shape index: {}]
  %s1 = inlined_call_operand.vmem [shape: bf16[24,16], index: 1, kind: input, shape index: {}]
  %s2 = inlined_call_operand.vmem [shape: f32[1,16], index: 2, kind: input, shape index: {}]
  %s3 = inlined_call_operand.vmem [shape: bf16[512,16], index: 3, kind: output, shape index: {}]
  %s4 = sld [smem:[#allocation0]]
  $region45: #{yolov8_head_forward.38} parent=0
    _
  %s6 = ssub.s32 1, %s4
  %s7 = scalar_select 0, %s6, %s4
  loop: start=0, step=1, limit=4
  $region2: #{yolov8_head_forward.38} parent=0 // loop_pre_header
    _
  $region3: #{yolov8_head_forward.38} parent=0 // loop_header
    %s9 = sphi 0, %s13
    %p10 = scmp.ge.s32.totalorder %s9, 4
    %s16 = sphi 0, %s28
    %s17 = sphi 0, %s24
    %s18 = sphi 0, %s16
    %s19 = sphi 0, %s17
    %s20 = sphi 0, %s18
    %s21 = sphi 0, %s19
    %s31 = sphi 0, %s33
    %s34 = sphi 0, %s31
    %s35 = sphi 0, %s34
    %s51 = sphi 0, %s35
    %s57 = sphi 0, %s59
    %s60 = sphi 0, %s57
    %s61 = sphi 0, %s60
    %s77 = sphi 0, %s61
    %s83 = sphi 0, %s85
    %s86 = sphi 0, %s83
    %s87 = sphi 0, %s86
    %s103 = sphi 0, %s87
    %s111 = sphi 0, %s113
    %s114 = sphi 0, %s111
    %s115 = sphi 0, %s114
    %s131 = sphi 0, %s115
  $region4: #{yolov8_head_forward.38} parent=0 // loop_header_branch
    %12 = sbr.rel (%p10) target = $region8
  $region5: #{yolov8_head_forward.38} parent=0 // loop_body
    %s14 = ssub.s32 %s9, 1
    %s15 = ssub.s32 %s9, 2
    %s22 = sadd.s32 1, %s17
    %p23 = scmp.ge.s32.totalorder %s22, 1
    %s24 = scalar_select %p23, 0, %s22
    %s25 = sadd.s32 1, %s16
    %s26 = scalar_select %p23, %s25, %s16
    %p27 = scmp.ge.s32.totalorder %s26, 2
    %s28 = scalar_select %p27, 0, %s26
    %s29 = ssub.s32 %s16, %s28
    %p30 = scmp.eq.s32.totalorder %s29, 0
    %s32 = sadd.s32 %s31, 1
    %s33 = scalar_select %p30, %s31, %s32
    %p36 = pneg %p30
    %p37 = scmp.eq.s32.totalorder %s9, 1
    %p38 = por %p36, %p37
    %p39 = scmp.ne.s32.totalorder %s31, %s34
    %p40 = scmp.eq.s32.totalorder %s9, 0
    %p41 = por %p39, %p40
    %p42 = scmp.ne.s32.totalorder %s31, %s34
    %p43 = scmp.eq.s32.totalorder %s14, 1
    %p44 = por %p42, %p43
    %p45 = scmp.ne.s32.totalorder %s34, %s35
    %p46 = scmp.eq.s32.totalorder %s14, 0
    %p47 = por %p45, %p46
    %p48 = scmp.ne.s32.totalorder %s34, %s35
    %p49 = scmp.eq.s32.totalorder %s15, 1
    %p50 = por %p48, %p49
    %p52 = scmp.ne.s32.totalorder %s35, %s51
    %p53 = scmp.eq.s32.totalorder %s15, 0
    %p54 = por %p52, %p53
    %s55 = ssub.s32 %s17, %s24
    %p56 = scmp.eq.s32.totalorder %s55, 0
    %s58 = sadd.s32 %s57, 1
    %s59 = scalar_select %p56, %s57, %s58
    %p62 = pneg %p56
    %p63 = scmp.eq.s32.totalorder %s9, 1
    %p64 = por %p62, %p63
    %p65 = scmp.ne.s32.totalorder %s57, %s60
    %p66 = scmp.eq.s32.totalorder %s9, 0
    %p67 = por %p65, %p66
    %p68 = scmp.ne.s32.totalorder %s57, %s60
    %p69 = scmp.eq.s32.totalorder %s14, 1
    %p70 = por %p68, %p69
    %p71 = scmp.ne.s32.totalorder %s60, %s61
    %p72 = scmp.eq.s32.totalorder %s14, 0
    %p73 = por %p71, %p72
    %p74 = scmp.ne.s32.totalorder %s60, %s61
    %p75 = scmp.eq.s32.totalorder %s15, 1
    %p76 = por %p74, %p75
    %p78 = scmp.ne.s32.totalorder %s61, %s77
    %p79 = scmp.eq.s32.totalorder %s15, 0
    %p80 = por %p78, %p79
    %s81 = ssub.s32 %s17, %s24
    %p82 = scmp.eq.s32.totalorder %s81, 0
    %s84 = sadd.s32 %s83, 1
    %s85 = scalar_select %p82, %s83, %s84
    %p88 = pneg %p82
    %p89 = scmp.eq.s32.totalorder %s9, 1
    %p90 = por %p88, %p89
    %p91 = scmp.ne.s32.totalorder %s83, %s86
    %p92 = scmp.eq.s32.totalorder %s9, 0
    %p93 = por %p91, %p92
    %p94 = scmp.ne.s32.totalorder %s83, %s86
    %p95 = scmp.eq.s32.totalorder %s14, 1
    %p96 = por %p94, %p95
    %p97 = scmp.ne.s32.totalorder %s86, %s87
    %p98 = scmp.eq.s32.totalorder %s14, 0
    %p99 = por %p97, %p98
    %p100 = scmp.ne.s32.totalorder %s86, %s87
    %p101 = scmp.eq.s32.totalorder %s15, 1
    %p102 = por %p100, %p101
    %p104 = scmp.ne.s32.totalorder %s87, %s103
    %p105 = scmp.eq.s32.totalorder %s15, 0
    %p106 = por %p104, %p105
    %s107 = ssub.s32 %s16, %s28
    %s108 = ssub.s32 %s17, %s24
    %s109 = sor.u32 %s107, %s108
    %p110 = scmp.eq.s32.totalorder %s109, 0
    %s112 = sadd.s32 %s111, 1
    %s113 = scalar_select %p110, %s111, %s112
    %p116 = pneg %p110
    %p117 = scmp.eq.s32.totalorder %s9, 1
    %p118 = por %p116, %p117
    %p119 = scmp.ne.s32.totalorder %s111, %s114
    %p120 = scmp.eq.s32.totalorder %s9, 0
    %p121 = por %p119, %p120
    %p122 = scmp.ne.s32.totalorder %s111, %s114
    %p123 = scmp.eq.s32.totalorder %s14, 1
    %p124 = por %p122, %p123
    %p125 = scmp.ne.s32.totalorder %s114, %s115
    %p126 = scmp.eq.s32.totalorder %s14, 0
    %p127 = por %p125, %p126
    %p128 = scmp.ne.s32.totalorder %s114, %s115
    %p129 = scmp.eq.s32.totalorder %s15, 1
    %p130 = por %p128, %p129
    %p132 = scmp.ne.s32.totalorder %s115, %s131
    %p133 = scmp.eq.s32.totalorder %s15, 0
    %p134 = por %p132, %p133
    %p135 = scmp.le.s32.totalorder 1, %s9
    %p136 = scmp.lt.s32.totalorder %s9, 3
    %p137 = pnand %p135, %p136
    %p138 = pneg %p137
    // Predicated region
    $region9: #{yolov8_head_forward.38} parent=5 // pred_check
      _
    $region10: #{yolov8_head_forward.38} parent=5 // pred_check_branch
      %140 = sbr.rel (%p137) target = $region12
    $region11: #{yolov8_head_forward.38} parent=5 // pred_region
      %s141 = ssub.s32 %s9, 1
      // Predicated region
      $region13: #{yolov8_head_forward.38} parent=11 // pred_check
        %p142 = pneg %p73
      $region14: #{yolov8_head_forward.38} parent=11 // pred_check_branch
        %144 = sbr.rel (%p142) target = $region16
      $region15: #{yolov8_head_forward.38} parent=11 // pred_region
        %p145 = scmp.lt.s32.totalorder %s19, 0
        %s146 = scalar_select %p145, %s19, 0
        %s147 = smul.addr %s146, 4
        %s148 = scalar_lea.vmem %s1, %s147
      $region16: #{yolov8_head_forward.38} parent=11 // pred_fallthru
        _
      // Predicated region
      $region17: #{yolov8_head_forward.38} parent=11 // pred_check
        %p149 = pneg %p99
      $region18: #{yolov8_head_forward.38} parent=11 // pred_check_branch
        %151 = sbr.rel (%p149) target = $region20
      $region19: #{yolov8_head_forward.38} parent=11 // pred_region
        %p152 = scmp.lt.s32.totalorder %s19, 0
        %s153 = scalar_select %p152, %s19, 0
        %s154 = scalar_lea.vmem %s2, %s153
      $region20: #{yolov8_head_forward.38} parent=11 // pred_fallthru
        _
    $region12: #{yolov8_head_forward.38} parent=5 // pred_fallthru
      _
    %p155 = scmp.lt.s32.totalorder %s9, 2
    // Predicated region
    $region21: #{yolov8_head_forward.38} parent=5 // pred_check
      %p156 = pneg %p155
    $region22: #{yolov8_head_forward.38} parent=5 // pred_check_branch
      %158 = sbr.rel (%p156) target = $region24
    $region23: #{yolov8_head_forward.38} parent=5 // pred_region
      // Predicated region
      $region25: #{yolov8_head_forward.38} parent=23 // pred_check
        %p159 = pneg %p41
      $region26: #{yolov8_head_forward.38} parent=23 // pred_check_branch
        %161 = sbr.rel (%p159) target = $region28
      $region27: #{yolov8_head_forward.38} parent=23 // pred_region
        %s162 = smul.u32 32, %s16
        %p163 = scmp.lt.s32.totalorder %s162, 63
        %s164 = scalar_select %p163, %s162, 63
        %s165 = smul.addr %s164, 4
        %s166 = scalar_lea.vmem %s0, %s165
        %s167 = smul.u32 32, %s16
      $region28: #{yolov8_head_forward.38} parent=23 // pred_fallthru
        _
    $region24: #{yolov8_head_forward.38} parent=5 // pred_fallthru
      _
    %p168 = scmp.le.s32.totalorder 1, %s9
    %p169 = scmp.lt.s32.totalorder %s9, 3
    %p170 = pnand %p168, %p169
    %p171 = pneg %p170
    // Predicated region
    $region29: #{yolov8_head_forward.38} parent=5 // pred_check
      _
    $region30: #{yolov8_head_forward.38} parent=5 // pred_check_branch
      %173 = sbr.rel (%p170) target = $region32
    $region31: #{yolov8_head_forward.38} parent=5 // pred_region
      %s174 = ssub.s32 %s9, 1
      %s175 = smul.u32 32, %s18
      %p176 = scmp.lt.s32.totalorder %s175, 63
      %s177 = scalar_select %p176, %s175, 63
      %s178 = smul.addr %s177, 4
      %s179 = scalar_lea.vmem %s0, %s178
      %p180 = pneg %p47
      %p181 = pneg %p44
      %p182 = scmp.lt.s32.totalorder %s19, 0
      %s183 = scalar_select %p182, %s19, 0
      %s184 = smul.addr %s183, 4
      %s185 = scalar_lea.vmem %s1, %s184
      %p186 = pneg %p73
      %p187 = pneg %p70
      %p188 = scmp.lt.s32.totalorder %s19, 0
      %s189 = scalar_select %p188, %s19, 0
      %s190 = scalar_lea.vmem %s2, %s189
      %p191 = pneg %p99
      %p192 = pneg %p96
      %p193 = pneg %p127
      %p194 = pneg %p124
      %s195 = smul.u32 32, %s18
      %p196 = scmp.lt.s32.totalorder %s195, 63
      %s197 = scalar_select %p196, %s195, 63
      %p198 = scmp.lt.s32.totalorder %s19, 0
      %s199 = scalar_select %p198, %s19, 0
      %s200 = sadd.s32 %s199, %s197
      %s201 = smul.addr %s200, 4
      %s202 = scalar_lea.vmem %s3, %s201
      %s203 = smul.u32 32, %s18
      %p204 = scmp.lt.s32.totalorder %s203, 63
      %s205 = scalar_select %p204, %s203, 63
      %s206 = smul.addr %s205, 4
      %s207 = scalar_lea.vmem %s0, %s206
      %s208 = smul.u32 32, %s18
      %p209 = scmp.lt.s32.totalorder %s19, 0
      %s210 = scalar_select %p209, %s19, 0
      %s211 = smul.addr %s210, 4
      %s212 = scalar_lea.vmem %s1, %s211
      %p213 = scmp.lt.s32.totalorder %s19, 0
      %s214 = scalar_select %p213, %s19, 0
      %s215 = scalar_lea.vmem %s2, %s214
      %s216 = smul.u32 32, %s18
      %p217 = scmp.lt.s32.totalorder %s216, 63
      %s218 = scalar_select %p217, %s216, 63
      %p219 = scmp.lt.s32.totalorder %s19, 0
      %s220 = scalar_select %p219, %s19, 0
      %s221 = sadd.s32 %s220, %s218
      %s222 = smul.addr %s221, 4
      %s223 = scalar_lea.vmem %s3, %s222
      %s224 = smul.u32 32, %s18
      %v226 = vld [vmem:[%s207] sm:$0xf]
      %v227 = vld [vmem:[%s207 + $0x4] sm:$0xf]
      %v228 = vld [vmem:[%s207 + $0x8] sm:$0xf]
      %v229 = vld [vmem:[%s207 + $0xc] sm:$0xf]
      %v230 = vld [vmem:[%s207 + $0x10] sm:$0xf]
      %v231 = vld [vmem:[%s207 + $0x14] sm:$0xf]
      %v232 = vld [vmem:[%s207 + $0x18] sm:$0xf]
      %v233 = vld [vmem:[%s207 + $0x1c] sm:$0xf]
      %v234 = vld [vmem:[%s207 + $0x20] sm:$0xf]
      %v235 = vld [vmem:[%s207 + $0x24] sm:$0xf]
      %v236 = vld [vmem:[%s207 + $0x28] sm:$0xf]
      %v237 = vld [vmem:[%s207 + $0x2c] sm:$0xf]
      %v238 = vld [vmem:[%s207 + $0x30] sm:$0xf]
      %v239 = vld [vmem:[%s207 + $0x34] sm:$0xf]
      %v240 = vld [vmem:[%s207 + $0x38] sm:$0xf]
      %v241 = vld [vmem:[%s207 + $0x3c] sm:$0xf]
      %v242 = vld [vmem:[%s207 + $0x40] sm:$0xf]
      %v243 = vld [vmem:[%s207 + $0x44] sm:$0xf]
      %v244 = vld [vmem:[%s207 + $0x48] sm:$0xf]
      %v245 = vld [vmem:[%s207 + $0x4c] sm:$0xf]
      %v246 = vld [vmem:[%s207 + $0x50] sm:$0xf]
      %v247 = vld [vmem:[%s207 + $0x54] sm:$0xf]
      %v248 = vld [vmem:[%s207 + $0x58] sm:$0xf]
      %v249 = vld [vmem:[%s207 + $0x5c] sm:$0xf]
      %v250 = vld [vmem:[%s207 + $0x60] sm:$0xf]
      %v251 = vld [vmem:[%s207 + $0x64] sm:$0xf]
      %v252 = vld [vmem:[%s207 + $0x68] sm:$0xf]
      %v253 = vld [vmem:[%s207 + $0x6c] sm:$0xf]
      %v254 = vld [vmem:[%s207 + $0x70] sm:$0xf]
      %v255 = vld [vmem:[%s207 + $0x74] sm:$0xf]
      %v256 = vld [vmem:[%s207 + $0x78] sm:$0xf]
      %v257 = vld [vmem:[%s207 + $0x7c] sm:$0xf]
      %v258 = vld [vmem:[%s212] sm:$0xf]
      %v259 = vld [vmem:[%s212 + $0x4] sm:$0xf]
      %v260 = vld [vmem:[%s212 + $0x8] sm:$0xf]
      %v261 = vld [vmem:[%s215] sm:$0x1]
      %v263 = vlaneseq
      %v264 = vshrl.u32 %v263, 7
      %v265 = vsub.s32 0, %v264
      %v266 = vrot.slane %v261, %v265
      %v300 = vunpack.c.l.b16 %v226
      %v301 = vunpack.c.l.b16 %v227
      %v302 = vunpack.c.l.b16 %v228
      %v303 = vunpack.c.l.b16 %v229
      %v304 = vunpack.c.l.b16 %v230
      %v305 = vunpack.c.l.b16 %v231
      %v306 = vunpack.c.l.b16 %v232
      %v307 = vunpack.c.l.b16 %v233
      %v308 = vunpack.c.l.b16 %v234
      %v309 = vunpack.c.l.b16 %v235
      %v310 = vunpack.c.l.b16 %v236
      %v311 = vunpack.c.l.b16 %v237
      %v312 = vunpack.c.l.b16 %v238
      %v313 = vunpack.c.l.b16 %v239
      %v314 = vunpack.c.l.b16 %v240
      %v315 = vunpack.c.l.b16 %v241
      %v316 = vunpack.c.l.b16 %v242
      %v317 = vunpack.c.l.b16 %v243
      %v318 = vunpack.c.l.b16 %v244
      %v319 = vunpack.c.l.b16 %v245
      %v320 = vunpack.c.l.b16 %v246
      %v321 = vunpack.c.l.b16 %v247
      %v322 = vunpack.c.l.b16 %v248
      %v323 = vunpack.c.l.b16 %v249
      %v324 = vunpack.c.l.b16 %v250
      %v325 = vunpack.c.l.b16 %v251
      %v326 = vunpack.c.l.b16 %v252
      %v327 = vunpack.c.l.b16 %v253
      %v328 = vunpack.c.l.b16 %v254
      %v329 = vunpack.c.l.b16 %v255
      %v330 = vunpack.c.l.b16 %v256
      %v331 = vunpack.c.l.b16 %v257
      %v332 = vpack.c.b16 %v301, %v300
      %v333 = vpack.c.b16 %v303, %v302
      %v334 = vpack.c.b16 %v305, %v304
      %v335 = vpack.c.b16 %v307, %v306
      %v336 = vpack.c.b16 %v309, %v308
      %v337 = vpack.c.b16 %v311, %v310
      %v338 = vpack.c.b16 %v313, %v312
      %v339 = vpack.c.b16 %v315, %v314
      %v340 = vpack.c.b16 %v317, %v316
      %v341 = vpack.c.b16 %v319, %v318
      %v342 = vpack.c.b16 %v321, %v320
      %v343 = vpack.c.b16 %v323, %v322
      %v344 = vpack.c.b16 %v325, %v324
      %v345 = vpack.c.b16 %v327, %v326
      %v346 = vpack.c.b16 %v329, %v328
      %v347 = vpack.c.b16 %v331, %v330
      %v351 = vunpack.c.l.b16 %v258
      %v352 = vunpack.c.l.b16 %v259
      %v353 = vunpack.c.l.b16 %v260
      %v354 = vpack.c.b16 %v352, %v351
      %v355 = vpack.c.b16 %v353, %v353
      %vm357 = vcmask 195584
      %v359 = vsel %vm357, %v332, 0
      %v362 = vsel %vm357, %v333, 0
      %v365 = vsel %vm357, %v334, 0
      %v368 = vsel %vm357, %v335, 0
      %v371 = vsel %vm357, %v336, 0
      %v374 = vsel %vm357, %v337, 0
      %v377 = vsel %vm357, %v338, 0
      %v380 = vsel %vm357, %v339, 0
      %v383 = vsel %vm357, %v340, 0
      %v386 = vsel %vm357, %v341, 0
      %v389 = vsel %vm357, %v342, 0
      %v392 = vsel %vm357, %v343, 0
      %v395 = vsel %vm357, %v344, 0
      %v398 = vsel %vm357, %v345, 0
      %v401 = vsel %vm357, %v346, 0
      %v404 = vsel %vm357, %v347, 0
      %vm406 = vcmask 1043456
      %v408 = vsel %vm406, %v355, 0
      %410 = vmatprep.subr.bf16.mxu0 0
      %411 = vmatpush1.bf16.msra.mxu0 0
      %412 = vmatprep.subr.bf16.mxu0 0
      %413 = vmatpush1.bf16.msra.mxu0 0
      %414 = vmatprep.subr.bf16.mxu0 0
      %415 = vmatpush1.bf16.msra.mxu0 0
      %416 = vmatprep.subr.bf16.mxu0 0
      %417 = vmatpush1.bf16.msra.mxu0 0
      %418 = vmatprep.subr.bf16.mxu0 0
      %419 = vmatpush1.bf16.msra.mxu0 0
      %420 = vmatprep.subr.bf16.mxu0 0
      %421 = vmatpush1.bf16.msra.mxu0 0
      %422 = vmatprep.subr.bf16.mxu0 0
      %423 = vmatpush1.bf16.msra.mxu0 %v408
      %424 = vmatprep.subr.bf16.mxu0 0
      %425 = vmatpush1.bf16.msra.mxu0 %v354
      %426 = vmatprep.subr.bf16.mxu0 0
      %427 = vmatpush2.bf16.msra.mxu0 0
      %428 = vmatprep.subr.bf16.mxu0 0
      %429 = vmatpush2.bf16.msra.mxu0 0
      %430 = vmatprep.subr.bf16.mxu0 0
      %431 = vmatpush2.bf16.msra.mxu0 0
      %432 = vmatprep.subr.bf16.mxu0 0
      %433 = vmatpush2.bf16.msra.mxu0 0
      %434 = vmatprep.subr.bf16.mxu0 0
      %435 = vmatpush2.bf16.msra.mxu0 0
      %436 = vmatprep.subr.bf16.mxu0 0
      %437 = vmatpush2.bf16.msra.mxu0 0
      %438 = vmatprep.subr.bf16.mxu0 0
      %439 = vmatpush2.bf16.msra.mxu0 0
      %440 = vmatprep.subr.bf16.mxu0 0
      %441 = vmatpush2.bf16.msra.mxu0 0
      %442 = vmatprep.mubr.bf16.mxu0 0
      %443 = vmatmul.mubr.bf16.gmra.mxu0 %v359
      %v444 = vpop.f32.mrf.mxu0
      %v445 = vadd.f32 %v266, %v444
      %v446 = vpop.f32.mrf.mxu0
      %v447 = vpop.f32.mrf.mxu0
      %v448 = vadd.f32 %v266, %v447
      %v449 = vpop.f32.mrf.mxu0
      %450 = vmatprep.mubr.bf16.mxu0 0
      %451 = vmatmul.mubr.bf16.gmra.mxu0 %v362
      %v452 = vpop.f32.mrf.mxu0
      %v453 = vadd.f32 %v266, %v452
      %v454 = vpop.f32.mrf.mxu0
      %v455 = vpop.f32.mrf.mxu0
      %v456 = vadd.f32 %v266, %v455
      %v457 = vpop.f32.mrf.mxu0
      %458 = vmatprep.mubr.bf16.mxu0 0
      %459 = vmatmul.mubr.bf16.gmra.mxu0 %v365
      %v460 = vpop.f32.mrf.mxu0
      %v461 = vadd.f32 %v266, %v460
      %v462 = vpop.f32.mrf.mxu0
      %v463 = vpop.f32.mrf.mxu0
      %v464 = vadd.f32 %v266, %v463
      %v465 = vpop.f32.mrf.mxu0
      %466 = vmatprep.mubr.bf16.mxu0 0
      %467 = vmatmul.mubr.bf16.gmra.mxu0 %v368
      %v468 = vpop.f32.mrf.mxu0
      %v469 = vadd.f32 %v266, %v468
      %v470 = vpop.f32.mrf.mxu0
      %v471 = vpop.f32.mrf.mxu0
      %v472 = vadd.f32 %v266, %v471
      %v473 = vpop.f32.mrf.mxu0
      %474 = vmatprep.mubr.bf16.mxu0 0
      %475 = vmatmul.mubr.bf16.gmra.mxu0 %v371
      %v476 = vpop.f32.mrf.mxu0
      %v477 = vadd.f32 %v266, %v476
      %v478 = vpop.f32.mrf.mxu0
      %v479 = vpop.f32.mrf.mxu0
      %v480 = vadd.f32 %v266, %v479
      %v481 = vpop.f32.mrf.mxu0
      %482 = vmatprep.mubr.bf16.mxu0 0
      %483 = vmatmul.mubr.bf16.gmra.mxu0 %v374
      %v484 = vpop.f32.mrf.mxu0
      %v485 = vadd.f32 %v266, %v484
      %v486 = vpop.f32.mrf.mxu0
      %v487 = vpop.f32.mrf.mxu0
      %v488 = vadd.f32 %v266, %v487
      %v489 = vpop.f32.mrf.mxu0
      %490 = vmatprep.mubr.bf16.mxu0 0
      %491 = vmatmul.mubr.bf16.gmra.mxu0 %v377
      %v492 = vpop.f32.mrf.mxu0
      %v493 = vadd.f32 %v266, %v492
      %v494 = vpop.f32.mrf.mxu0
      %v495 = vpop.f32.mrf.mxu0
      %v496 = vadd.f32 %v266, %v495
      %v497 = vpop.f32.mrf.mxu0
      %498 = vmatprep.mubr.bf16.mxu0 0
      %499 = vmatmul.mubr.bf16.gmra.mxu0 %v380
      %v500 = vpop.f32.mrf.mxu0
      %v501 = vadd.f32 %v266, %v500
      %v502 = vpop.f32.mrf.mxu0
      %v503 = vpop.f32.mrf.mxu0
      %v504 = vadd.f32 %v266, %v503
      %v505 = vpop.f32.mrf.mxu0
      %506 = vmatprep.mubr.bf16.mxu0 0
      %507 = vmatmul.mubr.bf16.gmra.mxu0 %v383
      %v508 = vpop.f32.mrf.mxu0
      %v509 = vadd.f32 %v266, %v508
      %v510 = vpop.f32.mrf.mxu0
      %v511 = vpop.f32.mrf.mxu0
      %v512 = vadd.f32 %v266, %v511
      %v513 = vpop.f32.mrf.mxu0
      %514 = vmatprep.mubr.bf16.mxu0 0
      %515 = vmatmul.mubr.bf16.gmra.mxu0 %v386
      %v516 = vpop.f32.mrf.mxu0
      %v517 = vadd.f32 %v266, %v516
      %v518 = vpop.f32.mrf.mxu0
      %v519 = vpop.f32.mrf.mxu0
      %v520 = vadd.f32 %v266, %v519
      %v521 = vpop.f32.mrf.mxu0
      %522 = vmatprep.mubr.bf16.mxu0 0
      %523 = vmatmul.mubr.bf16.gmra.mxu0 %v389
      %v524 = vpop.f32.mrf.mxu0
      %v525 = vadd.f32 %v266, %v524
      %v526 = vpop.f32.mrf.mxu0
      %v527 = vpop.f32.mrf.mxu0
      %v528 = vadd.f32 %v266, %v527
      %v529 = vpop.f32.mrf.mxu0
      %530 = vmatprep.mubr.bf16.mxu0 0
      %531 = vmatmul.mubr.bf16.gmra.mxu0 %v392
      %v532 = vpop.f32.mrf.mxu0
      %v533 = vadd.f32 %v266, %v532
      %v534 = vpop.f32.mrf.mxu0
      %v535 = vpop.f32.mrf.mxu0
      %v536 = vadd.f32 %v266, %v535
      %v537 = vpop.f32.mrf.mxu0
      %538 = vmatprep.mubr.bf16.mxu0 0
      %539 = vmatmul.mubr.bf16.gmra.mxu0 %v395
      %v540 = vpop.f32.mrf.mxu0
      %v541 = vadd.f32 %v266, %v540
      %v542 = vpop.f32.mrf.mxu0
      %v543 = vpop.f32.mrf.mxu0
      %v544 = vadd.f32 %v266, %v543
      %v545 = vpop.f32.mrf.mxu0
      %546 = vmatprep.mubr.bf16.mxu0 0
      %547 = vmatmul.mubr.bf16.gmra.mxu0 %v398
      %v548 = vpop.f32.mrf.mxu0
      %v549 = vadd.f32 %v266, %v548
      %v550 = vpop.f32.mrf.mxu0
      %v551 = vpop.f32.mrf.mxu0
      %v552 = vadd.f32 %v266, %v551
      %v553 = vpop.f32.mrf.mxu0
      %554 = vmatprep.mubr.bf16.mxu0 0
      %555 = vmatmul.mubr.bf16.gmra.mxu0 %v401
      %v556 = vpop.f32.mrf.mxu0
      %v557 = vadd.f32 %v266, %v556
      %v558 = vpop.f32.mrf.mxu0
      %v559 = vpop.f32.mrf.mxu0
      %v560 = vadd.f32 %v266, %v559
      %v561 = vpop.f32.mrf.mxu0
      %562 = vmatprep.mubr.bf16.mxu0 0
      %563 = vmatmul.mubr.bf16.gmra.mxu0 %v404
      %v564 = vpop.f32.mrf.mxu0
      %v565 = vadd.f32 %v266, %v564
      %v566 = vpop.f32.mrf.mxu0
      %v567 = vpop.f32.mrf.mxu0
      %v568 = vadd.f32 %v266, %v567
      %v569 = vpop.f32.mrf.mxu0
      %570 = vdwg.mxu0
      %v571 = vxor.u32 %v445, 2147483648
      %v572 = vxor.u32 %v448, 2147483648
      %v573 = vxor.u32 %v453, 2147483648
      %v574 = vxor.u32 %v456, 2147483648
      %v575 = vxor.u32 %v461, 2147483648
      %v576 = vxor.u32 %v464, 2147483648
      %v577 = vxor.u32 %v469, 2147483648
      %v578 = vxor.u32 %v472, 2147483648
      %v579 = vxor.u32 %v477, 2147483648
      %v580 = vxor.u32 %v480, 2147483648
      %v581 = vxor.u32 %v485, 2147483648
      %v582 = vxor.u32 %v488, 2147483648
      %v583 = vxor.u32 %v493, 2147483648
      %v584 = vxor.u32 %v496, 2147483648
      %v585 = vxor.u32 %v501, 2147483648
      %v586 = vxor.u32 %v504, 2147483648
      %v587 = vxor.u32 %v509, 2147483648
      %v588 = vxor.u32 %v512, 2147483648
      %v589 = vxor.u32 %v517, 2147483648
      %v590 = vxor.u32 %v520, 2147483648
      %v591 = vxor.u32 %v525, 2147483648
      %v592 = vxor.u32 %v528, 2147483648
      %v593 = vxor.u32 %v533, 2147483648
      %v594 = vxor.u32 %v536, 2147483648
      %v595 = vxor.u32 %v541, 2147483648
      %v596 = vxor.u32 %v544, 2147483648
      %v597 = vxor.u32 %v549, 2147483648
      %v598 = vxor.u32 %v552, 2147483648
      %v599 = vxor.u32 %v557, 2147483648
      %v600 = vxor.u32 %v560, 2147483648
      %v601 = vxor.u32 %v565, 2147483648
      %v602 = vxor.u32 %v568, 2147483648
      %v603 = vmul.f32 %v571, 1.442695
      %v604 = vpow.pop %v603
      %v605 = vmul.f32 %v572, 1.442695
      %v606 = vpow.pop %v605
      %v607 = vmul.f32 %v573, 1.442695
      %v608 = vpow.pop %v607
      %v609 = vmul.f32 %v574, 1.442695
      %v610 = vpow.pop %v609
      %v611 = vmul.f32 %v575, 1.442695
      %v612 = vpow.pop %v611
      %v613 = vmul.f32 %v576, 1.442695
      %v614 = vpow.pop %v613
      %v615 = vmul.f32 %v577, 1.442695
      %v616 = vpow.pop %v615
      %v617 = vmul.f32 %v578, 1.442695
      %v618 = vpow.pop %v617
      %v619 = vmul.f32 %v579, 1.442695
      %v620 = vpow.pop %v619
      %v621 = vmul.f32 %v580, 1.442695
      %v622 = vpow.pop %v621
      %v623 = vmul.f32 %v581, 1.442695
      %v624 = vpow.pop %v623
      %v625 = vmul.f32 %v582, 1.442695
      %v626 = vpow.pop %v625
      %v627 = vmul.f32 %v583, 1.442695
      %v628 = vpow.pop %v627
      %v629 = vmul.f32 %v584, 1.442695
      %v630 = vpow.pop %v629
      %v631 = vmul.f32 %v585, 1.442695
      %v632 = vpow.pop %v631
      %v633 = vmul.f32 %v586, 1.442695
      %v634 = vpow.pop %v633
      %v635 = vmul.f32 %v587, 1.442695
      %v636 = vpow.pop %v635
      %v637 = vmul.f32 %v588, 1.442695
      %v638 = vpow.pop %v637
      %v639 = vmul.f32 %v589, 1.442695
      %v640 = vpow.pop %v639
      %v641 = vmul.f32 %v590, 1.442695
      %v642 = vpow.pop %v641
      %v643 = vmul.f32 %v591, 1.442695
      %v644 = vpow.pop %v643
      %v645 = vmul.f32 %v592, 1.442695
      %v646 = vpow.pop %v645
      %v647 = vmul.f32 %v593, 1.442695
      %v648 = vpow.pop %v647
      %v649 = vmul.f32 %v594, 1.442695
      %v650 = vpow.pop %v649
      %v651 = vmul.f32 %v595, 1.442695
      %v652 = vpow.pop %v651
      %v653 = vmul.f32 %v596, 1.442695
      %v654 = vpow.pop %v653
      %v655 = vmul.f32 %v597, 1.442695
      %v656 = vpow.pop %v655
      %v657 = vmul.f32 %v598, 1.442695
      %v658 = vpow.pop %v657
      %v659 = vmul.f32 %v599, 1.442695
      %v660 = vpow.pop %v659
      %v661 = vmul.f32 %v600, 1.442695
      %v662 = vpow.pop %v661
      %v663 = vmul.f32 %v601, 1.442695
      %v664 = vpow.pop %v663
      %v665 = vmul.f32 %v602, 1.442695
      %v666 = vpow.pop %v665
      %v667 = vadd.f32 %v604, 1.0
      %v668 = vadd.f32 %v606, 1.0
      %v669 = vadd.f32 %v608, 1.0
      %v670 = vadd.f32 %v610, 1.0
      %v671 = vadd.f32 %v612, 1.0
      %v672 = vadd.f32 %v614, 1.0
      %v673 = vadd.f32 %v616, 1.0
      %v674 = vadd.f32 %v618, 1.0
      %v675 = vadd.f32 %v620, 1.0
      %v676 = vadd.f32 %v622, 1.0
      %v677 = vadd.f32 %v624, 1.0
      %v678 = vadd.f32 %v626, 1.0
      %v679 = vadd.f32 %v628, 1.0
      %v680 = vadd.f32 %v630, 1.0
      %v681 = vadd.f32 %v632, 1.0
      %v682 = vadd.f32 %v634, 1.0
      %v683 = vadd.f32 %v636, 1.0
      %v684 = vadd.f32 %v638, 1.0
      %v685 = vadd.f32 %v640, 1.0
      %v686 = vadd.f32 %v642, 1.0
      %v687 = vadd.f32 %v644, 1.0
      %v688 = vadd.f32 %v646, 1.0
      %v689 = vadd.f32 %v648, 1.0
      %v690 = vadd.f32 %v650, 1.0
      %v691 = vadd.f32 %v652, 1.0
      %v692 = vadd.f32 %v654, 1.0
      %v693 = vadd.f32 %v656, 1.0
      %v694 = vadd.f32 %v658, 1.0
      %v695 = vadd.f32 %v660, 1.0
      %v696 = vadd.f32 %v662, 1.0
      %v697 = vadd.f32 %v664, 1.0
      %v698 = vadd.f32 %v666, 1.0
      %v699 = vrcp.pop %v667
      %v700 = vmul.f32 1.0, %v699
      %v701 = vrcp.pop %v668
      %v702 = vmul.f32 1.0, %v701
      %v703 = vrcp.pop %v669
      %v704 = vmul.f32 1.0, %v703
      %v705 = vrcp.pop %v670
      %v706 = vmul.f32 1.0, %v705
      %v707 = vrcp.pop %v671
      %v708 = vmul.f32 1.0, %v707
      %v709 = vrcp.pop %v672
      %v710 = vmul.f32 1.0, %v709
      %v711 = vrcp.pop %v673
      %v712 = vmul.f32 1.0, %v711
      %v713 = vrcp.pop %v674
      %v714 = vmul.f32 1.0, %v713
      %v715 = vrcp.pop %v675
      %v716 = vmul.f32 1.0, %v715
      %v717 = vrcp.pop %v676
      %v718 = vmul.f32 1.0, %v717
      %v719 = vrcp.pop %v677
      %v720 = vmul.f32 1.0, %v719
      %v721 = vrcp.pop %v678
      %v722 = vmul.f32 1.0, %v721
      %v723 = vrcp.pop %v679
      %v724 = vmul.f32 1.0, %v723
      %v725 = vrcp.pop %v680
      %v726 = vmul.f32 1.0, %v725
      %v727 = vrcp.pop %v681
      %v728 = vmul.f32 1.0, %v727
      %v729 = vrcp.pop %v682
      %v730 = vmul.f32 1.0, %v729
      %v731 = vrcp.pop %v683
      %v732 = vmul.f32 1.0, %v731
      %v733 = vrcp.pop %v684
      %v734 = vmul.f32 1.0, %v733
      %v735 = vrcp.pop %v685
      %v736 = vmul.f32 1.0, %v735
      %v737 = vrcp.pop %v686
      %v738 = vmul.f32 1.0, %v737
      %v739 = vrcp.pop %v687
      %v740 = vmul.f32 1.0, %v739
      %v741 = vrcp.pop %v688
      %v742 = vmul.f32 1.0, %v741
      %v743 = vrcp.pop %v689
      %v744 = vmul.f32 1.0, %v743
      %v745 = vrcp.pop %v690
      %v746 = vmul.f32 1.0, %v745
      %v747 = vrcp.pop %v691
      %v748 = vmul.f32 1.0, %v747
      %v749 = vrcp.pop %v692
      %v750 = vmul.f32 1.0, %v749
      %v751 = vrcp.pop %v693
      %v752 = vmul.f32 1.0, %v751
      %v753 = vrcp.pop %v694
      %v754 = vmul.f32 1.0, %v753
      %v755 = vrcp.pop %v695
      %v756 = vmul.f32 1.0, %v755
      %v757 = vrcp.pop %v696
      %v758 = vmul.f32 1.0, %v757
      %v759 = vrcp.pop %v697
      %v760 = vmul.f32 1.0, %v759
      %v761 = vrcp.pop %v698
      %v762 = vmul.f32 1.0, %v761
      %v763 = vmul.f32 %v445, %v700
      %v764 = vmul.f32 %v448, %v702
      %v765 = vmul.f32 %v453, %v704
      %v766 = vmul.f32 %v456, %v706
      %v767 = vmul.f32 %v461, %v708
      %v768 = vmul.f32 %v464, %v710
      %v769 = vmul.f32 %v469, %v712
      %v770 = vmul.f32 %v472, %v714
      %v771 = vmul.f32 %v477, %v716
      %v772 = vmul.f32 %v480, %v718
      %v773 = vmul.f32 %v485, %v720
      %v774 = vmul.f32 %v488, %v722
      %v775 = vmul.f32 %v493, %v724
      %v776 = vmul.f32 %v496, %v726
      %v777 = vmul.f32 %v501, %v728
      %v778 = vmul.f32 %v504, %v730
      %v779 = vmul.f32 %v509, %v732
      %v780 = vmul.f32 %v512, %v734
      %v781 = vmul.f32 %v517, %v736
      %v782 = vmul.f32 %v520, %v738
      %v783 = vmul.f32 %v525, %v740
      %v784 = vmul.f32 %v528, %v742
      %v785 = vmul.f32 %v533, %v744
      %v786 = vmul.f32 %v536, %v746
      %v787 = vmul.f32 %v541, %v748
      %v788 = vmul.f32 %v544, %v750
      %v789 = vmul.f32 %v549, %v752
      %v790 = vmul.f32 %v552, %v754
      %v791 = vmul.f32 %v557, %v756
      %v792 = vmul.f32 %v560, %v758
      %v793 = vmul.f32 %v565, %v760
      %v794 = vmul.f32 %v568, %v762
      %v795 = vpack.c.bf16 %v764, %v763
      %v796 = vpack.c.bf16 %v766, %v765
      %v797 = vpack.c.bf16 %v768, %v767
      %v798 = vpack.c.bf16 %v770, %v769
      %v799 = vpack.c.bf16 %v772, %v771
      %v800 = vpack.c.bf16 %v774, %v773
      %v801 = vpack.c.bf16 %v776, %v775
      %v802 = vpack.c.bf16 %v778, %v777
      %v803 = vpack.c.bf16 %v780, %v779
      %v804 = vpack.c.bf16 %v782, %v781
      %v805 = vpack.c.bf16 %v784, %v783
      %v806 = vpack.c.bf16 %v786, %v785
      %v807 = vpack.c.bf16 %v788, %v787
      %v808 = vpack.c.bf16 %v790, %v789
      %v809 = vpack.c.bf16 %v792, %v791
      %v810 = vpack.c.bf16 %v794, %v793
      %v827 = vunpack.c.l.b16 %v795
      %v828 = vunpack.c.h.b16 %v795
      %v829 = vunpack.c.l.b16 %v796
      %v830 = vunpack.c.h.b16 %v796
      %v831 = vunpack.c.l.b16 %v797
      %v832 = vunpack.c.h.b16 %v797
      %v833 = vunpack.c.l.b16 %v798
      %v834 = vunpack.c.h.b16 %v798
      %v835 = vunpack.c.l.b16 %v799
      %v836 = vunpack.c.h.b16 %v799
      %v837 = vunpack.c.l.b16 %v800
      %v838 = vunpack.c.h.b16 %v800
      %v839 = vunpack.c.l.b16 %v801
      %v840 = vunpack.c.h.b16 %v801
      %v841 = vunpack.c.l.b16 %v802
      %v842 = vunpack.c.h.b16 %v802
      %v843 = vunpack.c.l.b16 %v803
      %v844 = vunpack.c.h.b16 %v803
      %v845 = vunpack.c.l.b16 %v804
      %v846 = vunpack.c.h.b16 %v804
      %v847 = vunpack.c.l.b16 %v805
      %v848 = vunpack.c.h.b16 %v805
      %v849 = vunpack.c.l.b16 %v806
      %v850 = vunpack.c.h.b16 %v806
      %v851 = vunpack.c.l.b16 %v807
      %v852 = vunpack.c.h.b16 %v807
      %v853 = vunpack.c.l.b16 %v808
      %v854 = vunpack.c.h.b16 %v808
      %v855 = vunpack.c.l.b16 %v809
      %v856 = vunpack.c.h.b16 %v809
      %v857 = vunpack.c.l.b16 %v810
      %v858 = vunpack.c.h.b16 %v810
      %v859 = vpack.c.b16 %v827, %v827
      %v860 = vpack.c.b16 %v828, %v828
      %v861 = vpack.c.b16 %v829, %v829
      %v862 = vpack.c.b16 %v830, %v830
      %v863 = vpack.c.b16 %v831, %v831
      %v864 = vpack.c.b16 %v832, %v832
      %v865 = vpack.c.b16 %v833, %v833
      %v866 = vpack.c.b16 %v834, %v834
      %v867 = vpack.c.b16 %v835, %v835
      %v868 = vpack.c.b16 %v836, %v836
      %v869 = vpack.c.b16 %v837, %v837
      %v870 = vpack.c.b16 %v838, %v838
      %v871 = vpack.c.b16 %v839, %v839
      %v872 = vpack.c.b16 %v840, %v840
      %v873 = vpack.c.b16 %v841, %v841
      %v874 = vpack.c.b16 %v842, %v842
      %v875 = vpack.c.b16 %v843, %v843
      %v876 = vpack.c.b16 %v844, %v844
      %v877 = vpack.c.b16 %v845, %v845
      %v878 = vpack.c.b16 %v846, %v846
      %v879 = vpack.c.b16 %v847, %v847
      %v880 = vpack.c.b16 %v848, %v848
      %v881 = vpack.c.b16 %v849, %v849
      %v882 = vpack.c.b16 %v850, %v850
      %v883 = vpack.c.b16 %v851, %v851
      %v884 = vpack.c.b16 %v852, %v852
      %v885 = vpack.c.b16 %v853, %v853
      %v886 = vpack.c.b16 %v854, %v854
      %v887 = vpack.c.b16 %v855, %v855
      %v888 = vpack.c.b16 %v856, %v856
      %v889 = vpack.c.b16 %v857, %v857
      %v890 = vpack.c.b16 %v858, %v858
      %vm923 = vcmask 125952
      %924 = vst.msk [vmem:[%s223] sm:$0xf] %vm923, %v859
      %925 = vst.msk [vmem:[%s223 + $0x4] sm:$0xf] %vm923, %v860
      %926 = vst.msk [vmem:[%s223 + $0x8] sm:$0xf] %vm923, %v861
      %927 = vst.msk [vmem:[%s223 + $0xc] sm:$0xf] %vm923, %v862
      %928 = vst.msk [vmem:[%s223 + $0x10] sm:$0xf] %vm923, %v863
      %929 = vst.msk [vmem:[%s223 + $0x14] sm:$0xf] %vm923, %v864
      %930 = vst.msk [vmem:[%s223 + $0x18] sm:$0xf] %vm923, %v865
      %931 = vst.msk [vmem:[%s223 + $0x1c] sm:$0xf] %vm923, %v866
      %932 = vst.msk [vmem:[%s223 + $0x20] sm:$0xf] %vm923, %v867
      %933 = vst.msk [vmem:[%s223 + $0x24] sm:$0xf] %vm923, %v868
      %934 = vst.msk [vmem:[%s223 + $0x28] sm:$0xf] %vm923, %v869
      %935 = vst.msk [vmem:[%s223 + $0x2c] sm:$0xf] %vm923, %v870
      %936 = vst.msk [vmem:[%s223 + $0x30] sm:$0xf] %vm923, %v871
      %937 = vst.msk [vmem:[%s223 + $0x34] sm:$0xf] %vm923, %v872
      %938 = vst.msk [vmem:[%s223 + $0x38] sm:$0xf] %vm923, %v873
      %939 = vst.msk [vmem:[%s223 + $0x3c] sm:$0xf] %vm923, %v874
      %940 = vst.msk [vmem:[%s223 + $0x40] sm:$0xf] %vm923, %v875
      %941 = vst.msk [vmem:[%s223 + $0x44] sm:$0xf] %vm923, %v876
      %942 = vst.msk [vmem:[%s223 + $0x48] sm:$0xf] %vm923, %v877
      %943 = vst.msk [vmem:[%s223 + $0x4c] sm:$0xf] %vm923, %v878
      %944 = vst.msk [vmem:[%s223 + $0x50] sm:$0xf] %vm923, %v879
      %945 = vst.msk [vmem:[%s223 + $0x54] sm:$0xf] %vm923, %v880
      %946 = vst.msk [vmem:[%s223 + $0x58] sm:$0xf] %vm923, %v881
      %947 = vst.msk [vmem:[%s223 + $0x5c] sm:$0xf] %vm923, %v882
      %948 = vst.msk [vmem:[%s223 + $0x60] sm:$0xf] %vm923, %v883
      %949 = vst.msk [vmem:[%s223 + $0x64] sm:$0xf] %vm923, %v884
      %950 = vst.msk [vmem:[%s223 + $0x68] sm:$0xf] %vm923, %v885
      %951 = vst.msk [vmem:[%s223 + $0x6c] sm:$0xf] %vm923, %v886
      %952 = vst.msk [vmem:[%s223 + $0x70] sm:$0xf] %vm923, %v887
      %953 = vst.msk [vmem:[%s223 + $0x74] sm:$0xf] %vm923, %v888
      %954 = vst.msk [vmem:[%s223 + $0x78] sm:$0xf] %vm923, %v889
      %955 = vst.msk [vmem:[%s223 + $0x7c] sm:$0xf] %vm923, %v890
      %s956 = smul.u32 32, %s18
      %p957 = scmp.lt.s32.totalorder %s956, 63
      %s958 = scalar_select %p957, %s956, 63
      %p959 = scmp.lt.s32.totalorder %s19, 0
      %s960 = scalar_select %p959, %s19, 0
      %s961 = sadd.s32 %s960, %s958
      %s962 = smul.addr %s961, 4
      %s963 = scalar_lea.vmem %s3, %s962
      // Predicated region
      $region33: #{yolov8_head_forward.38} parent=31 // pred_check
        %p964 = pneg %p124
      $region34: #{yolov8_head_forward.38} parent=31 // pred_check_branch
        %966 = sbr.rel (%p964) target = $region36
      $region35: #{yolov8_head_forward.38} parent=31 // pred_region
        %s967 = smul.u32 32, %s18
      $region36: #{yolov8_head_forward.38} parent=31 // pred_fallthru
        _
    $region32: #{yolov8_head_forward.38} parent=5 // pred_fallthru
      _
    %p968 = scmp.le.s32.totalorder 2, %s9
    // Predicated region
    $region37: #{yolov8_head_forward.38} parent=5 // pred_check
      %p969 = pneg %p968
    $region38: #{yolov8_head_forward.38} parent=5 // pred_check_branch
      %971 = sbr.rel (%p969) target = $region40
    $region39: #{yolov8_head_forward.38} parent=5 // pred_region
      %s972 = ssub.s32 %s9, 2
      // Predicated region
      $region41: #{yolov8_head_forward.38} parent=39 // pred_check
        %p973 = pneg %p130
      $region42: #{yolov8_head_forward.38} parent=39 // pred_check_branch
        %975 = sbr.rel (%p973) target = $region44
      $region43: #{yolov8_head_forward.38} parent=39 // pred_region
        %s976 = smul.u32 32, %s20
        %p977 = scmp.lt.s32.totalorder %s976, 63
        %s978 = scalar_select %p977, %s976, 63
        %p979 = scmp.lt.s32.totalorder %s21, 0
        %s980 = scalar_select %p979, %s21, 0
        %s981 = sadd.s32 %s980, %s978
        %s982 = smul.addr %s981, 4
        %s983 = scalar_lea.vmem %s3, %s982
      $region44: #{yolov8_head_forward.38} parent=39 // pred_fallthru
        _
    $region40: #{yolov8_head_forward.38} parent=5 // pred_fallthru
      _
  $region6: #{yolov8_head_forward.38} parent=0 // loop_footer
    %s13 = sadd.s32 1, %s9
  $region7: #{yolov8_head_forward.38} parent=0 // loop_footer_branch
    %8 = sbr.rel target = $region3
  $region8: #{yolov8_head_forward.38} parent=0 // loop_exit
    _

// kernel: yolov8_head_forward.39
$region0: #{yolov8_head_forward.39}
  #allocation0 [shape = 'u32[]', space=smem, size = 0x4, offset = 0x4, fixed_abs, tag = 'smem constant byte address 0x4 - core index']
  #allocation1 [shape = 'u32[144,128]{1,0:T(1,128)}', space=vmem, size = 0x12000, scoped, tag = 'internal scratch']
  %s0 = inlined_call_operand.vmem [shape: bf16[128,144], index: 0, kind: input, shape index: {}]
  %s1 = inlined_call_operand.vmem [shape: bf16[144,16], index: 1, kind: input, shape index: {}]
  %s2 = inlined_call_operand.vmem [shape: f32[1,16], index: 2, kind: input, shape index: {}]
  %s3 = inlined_call_operand.vmem [shape: bf16[128,16], index: 3, kind: output, shape index: {}]
  %s4 = sld [smem:[#allocation0]]
  $region22: #{yolov8_head_forward.39} parent=0
    _
  %s6 = ssub.s32 1, %s4
  %s7 = scalar_select 0, %s6, %s4
  // Predicated region
  $region2: #{yolov8_head_forward.39} parent=0 // pred_check
    _
  $region3: #{yolov8_head_forward.39} parent=0 // pred_check_branch
    %9 = sbr.rel (0) target = $region5
  $region4: #{yolov8_head_forward.39} parent=0 // pred_region
    _
  $region5: #{yolov8_head_forward.39} parent=0 // pred_fallthru
    _
  // Predicated region
  $region6: #{yolov8_head_forward.39} parent=0 // pred_check
    _
  $region7: #{yolov8_head_forward.39} parent=0 // pred_check_branch
    %11 = sbr.rel (0) target = $region9
  $region8: #{yolov8_head_forward.39} parent=0 // pred_region
    _
  $region9: #{yolov8_head_forward.39} parent=0 // pred_fallthru
    _
  // Predicated region
  $region10: #{yolov8_head_forward.39} parent=0 // pred_check
    _
  $region11: #{yolov8_head_forward.39} parent=0 // pred_check_branch
    %13 = sbr.rel (0) target = $region13
  $region12: #{yolov8_head_forward.39} parent=0 // pred_region
    _
  $region13: #{yolov8_head_forward.39} parent=0 // pred_fallthru
    _
  %v15 = vld [vmem:[%s0] sm:$0xff]
  %v16 = vld [vmem:[%s0 + $0x8] sm:$0xff]
  %v17 = vld [vmem:[%s0 + $0x10] sm:$0xff]
  %v18 = vld [vmem:[%s0 + $0x18] sm:$0xff]
  %v19 = vld [vmem:[%s0 + $0x20] sm:$0xff]
  %v20 = vld [vmem:[%s0 + $0x28] sm:$0xff]
  %v21 = vld [vmem:[%s0 + $0x30] sm:$0xff]
  %v22 = vld [vmem:[%s0 + $0x38] sm:$0xff]
  %v23 = vld [vmem:[%s0 + $0x40] sm:$0xff]
  %v24 = vld [vmem:[%s0 + $0x48] sm:$0xff]
  %v25 = vld [vmem:[%s0 + $0x50] sm:$0xff]
  %v26 = vld [vmem:[%s0 + $0x58] sm:$0xff]
  %v27 = vld [vmem:[%s0 + $0x60] sm:$0xff]
  %v28 = vld [vmem:[%s0 + $0x68] sm:$0xff]
  %v29 = vld [vmem:[%s0 + $0x70] sm:$0xff]
  %v30 = vld [vmem:[%s0 + $0x78] sm:$0xff]
  %v31 = vld [vmem:[%s1] sm:$0xf]
  %v32 = vld [vmem:[%s1 + $0x4] sm:$0xf]
  %v33 = vld [vmem:[%s1 + $0x8] sm:$0xf]
  %v34 = vld [vmem:[%s1 + $0xc] sm:$0xf]
  %v35 = vld [vmem:[%s1 + $0x10] sm:$0xf]
  %v36 = vld [vmem:[%s1 + $0x14] sm:$0xf]
  %v37 = vld [vmem:[%s1 + $0x18] sm:$0xf]
  %v38 = vld [vmem:[%s1 + $0x1c] sm:$0xf]
  %v39 = vld [vmem:[%s1 + $0x20] sm:$0xf]
  %v40 = vld [vmem:[%s1 + $0x24] sm:$0xf]
  %v41 = vld [vmem:[%s1 + $0x28] sm:$0xf]
  %v42 = vld [vmem:[%s1 + $0x2c] sm:$0xf]
  %v43 = vld [vmem:[%s1 + $0x30] sm:$0xf]
  %v44 = vld [vmem:[%s1 + $0x34] sm:$0xf]
  %v45 = vld [vmem:[%s1 + $0x38] sm:$0xf]
  %v46 = vld [vmem:[%s1 + $0x3c] sm:$0xf]
  %v47 = vld [vmem:[%s1 + $0x40] sm:$0xf]
  %v48 = vld [vmem:[%s1 + $0x44] sm:$0xf]
  %v49 = vld [vmem:[%s2] sm:$0x1]
  %v51 = vlaneseq
  %v52 = vshrl.u32 %v51, 7
  %v53 = vsub.s32 0, %v52
  %v54 = vrot.slane %v49, %v53
  %v72 = vunpack.c.l.b16 %v15
  %v73 = vunpack.c.h.b16 %v15
  %v74 = vunpack.c.l.b16 %v16
  %v75 = vunpack.c.h.b16 %v16
  %v76 = vunpack.c.l.b16 %v17
  %v77 = vunpack.c.h.b16 %v17
  %v78 = vunpack.c.l.b16 %v18
  %v79 = vunpack.c.h.b16 %v18
  %v80 = vunpack.c.l.b16 %v19
  %v81 = vunpack.c.h.b16 %v19
  %v82 = vunpack.c.l.b16 %v20
  %v83 = vunpack.c.h.b16 %v20
  %v84 = vunpack.c.l.b16 %v21
  %v85 = vunpack.c.h.b16 %v21
  %v86 = vunpack.c.l.b16 %v22
  %v87 = vunpack.c.h.b16 %v22
  %v88 = vunpack.c.l.b16 %v23
  %v89 = vunpack.c.h.b16 %v23
  %v90 = vunpack.c.l.b16 %v24
  %v91 = vunpack.c.h.b16 %v24
  %v92 = vunpack.c.l.b16 %v25
  %v93 = vunpack.c.h.b16 %v25
  %v94 = vunpack.c.l.b16 %v26
  %v95 = vunpack.c.h.b16 %v26
  %v96 = vunpack.c.l.b16 %v27
  %v97 = vunpack.c.h.b16 %v27
  %v98 = vunpack.c.l.b16 %v28
  %v99 = vunpack.c.h.b16 %v28
  %v100 = vunpack.c.l.b16 %v29
  %v101 = vunpack.c.h.b16 %v29
  %v102 = vunpack.c.l.b16 %v30
  %v103 = vunpack.c.h.b16 %v30
  %v104 = vpack.c.b16 %v74, %v72
  %v105 = vpack.c.b16 %v75, %v73
  %v106 = vpack.c.b16 %v78, %v76
  %v107 = vpack.c.b16 %v79, %v77
  %v108 = vpack.c.b16 %v82, %v80
  %v109 = vpack.c.b16 %v83, %v81
  %v110 = vpack.c.b16 %v86, %v84
  %v111 = vpack.c.b16 %v87, %v85
  %v112 = vpack.c.b16 %v90, %v88
  %v113 = vpack.c.b16 %v91, %v89
  %v114 = vpack.c.b16 %v94, %v92
  %v115 = vpack.c.b16 %v95, %v93
  %v116 = vpack.c.b16 %v98, %v96
  %v117 = vpack.c.b16 %v99, %v97
  %v118 = vpack.c.b16 %v102, %v100
  %v119 = vpack.c.b16 %v103, %v101
  %v146 = vunpack.c.l.b16 %v31
  %v147 = vunpack.c.l.b16 %v32
  %v148 = vunpack.c.l.b16 %v33
  %v149 = vunpack.c.l.b16 %v34
  %v150 = vunpack.c.l.b16 %v35
  %v151 = vunpack.c.l.b16 %v36
  %v152 = vunpack.c.l.b16 %v37
  %v153 = vunpack.c.l.b16 %v38
  %v154 = vunpack.c.l.b16 %v39
  %v155 = vunpack.c.l.b16 %v40
  %v156 = vunpack.c.l.b16 %v41
  %v157 = vunpack.c.l.b16 %v42
  %v158 = vunpack.c.l.b16 %v43
  %v159 = vunpack.c.l.b16 %v44
  %v160 = vunpack.c.l.b16 %v45
  %v161 = vunpack.c.l.b16 %v46
  %v162 = vunpack.c.l.b16 %v47
  %v163 = vunpack.c.l.b16 %v48
  %v164 = vpack.c.b16 %v147, %v146
  %v165 = vpack.c.b16 %v149, %v148
  %v166 = vpack.c.b16 %v151, %v150
  %v167 = vpack.c.b16 %v153, %v152
  %v168 = vpack.c.b16 %v155, %v154
  %v169 = vpack.c.b16 %v157, %v156
  %v170 = vpack.c.b16 %v159, %v158
  %v171 = vpack.c.b16 %v161, %v160
  %v172 = vpack.c.b16 %v163, %v162
  %vm182 = vcmask 130048
  %v184 = vsel %vm182, %v105, 0
  %v187 = vsel %vm182, %v107, 0
  %v190 = vsel %vm182, %v109, 0
  %v193 = vsel %vm182, %v111, 0
  %v196 = vsel %vm182, %v113, 0
  %v199 = vsel %vm182, %v115, 0
  %v202 = vsel %vm182, %v117, 0
  %v205 = vsel %vm182, %v119, 0
  %207 = vmatprep.subr.bf16.mxu0 0
  %208 = vmatpush1.bf16.msra.mxu0 %v171
  %209 = vmatprep.subr.bf16.mxu0 0
  %210 = vmatpush1.bf16.msra.mxu0 %v170
  %211 = vmatprep.subr.bf16.mxu0 0
  %212 = vmatpush1.bf16.msra.mxu0 %v169
  %213 = vmatprep.subr.bf16.mxu0 0
  %214 = vmatpush1.bf16.msra.mxu0 %v168
  %215 = vmatprep.subr.bf16.mxu0 0
  %216 = vmatpush1.bf16.msra.mxu0 %v167
  %217 = vmatprep.subr.bf16.mxu0 0
  %218 = vmatpush1.bf16.msra.mxu0 %v166
  %219 = vmatprep.subr.bf16.mxu0 0
  %220 = vmatpush1.bf16.msra.mxu0 %v165
  %221 = vmatprep.subr.bf16.mxu0 0
  %222 = vmatpush1.bf16.msra.mxu0 %v164
  %223 = vmatprep.subr.bf16.mxu0 0
  %224 = vmatpush2.bf16.msra.mxu0 0
  %225 = vmatprep.subr.bf16.mxu0 0
  %226 = vmatpush2.bf16.msra.mxu0 0
  %227 = vmatprep.subr.bf16.mxu0 0
  %228 = vmatpush2.bf16.msra.mxu0 0
  %229 = vmatprep.subr.bf16.mxu0 0
  %230 = vmatpush2.bf16.msra.mxu0 0
  %231 = vmatprep.subr.bf16.mxu0 0
  %232 = vmatpush2.bf16.msra.mxu0 0
  %233 = vmatprep.subr.bf16.mxu0 0
  %234 = vmatpush2.bf16.msra.mxu0 0
  %235 = vmatprep.subr.bf16.mxu0 0
  %236 = vmatpush2.bf16.msra.mxu0 0
  %237 = vmatprep.subr.bf16.mxu0 0
  %238 = vmatpush2.bf16.msra.mxu0 %v172
  %239 = vmatprep.mubr.bf16.mxu0 %v184
  %240 = vmatmul.mubr.bf16.gmra.mxu0 %v104
  %v241 = vpop.f32.mrf.mxu0
  %v242 = vadd.f32 %v54, %v241
  %v243 = vpop.f32.mrf.mxu0
  %v244 = vpop.f32.mrf.mxu0
  %v245 = vadd.f32 %v54, %v244
  %v246 = vpop.f32.mrf.mxu0
  %247 = vmatprep.mubr.bf16.mxu0 %v187
  %248 = vmatmul.mubr.bf16.gmra.mxu0 %v106
  %v249 = vpop.f32.mrf.mxu0
  %v250 = vadd.f32 %v54, %v249
  %v251 = vpop.f32.mrf.mxu0
  %v252 = vpop.f32.mrf.mxu0
  %v253 = vadd.f32 %v54, %v252
  %v254 = vpop.f32.mrf.mxu0
  %255 = vmatprep.mubr.bf16.mxu0 %v190
  %256 = vmatmul.mubr.bf16.gmra.mxu0 %v108
  %v257 = vpop.f32.mrf.mxu0
  %v258 = vadd.f32 %v54, %v257
  %v259 = vpop.f32.mrf.mxu0
  %v260 = vpop.f32.mrf.mxu0
  %v261 = vadd.f32 %v54, %v260
  %v262 = vpop.f32.mrf.mxu0
  %263 = vmatprep.mubr.bf16.mxu0 %v193
  %264 = vmatmul.mubr.bf16.gmra.mxu0 %v110
  %v265 = vpop.f32.mrf.mxu0
  %v266 = vadd.f32 %v54, %v265
  %v267 = vpop.f32.mrf.mxu0
  %v268 = vpop.f32.mrf.mxu0
  %v269 = vadd.f32 %v54, %v268
  %v270 = vpop.f32.mrf.mxu0
  %271 = vmatprep.mubr.bf16.mxu0 %v196
  %272 = vmatmul.mubr.bf16.gmra.mxu0 %v112
  %v273 = vpop.f32.mrf.mxu0
  %v274 = vadd.f32 %v54, %v273
  %v275 = vpop.f32.mrf.mxu0
  %v276 = vpop.f32.mrf.mxu0
  %v277 = vadd.f32 %v54, %v276
  %v278 = vpop.f32.mrf.mxu0
  %279 = vmatprep.mubr.bf16.mxu0 %v199
  %280 = vmatmul.mubr.bf16.gmra.mxu0 %v114
  %v281 = vpop.f32.mrf.mxu0
  %v282 = vadd.f32 %v54, %v281
  %v283 = vpop.f32.mrf.mxu0
  %v284 = vpop.f32.mrf.mxu0
  %v285 = vadd.f32 %v54, %v284
  %v286 = vpop.f32.mrf.mxu0
  %287 = vmatprep.mubr.bf16.mxu0 %v202
  %288 = vmatmul.mubr.bf16.gmra.mxu0 %v116
  %v289 = vpop.f32.mrf.mxu0
  %v290 = vadd.f32 %v54, %v289
  %v291 = vpop.f32.mrf.mxu0
  %v292 = vpop.f32.mrf.mxu0
  %v293 = vadd.f32 %v54, %v292
  %v294 = vpop.f32.mrf.mxu0
  %295 = vmatprep.mubr.bf16.mxu0 %v205
  %296 = vmatmul.mubr.bf16.gmra.mxu0 %v118
  %v297 = vpop.f32.mrf.mxu0
  %v298 = vadd.f32 %v54, %v297
  %v299 = vpop.f32.mrf.mxu0
  %v300 = vpop.f32.mrf.mxu0
  %v301 = vadd.f32 %v54, %v300
  %v302 = vpop.f32.mrf.mxu0
  %303 = vdwg.mxu0
  %v304 = vxor.u32 %v242, 2147483648
  %v305 = vxor.u32 %v245, 2147483648
  %v306 = vxor.u32 %v250, 2147483648
  %v307 = vxor.u32 %v253, 2147483648
  %v308 = vxor.u32 %v258, 2147483648
  %v309 = vxor.u32 %v261, 2147483648
  %v310 = vxor.u32 %v266, 2147483648
  %v311 = vxor.u32 %v269, 2147483648
  %v312 = vxor.u32 %v274, 2147483648
  %v313 = vxor.u32 %v277, 2147483648
  %v314 = vxor.u32 %v282, 2147483648
  %v315 = vxor.u32 %v285, 2147483648
  %v316 = vxor.u32 %v290, 2147483648
  %v317 = vxor.u32 %v293, 2147483648
  %v318 = vxor.u32 %v298, 2147483648
  %v319 = vxor.u32 %v301, 2147483648
  %v320 = vmul.f32 %v304, 1.442695
  %v321 = vpow.pop %v320
  %v322 = vmul.f32 %v305, 1.442695
  %v323 = vpow.pop %v322
  %v324 = vmul.f32 %v306, 1.442695
  %v325 = vpow.pop %v324
  %v326 = vmul.f32 %v307, 1.442695
  %v327 = vpow.pop %v326
  %v328 = vmul.f32 %v308, 1.442695
  %v329 = vpow.pop %v328
  %v330 = vmul.f32 %v309, 1.442695
  %v331 = vpow.pop %v330
  %v332 = vmul.f32 %v310, 1.442695
  %v333 = vpow.pop %v332
  %v334 = vmul.f32 %v311, 1.442695
  %v335 = vpow.pop %v334
  %v336 = vmul.f32 %v312, 1.442695
  %v337 = vpow.pop %v336
  %v338 = vmul.f32 %v313, 1.442695
  %v339 = vpow.pop %v338
  %v340 = vmul.f32 %v314, 1.442695
  %v341 = vpow.pop %v340
  %v342 = vmul.f32 %v315, 1.442695
  %v343 = vpow.pop %v342
  %v344 = vmul.f32 %v316, 1.442695
  %v345 = vpow.pop %v344
  %v346 = vmul.f32 %v317, 1.442695
  %v347 = vpow.pop %v346
  %v348 = vmul.f32 %v318, 1.442695
  %v349 = vpow.pop %v348
  %v350 = vmul.f32 %v319, 1.442695
  %v351 = vpow.pop %v350
  %v352 = vadd.f32 %v321, 1.0
  %v353 = vadd.f32 %v323, 1.0
  %v354 = vadd.f32 %v325, 1.0
  %v355 = vadd.f32 %v327, 1.0
  %v356 = vadd.f32 %v329, 1.0
  %v357 = vadd.f32 %v331, 1.0
  %v358 = vadd.f32 %v333, 1.0
  %v359 = vadd.f32 %v335, 1.0
  %v360 = vadd.f32 %v337, 1.0
  %v361 = vadd.f32 %v339, 1.0
  %v362 = vadd.f32 %v341, 1.0
  %v363 = vadd.f32 %v343, 1.0
  %v364 = vadd.f32 %v345, 1.0
  %v365 = vadd.f32 %v347, 1.0
  %v366 = vadd.f32 %v349, 1.0
  %v367 = vadd.f32 %v351, 1.0
  %v368 = vrcp.pop %v352
  %v369 = vmul.f32 1.0, %v368
  %v370 = vrcp.pop %v353
  %v371 = vmul.f32 1.0, %v370
  %v372 = vrcp.pop %v354
  %v373 = vmul.f32 1.0, %v372
  %v374 = vrcp.pop %v355
  %v375 = vmul.f32 1.0, %v374
  %v376 = vrcp.pop %v356
  %v377 = vmul.f32 1.0, %v376
  %v378 = vrcp.pop %v357
  %v379 = vmul.f32 1.0, %v378
  %v380 = vrcp.pop %v358
  %v381 = vmul.f32 1.0, %v380
  %v382 = vrcp.pop %v359
  %v383 = vmul.f32 1.0, %v382
  %v384 = vrcp.pop %v360
  %v385 = vmul.f32 1.0, %v384
  %v386 = vrcp.pop %v361
  %v387 = vmul.f32 1.0, %v386
  %v388 = vrcp.pop %v362
  %v389 = vmul.f32 1.0, %v388
  %v390 = vrcp.pop %v363
  %v391 = vmul.f32 1.0, %v390
  %v392 = vrcp.pop %v364
  %v393 = vmul.f32 1.0, %v392
  %v394 = vrcp.pop %v365
  %v395 = vmul.f32 1.0, %v394
  %v396 = vrcp.pop %v366
  %v397 = vmul.f32 1.0, %v396
  %v398 = vrcp.pop %v367
  %v399 = vmul.f32 1.0, %v398
  %v400 = vmul.f32 %v242, %v369
  %v401 = vmul.f32 %v245, %v371
  %v402 = vmul.f32 %v250, %v373
  %v403 = vmul.f32 %v253, %v375
  %v404 = vmul.f32 %v258, %v377
  %v405 = vmul.f32 %v261, %v379
  %v406 = vmul.f32 %v266, %v381
  %v407 = vmul.f32 %v269, %v383
  %v408 = vmul.f32 %v274, %v385
  %v409 = vmul.f32 %v277, %v387
  %v410 = vmul.f32 %v282, %v389
  %v411 = vmul.f32 %v285, %v391
  %v412 = vmul.f32 %v290, %v393
  %v413 = vmul.f32 %v293, %v395
  %v414 = vmul.f32 %v298, %v397
  %v415 = vmul.f32 %v301, %v399
  %v416 = vpack.c.bf16 %v401, %v400
  %v417 = vpack.c.bf16 %v403, %v402
  %v418 = vpack.c.bf16 %v405, %v404
  %v419 = vpack.c.bf16 %v407, %v406
  %v420 = vpack.c.bf16 %v409, %v408
  %v421 = vpack.c.bf16 %v411, %v410
  %v422 = vpack.c.bf16 %v413, %v412
  %v423 = vpack.c.bf16 %v415, %v414
  %v432 = vunpack.c.l.b16 %v416
  %v433 = vunpack.c.h.b16 %v416
  %v434 = vunpack.c.l.b16 %v417
  %v435 = vunpack.c.h.b16 %v417
  %v436 = vunpack.c.l.b16 %v418
  %v437 = vunpack.c.h.b16 %v418
  %v438 = vunpack.c.l.b16 %v419
  %v439 = vunpack.c.h.b16 %v419
  %v440 = vunpack.c.l.b16 %v420
  %v441 = vunpack.c.h.b16 %v420
  %v442 = vunpack.c.l.b16 %v421
  %v443 = vunpack.c.h.b16 %v421
  %v444 = vunpack.c.l.b16 %v422
  %v445 = vunpack.c.h.b16 %v422
  %v446 = vunpack.c.l.b16 %v423
  %v447 = vunpack.c.h.b16 %v423
  %v448 = vpack.c.b16 %v432, %v432
  %v449 = vpack.c.b16 %v433, %v433
  %v450 = vpack.c.b16 %v434, %v434
  %v451 = vpack.c.b16 %v435, %v435
  %v452 = vpack.c.b16 %v436, %v436
  %v453 = vpack.c.b16 %v437, %v437
  %v454 = vpack.c.b16 %v438, %v438
  %v455 = vpack.c.b16 %v439, %v439
  %v456 = vpack.c.b16 %v440, %v440
  %v457 = vpack.c.b16 %v441, %v441
  %v458 = vpack.c.b16 %v442, %v442
  %v459 = vpack.c.b16 %v443, %v443
  %v460 = vpack.c.b16 %v444, %v444
  %v461 = vpack.c.b16 %v445, %v445
  %v462 = vpack.c.b16 %v446, %v446
  %v463 = vpack.c.b16 %v447, %v447
  %vm480 = vcmask 125952
  %481 = vst.msk [vmem:[%s3] sm:$0xf] %vm480, %v448
  %482 = vst.msk [vmem:[%s3 + $0x4] sm:$0xf] %vm480, %v449
  %483 = vst.msk [vmem:[%s3 + $0x8] sm:$0xf] %vm480, %v450
  %484 = vst.msk [vmem:[%s3 + $0xc] sm:$0xf] %vm480, %v451
  %485 = vst.msk [vmem:[%s3 + $0x10] sm:$0xf] %vm480, %v452
  %486 = vst.msk [vmem:[%s3 + $0x14] sm:$0xf] %vm480, %v453
  %487 = vst.msk [vmem:[%s3 + $0x18] sm:$0xf] %vm480, %v454
  %488 = vst.msk [vmem:[%s3 + $0x1c] sm:$0xf] %vm480, %v455
  %489 = vst.msk [vmem:[%s3 + $0x20] sm:$0xf] %vm480, %v456
  %490 = vst.msk [vmem:[%s3 + $0x24] sm:$0xf] %vm480, %v457
  %491 = vst.msk [vmem:[%s3 + $0x28] sm:$0xf] %vm480, %v458
  %492 = vst.msk [vmem:[%s3 + $0x2c] sm:$0xf] %vm480, %v459
  %493 = vst.msk [vmem:[%s3 + $0x30] sm:$0xf] %vm480, %v460
  %494 = vst.msk [vmem:[%s3 + $0x34] sm:$0xf] %vm480, %v461
  %495 = vst.msk [vmem:[%s3 + $0x38] sm:$0xf] %vm480, %v462
  %496 = vst.msk [vmem:[%s3 + $0x3c] sm:$0xf] %vm480, %v463
  // Predicated region
  $region14: #{yolov8_head_forward.39} parent=0 // pred_check
    _
  $region15: #{yolov8_head_forward.39} parent=0 // pred_check_branch
    %498 = sbr.rel (0) target = $region17
  $region16: #{yolov8_head_forward.39} parent=0 // pred_region
    _
  $region17: #{yolov8_head_forward.39} parent=0 // pred_fallthru
    _
  // Predicated region
  $region18: #{yolov8_head_forward.39} parent=0 // pred_check
    _
  $region19: #{yolov8_head_forward.39} parent=0 // pred_check_branch
    %500 = sbr.rel (0) target = $region21
  $region20: #{yolov8_head_forward.39} parent=0 // pred_region
    _
  $region21: #{yolov8_head_forward.39} parent=0 // pred_fallthru
    _

// kernel: yolov8_head_forward.41
$region0: #{yolov8_head_forward.41}
  #allocation0 [shape = 'u32[]', space=smem, size = 0x4, offset = 0x4, fixed_abs, tag = 'smem constant byte address 0x4 - core index']
  #allocation1 [shape = 'u32[144,128]{1,0:T(1,128)}', space=vmem, size = 0x12000, scoped, tag = 'internal scratch']
  %s0 = inlined_call_operand.vmem [shape: bf16[128,32], index: 0, kind: input, shape index: {}]
  %s1 = inlined_call_operand.vmem [shape: bf16[32,32], index: 1, kind: input, shape index: {}]
  %s2 = inlined_call_operand.vmem [shape: f32[1,32], index: 2, kind: input, shape index: {}]
  %s3 = inlined_call_operand.vmem [shape: bf16[128,32], index: 3, kind: output, shape index: {}]
  %s4 = sld [smem:[#allocation0]]
  $region22: #{yolov8_head_forward.41} parent=0
    _
  %s6 = ssub.s32 1, %s4
  %s7 = scalar_select 0, %s6, %s4
  // Predicated region
  $region2: #{yolov8_head_forward.41} parent=0 // pred_check
    _
  $region3: #{yolov8_head_forward.41} parent=0 // pred_check_branch
    %9 = sbr.rel (0) target = $region5
  $region4: #{yolov8_head_forward.41} parent=0 // pred_region
    _
  $region5: #{yolov8_head_forward.41} parent=0 // pred_fallthru
    _
  // Predicated region
  $region6: #{yolov8_head_forward.41} parent=0 // pred_check
    _
  $region7: #{yolov8_head_forward.41} parent=0 // pred_check_branch
    %11 = sbr.rel (0) target = $region9
  $region8: #{yolov8_head_forward.41} parent=0 // pred_region
    _
  $region9: #{yolov8_head_forward.41} parent=0 // pred_fallthru
    _
  // Predicated region
  $region10: #{yolov8_head_forward.41} parent=0 // pred_check
    _
  $region11: #{yolov8_head_forward.41} parent=0 // pred_check_branch
    %13 = sbr.rel (0) target = $region13
  $region12: #{yolov8_head_forward.41} parent=0 // pred_region
    _
  $region13: #{yolov8_head_forward.41} parent=0 // pred_fallthru
    _
  %v15 = vld [vmem:[%s0] sm:$0xf]
  %v16 = vld [vmem:[%s0 + $0x4] sm:$0xf]
  %v17 = vld [vmem:[%s0 + $0x8] sm:$0xf]
  %v18 = vld [vmem:[%s0 + $0xc] sm:$0xf]
  %v19 = vld [vmem:[%s0 + $0x10] sm:$0xf]
  %v20 = vld [vmem:[%s0 + $0x14] sm:$0xf]
  %v21 = vld [vmem:[%s0 + $0x18] sm:$0xf]
  %v22 = vld [vmem:[%s0 + $0x1c] sm:$0xf]
  %v23 = vld [vmem:[%s0 + $0x20] sm:$0xf]
  %v24 = vld [vmem:[%s0 + $0x24] sm:$0xf]
  %v25 = vld [vmem:[%s0 + $0x28] sm:$0xf]
  %v26 = vld [vmem:[%s0 + $0x2c] sm:$0xf]
  %v27 = vld [vmem:[%s0 + $0x30] sm:$0xf]
  %v28 = vld [vmem:[%s0 + $0x34] sm:$0xf]
  %v29 = vld [vmem:[%s0 + $0x38] sm:$0xf]
  %v30 = vld [vmem:[%s0 + $0x3c] sm:$0xf]
  %v31 = vld [vmem:[%s1] sm:$0xf]
  %v32 = vld [vmem:[%s1 + $0x4] sm:$0xf]
  %v33 = vld [vmem:[%s1 + $0x8] sm:$0xf]
  %v34 = vld [vmem:[%s1 + $0xc] sm:$0xf]
  %v35 = vld [vmem:[%s2] sm:$0x1]
  %v37 = vlaneseq
  %v38 = vshrl.u32 %v37, 7
  %v39 = vsub.s32 0, %v38
  %v40 = vrot.slane %v35, %v39
  %v58 = vunpack.c.l.b16 %v15
  %v59 = vunpack.c.l.b16 %v16
  %v60 = vunpack.c.l.b16 %v17
  %v61 = vunpack.c.l.b16 %v18
  %v62 = vunpack.c.l.b16 %v19
  %v63 = vunpack.c.l.b16 %v20
  %v64 = vunpack.c.l.b16 %v21
  %v65 = vunpack.c.l.b16 %v22
  %v66 = vunpack.c.l.b16 %v23
  %v67 = vunpack.c.l.b16 %v24
  %v68 = vunpack.c.l.b16 %v25
  %v69 = vunpack.c.l.b16 %v26
  %v70 = vunpack.c.l.b16 %v27
  %v71 = vunpack.c.l.b16 %v28
  %v72 = vunpack.c.l.b16 %v29
  %v73 = vunpack.c.l.b16 %v30
  %v74 = vpack.c.b16 %v59, %v58
  %v75 = vpack.c.b16 %v61, %v60
  %v76 = vpack.c.b16 %v63, %v62
  %v77 = vpack.c.b16 %v65, %v64
  %v78 = vpack.c.b16 %v67, %v66
  %v79 = vpack.c.b16 %v69, %v68
  %v80 = vpack.c.b16 %v71, %v70
  %v81 = vpack.c.b16 %v73, %v72
  %v86 = vunpack.c.l.b16 %v31
  %v87 = vunpack.c.l.b16 %v32
  %v88 = vunpack.c.l.b16 %v33
  %v89 = vunpack.c.l.b16 %v34
  %v90 = vpack.c.b16 %v87, %v86
  %v91 = vpack.c.b16 %v89, %v88
  %vm94 = vcmask 261120
  %v96 = vsel %vm94, %v74, 0
  %v99 = vsel %vm94, %v75, 0
  %v102 = vsel %vm94, %v76, 0
  %v105 = vsel %vm94, %v77, 0
  %v108 = vsel %vm94, %v78, 0
  %v111 = vsel %vm94, %v79, 0
  %v114 = vsel %vm94, %v80, 0
  %v117 = vsel %vm94, %v81, 0
  %119 = vmatprep.subr.bf16.mxu0 0
  %120 = vmatpush1.bf16.msra.mxu0 0
  %121 = vmatprep.subr.bf16.mxu0 0
  %122 = vmatpush1.bf16.msra.mxu0 0
  %123 = vmatprep.subr.bf16.mxu0 0
  %124 = vmatpush1.bf16.msra.mxu0 0
  %125 = vmatprep.subr.bf16.mxu0 0
  %126 = vmatpush1.bf16.msra.mxu0 0
  %127 = vmatprep.subr.bf16.mxu0 0
  %128 = vmatpush1.bf16.msra.mxu0 0
  %129 = vmatprep.subr.bf16.mxu0 0
  %130 = vmatpush1.bf16.msra.mxu0 0
  %131 = vmatprep.subr.bf16.mxu0 0
  %132 = vmatpush1.bf16.msra.mxu0 %v91
  %133 = vmatprep.subr.bf16.mxu0 0
  %134 = vmatpush1.bf16.msra.mxu0 %v90
  %135 = vmatprep.subr.bf16.mxu0 0
  %136 = vmatpush2.bf16.msra.mxu0 0
  %137 = vmatprep.subr.bf16.mxu0 0
  %138 = vmatpush2.bf16.msra.mxu0 0
  %139 = vmatprep.subr.bf16.mxu0 0
  %140 = vmatpush2.bf16.msra.mxu0 0
  %141 = vmatprep.subr.bf16.mxu0 0
  %142 = vmatpush2.bf16.msra.mxu0 0
  %143 = vmatprep.subr.bf16.mxu0 0
  %144 = vmatpush2.bf16.msra.mxu0 0
  %145 = vmatprep.subr.bf16.mxu0 0
  %146 = vmatpush2.bf16.msra.mxu0 0
  %147 = vmatprep.subr.bf16.mxu0 0
  %148 = vmatpush2.bf16.msra.mxu0 0
  %149 = vmatprep.subr.bf16.mxu0 0
  %150 = vmatpush2.bf16.msra.mxu0 0
  %151 = vmatprep.mubr.bf16.mxu0 0
  %152 = vmatmul.mubr.bf16.gmra.mxu0 %v96
  %v153 = vpop.f32.mrf.mxu0
  %v154 = vadd.f32 %v40, %v153
  %v155 = vpop.f32.mrf.mxu0
  %v156 = vpop.f32.mrf.mxu0
  %v157 = vadd.f32 %v40, %v156
  %v158 = vpop.f32.mrf.mxu0
  %159 = vmatprep.mubr.bf16.mxu0 0
  %160 = vmatmul.mubr.bf16.gmra.mxu0 %v99
  %v161 = vpop.f32.mrf.mxu0
  %v162 = vadd.f32 %v40, %v161
  %v163 = vpop.f32.mrf.mxu0
  %v164 = vpop.f32.mrf.mxu0
  %v165 = vadd.f32 %v40, %v164
  %v166 = vpop.f32.mrf.mxu0
  %167 = vmatprep.mubr.bf16.mxu0 0
  %168 = vmatmul.mubr.bf16.gmra.mxu0 %v102
  %v169 = vpop.f32.mrf.mxu0
  %v170 = vadd.f32 %v40, %v169
  %v171 = vpop.f32.mrf.mxu0
  %v172 = vpop.f32.mrf.mxu0
  %v173 = vadd.f32 %v40, %v172
  %v174 = vpop.f32.mrf.mxu0
  %175 = vmatprep.mubr.bf16.mxu0 0
  %176 = vmatmul.mubr.bf16.gmra.mxu0 %v105
  %v177 = vpop.f32.mrf.mxu0
  %v178 = vadd.f32 %v40, %v177
  %v179 = vpop.f32.mrf.mxu0
  %v180 = vpop.f32.mrf.mxu0
  %v181 = vadd.f32 %v40, %v180
  %v182 = vpop.f32.mrf.mxu0
  %183 = vmatprep.mubr.bf16.mxu0 0
  %184 = vmatmul.mubr.bf16.gmra.mxu0 %v108
  %v185 = vpop.f32.mrf.mxu0
  %v186 = vadd.f32 %v40, %v185
  %v187 = vpop.f32.mrf.mxu0
  %v188 = vpop.f32.mrf.mxu0
  %v189 = vadd.f32 %v40, %v188
  %v190 = vpop.f32.mrf.mxu0
  %191 = vmatprep.mubr.bf16.mxu0 0
  %192 = vmatmul.mubr.bf16.gmra.mxu0 %v111
  %v193 = vpop.f32.mrf.mxu0
  %v194 = vadd.f32 %v40, %v193
  %v195 = vpop.f32.mrf.mxu0
  %v196 = vpop.f32.mrf.mxu0
  %v197 = vadd.f32 %v40, %v196
  %v198 = vpop.f32.mrf.mxu0
  %199 = vmatprep.mubr.bf16.mxu0 0
  %200 = vmatmul.mubr.bf16.gmra.mxu0 %v114
  %v201 = vpop.f32.mrf.mxu0
  %v202 = vadd.f32 %v40, %v201
  %v203 = vpop.f32.mrf.mxu0
  %v204 = vpop.f32.mrf.mxu0
  %v205 = vadd.f32 %v40, %v204
  %v206 = vpop.f32.mrf.mxu0
  %207 = vmatprep.mubr.bf16.mxu0 0
  %208 = vmatmul.mubr.bf16.gmra.mxu0 %v117
  %v209 = vpop.f32.mrf.mxu0
  %v210 = vadd.f32 %v40, %v209
  %v211 = vpop.f32.mrf.mxu0
  %v212 = vpop.f32.mrf.mxu0
  %v213 = vadd.f32 %v40, %v212
  %v214 = vpop.f32.mrf.mxu0
  %215 = vdwg.mxu0
  %v216 = vxor.u32 %v154, 2147483648
  %v217 = vxor.u32 %v157, 2147483648
  %v218 = vxor.u32 %v162, 2147483648
  %v219 = vxor.u32 %v165, 2147483648
  %v220 = vxor.u32 %v170, 2147483648
  %v221 = vxor.u32 %v173, 2147483648
  %v222 = vxor.u32 %v178, 2147483648
  %v223 = vxor.u32 %v181, 2147483648
  %v224 = vxor.u32 %v186, 2147483648
  %v225 = vxor.u32 %v189, 2147483648
  %v226 = vxor.u32 %v194, 2147483648
  %v227 = vxor.u32 %v197, 2147483648
  %v228 = vxor.u32 %v202, 2147483648
  %v229 = vxor.u32 %v205, 2147483648
  %v230 = vxor.u32 %v210, 2147483648
  %v231 = vxor.u32 %v213, 2147483648
  %v232 = vmul.f32 %v216, 1.442695
  %v233 = vpow.pop %v232
  %v234 = vmul.f32 %v217, 1.442695
  %v235 = vpow.pop %v234
  %v236 = vmul.f32 %v218, 1.442695
  %v237 = vpow.pop %v236
  %v238 = vmul.f32 %v219, 1.442695
  %v239 = vpow.pop %v238
  %v240 = vmul.f32 %v220, 1.442695
  %v241 = vpow.pop %v240
  %v242 = vmul.f32 %v221, 1.442695
  %v243 = vpow.pop %v242
  %v244 = vmul.f32 %v222, 1.442695
  %v245 = vpow.pop %v244
  %v246 = vmul.f32 %v223, 1.442695
  %v247 = vpow.pop %v246
  %v248 = vmul.f32 %v224, 1.442695
  %v249 = vpow.pop %v248
  %v250 = vmul.f32 %v225, 1.442695
  %v251 = vpow.pop %v250
  %v252 = vmul.f32 %v226, 1.442695
  %v253 = vpow.pop %v252
  %v254 = vmul.f32 %v227, 1.442695
  %v255 = vpow.pop %v254
  %v256 = vmul.f32 %v228, 1.442695
  %v257 = vpow.pop %v256
  %v258 = vmul.f32 %v229, 1.442695
  %v259 = vpow.pop %v258
  %v260 = vmul.f32 %v230, 1.442695
  %v261 = vpow.pop %v260
  %v262 = vmul.f32 %v231, 1.442695
  %v263 = vpow.pop %v262
  %v264 = vadd.f32 %v233, 1.0
  %v265 = vadd.f32 %v235, 1.0
  %v266 = vadd.f32 %v237, 1.0
  %v267 = vadd.f32 %v239, 1.0
  %v268 = vadd.f32 %v241, 1.0
  %v269 = vadd.f32 %v243, 1.0
  %v270 = vadd.f32 %v245, 1.0
  %v271 = vadd.f32 %v247, 1.0
  %v272 = vadd.f32 %v249, 1.0
  %v273 = vadd.f32 %v251, 1.0
  %v274 = vadd.f32 %v253, 1.0
  %v275 = vadd.f32 %v255, 1.0
  %v276 = vadd.f32 %v257, 1.0
  %v277 = vadd.f32 %v259, 1.0
  %v278 = vadd.f32 %v261, 1.0
  %v279 = vadd.f32 %v263, 1.0
  %v280 = vrcp.pop %v264
  %v281 = vmul.f32 1.0, %v280
  %v282 = vrcp.pop %v265
  %v283 = vmul.f32 1.0, %v282
  %v284 = vrcp.pop %v266
  %v285 = vmul.f32 1.0, %v284
  %v286 = vrcp.pop %v267
  %v287 = vmul.f32 1.0, %v286
  %v288 = vrcp.pop %v268
  %v289 = vmul.f32 1.0, %v288
  %v290 = vrcp.pop %v269
  %v291 = vmul.f32 1.0, %v290
  %v292 = vrcp.pop %v270
  %v293 = vmul.f32 1.0, %v292
  %v294 = vrcp.pop %v271
  %v295 = vmul.f32 1.0, %v294
  %v296 = vrcp.pop %v272
  %v297 = vmul.f32 1.0, %v296
  %v298 = vrcp.pop %v273
  %v299 = vmul.f32 1.0, %v298
  %v300 = vrcp.pop %v274
  %v301 = vmul.f32 1.0, %v300
  %v302 = vrcp.pop %v275
  %v303 = vmul.f32 1.0, %v302
  %v304 = vrcp.pop %v276
  %v305 = vmul.f32 1.0, %v304
  %v306 = vrcp.pop %v277
  %v307 = vmul.f32 1.0, %v306
  %v308 = vrcp.pop %v278
  %v309 = vmul.f32 1.0, %v308
  %v310 = vrcp.pop %v279
  %v311 = vmul.f32 1.0, %v310
  %v312 = vmul.f32 %v154, %v281
  %v313 = vmul.f32 %v157, %v283
  %v314 = vmul.f32 %v162, %v285
  %v315 = vmul.f32 %v165, %v287
  %v316 = vmul.f32 %v170, %v289
  %v317 = vmul.f32 %v173, %v291
  %v318 = vmul.f32 %v178, %v293
  %v319 = vmul.f32 %v181, %v295
  %v320 = vmul.f32 %v186, %v297
  %v321 = vmul.f32 %v189, %v299
  %v322 = vmul.f32 %v194, %v301
  %v323 = vmul.f32 %v197, %v303
  %v324 = vmul.f32 %v202, %v305
  %v325 = vmul.f32 %v205, %v307
  %v326 = vmul.f32 %v210, %v309
  %v327 = vmul.f32 %v213, %v311
  %v328 = vpack.c.bf16 %v313, %v312
  %v329 = vpack.c.bf16 %v315, %v314
  %v330 = vpack.c.bf16 %v317, %v316
  %v331 = vpack.c.bf16 %v319, %v318
  %v332 = vpack.c.bf16 %v321, %v320
  %v333 = vpack.c.bf16 %v323, %v322
  %v334 = vpack.c.bf16 %v325, %v324
  %v335 = vpack.c.bf16 %v327, %v326
  %v344 = vunpack.c.l.b16 %v328
  %v345 = vunpack.c.h.b16 %v328
  %v346 = vunpack.c.l.b16 %v329
  %v347 = vunpack.c.h.b16 %v329
  %v348 = vunpack.c.l.b16 %v330
  %v349 = vunpack.c.h.b16 %v330
  %v350 = vunpack.c.l.b16 %v331
  %v351 = vunpack.c.h.b16 %v331
  %v352 = vunpack.c.l.b16 %v332
  %v353 = vunpack.c.h.b16 %v332
  %v354 = vunpack.c.l.b16 %v333
  %v355 = vunpack.c.h.b16 %v333
  %v356 = vunpack.c.l.b16 %v334
  %v357 = vunpack.c.h.b16 %v334
  %v358 = vunpack.c.l.b16 %v335
  %v359 = vunpack.c.h.b16 %v335
  %v360 = vpack.c.b16 %v344, %v344
  %v361 = vpack.c.b16 %v345, %v345
  %v362 = vpack.c.b16 %v346, %v346
  %v363 = vpack.c.b16 %v347, %v347
  %v364 = vpack.c.b16 %v348, %v348
  %v365 = vpack.c.b16 %v349, %v349
  %v366 = vpack.c.b16 %v350, %v350
  %v367 = vpack.c.b16 %v351, %v351
  %v368 = vpack.c.b16 %v352, %v352
  %v369 = vpack.c.b16 %v353, %v353
  %v370 = vpack.c.b16 %v354, %v354
  %v371 = vpack.c.b16 %v355, %v355
  %v372 = vpack.c.b16 %v356, %v356
  %v373 = vpack.c.b16 %v357, %v357
  %v374 = vpack.c.b16 %v358, %v358
  %v375 = vpack.c.b16 %v359, %v359
  %vm392 = vcmask 257024
  %393 = vst.msk [vmem:[%s3] sm:$0xf] %vm392, %v360
  %394 = vst.msk [vmem:[%s3 + $0x4] sm:$0xf] %vm392, %v361
  %395 = vst.msk [vmem:[%s3 + $0x8] sm:$0xf] %vm392, %v362
  %396 = vst.msk [vmem:[%s3 + $0xc] sm:$0xf] %vm392, %v363
  %397 = vst.msk [vmem:[%s3 + $0x10] sm:$0xf] %vm392, %v364
  %398 = vst.msk [vmem:[%s3 + $0x14] sm:$0xf] %vm392, %v365
  %399 = vst.msk [vmem:[%s3 + $0x18] sm:$0xf] %vm392, %v366
  %400 = vst.msk [vmem:[%s3 + $0x1c] sm:$0xf] %vm392, %v367
  %401 = vst.msk [vmem:[%s3 + $0x20] sm:$0xf] %vm392, %v368
  %402 = vst.msk [vmem:[%s3 + $0x24] sm:$0xf] %vm392, %v369
  %403 = vst.msk [vmem:[%s3 + $0x28] sm:$0xf] %vm392, %v370
  %404 = vst.msk [vmem:[%s3 + $0x2c] sm:$0xf] %vm392, %v371
  %405 = vst.msk [vmem:[%s3 + $0x30] sm:$0xf] %vm392, %v372
  %406 = vst.msk [vmem:[%s3 + $0x34] sm:$0xf] %vm392, %v373
  %407 = vst.msk [vmem:[%s3 + $0x38] sm:$0xf] %vm392, %v374
  %408 = vst.msk [vmem:[%s3 + $0x3c] sm:$0xf] %vm392, %v375
  // Predicated region
  $region14: #{yolov8_head_forward.41} parent=0 // pred_check
    _
  $region15: #{yolov8_head_forward.41} parent=0 // pred_check_branch
    %410 = sbr.rel (0) target = $region17
  $region16: #{yolov8_head_forward.41} parent=0 // pred_region
    _
  $region17: #{yolov8_head_forward.41} parent=0 // pred_fallthru
    _
  // Predicated region
  $region18: #{yolov8_head_forward.41} parent=0 // pred_check
    _
  $region19: #{yolov8_head_forward.41} parent=0 // pred_check_branch
    %412 = sbr.rel (0) target = $region21
  $region20: #{yolov8_head_forward.41} parent=0 // pred_region
    _
  $region21: #{yolov8_head_forward.41} parent=0 // pred_fallthru
    _

// kernel: yolov8_head_forward.47
$region0: #{yolov8_head_forward.47}
  #allocation0 [shape = 'u32[]', space=smem, size = 0x4, offset = 0x4, fixed_abs, tag = 'smem constant byte address 0x4 - core index']
  #allocation1 [shape = 'u32[144,128]{1,0:T(1,128)}', space=vmem, size = 0x12000, scoped, tag = 'internal scratch']
  %s0 = inlined_call_operand.vmem [shape: bf16[32,64], index: 0, kind: input, shape index: {}]
  %s1 = inlined_call_operand.vmem [shape: bf16[64,32], index: 1, kind: input, shape index: {}]
  %s2 = inlined_call_operand.vmem [shape: f32[1,32], index: 2, kind: input, shape index: {}]
  %s3 = inlined_call_operand.vmem [shape: bf16[32,32], index: 3, kind: output, shape index: {}]
  %s4 = sld [smem:[#allocation0]]
  $region22: #{yolov8_head_forward.47} parent=0
    _
  %s6 = ssub.s32 1, %s4
  %s7 = scalar_select 0, %s6, %s4
  // Predicated region
  $region2: #{yolov8_head_forward.47} parent=0 // pred_check
    _
  $region3: #{yolov8_head_forward.47} parent=0 // pred_check_branch
    %9 = sbr.rel (0) target = $region5
  $region4: #{yolov8_head_forward.47} parent=0 // pred_region
    _
  $region5: #{yolov8_head_forward.47} parent=0 // pred_fallthru
    _
  // Predicated region
  $region6: #{yolov8_head_forward.47} parent=0 // pred_check
    _
  $region7: #{yolov8_head_forward.47} parent=0 // pred_check_branch
    %11 = sbr.rel (0) target = $region9
  $region8: #{yolov8_head_forward.47} parent=0 // pred_region
    _
  $region9: #{yolov8_head_forward.47} parent=0 // pred_fallthru
    _
  // Predicated region
  $region10: #{yolov8_head_forward.47} parent=0 // pred_check
    _
  $region11: #{yolov8_head_forward.47} parent=0 // pred_check_branch
    %13 = sbr.rel (0) target = $region13
  $region12: #{yolov8_head_forward.47} parent=0 // pred_region
    _
  $region13: #{yolov8_head_forward.47} parent=0 // pred_fallthru
    _
  %v15 = vld [vmem:[%s0] sm:$0xf]
  %v16 = vld [vmem:[%s0 + $0x4] sm:$0xf]
  %v17 = vld [vmem:[%s0 + $0x8] sm:$0xf]
  %v18 = vld [vmem:[%s0 + $0xc] sm:$0xf]
  %v19 = vld [vmem:[%s1] sm:$0xf]
  %v20 = vld [vmem:[%s1 + $0x4] sm:$0xf]
  %v21 = vld [vmem:[%s1 + $0x8] sm:$0xf]
  %v22 = vld [vmem:[%s1 + $0xc] sm:$0xf]
  %v23 = vld [vmem:[%s1 + $0x10] sm:$0xf]
  %v24 = vld [vmem:[%s1 + $0x14] sm:$0xf]
  %v25 = vld [vmem:[%s1 + $0x18] sm:$0xf]
  %v26 = vld [vmem:[%s1 + $0x1c] sm:$0xf]
  %v27 = vld [vmem:[%s2] sm:$0x1]
  %v29 = vlaneseq
  %v30 = vshrl.u32 %v29, 7
  %v31 = vsub.s32 0, %v30
  %v32 = vrot.slane %v27, %v31
  %v38 = vunpack.c.l.b16 %v15
  %v39 = vunpack.c.l.b16 %v16
  %v40 = vunpack.c.l.b16 %v17
  %v41 = vunpack.c.l.b16 %v18
  %v42 = vpack.c.b16 %v39, %v38
  %v43 = vpack.c.b16 %v41, %v40
  %v52 = vunpack.c.l.b16 %v19
  %v53 = vunpack.c.l.b16 %v20
  %v54 = vunpack.c.l.b16 %v21
  %v55 = vunpack.c.l.b16 %v22
  %v56 = vunpack.c.l.b16 %v23
  %v57 = vunpack.c.l.b16 %v24
  %v58 = vunpack.c.l.b16 %v25
  %v59 = vunpack.c.l.b16 %v26
  %v60 = vpack.c.b16 %v53, %v52
  %v61 = vpack.c.b16 %v55, %v54
  %v62 = vpack.c.b16 %v57, %v56
  %v63 = vpack.c.b16 %v59, %v58
  %vm68 = vcmask 523264
  %v70 = vsel %vm68, %v42, 0
  %v73 = vsel %vm68, %v43, 0
  %75 = vmatprep.subr.bf16.mxu0 0
  %76 = vmatpush1.bf16.msra.mxu0 0
  %77 = vmatprep.subr.bf16.mxu0 0
  %78 = vmatpush1.bf16.msra.mxu0 0
  %79 = vmatprep.subr.bf16.mxu0 0
  %80 = vmatpush1.bf16.msra.mxu0 0
  %81 = vmatprep.subr.bf16.mxu0 0
  %82 = vmatpush1.bf16.msra.mxu0 0
  %83 = vmatprep.subr.bf16.mxu0 0
  %84 = vmatpush1.bf16.msra.mxu0 %v63
  %85 = vmatprep.subr.bf16.mxu0 0
  %86 = vmatpush1.bf16.msra.mxu0 %v62
  %87 = vmatprep.subr.bf16.mxu0 0
  %88 = vmatpush1.bf16.msra.mxu0 %v61
  %89 = vmatprep.subr.bf16.mxu0 0
  %90 = vmatpush1.bf16.msra.mxu0 %v60
  %91 = vmatprep.subr.bf16.mxu0 0
  %92 = vmatpush2.bf16.msra.mxu0 0
  %93 = vmatprep.subr.bf16.mxu0 0
  %94 = vmatpush2.bf16.msra.mxu0 0
  %95 = vmatprep.subr.bf16.mxu0 0
  %96 = vmatpush2.bf16.msra.mxu0 0
  %97 = vmatprep.subr.bf16.mxu0 0
  %98 = vmatpush2.bf16.msra.mxu0 0
  %99 = vmatprep.subr.bf16.mxu0 0
  %100 = vmatpush2.bf16.msra.mxu0 0
  %101 = vmatprep.subr.bf16.mxu0 0
  %102 = vmatpush2.bf16.msra.mxu0 0
  %103 = vmatprep.subr.bf16.mxu0 0
  %104 = vmatpush2.bf16.msra.mxu0 0
  %105 = vmatprep.subr.bf16.mxu0 0
  %106 = vmatpush2.bf16.msra.mxu0 0
  %107 = vmatprep.mubr.bf16.mxu0 0
  %108 = vmatmul.mubr.bf16.gmra.mxu0 %v70
  %v109 = vpop.f32.mrf.mxu0
  %v110 = vadd.f32 %v32, %v109
  %v111 = vpop.f32.mrf.mxu0
  %v112 = vpop.f32.mrf.mxu0
  %v113 = vadd.f32 %v32, %v112
  %v114 = vpop.f32.mrf.mxu0
  %115 = vmatprep.mubr.bf16.mxu0 0
  %116 = vmatmul.mubr.bf16.gmra.mxu0 %v73
  %v117 = vpop.f32.mrf.mxu0
  %v118 = vadd.f32 %v32, %v117
  %v119 = vpop.f32.mrf.mxu0
  %v120 = vpop.f32.mrf.mxu0
  %v121 = vadd.f32 %v32, %v120
  %v122 = vpop.f32.mrf.mxu0
  %123 = vdwg.mxu0
  %v124 = vxor.u32 %v110, 2147483648
  %v125 = vxor.u32 %v113, 2147483648
  %v126 = vxor.u32 %v118, 2147483648
  %v127 = vxor.u32 %v121, 2147483648
  %v128 = vmul.f32 %v124, 1.442695
  %v129 = vpow.pop %v128
  %v130 = vmul.f32 %v125, 1.442695
  %v131 = vpow.pop %v130
  %v132 = vmul.f32 %v126, 1.442695
  %v133 = vpow.pop %v132
  %v134 = vmul.f32 %v127, 1.442695
  %v135 = vpow.pop %v134
  %v136 = vadd.f32 %v129, 1.0
  %v137 = vadd.f32 %v131, 1.0
  %v138 = vadd.f32 %v133, 1.0
  %v139 = vadd.f32 %v135, 1.0
  %v140 = vrcp.pop %v136
  %v141 = vmul.f32 1.0, %v140
  %v142 = vrcp.pop %v137
  %v143 = vmul.f32 1.0, %v142
  %v144 = vrcp.pop %v138
  %v145 = vmul.f32 1.0, %v144
  %v146 = vrcp.pop %v139
  %v147 = vmul.f32 1.0, %v146
  %v148 = vmul.f32 %v110, %v141
  %v149 = vmul.f32 %v113, %v143
  %v150 = vmul.f32 %v118, %v145
  %v151 = vmul.f32 %v121, %v147
  %v152 = vpack.c.bf16 %v149, %v148
  %v153 = vpack.c.bf16 %v151, %v150
  %v156 = vunpack.c.l.b16 %v152
  %v157 = vunpack.c.h.b16 %v152
  %v158 = vunpack.c.l.b16 %v153
  %v159 = vunpack.c.h.b16 %v153
  %v160 = vpack.c.b16 %v156, %v156
  %v161 = vpack.c.b16 %v157, %v157
  %v162 = vpack.c.b16 %v158, %v158
  %v163 = vpack.c.b16 %v159, %v159
  %vm168 = vcmask 257024
  %169 = vst.msk [vmem:[%s3] sm:$0xf] %vm168, %v160
  %170 = vst.msk [vmem:[%s3 + $0x4] sm:$0xf] %vm168, %v161
  %171 = vst.msk [vmem:[%s3 + $0x8] sm:$0xf] %vm168, %v162
  %172 = vst.msk [vmem:[%s3 + $0xc] sm:$0xf] %vm168, %v163
  // Predicated region
  $region14: #{yolov8_head_forward.47} parent=0 // pred_check
    _
  $region15: #{yolov8_head_forward.47} parent=0 // pred_check_branch
    %174 = sbr.rel (0) target = $region17
  $region16: #{yolov8_head_forward.47} parent=0 // pred_region
    _
  $region17: #{yolov8_head_forward.47} parent=0 // pred_fallthru
    _
  // Predicated region
  $region18: #{yolov8_head_forward.47} parent=0 // pred_check
    _
  $region19: #{yolov8_head_forward.47} parent=0 // pred_check_branch
    %176 = sbr.rel (0) target = $region21
  $region20: #{yolov8_head_forward.47} parent=0 // pred_region
    _
  $region21: #{yolov8_head_forward.47} parent=0 // pred_fallthru
    _

// kernel: yolov8_head_forward.46
$region0: #{yolov8_head_forward.46}
  #allocation0 [shape = 'u32[]', space=smem, size = 0x4, offset = 0x4, fixed_abs, tag = 'smem constant byte address 0x4 - core index']
  #allocation1 [shape = 'u32[144,128]{1,0:T(1,128)}', space=vmem, size = 0x12000, scoped, tag = 'internal scratch']
  %s0 = inlined_call_operand.vmem [shape: bf16[32,64], index: 0, kind: input, shape index: {}]
  %s1 = inlined_call_operand.vmem [shape: bf16[64,64], index: 1, kind: input, shape index: {}]
  %s2 = inlined_call_operand.vmem [shape: f32[1,64], index: 2, kind: input, shape index: {}]
  %s3 = inlined_call_operand.vmem [shape: bf16[32,64], index: 3, kind: output, shape index: {}]
  %s4 = sld [smem:[#allocation0]]
  $region22: #{yolov8_head_forward.46} parent=0
    _
  %s6 = ssub.s32 1, %s4
  %s7 = scalar_select 0, %s6, %s4
  // Predicated region
  $region2: #{yolov8_head_forward.46} parent=0 // pred_check
    _
  $region3: #{yolov8_head_forward.46} parent=0 // pred_check_branch
    %9 = sbr.rel (0) target = $region5
  $region4: #{yolov8_head_forward.46} parent=0 // pred_region
    _
  $region5: #{yolov8_head_forward.46} parent=0 // pred_fallthru
    _
  // Predicated region
  $region6: #{yolov8_head_forward.46} parent=0 // pred_check
    _
  $region7: #{yolov8_head_forward.46} parent=0 // pred_check_branch
    %11 = sbr.rel (0) target = $region9
  $region8: #{yolov8_head_forward.46} parent=0 // pred_region
    _
  $region9: #{yolov8_head_forward.46} parent=0 // pred_fallthru
    _
  // Predicated region
  $region10: #{yolov8_head_forward.46} parent=0 // pred_check
    _
  $region11: #{yolov8_head_forward.46} parent=0 // pred_check_branch
    %13 = sbr.rel (0) target = $region13
  $region12: #{yolov8_head_forward.46} parent=0 // pred_region
    _
  $region13: #{yolov8_head_forward.46} parent=0 // pred_fallthru
    _
  %v15 = vld [vmem:[%s0] sm:$0xf]
  %v16 = vld [vmem:[%s0 + $0x4] sm:$0xf]
  %v17 = vld [vmem:[%s0 + $0x8] sm:$0xf]
  %v18 = vld [vmem:[%s0 + $0xc] sm:$0xf]
  %v19 = vld [vmem:[%s1] sm:$0xf]
  %v20 = vld [vmem:[%s1 + $0x4] sm:$0xf]
  %v21 = vld [vmem:[%s1 + $0x8] sm:$0xf]
  %v22 = vld [vmem:[%s1 + $0xc] sm:$0xf]
  %v23 = vld [vmem:[%s1 + $0x10] sm:$0xf]
  %v24 = vld [vmem:[%s1 + $0x14] sm:$0xf]
  %v25 = vld [vmem:[%s1 + $0x18] sm:$0xf]
  %v26 = vld [vmem:[%s1 + $0x1c] sm:$0xf]
  %v27 = vld [vmem:[%s2] sm:$0x1]
  %v29 = vlaneseq
  %v30 = vshrl.u32 %v29, 7
  %v31 = vsub.s32 0, %v30
  %v32 = vrot.slane %v27, %v31
  %v38 = vunpack.c.l.b16 %v15
  %v39 = vunpack.c.l.b16 %v16
  %v40 = vunpack.c.l.b16 %v17
  %v41 = vunpack.c.l.b16 %v18
  %v42 = vpack.c.b16 %v39, %v38
  %v43 = vpack.c.b16 %v41, %v40
  %v52 = vunpack.c.l.b16 %v19
  %v53 = vunpack.c.l.b16 %v20
  %v54 = vunpack.c.l.b16 %v21
  %v55 = vunpack.c.l.b16 %v22
  %v56 = vunpack.c.l.b16 %v23
  %v57 = vunpack.c.l.b16 %v24
  %v58 = vunpack.c.l.b16 %v25
  %v59 = vunpack.c.l.b16 %v26
  %v60 = vpack.c.b16 %v53, %v52
  %v61 = vpack.c.b16 %v55, %v54
  %v62 = vpack.c.b16 %v57, %v56
  %v63 = vpack.c.b16 %v59, %v58
  %vm68 = vcmask 523264
  %v70 = vsel %vm68, %v42, 0
  %v73 = vsel %vm68, %v43, 0
  %75 = vmatprep.subr.bf16.mxu0 0
  %76 = vmatpush1.bf16.msra.mxu0 0
  %77 = vmatprep.subr.bf16.mxu0 0
  %78 = vmatpush1.bf16.msra.mxu0 0
  %79 = vmatprep.subr.bf16.mxu0 0
  %80 = vmatpush1.bf16.msra.mxu0 0
  %81 = vmatprep.subr.bf16.mxu0 0
  %82 = vmatpush1.bf16.msra.mxu0 0
  %83 = vmatprep.subr.bf16.mxu0 0
  %84 = vmatpush1.bf16.msra.mxu0 %v63
  %85 = vmatprep.subr.bf16.mxu0 0
  %86 = vmatpush1.bf16.msra.mxu0 %v62
  %87 = vmatprep.subr.bf16.mxu0 0
  %88 = vmatpush1.bf16.msra.mxu0 %v61
  %89 = vmatprep.subr.bf16.mxu0 0
  %90 = vmatpush1.bf16.msra.mxu0 %v60
  %91 = vmatprep.subr.bf16.mxu0 0
  %92 = vmatpush2.bf16.msra.mxu0 0
  %93 = vmatprep.subr.bf16.mxu0 0
  %94 = vmatpush2.bf16.msra.mxu0 0
  %95 = vmatprep.subr.bf16.mxu0 0
  %96 = vmatpush2.bf16.msra.mxu0 0
  %97 = vmatprep.subr.bf16.mxu0 0
  %98 = vmatpush2.bf16.msra.mxu0 0
  %99 = vmatprep.subr.bf16.mxu0 0
  %100 = vmatpush2.bf16.msra.mxu0 0
  %101 = vmatprep.subr.bf16.mxu0 0
  %102 = vmatpush2.bf16.msra.mxu0 0
  %103 = vmatprep.subr.bf16.mxu0 0
  %104 = vmatpush2.bf16.msra.mxu0 0
  %105 = vmatprep.subr.bf16.mxu0 0
  %106 = vmatpush2.bf16.msra.mxu0 0
  %107 = vmatprep.mubr.bf16.mxu0 0
  %108 = vmatmul.mubr.bf16.gmra.mxu0 %v70
  %v109 = vpop.f32.mrf.mxu0
  %v110 = vadd.f32 %v32, %v109
  %v111 = vpop.f32.mrf.mxu0
  %v112 = vpop.f32.mrf.mxu0
  %v113 = vadd.f32 %v32, %v112
  %v114 = vpop.f32.mrf.mxu0
  %115 = vmatprep.mubr.bf16.mxu0 0
  %116 = vmatmul.mubr.bf16.gmra.mxu0 %v73
  %v117 = vpop.f32.mrf.mxu0
  %v118 = vadd.f32 %v32, %v117
  %v119 = vpop.f32.mrf.mxu0
  %v120 = vpop.f32.mrf.mxu0
  %v121 = vadd.f32 %v32, %v120
  %v122 = vpop.f32.mrf.mxu0
  %123 = vdwg.mxu0
  %v124 = vxor.u32 %v110, 2147483648
  %v125 = vxor.u32 %v113, 2147483648
  %v126 = vxor.u32 %v118, 2147483648
  %v127 = vxor.u32 %v121, 2147483648
  %v128 = vmul.f32 %v124, 1.442695
  %v129 = vpow.pop %v128
  %v130 = vmul.f32 %v125, 1.442695
  %v131 = vpow.pop %v130
  %v132 = vmul.f32 %v126, 1.442695
  %v133 = vpow.pop %v132
  %v134 = vmul.f32 %v127, 1.442695
  %v135 = vpow.pop %v134
  %v136 = vadd.f32 %v129, 1.0
  %v137 = vadd.f32 %v131, 1.0
  %v138 = vadd.f32 %v133, 1.0
  %v139 = vadd.f32 %v135, 1.0
  %v140 = vrcp.pop %v136
  %v141 = vmul.f32 1.0, %v140
  %v142 = vrcp.pop %v137
  %v143 = vmul.f32 1.0, %v142
  %v144 = vrcp.pop %v138
  %v145 = vmul.f32 1.0, %v144
  %v146 = vrcp.pop %v139
  %v147 = vmul.f32 1.0, %v146
  %v148 = vmul.f32 %v110, %v141
  %v149 = vmul.f32 %v113, %v143
  %v150 = vmul.f32 %v118, %v145
  %v151 = vmul.f32 %v121, %v147
  %v152 = vpack.c.bf16 %v149, %v148
  %v153 = vpack.c.bf16 %v151, %v150
  %v156 = vunpack.c.l.b16 %v152
  %v157 = vunpack.c.h.b16 %v152
  %v158 = vunpack.c.l.b16 %v153
  %v159 = vunpack.c.h.b16 %v153
  %v160 = vpack.c.b16 %v156, %v156
  %v161 = vpack.c.b16 %v157, %v157
  %v162 = vpack.c.b16 %v158, %v158
  %v163 = vpack.c.b16 %v159, %v159
  %vm168 = vcmask 519168
  %169 = vst.msk [vmem:[%s3] sm:$0xf] %vm168, %v160
  %170 = vst.msk [vmem:[%s3 + $0x4] sm:$0xf] %vm168, %v161
  %171 = vst.msk [vmem:[%s3 + $0x8] sm:$0xf] %vm168, %v162
  %172 = vst.msk [vmem:[%s3 + $0xc] sm:$0xf] %vm168, %v163
  // Predicated region
  $region14: #{yolov8_head_forward.46} parent=0 // pred_check
    _
  $region15: #{yolov8_head_forward.46} parent=0 // pred_check_branch
    %174 = sbr.rel (0) target = $region17
  $region16: #{yolov8_head_forward.46} parent=0 // pred_region
    _
  $region17: #{yolov8_head_forward.46} parent=0 // pred_fallthru
    _
  // Predicated region
  $region18: #{yolov8_head_forward.46} parent=0 // pred_check
    _
  $region19: #{yolov8_head_forward.46} parent=0 // pred_check_branch
    %176 = sbr.rel (0) target = $region21
  $region20: #{yolov8_head_forward.46} parent=0 // pred_region
    _
  $region21: #{yolov8_head_forward.46} parent=0 // pred_fallthru
    _

// kernel: yolov8_head_forward.45
$region0: #{yolov8_head_forward.45}
  #allocation0 [shape = 'u32[]', space=smem, size = 0x4, offset = 0x4, fixed_abs, tag = 'smem constant byte address 0x4 - core index']
  #allocation1 [shape = 'u32[144,128]{1,0:T(1,128)}', space=vmem, size = 0x12000, scoped, tag = 'internal scratch']
  %s0 = inlined_call_operand.vmem [shape: bf16[32,288], index: 0, kind: input, shape index: {}]
  %s1 = inlined_call_operand.vmem [shape: bf16[288,32], index: 1, kind: input, shape index: {}]
  %s2 = inlined_call_operand.vmem [shape: f32[1,32], index: 2, kind: input, shape index: {}]
  %s3 = inlined_call_operand.vmem [shape: bf16[32,32], index: 3, kind: output, shape index: {}]
  %s4 = sld [smem:[#allocation0]]
  $region22: #{yolov8_head_forward.45} parent=0
    _
  %s6 = ssub.s32 1, %s4
  %s7 = scalar_select 0, %s6, %s4
  // Predicated region
  $region2: #{yolov8_head_forward.45} parent=0 // pred_check
    _
  $region3: #{yolov8_head_forward.45} parent=0 // pred_check_branch
    %9 = sbr.rel (0) target = $region5
  $region4: #{yolov8_head_forward.45} parent=0 // pred_region
    _
  $region5: #{yolov8_head_forward.45} parent=0 // pred_fallthru
    _
  // Predicated region
  $region6: #{yolov8_head_forward.45} parent=0 // pred_check
    _
  $region7: #{yolov8_head_forward.45} parent=0 // pred_check_branch
    %11 = sbr.rel (0) target = $region9
  $region8: #{yolov8_head_forward.45} parent=0 // pred_region
    _
  $region9: #{yolov8_head_forward.45} parent=0 // pred_fallthru
    _
  // Predicated region
  $region10: #{yolov8_head_forward.45} parent=0 // pred_check
    _
  $region11: #{yolov8_head_forward.45} parent=0 // pred_check_branch
    %13 = sbr.rel (0) target = $region13
  $region12: #{yolov8_head_forward.45} parent=0 // pred_region
    _
  $region13: #{yolov8_head_forward.45} parent=0 // pred_fallthru
    _
  %v15 = vld [vmem:[%s0] sm:$0xff]
  %v16 = vld [vmem:[%s0 + $0x8] sm:$0xf]
  %v17 = vld [vmem:[%s0 + $0xc] sm:$0xff]
  %v18 = vld [vmem:[%s0 + $0x14] sm:$0xf]
  %v19 = vld [vmem:[%s0 + $0x18] sm:$0xff]
  %v20 = vld [vmem:[%s0 + $0x20] sm:$0xf]
  %v21 = vld [vmem:[%s0 + $0x24] sm:$0xff]
  %v22 = vld [vmem:[%s0 + $0x2c] sm:$0xf]
  %v23 = vld [vmem:[%s1] sm:$0xf]
  %v24 = vld [vmem:[%s1 + $0x4] sm:$0xf]
  %v25 = vld [vmem:[%s1 + $0x8] sm:$0xf]
  %v26 = vld [vmem:[%s1 + $0xc] sm:$0xf]
  %v27 = vld [vmem:[%s1 + $0x10] sm:$0xf]
  %v28 = vld [vmem:[%s1 + $0x14] sm:$0xf]
  %v29 = vld [vmem:[%s1 + $0x18] sm:$0xf]
  %v30 = vld [vmem:[%s1 + $0x1c] sm:$0xf]
  %v31 = vld [vmem:[%s1 + $0x20] sm:$0xf]
  %v32 = vld [vmem:[%s1 + $0x24] sm:$0xf]
  %v33 = vld [vmem:[%s1 + $0x28] sm:$0xf]
  %v34 = vld [vmem:[%s1 + $0x2c] sm:$0xf]
  %v35 = vld [vmem:[%s1 + $0x30] sm:$0xf]
  %v36 = vld [vmem:[%s1 + $0x34] sm:$0xf]
  %v37 = vld [vmem:[%s1 + $0x38] sm:$0xf]
  %v38 = vld [vmem:[%s1 + $0x3c] sm:$0xf]
  %v39 = vld [vmem:[%s1 + $0x40] sm:$0xf]
  %v40 = vld [vmem:[%s1 + $0x44] sm:$0xf]
  %v41 = vld [vmem:[%s1 + $0x48] sm:$0xf]
  %v42 = vld [vmem:[%s1 + $0x4c] sm:$0xf]
  %v43 = vld [vmem:[%s1 + $0x50] sm:$0xf]
  %v44 = vld [vmem:[%s1 + $0x54] sm:$0xf]
  %v45 = vld [vmem:[%s1 + $0x58] sm:$0xf]
  %v46 = vld [vmem:[%s1 + $0x5c] sm:$0xf]
  %v47 = vld [vmem:[%s1 + $0x60] sm:$0xf]
  %v48 = vld [vmem:[%s1 + $0x64] sm:$0xf]
  %v49 = vld [vmem:[%s1 + $0x68] sm:$0xf]
  %v50 = vld [vmem:[%s1 + $0x6c] sm:$0xf]
  %v51 = vld [vmem:[%s1 + $0x70] sm:$0xf]
  %v52 = vld [vmem:[%s1 + $0x74] sm:$0xf]
  %v53 = vld [vmem:[%s1 + $0x78] sm:$0xf]
  %v54 = vld [vmem:[%s1 + $0x7c] sm:$0xf]
  %v55 = vld [vmem:[%s1 + $0x80] sm:$0xf]
  %v56 = vld [vmem:[%s1 + $0x84] sm:$0xf]
  %v57 = vld [vmem:[%s1 + $0x88] sm:$0xf]
  %v58 = vld [vmem:[%s1 + $0x8c] sm:$0xf]
  %v59 = vld [vmem:[%s2] sm:$0x1]
  %v61 = vlaneseq
  %v62 = vshrl.u32 %v61, 7
  %v63 = vsub.s32 0, %v62
  %v64 = vrot.slane %v59, %v63
  %v74 = vunpack.c.l.b16 %v15
  %v75 = vunpack.c.h.b16 %v15
  %v76 = vunpack.c.l.b16 %v16
  %v77 = vunpack.c.l.b16 %v17
  %v78 = vunpack.c.h.b16 %v17
  %v79 = vunpack.c.l.b16 %v18
  %v80 = vunpack.c.l.b16 %v19
  %v81 = vunpack.c.h.b16 %v19
  %v82 = vunpack.c.l.b16 %v20
  %v83 = vunpack.c.l.b16 %v21
  %v84 = vunpack.c.h.b16 %v21
  %v85 = vunpack.c.l.b16 %v22
  %v86 = vpack.c.b16 %v77, %v74
  %v87 = vpack.c.b16 %v78, %v75
  %v88 = vpack.c.b16 %v79, %v76
  %v89 = vpack.c.b16 %v83, %v80
  %v90 = vpack.c.b16 %v84, %v81
  %v91 = vpack.c.b16 %v85, %v82
  %v132 = vunpack.c.l.b16 %v23
  %v133 = vunpack.c.l.b16 %v24
  %v134 = vunpack.c.l.b16 %v25
  %v135 = vunpack.c.l.b16 %v26
  %v136 = vunpack.c.l.b16 %v27
  %v137 = vunpack.c.l.b16 %v28
  %v138 = vunpack.c.l.b16 %v29
  %v139 = vunpack.c.l.b16 %v30
  %v140 = vunpack.c.l.b16 %v31
  %v141 = vunpack.c.l.b16 %v32
  %v142 = vunpack.c.l.b16 %v33
  %v143 = vunpack.c.l.b16 %v34
  %v144 = vunpack.c.l.b16 %v35
  %v145 = vunpack.c.l.b16 %v36
  %v146 = vunpack.c.l.b16 %v37
  %v147 = vunpack.c.l.b16 %v38
  %v148 = vunpack.c.l.b16 %v39
  %v149 = vunpack.c.l.b16 %v40
  %v150 = vunpack.c.l.b16 %v41
  %v151 = vunpack.c.l.b16 %v42
  %v152 = vunpack.c.l.b16 %v43
  %v153 = vunpack.c.l.b16 %v44
  %v154 = vunpack.c.l.b16 %v45
  %v155 = vunpack.c.l.b16 %v46
  %v156 = vunpack.c.l.b16 %v47
  %v157 = vunpack.c.l.b16 %v48
  %v158 = vunpack.c.l.b16 %v49
  %v159 = vunpack.c.l.b16 %v50
  %v160 = vunpack.c.l.b16 %v51
  %v161 = vunpack.c.l.b16 %v52
  %v162 = vunpack.c.l.b16 %v53
  %v163 = vunpack.c.l.b16 %v54
  %v164 = vunpack.c.l.b16 %v55
  %v165 = vunpack.c.l.b16 %v56
  %v166 = vunpack.c.l.b16 %v57
  %v167 = vunpack.c.l.b16 %v58
  %v168 = vpack.c.b16 %v133, %v132
  %v169 = vpack.c.b16 %v135, %v134
  %v170 = vpack.c.b16 %v137, %v136
  %v171 = vpack.c.b16 %v139, %v138
  %v172 = vpack.c.b16 %v141, %v140
  %v173 = vpack.c.b16 %v143, %v142
  %v174 = vpack.c.b16 %v145, %v144
  %v175 = vpack.c.b16 %v147, %v146
  %v176 = vpack.c.b16 %v149, %v148
  %v177 = vpack.c.b16 %v151, %v150
  %v178 = vpack.c.b16 %v153, %v152
  %v179 = vpack.c.b16 %v155, %v154
  %v180 = vpack.c.b16 %v157, %v156
  %v181 = vpack.c.b16 %v159, %v158
  %v182 = vpack.c.b16 %v161, %v160
  %v183 = vpack.c.b16 %v163, %v162
  %v184 = vpack.c.b16 %v165, %v164
  %v185 = vpack.c.b16 %v167, %v166
  %vm204 = vcmask 261120
  %v206 = vsel %vm204, %v88, 0
  %v209 = vsel %vm204, %v91, 0
  %211 = vmatprep.subr.bf16.mxu0 0
  %212 = vmatpush1.bf16.msra.mxu0 %v175
  %213 = vmatprep.subr.bf16.mxu0 0
  %214 = vmatpush1.bf16.msra.mxu0 %v174
  %215 = vmatprep.subr.bf16.mxu0 0
  %216 = vmatpush1.bf16.msra.mxu0 %v173
  %217 = vmatprep.subr.bf16.mxu0 0
  %218 = vmatpush1.bf16.msra.mxu0 %v172
  %219 = vmatprep.subr.bf16.mxu0 0
  %220 = vmatpush1.bf16.msra.mxu0 %v171
  %221 = vmatprep.subr.bf16.mxu0 0
  %222 = vmatpush1.bf16.msra.mxu0 %v170
  %223 = vmatprep.subr.bf16.mxu0 0
  %224 = vmatpush1.bf16.msra.mxu0 %v169
  %225 = vmatprep.subr.bf16.mxu0 0
  %226 = vmatpush1.bf16.msra.mxu0 %v168
  %227 = vmatprep.subr.bf16.mxu0 0
  %228 = vmatpush2.bf16.msra.mxu0 %v183
  %229 = vmatprep.subr.bf16.mxu0 0
  %230 = vmatpush2.bf16.msra.mxu0 %v182
  %231 = vmatprep.subr.bf16.mxu0 0
  %232 = vmatpush2.bf16.msra.mxu0 %v181
  %233 = vmatprep.subr.bf16.mxu0 0
  %234 = vmatpush2.bf16.msra.mxu0 %v180
  %235 = vmatprep.subr.bf16.mxu0 0
  %236 = vmatpush2.bf16.msra.mxu0 %v179
  %237 = vmatprep.subr.bf16.mxu0 0
  %238 = vmatpush2.bf16.msra.mxu0 %v178
  %239 = vmatprep.subr.bf16.mxu0 0
  %240 = vmatpush2.bf16.msra.mxu0 %v177
  %241 = vmatprep.subr.bf16.mxu0 0
  %242 = vmatpush2.bf16.msra.mxu0 %v176
  %243 = vmatprep.mubr.bf16.mxu0 %v87
  %244 = vmatmul.mubr.bf16.gmra.mxu0 %v86
  %v245 = vpop.f32.mrf.mxu0
  %v246 = vadd.f32 %v64, %v245
  %v247 = vpop.f32.mrf.mxu0
  %v248 = vpop.f32.mrf.mxu0
  %v249 = vadd.f32 %v64, %v248
  %v250 = vpop.f32.mrf.mxu0
  %251 = vmatprep.mubr.bf16.mxu0 %v90
  %252 = vmatmul.mubr.bf16.gmra.mxu0 %v89
  %v253 = vpop.f32.mrf.mxu0
  %v254 = vadd.f32 %v64, %v253
  %v255 = vpop.f32.mrf.mxu0
  %v256 = vpop.f32.mrf.mxu0
  %v257 = vadd.f32 %v64, %v256
  %v258 = vpop.f32.mrf.mxu0
  %259 = vdwg.mxu0
  %260 = vmatprep.subr.bf16.mxu0 0
  %261 = vmatpush1.bf16.msra.mxu0 0
  %262 = vmatprep.subr.bf16.mxu0 0
  %263 = vmatpush1.bf16.msra.mxu0 0
  %264 = vmatprep.subr.bf16.mxu0 0
  %265 = vmatpush1.bf16.msra.mxu0 0
  %266 = vmatprep.subr.bf16.mxu0 0
  %267 = vmatpush1.bf16.msra.mxu0 0
  %268 = vmatprep.subr.bf16.mxu0 0
  %269 = vmatpush1.bf16.msra.mxu0 0
  %270 = vmatprep.subr.bf16.mxu0 0
  %271 = vmatpush1.bf16.msra.mxu0 0
  %272 = vmatprep.subr.bf16.mxu0 0
  %273 = vmatpush1.bf16.msra.mxu0 %v185
  %274 = vmatprep.subr.bf16.mxu0 0
  %275 = vmatpush1.bf16.msra.mxu0 %v184
  %276 = vmatprep.subr.bf16.mxu0 0
  %277 = vmatpush2.bf16.msra.mxu0 0
  %278 = vmatprep.subr.bf16.mxu0 0
  %279 = vmatpush2.bf16.msra.mxu0 0
  %280 = vmatprep.subr.bf16.mxu0 0
  %281 = vmatpush2.bf16.msra.mxu0 0
  %282 = vmatprep.subr.bf16.mxu0 0
  %283 = vmatpush2.bf16.msra.mxu0 0
  %284 = vmatprep.subr.bf16.mxu0 0
  %285 = vmatpush2.bf16.msra.mxu0 0
  %286 = vmatprep.subr.bf16.mxu0 0
  %287 = vmatpush2.bf16.msra.mxu0 0
  %288 = vmatprep.subr.bf16.mxu0 0
  %289 = vmatpush2.bf16.msra.mxu0 0
  %290 = vmatprep.subr.bf16.mxu0 0
  %291 = vmatpush2.bf16.msra.mxu0 0
  %292 = vmatprep.mubr.bf16.mxu0 0
  %293 = vmatmul.mubr.bf16.gmra.mxu0 %v206
  %v294 = vpop.f32.mrf.mxu0
  %v295 = vadd.f32 %v246, %v294
  %v296 = vpop.f32.mrf.mxu0
  %v297 = vpop.f32.mrf.mxu0
  %v298 = vadd.f32 %v249, %v297
  %v299 = vpop.f32.mrf.mxu0
  %300 = vmatprep.mubr.bf16.mxu0 0
  %301 = vmatmul.mubr.bf16.gmra.mxu0 %v209
  %v302 = vpop.f32.mrf.mxu0
  %v303 = vadd.f32 %v254, %v302
  %v304 = vpop.f32.mrf.mxu0
  %v305 = vpop.f32.mrf.mxu0
  %v306 = vadd.f32 %v257, %v305
  %v307 = vpop.f32.mrf.mxu0
  %308 = vdwg.mxu0
  %v309 = vxor.u32 %v295, 2147483648
  %v310 = vxor.u32 %v298, 2147483648
  %v311 = vxor.u32 %v303, 2147483648
  %v312 = vxor.u32 %v306, 2147483648
  %v313 = vmul.f32 %v309, 1.442695
  %v314 = vpow.pop %v313
  %v315 = vmul.f32 %v310, 1.442695
  %v316 = vpow.pop %v315
  %v317 = vmul.f32 %v311, 1.442695
  %v318 = vpow.pop %v317
  %v319 = vmul.f32 %v312, 1.442695
  %v320 = vpow.pop %v319
  %v321 = vadd.f32 %v314, 1.0
  %v322 = vadd.f32 %v316, 1.0
  %v323 = vadd.f32 %v318, 1.0
  %v324 = vadd.f32 %v320, 1.0
  %v325 = vrcp.pop %v321
  %v326 = vmul.f32 1.0, %v325
  %v327 = vrcp.pop %v322
  %v328 = vmul.f32 1.0, %v327
  %v329 = vrcp.pop %v323
  %v330 = vmul.f32 1.0, %v329
  %v331 = vrcp.pop %v324
  %v332 = vmul.f32 1.0, %v331
  %v333 = vmul.f32 %v295, %v326
  %v334 = vmul.f32 %v298, %v328
  %v335 = vmul.f32 %v303, %v330
  %v336 = vmul.f32 %v306, %v332
  %v337 = vpack.c.bf16 %v334, %v333
  %v338 = vpack.c.bf16 %v336, %v335
  %v341 = vunpack.c.l.b16 %v337
  %v342 = vunpack.c.h.b16 %v337
  %v343 = vunpack.c.l.b16 %v338
  %v344 = vunpack.c.h.b16 %v338
  %v345 = vpack.c.b16 %v341, %v341
  %v346 = vpack.c.b16 %v342, %v342
  %v347 = vpack.c.b16 %v343, %v343
  %v348 = vpack.c.b16 %v344, %v344
  %vm353 = vcmask 257024
  %354 = vst.msk [vmem:[%s3] sm:$0xf] %vm353, %v345
  %355 = vst.msk [vmem:[%s3 + $0x4] sm:$0xf] %vm353, %v346
  %356 = vst.msk [vmem:[%s3 + $0x8] sm:$0xf] %vm353, %v347
  %357 = vst.msk [vmem:[%s3 + $0xc] sm:$0xf] %vm353, %v348
  // Predicated region
  $region14: #{yolov8_head_forward.45} parent=0 // pred_check
    _
  $region15: #{yolov8_head_forward.45} parent=0 // pred_check_branch
    %359 = sbr.rel (0) target = $region17
  $region16: #{yolov8_head_forward.45} parent=0 // pred_region
    _
  $region17: #{yolov8_head_forward.45} parent=0 // pred_fallthru
    _
  // Predicated region
  $region18: #{yolov8_head_forward.45} parent=0 // pred_check
    _
  $region19: #{yolov8_head_forward.45} parent=0 // pred_check_branch
    %361 = sbr.rel (0) target = $region21
  $region20: #{yolov8_head_forward.45} parent=0 // pred_region
    _
  $region21: #{yolov8_head_forward.45} parent=0 // pred_fallthru
    _

// kernel: yolov8_head_forward.48
$region0: #{yolov8_head_forward.48}
  #allocation0 [shape = 'u32[]', space=smem, size = 0x4, offset = 0x4, fixed_abs, tag = 'smem constant byte address 0x4 - core index']
  #allocation1 [shape = 'u32[144,128]{1,0:T(1,128)}', space=vmem, size = 0x12000, scoped, tag = 'internal scratch']
  %s0 = inlined_call_operand.vmem [shape: bf16[32,144], index: 0, kind: input, shape index: {}]
  %s1 = inlined_call_operand.vmem [shape: bf16[144,8], index: 1, kind: input, shape index: {}]
  %s2 = inlined_call_operand.vmem [shape: f32[1,8], index: 2, kind: input, shape index: {}]
  %s3 = inlined_call_operand.vmem [shape: bf16[32,8], index: 3, kind: output, shape index: {}]
  %s4 = sld [smem:[#allocation0]]
  $region22: #{yolov8_head_forward.48} parent=0
    _
  %s6 = ssub.s32 1, %s4
  %s7 = scalar_select 0, %s6, %s4
  // Predicated region
  $region2: #{yolov8_head_forward.48} parent=0 // pred_check
    _
  $region3: #{yolov8_head_forward.48} parent=0 // pred_check_branch
    %9 = sbr.rel (0) target = $region5
  $region4: #{yolov8_head_forward.48} parent=0 // pred_region
    _
  $region5: #{yolov8_head_forward.48} parent=0 // pred_fallthru
    _
  // Predicated region
  $region6: #{yolov8_head_forward.48} parent=0 // pred_check
    _
  $region7: #{yolov8_head_forward.48} parent=0 // pred_check_branch
    %11 = sbr.rel (0) target = $region9
  $region8: #{yolov8_head_forward.48} parent=0 // pred_region
    _
  $region9: #{yolov8_head_forward.48} parent=0 // pred_fallthru
    _
  // Predicated region
  $region10: #{yolov8_head_forward.48} parent=0 // pred_check
    _
  $region11: #{yolov8_head_forward.48} parent=0 // pred_check_branch
    %13 = sbr.rel (0) target = $region13
  $region12: #{yolov8_head_forward.48} parent=0 // pred_region
    _
  $region13: #{yolov8_head_forward.48} parent=0 // pred_fallthru
    _
  %v15 = vld [vmem:[%s0] sm:$0xff]
  %v16 = vld [vmem:[%s0 + $0x8] sm:$0xff]
  %v17 = vld [vmem:[%s0 + $0x10] sm:$0xff]
  %v18 = vld [vmem:[%s0 + $0x18] sm:$0xff]
  %v19 = vld [vmem:[%s1] sm:$0xf]
  %v20 = vld [vmem:[%s1 + $0x4] sm:$0xf]
  %v21 = vld [vmem:[%s1 + $0x8] sm:$0xf]
  %v22 = vld [vmem:[%s1 + $0xc] sm:$0xf]
  %v23 = vld [vmem:[%s1 + $0x10] sm:$0xf]
  %v24 = vld [vmem:[%s1 + $0x14] sm:$0xf]
  %v25 = vld [vmem:[%s1 + $0x18] sm:$0xf]
  %v26 = vld [vmem:[%s1 + $0x1c] sm:$0xf]
  %v27 = vld [vmem:[%s1 + $0x20] sm:$0xf]
  %v28 = vld [vmem:[%s1 + $0x24] sm:$0xf]
  %v29 = vld [vmem:[%s1 + $0x28] sm:$0xf]
  %v30 = vld [vmem:[%s1 + $0x2c] sm:$0xf]
  %v31 = vld [vmem:[%s1 + $0x30] sm:$0xf]
  %v32 = vld [vmem:[%s1 + $0x34] sm:$0xf]
  %v33 = vld [vmem:[%s1 + $0x38] sm:$0xf]
  %v34 = vld [vmem:[%s1 + $0x3c] sm:$0xf]
  %v35 = vld [vmem:[%s1 + $0x40] sm:$0xf]
  %v36 = vld [vmem:[%s1 + $0x44] sm:$0xf]
  %v37 = vld [vmem:[%s2] sm:$0x1]
  %v39 = vlaneseq
  %v40 = vshrl.u32 %v39, 7
  %v41 = vsub.s32 0, %v40
  %v42 = vrot.slane %v37, %v41
  %v48 = vunpack.c.l.b16 %v15
  %v49 = vunpack.c.h.b16 %v15
  %v50 = vunpack.c.l.b16 %v16
  %v51 = vunpack.c.h.b16 %v16
  %v52 = vunpack.c.l.b16 %v17
  %v53 = vunpack.c.h.b16 %v17
  %v54 = vunpack.c.l.b16 %v18
  %v55 = vunpack.c.h.b16 %v18
  %v56 = vpack.c.b16 %v50, %v48
  %v57 = vpack.c.b16 %v51, %v49
  %v58 = vpack.c.b16 %v54, %v52
  %v59 = vpack.c.b16 %v55, %v53
  %v80 = vunpack.c.l.b16 %v19
  %v81 = vunpack.c.l.b16 %v20
  %v82 = vunpack.c.l.b16 %v21
  %v83 = vunpack.c.l.b16 %v22
  %v84 = vunpack.c.l.b16 %v23
  %v85 = vunpack.c.l.b16 %v24
  %v86 = vunpack.c.l.b16 %v25
  %v87 = vunpack.c.l.b16 %v26
  %v88 = vunpack.c.l.b16 %v27
  %v89 = vunpack.c.l.b16 %v28
  %v90 = vunpack.c.l.b16 %v29
  %v91 = vunpack.c.l.b16 %v30
  %v92 = vunpack.c.l.b16 %v31
  %v93 = vunpack.c.l.b16 %v32
  %v94 = vunpack.c.l.b16 %v33
  %v95 = vunpack.c.l.b16 %v34
  %v96 = vunpack.c.l.b16 %v35
  %v97 = vunpack.c.l.b16 %v36
  %v98 = vpack.c.b16 %v81, %v80
  %v99 = vpack.c.b16 %v83, %v82
  %v100 = vpack.c.b16 %v85, %v84
  %v101 = vpack.c.b16 %v87, %v86
  %v102 = vpack.c.b16 %v89, %v88
  %v103 = vpack.c.b16 %v91, %v90
  %v104 = vpack.c.b16 %v93, %v92
  %v105 = vpack.c.b16 %v95, %v94
  %v106 = vpack.c.b16 %v97, %v96
  %vm116 = vcmask 130048
  %v118 = vsel %vm116, %v57, 0
  %v121 = vsel %vm116, %v59, 0
  %123 = vmatprep.subr.bf16.mxu0 0
  %124 = vmatpush1.bf16.msra.mxu0 %v105
  %125 = vmatprep.subr.bf16.mxu0 0
  %126 = vmatpush1.bf16.msra.mxu0 %v104
  %127 = vmatprep.subr.bf16.mxu0 0
  %128 = vmatpush1.bf16.msra.mxu0 %v103
  %129 = vmatprep.subr.bf16.mxu0 0
  %130 = vmatpush1.bf16.msra.mxu0 %v102
  %131 = vmatprep.subr.bf16.mxu0 0
  %132 = vmatpush1.bf16.msra.mxu0 %v101
  %133 = vmatprep.subr.bf16.mxu0 0
  %134 = vmatpush1.bf16.msra.mxu0 %v100
  %135 = vmatprep.subr.bf16.mxu0 0
  %136 = vmatpush1.bf16.msra.mxu0 %v99
  %137 = vmatprep.subr.bf16.mxu0 0
  %138 = vmatpush1.bf16.msra.mxu0 %v98
  %139 = vmatprep.subr.bf16.mxu0 0
  %140 = vmatpush2.bf16.msra.mxu0 0
  %141 = vmatprep.subr.bf16.mxu0 0
  %142 = vmatpush2.bf16.msra.mxu0 0
  %143 = vmatprep.subr.bf16.mxu0 0
  %144 = vmatpush2.bf16.msra.mxu0 0
  %145 = vmatprep.subr.bf16.mxu0 0
  %146 = vmatpush2.bf16.msra.mxu0 0
  %147 = vmatprep.subr.bf16.mxu0 0
  %148 = vmatpush2.bf16.msra.mxu0 0
  %149 = vmatprep.subr.bf16.mxu0 0
  %150 = vmatpush2.bf16.msra.mxu0 0
  %151 = vmatprep.subr.bf16.mxu0 0
  %152 = vmatpush2.bf16.msra.mxu0 0
  %153 = vmatprep.subr.bf16.mxu0 0
  %154 = vmatpush2.bf16.msra.mxu0 %v106
  %155 = vmatprep.mubr.bf16.mxu0 %v118
  %156 = vmatmul.mubr.bf16.gmra.mxu0 %v56
  %v157 = vpop.f32.mrf.mxu0
  %v158 = vadd.f32 %v42, %v157
  %v159 = vpop.f32.mrf.mxu0
  %v160 = vpop.f32.mrf.mxu0
  %v161 = vadd.f32 %v42, %v160
  %v162 = vpop.f32.mrf.mxu0
  %163 = vmatprep.mubr.bf16.mxu0 %v121
  %164 = vmatmul.mubr.bf16.gmra.mxu0 %v58
  %v165 = vpop.f32.mrf.mxu0
  %v166 = vadd.f32 %v42, %v165
  %v167 = vpop.f32.mrf.mxu0
  %v168 = vpop.f32.mrf.mxu0
  %v169 = vadd.f32 %v42, %v168
  %v170 = vpop.f32.mrf.mxu0
  %171 = vdwg.mxu0
  %v172 = vxor.u32 %v158, 2147483648
  %v173 = vxor.u32 %v161, 2147483648
  %v174 = vxor.u32 %v166, 2147483648
  %v175 = vxor.u32 %v169, 2147483648
  %v176 = vmul.f32 %v172, 1.442695
  %v177 = vpow.pop %v176
  %v178 = vmul.f32 %v173, 1.442695
  %v179 = vpow.pop %v178
  %v180 = vmul.f32 %v174, 1.442695
  %v181 = vpow.pop %v180
  %v182 = vmul.f32 %v175, 1.442695
  %v183 = vpow.pop %v182
  %v184 = vadd.f32 %v177, 1.0
  %v185 = vadd.f32 %v179, 1.0
  %v186 = vadd.f32 %v181, 1.0
  %v187 = vadd.f32 %v183, 1.0
  %v188 = vrcp.pop %v184
  %v189 = vmul.f32 1.0, %v188
  %v190 = vrcp.pop %v185
  %v191 = vmul.f32 1.0, %v190
  %v192 = vrcp.pop %v186
  %v193 = vmul.f32 1.0, %v192
  %v194 = vrcp.pop %v187
  %v195 = vmul.f32 1.0, %v194
  %v196 = vmul.f32 %v158, %v189
  %v197 = vmul.f32 %v161, %v191
  %v198 = vmul.f32 %v166, %v193
  %v199 = vmul.f32 %v169, %v195
  %v200 = vpack.c.bf16 %v197, %v196
  %v201 = vpack.c.bf16 %v199, %v198
  %v204 = vunpack.c.l.b16 %v200
  %v205 = vunpack.c.h.b16 %v200
  %v206 = vunpack.c.l.b16 %v201
  %v207 = vunpack.c.h.b16 %v201
  %v208 = vpack.c.b16 %v204, %v204
  %v209 = vpack.c.b16 %v205, %v205
  %v210 = vpack.c.b16 %v206, %v206
  %v211 = vpack.c.b16 %v207, %v207
  %vm216 = vcmask 60416
  %217 = vst.msk [vmem:[%s3] sm:$0xf] %vm216, %v208
  %218 = vst.msk [vmem:[%s3 + $0x4] sm:$0xf] %vm216, %v209
  %219 = vst.msk [vmem:[%s3 + $0x8] sm:$0xf] %vm216, %v210
  %220 = vst.msk [vmem:[%s3 + $0xc] sm:$0xf] %vm216, %v211
  // Predicated region
  $region14: #{yolov8_head_forward.48} parent=0 // pred_check
    _
  $region15: #{yolov8_head_forward.48} parent=0 // pred_check_branch
    %222 = sbr.rel (0) target = $region17
  $region16: #{yolov8_head_forward.48} parent=0 // pred_region
    _
  $region17: #{yolov8_head_forward.48} parent=0 // pred_fallthru
    _
  // Predicated region
  $region18: #{yolov8_head_forward.48} parent=0 // pred_check
    _
  $region19: #{yolov8_head_forward.48} parent=0 // pred_check_branch
    %224 = sbr.rel (0) target = $region21
  $region20: #{yolov8_head_forward.48} parent=0 // pred_region
    _
  $region21: #{yolov8_head_forward.48} parent=0 // pred_fallthru
    _

// kernel: yolov8_head_forward.49
$region0: #{yolov8_head_forward.49}
  #allocation0 [shape = 'u32[]', space=smem, size = 0x4, offset = 0x4, fixed_abs, tag = 'smem constant byte address 0x4 - core index']
  #allocation1 [shape = 'u32[144,128]{1,0:T(1,128)}', space=vmem, size = 0x12000, scoped, tag = 'internal scratch']
  %s0 = inlined_call_operand.vmem [shape: bf16[32,72], index: 0, kind: input, shape index: {}]
  %s1 = inlined_call_operand.vmem [shape: bf16[72,16], index: 1, kind: input, shape index: {}]
  %s2 = inlined_call_operand.vmem [shape: f32[1,16], index: 2, kind: input, shape index: {}]
  %s3 = inlined_call_operand.vmem [shape: bf16[32,16], index: 3, kind: output, shape index: {}]
  %s4 = sld [smem:[#allocation0]]
  $region22: #{yolov8_head_forward.49} parent=0
    _
  %s6 = ssub.s32 1, %s4
  %s7 = scalar_select 0, %s6, %s4
  // Predicated region
  $region2: #{yolov8_head_forward.49} parent=0 // pred_check
    _
  $region3: #{yolov8_head_forward.49} parent=0 // pred_check_branch
    %9 = sbr.rel (0) target = $region5
  $region4: #{yolov8_head_forward.49} parent=0 // pred_region
    _
  $region5: #{yolov8_head_forward.49} parent=0 // pred_fallthru
    _
  // Predicated region
  $region6: #{yolov8_head_forward.49} parent=0 // pred_check
    _
  $region7: #{yolov8_head_forward.49} parent=0 // pred_check_branch
    %11 = sbr.rel (0) target = $region9
  $region8: #{yolov8_head_forward.49} parent=0 // pred_region
    _
  $region9: #{yolov8_head_forward.49} parent=0 // pred_fallthru
    _
  // Predicated region
  $region10: #{yolov8_head_forward.49} parent=0 // pred_check
    _
  $region11: #{yolov8_head_forward.49} parent=0 // pred_check_branch
    %13 = sbr.rel (0) target = $region13
  $region12: #{yolov8_head_forward.49} parent=0 // pred_region
    _
  $region13: #{yolov8_head_forward.49} parent=0 // pred_fallthru
    _
  %v15 = vld [vmem:[%s0] sm:$0xf]
  %v16 = vld [vmem:[%s0 + $0x4] sm:$0xf]
  %v17 = vld [vmem:[%s0 + $0x8] sm:$0xf]
  %v18 = vld [vmem:[%s0 + $0xc] sm:$0xf]
  %v19 = vld [vmem:[%s1] sm:$0xf]
  %v20 = vld [vmem:[%s1 + $0x4] sm:$0xf]
  %v21 = vld [vmem:[%s1 + $0x8] sm:$0xf]
  %v22 = vld [vmem:[%s1 + $0xc] sm:$0xf]
  %v23 = vld [vmem:[%s1 + $0x10] sm:$0xf]
  %v24 = vld [vmem:[%s1 + $0x14] sm:$0xf]
  %v25 = vld [vmem:[%s1 + $0x18] sm:$0xf]
  %v26 = vld [vmem:[%s1 + $0x1c] sm:$0xf]
  %v27 = vld [vmem:[%s1 + $0x20] sm:$0xf]
  %v28 = vld [vmem:[%s2] sm:$0x1]
  %v30 = vlaneseq
  %v31 = vshrl.u32 %v30, 7
  %v32 = vsub.s32 0, %v31
  %v33 = vrot.slane %v28, %v32
  %v39 = vunpack.c.l.b16 %v15
  %v40 = vunpack.c.l.b16 %v16
  %v41 = vunpack.c.l.b16 %v17
  %v42 = vunpack.c.l.b16 %v18
  %v43 = vpack.c.b16 %v40, %v39
  %v44 = vpack.c.b16 %v42, %v41
  %v54 = vunpack.c.l.b16 %v19
  %v55 = vunpack.c.l.b16 %v20
  %v56 = vunpack.c.l.b16 %v21
  %v57 = vunpack.c.l.b16 %v22
  %v58 = vunpack.c.l.b16 %v23
  %v59 = vunpack.c.l.b16 %v24
  %v60 = vunpack.c.l.b16 %v25
  %v61 = vunpack.c.l.b16 %v26
  %v62 = vunpack.c.l.b16 %v27
  %v63 = vpack.c.b16 %v55, %v54
  %v64 = vpack.c.b16 %v57, %v56
  %v65 = vpack.c.b16 %v59, %v58
  %v66 = vpack.c.b16 %v61, %v60
  %v67 = vpack.c.b16 %v62, %v62
  %vm72 = vcmask 588800
  %v74 = vsel %vm72, %v43, 0
  %v77 = vsel %vm72, %v44, 0
  %vm79 = vcmask 1043456
  %v81 = vsel %vm79, %v67, 0
  %83 = vmatprep.subr.bf16.mxu0 0
  %84 = vmatpush1.bf16.msra.mxu0 0
  %85 = vmatprep.subr.bf16.mxu0 0
  %86 = vmatpush1.bf16.msra.mxu0 0
  %87 = vmatprep.subr.bf16.mxu0 0
  %88 = vmatpush1.bf16.msra.mxu0 0
  %89 = vmatprep.subr.bf16.mxu0 0
  %90 = vmatpush1.bf16.msra.mxu0 %v81
  %91 = vmatprep.subr.bf16.mxu0 0
  %92 = vmatpush1.bf16.msra.mxu0 %v66
  %93 = vmatprep.subr.bf16.mxu0 0
  %94 = vmatpush1.bf16.msra.mxu0 %v65
  %95 = vmatprep.subr.bf16.mxu0 0
  %96 = vmatpush1.bf16.msra.mxu0 %v64
  %97 = vmatprep.subr.bf16.mxu0 0
  %98 = vmatpush1.bf16.msra.mxu0 %v63
  %99 = vmatprep.subr.bf16.mxu0 0
  %100 = vmatpush2.bf16.msra.mxu0 0
  %101 = vmatprep.subr.bf16.mxu0 0
  %102 = vmatpush2.bf16.msra.mxu0 0
  %103 = vmatprep.subr.bf16.mxu0 0
  %104 = vmatpush2.bf16.msra.mxu0 0
  %105 = vmatprep.subr.bf16.mxu0 0
  %106 = vmatpush2.bf16.msra.mxu0 0
  %107 = vmatprep.subr.bf16.mxu0 0
  %108 = vmatpush2.bf16.msra.mxu0 0
  %109 = vmatprep.subr.bf16.mxu0 0
  %110 = vmatpush2.bf16.msra.mxu0 0
  %111 = vmatprep.subr.bf16.mxu0 0
  %112 = vmatpush2.bf16.msra.mxu0 0
  %113 = vmatprep.subr.bf16.mxu0 0
  %114 = vmatpush2.bf16.msra.mxu0 0
  %115 = vmatprep.mubr.bf16.mxu0 0
  %116 = vmatmul.mubr.bf16.gmra.mxu0 %v74
  %v117 = vpop.f32.mrf.mxu0
  %v118 = vadd.f32 %v33, %v117
  %v119 = vpop.f32.mrf.mxu0
  %v120 = vpop.f32.mrf.mxu0
  %v121 = vadd.f32 %v33, %v120
  %v122 = vpop.f32.mrf.mxu0
  %123 = vmatprep.mubr.bf16.mxu0 0
  %124 = vmatmul.mubr.bf16.gmra.mxu0 %v77
  %v125 = vpop.f32.mrf.mxu0
  %v126 = vadd.f32 %v33, %v125
  %v127 = vpop.f32.mrf.mxu0
  %v128 = vpop.f32.mrf.mxu0
  %v129 = vadd.f32 %v33, %v128
  %v130 = vpop.f32.mrf.mxu0
  %131 = vdwg.mxu0
  %v132 = vxor.u32 %v118, 2147483648
  %v133 = vxor.u32 %v121, 2147483648
  %v134 = vxor.u32 %v126, 2147483648
  %v135 = vxor.u32 %v129, 2147483648
  %v136 = vmul.f32 %v132, 1.442695
  %v137 = vpow.pop %v136
  %v138 = vmul.f32 %v133, 1.442695
  %v139 = vpow.pop %v138
  %v140 = vmul.f32 %v134, 1.442695
  %v141 = vpow.pop %v140
  %v142 = vmul.f32 %v135, 1.442695
  %v143 = vpow.pop %v142
  %v144 = vadd.f32 %v137, 1.0
  %v145 = vadd.f32 %v139, 1.0
  %v146 = vadd.f32 %v141, 1.0
  %v147 = vadd.f32 %v143, 1.0
  %v148 = vrcp.pop %v144
  %v149 = vmul.f32 1.0, %v148
  %v150 = vrcp.pop %v145
  %v151 = vmul.f32 1.0, %v150
  %v152 = vrcp.pop %v146
  %v153 = vmul.f32 1.0, %v152
  %v154 = vrcp.pop %v147
  %v155 = vmul.f32 1.0, %v154
  %v156 = vmul.f32 %v118, %v149
  %v157 = vmul.f32 %v121, %v151
  %v158 = vmul.f32 %v126, %v153
  %v159 = vmul.f32 %v129, %v155
  %v160 = vpack.c.bf16 %v157, %v156
  %v161 = vpack.c.bf16 %v159, %v158
  %v164 = vunpack.c.l.b16 %v160
  %v165 = vunpack.c.h.b16 %v160
  %v166 = vunpack.c.l.b16 %v161
  %v167 = vunpack.c.h.b16 %v161
  %v168 = vpack.c.b16 %v164, %v164
  %v169 = vpack.c.b16 %v165, %v165
  %v170 = vpack.c.b16 %v166, %v166
  %v171 = vpack.c.b16 %v167, %v167
  %vm176 = vcmask 125952
  %177 = vst.msk [vmem:[%s3] sm:$0xf] %vm176, %v168
  %178 = vst.msk [vmem:[%s3 + $0x4] sm:$0xf] %vm176, %v169
  %179 = vst.msk [vmem:[%s3 + $0x8] sm:$0xf] %vm176, %v170
  %180 = vst.msk [vmem:[%s3 + $0xc] sm:$0xf] %vm176, %v171
  // Predicated region
  $region14: #{yolov8_head_forward.49} parent=0 // pred_check
    _
  $region15: #{yolov8_head_forward.49} parent=0 // pred_check_branch
    %182 = sbr.rel (0) target = $region17
  $region16: #{yolov8_head_forward.49} parent=0 // pred_region
    _
  $region17: #{yolov8_head_forward.49} parent=0 // pred_fallthru
    _
  // Predicated region
  $region18: #{yolov8_head_forward.49} parent=0 // pred_check
    _
  $region19: #{yolov8_head_forward.49} parent=0 // pred_check_branch
    %184 = sbr.rel (0) target = $region21
  $region20: #{yolov8_head_forward.49} parent=0 // pred_region
    _
  $region21: #{yolov8_head_forward.49} parent=0 // pred_fallthru
    _

// kernel: yolov8_head_forward.50
$region0: #{yolov8_head_forward.50}
  #allocation0 [shape = 'u32[]', space=smem, size = 0x4, offset = 0x4, fixed_abs, tag = 'smem constant byte address 0x4 - core index']
  #allocation1 [shape = 'u32[144,128]{1,0:T(1,128)}', space=vmem, size = 0x12000, scoped, tag = 'internal scratch']
  %s0 = inlined_call_operand.vmem [shape: bf16[32,48], index: 0, kind: input, shape index: {}]
  %s1 = inlined_call_operand.vmem [shape: bf16[48,32], index: 1, kind: input, shape index: {}]
  %s2 = inlined_call_operand.vmem [shape: f32[1,32], index: 2, kind: input, shape index: {}]
  %s3 = inlined_call_operand.vmem [shape: bf16[32,32], index: 3, kind: output, shape index: {}]
  %s4 = sld [smem:[#allocation0]]
  $region22: #{yolov8_head_forward.50} parent=0
    _
  %s6 = ssub.s32 1, %s4
  %s7 = scalar_select 0, %s6, %s4
  // Predicated region
  $region2: #{yolov8_head_forward.50} parent=0 // pred_check
    _
  $region3: #{yolov8_head_forward.50} parent=0 // pred_check_branch
    %9 = sbr.rel (0) target = $region5
  $region4: #{yolov8_head_forward.50} parent=0 // pred_region
    _
  $region5: #{yolov8_head_forward.50} parent=0 // pred_fallthru
    _
  // Predicated region
  $region6: #{yolov8_head_forward.50} parent=0 // pred_check
    _
  $region7: #{yolov8_head_forward.50} parent=0 // pred_check_branch
    %11 = sbr.rel (0) target = $region9
  $region8: #{yolov8_head_forward.50} parent=0 // pred_region
    _
  $region9: #{yolov8_head_forward.50} parent=0 // pred_fallthru
    _
  // Predicated region
  $region10: #{yolov8_head_forward.50} parent=0 // pred_check
    _
  $region11: #{yolov8_head_forward.50} parent=0 // pred_check_branch
    %13 = sbr.rel (0) target = $region13
  $region12: #{yolov8_head_forward.50} parent=0 // pred_region
    _
  $region13: #{yolov8_head_forward.50} parent=0 // pred_fallthru
    _
  %v15 = vld [vmem:[%s0] sm:$0xf]
  %v16 = vld [vmem:[%s0 + $0x4] sm:$0xf]
  %v17 = vld [vmem:[%s0 + $0x8] sm:$0xf]
  %v18 = vld [vmem:[%s0 + $0xc] sm:$0xf]
  %v19 = vld [vmem:[%s1] sm:$0xf]
  %v20 = vld [vmem:[%s1 + $0x4] sm:$0xf]
  %v21 = vld [vmem:[%s1 + $0x8] sm:$0xf]
  %v22 = vld [vmem:[%s1 + $0xc] sm:$0xf]
  %v23 = vld [vmem:[%s1 + $0x10] sm:$0xf]
  %v24 = vld [vmem:[%s1 + $0x14] sm:$0xf]
  %v25 = vld [vmem:[%s2] sm:$0x1]
  %v27 = vlaneseq
  %v28 = vshrl.u32 %v27, 7
  %v29 = vsub.s32 0, %v28
  %v30 = vrot.slane %v25, %v29
  %v36 = vunpack.c.l.b16 %v15
  %v37 = vunpack.c.l.b16 %v16
  %v38 = vunpack.c.l.b16 %v17
  %v39 = vunpack.c.l.b16 %v18
  %v40 = vpack.c.b16 %v37, %v36
  %v41 = vpack.c.b16 %v39, %v38
  %v48 = vunpack.c.l.b16 %v19
  %v49 = vunpack.c.l.b16 %v20
  %v50 = vunpack.c.l.b16 %v21
  %v51 = vunpack.c.l.b16 %v22
  %v52 = vunpack.c.l.b16 %v23
  %v53 = vunpack.c.l.b16 %v24
  %v54 = vpack.c.b16 %v49, %v48
  %v55 = vpack.c.b16 %v51, %v50
  %v56 = vpack.c.b16 %v53, %v52
  %vm60 = vcmask 392192
  %v62 = vsel %vm60, %v40, 0
  %v65 = vsel %vm60, %v41, 0
  %67 = vmatprep.subr.bf16.mxu0 0
  %68 = vmatpush1.bf16.msra.mxu0 0
  %69 = vmatprep.subr.bf16.mxu0 0
  %70 = vmatpush1.bf16.msra.mxu0 0
  %71 = vmatprep.subr.bf16.mxu0 0
  %72 = vmatpush1.bf16.msra.mxu0 0
  %73 = vmatprep.subr.bf16.mxu0 0
  %74 = vmatpush1.bf16.msra.mxu0 0
  %75 = vmatprep.subr.bf16.mxu0 0
  %76 = vmatpush1.bf16.msra.mxu0 0
  %77 = vmatprep.subr.bf16.mxu0 0
  %78 = vmatpush1.bf16.msra.mxu0 %v56
  %79 = vmatprep.subr.bf16.mxu0 0
  %80 = vmatpush1.bf16.msra.mxu0 %v55
  %81 = vmatprep.subr.bf16.mxu0 0
  %82 = vmatpush1.bf16.msra.mxu0 %v54
  %83 = vmatprep.subr.bf16.mxu0 0
  %84 = vmatpush2.bf16.msra.mxu0 0
  %85 = vmatprep.subr.bf16.mxu0 0
  %86 = vmatpush2.bf16.msra.mxu0 0
  %87 = vmatprep.subr.bf16.mxu0 0
  %88 = vmatpush2.bf16.msra.mxu0 0
  %89 = vmatprep.subr.bf16.mxu0 0
  %90 = vmatpush2.bf16.msra.mxu0 0
  %91 = vmatprep.subr.bf16.mxu0 0
  %92 = vmatpush2.bf16.msra.mxu0 0
  %93 = vmatprep.subr.bf16.mxu0 0
  %94 = vmatpush2.bf16.msra.mxu0 0
  %95 = vmatprep.subr.bf16.mxu0 0
  %96 = vmatpush2.bf16.msra.mxu0 0
  %97 = vmatprep.subr.bf16.mxu0 0
  %98 = vmatpush2.bf16.msra.mxu0 0
  %99 = vmatprep.mubr.bf16.mxu0 0
  %100 = vmatmul.mubr.bf16.gmra.mxu0 %v62
  %v101 = vpop.f32.mrf.mxu0
  %v102 = vadd.f32 %v30, %v101
  %v103 = vpop.f32.mrf.mxu0
  %v104 = vpop.f32.mrf.mxu0
  %v105 = vadd.f32 %v30, %v104
  %v106 = vpop.f32.mrf.mxu0
  %107 = vmatprep.mubr.bf16.mxu0 0
  %108 = vmatmul.mubr.bf16.gmra.mxu0 %v65
  %v109 = vpop.f32.mrf.mxu0
  %v110 = vadd.f32 %v30, %v109
  %v111 = vpop.f32.mrf.mxu0
  %v112 = vpop.f32.mrf.mxu0
  %v113 = vadd.f32 %v30, %v112
  %v114 = vpop.f32.mrf.mxu0
  %115 = vdwg.mxu0
  %v116 = vxor.u32 %v102, 2147483648
  %v117 = vxor.u32 %v105, 2147483648
  %v118 = vxor.u32 %v110, 2147483648
  %v119 = vxor.u32 %v113, 2147483648
  %v120 = vmul.f32 %v116, 1.442695
  %v121 = vpow.pop %v120
  %v122 = vmul.f32 %v117, 1.442695
  %v123 = vpow.pop %v122
  %v124 = vmul.f32 %v118, 1.442695
  %v125 = vpow.pop %v124
  %v126 = vmul.f32 %v119, 1.442695
  %v127 = vpow.pop %v126
  %v128 = vadd.f32 %v121, 1.0
  %v129 = vadd.f32 %v123, 1.0
  %v130 = vadd.f32 %v125, 1.0
  %v131 = vadd.f32 %v127, 1.0
  %v132 = vrcp.pop %v128
  %v133 = vmul.f32 1.0, %v132
  %v134 = vrcp.pop %v129
  %v135 = vmul.f32 1.0, %v134
  %v136 = vrcp.pop %v130
  %v137 = vmul.f32 1.0, %v136
  %v138 = vrcp.pop %v131
  %v139 = vmul.f32 1.0, %v138
  %v140 = vmul.f32 %v102, %v133
  %v141 = vmul.f32 %v105, %v135
  %v142 = vmul.f32 %v110, %v137
  %v143 = vmul.f32 %v113, %v139
  %v144 = vpack.c.bf16 %v141, %v140
  %v145 = vpack.c.bf16 %v143, %v142
  %v148 = vunpack.c.l.b16 %v144
  %v149 = vunpack.c.h.b16 %v144
  %v150 = vunpack.c.l.b16 %v145
  %v151 = vunpack.c.h.b16 %v145
  %v152 = vpack.c.b16 %v148, %v148
  %v153 = vpack.c.b16 %v149, %v149
  %v154 = vpack.c.b16 %v150, %v150
  %v155 = vpack.c.b16 %v151, %v151
  %vm160 = vcmask 257024
  %161 = vst.msk [vmem:[%s3] sm:$0xf] %vm160, %v152
  %162 = vst.msk [vmem:[%s3 + $0x4] sm:$0xf] %vm160, %v153
  %163 = vst.msk [vmem:[%s3 + $0x8] sm:$0xf] %vm160, %v154
  %164 = vst.msk [vmem:[%s3 + $0xc] sm:$0xf] %vm160, %v155
  // Predicated region
  $region14: #{yolov8_head_forward.50} parent=0 // pred_check
    _
  $region15: #{yolov8_head_forward.50} parent=0 // pred_check_branch
    %166 = sbr.rel (0) target = $region17
  $region16: #{yolov8_head_forward.50} parent=0 // pred_region
    _
  $region17: #{yolov8_head_forward.50} parent=0 // pred_fallthru
    _
  // Predicated region
  $region18: #{yolov8_head_forward.50} parent=0 // pred_check
    _
  $region19: #{yolov8_head_forward.50} parent=0 // pred_check_branch
    %168 = sbr.rel (0) target = $region21
  $region20: #{yolov8_head_forward.50} parent=0 // pred_region
    _
  $region21: #{yolov8_head_forward.50} parent=0 // pred_fallthru
    _

// kernel: yolov8_head_forward.53
$region0: #{yolov8_head_forward.53}
  #allocation0 [shape = 'u32[]', space=smem, size = 0x4, offset = 0x4, fixed_abs, tag = 'smem constant byte address 0x4 - core index']
  #allocation1 [shape = 'u32[144,128]{1,0:T(1,128)}', space=vmem, size = 0x12000, scoped, tag = 'internal scratch']
  %s0 = inlined_call_operand.vmem [shape: bf16[32,32], index: 0, kind: input, shape index: {}]
  %s1 = inlined_call_operand.vmem [shape: bf16[32,9], index: 1, kind: input, shape index: {}]
  %s2 = inlined_call_operand.vmem [shape: f32[1,9], index: 2, kind: input, shape index: {}]
  %s3 = inlined_call_operand.hbm [shape: f32[32,9], index: 3, kind: output, shape index: {}]
  %s4 = sld [smem:[#allocation0]]
  $region22: #{yolov8_head_forward.53} parent=0
    _
  %s6 = ssub.s32 1, %s4
  %s7 = scalar_select 0, %s6, %s4
  $region1: #{yolov8_head_forward.53} parent=0
    #allocation2 [shape = 'u8[16384]{0}', space=vmem, size = 0x4000, scoped, tag = 'output window, operand 0, single buffered']
    #allocation3 [shape = 's32[1]{0}', space=sflag, size = 0x4, scoped, tag = 'scoped memory for yolov8_head_forward.53']
    %8 = vsyncpa [#allocation3], 0
    // Predicated region
    $region2: #{yolov8_head_forward.53} parent=1 // pred_check
      _
    $region3: #{yolov8_head_forward.53} parent=1 // pred_check_branch
      %10 = sbr.rel (0) target = $region5
    $region4: #{yolov8_head_forward.53} parent=1 // pred_region
      _
    $region5: #{yolov8_head_forward.53} parent=1 // pred_fallthru
      _
    // Predicated region
    $region6: #{yolov8_head_forward.53} parent=1 // pred_check
      _
    $region7: #{yolov8_head_forward.53} parent=1 // pred_check_branch
      %12 = sbr.rel (0) target = $region9
    $region8: #{yolov8_head_forward.53} parent=1 // pred_region
      _
    $region9: #{yolov8_head_forward.53} parent=1 // pred_fallthru
      _
    // Predicated region
    $region10: #{yolov8_head_forward.53} parent=1 // pred_check
      _
    $region11: #{yolov8_head_forward.53} parent=1 // pred_check_branch
      %14 = sbr.rel (0) target = $region13
    $region12: #{yolov8_head_forward.53} parent=1 // pred_region
      _
    $region13: #{yolov8_head_forward.53} parent=1 // pred_fallthru
      _
    %v16 = vld [vmem:[%s0] sm:$0xf]
    %v17 = vld [vmem:[%s0 + $0x4] sm:$0xf]
    %v18 = vld [vmem:[%s0 + $0x8] sm:$0xf]
    %v19 = vld [vmem:[%s0 + $0xc] sm:$0xf]
    %v20 = vld [vmem:[%s1] sm:$0xf]
    %v21 = vld [vmem:[%s1 + $0x4] sm:$0xf]
    %v22 = vld [vmem:[%s1 + $0x8] sm:$0xf]
    %v23 = vld [vmem:[%s1 + $0xc] sm:$0xf]
    %v24 = vld [vmem:[%s2] sm:$0x1]
    %v26 = vlaneseq
    %v27 = vshrl.u32 %v26, 7
    %v28 = vsub.s32 0, %v27
    %v29 = vrot.slane %v24, %v28
    %v35 = vunpack.c.l.b16 %v16
    %v36 = vunpack.c.l.b16 %v17
    %v37 = vunpack.c.l.b16 %v18
    %v38 = vunpack.c.l.b16 %v19
    %v39 = vpack.c.b16 %v36, %v35
    %v40 = vpack.c.b16 %v38, %v37
    %v45 = vunpack.c.l.b16 %v20
    %v46 = vunpack.c.l.b16 %v21
    %v47 = vunpack.c.l.b16 %v22
    %v48 = vunpack.c.l.b16 %v23
    %v49 = vpack.c.b16 %v46, %v45
    %v50 = vpack.c.b16 %v48, %v47
    %vm53 = vcmask 261120
    %v55 = vsel %vm53, %v39, 0
    %v58 = vsel %vm53, %v40, 0
    %60 = vmatprep.subr.bf16.mxu0 0
    %61 = vmatpush1.bf16.msra.mxu0 0
    %62 = vmatprep.subr.bf16.mxu0 0
    %63 = vmatpush1.bf16.msra.mxu0 0
    %64 = vmatprep.subr.bf16.mxu0 0
    %65 = vmatpush1.bf16.msra.mxu0 0
    %66 = vmatprep.subr.bf16.mxu0 0
    %67 = vmatpush1.bf16.msra.mxu0 0
    %68 = vmatprep.subr.bf16.mxu0 0
    %69 = vmatpush1.bf16.msra.mxu0 0
    %70 = vmatprep.subr.bf16.mxu0 0
    %71 = vmatpush1.bf16.msra.mxu0 0
    %72 = vmatprep.subr.bf16.mxu0 0
    %73 = vmatpush1.bf16.msra.mxu0 %v50
    %74 = vmatprep.subr.bf16.mxu0 0
    %75 = vmatpush1.bf16.msra.mxu0 %v49
    %76 = vmatprep.subr.bf16.mxu0 0
    %77 = vmatpush2.bf16.msra.mxu0 0
    %78 = vmatprep.subr.bf16.mxu0 0
    %79 = vmatpush2.bf16.msra.mxu0 0
    %80 = vmatprep.subr.bf16.mxu0 0
    %81 = vmatpush2.bf16.msra.mxu0 0
    %82 = vmatprep.subr.bf16.mxu0 0
    %83 = vmatpush2.bf16.msra.mxu0 0
    %84 = vmatprep.subr.bf16.mxu0 0
    %85 = vmatpush2.bf16.msra.mxu0 0
    %86 = vmatprep.subr.bf16.mxu0 0
    %87 = vmatpush2.bf16.msra.mxu0 0
    %88 = vmatprep.subr.bf16.mxu0 0
    %89 = vmatpush2.bf16.msra.mxu0 0
    %90 = vmatprep.subr.bf16.mxu0 0
    %91 = vmatpush2.bf16.msra.mxu0 0
    %92 = vmatprep.mubr.bf16.mxu0 0
    %93 = vmatmul.mubr.bf16.gmra.mxu0 %v55
    %v94 = vpop.f32.mrf.mxu0
    %v95 = vadd.f32 %v29, %v94
    %v96 = vpop.f32.mrf.mxu0
    %v97 = vpop.f32.mrf.mxu0
    %v98 = vadd.f32 %v29, %v97
    %v99 = vpop.f32.mrf.mxu0
    %100 = vmatprep.mubr.bf16.mxu0 0
    %101 = vmatmul.mubr.bf16.gmra.mxu0 %v58
    %v102 = vpop.f32.mrf.mxu0
    %v103 = vadd.f32 %v29, %v102
    %v104 = vpop.f32.mrf.mxu0
    %v105 = vpop.f32.mrf.mxu0
    %v106 = vadd.f32 %v29, %v105
    %v107 = vpop.f32.mrf.mxu0
    %108 = vdwg.mxu0
    %vm109 = vcmask 72704
    %110 = vst.msk [vmem:[#allocation2] sm:$0xff] %vm109, %v95
    %111 = vst.msk [vmem:[#allocation2 + $0x8] sm:$0xff] %vm109, %v98
    %112 = vst.msk [vmem:[#allocation2 + $0x10] sm:$0xff] %vm109, %v103
    %113 = vst.msk [vmem:[#allocation2 + $0x18] sm:$0xff] %vm109, %v106
    // Predicated region
    $region14: #{yolov8_head_forward.53} parent=1 // pred_check
      _
    $region15: #{yolov8_head_forward.53} parent=1 // pred_check_branch
      %115 = sbr.rel (0) target = $region17
    $region16: #{yolov8_head_forward.53} parent=1 // pred_region
      %s117 = ssub.s32 512, 512
      %118 = vsyncadd [#allocation3], %s117
      %s119 = sshll.u32 [#allocation2], 4
      %s120 = int_to_ptr.vmem [resolvable:$true] %s119
      %125 = dma.vmem_to_hbm [thread:$0]  %s120, 512, %s3, [#allocation3], 128, 128, 8
    $region17: #{yolov8_head_forward.53} parent=1 // pred_fallthru
      _
    // Predicated region
    $region18: #{yolov8_head_forward.53} parent=1 // pred_check
      _
    $region19: #{yolov8_head_forward.53} parent=1 // pred_check_branch
      %127 = sbr.rel (0) target = $region21
    $region20: #{yolov8_head_forward.53} parent=1 // pred_region
      %128 = dma.done [#allocation3], 512
    $region21: #{yolov8_head_forward.53} parent=1 // pred_fallthru
      _
    %129 = vsyncpa [#allocation3], 1

// kernel: yolov8_head_forward.52
$region0: #{yolov8_head_forward.52}
  #allocation0 [shape = 'u32[]', space=smem, size = 0x4, offset = 0x4, fixed_abs, tag = 'smem constant byte address 0x4 - core index']
  #allocation1 [shape = 'u32[144,128]{1,0:T(1,128)}', space=vmem, size = 0x12000, scoped, tag = 'internal scratch']
  %s0 = inlined_call_operand.vmem [shape: bf16[128,32], index: 0, kind: input, shape index: {}]
  %s1 = inlined_call_operand.vmem [shape: bf16[32,9], index: 1, kind: input, shape index: {}]
  %s2 = inlined_call_operand.vmem [shape: f32[1,9], index: 2, kind: input, shape index: {}]
  %s3 = inlined_call_operand.hbm [shape: f32[128,9], index: 3, kind: output, shape index: {}]
  %s4 = sld [smem:[#allocation0]]
  $region22: #{yolov8_head_forward.52} parent=0
    _
  %s6 = ssub.s32 1, %s4
  %s7 = scalar_select 0, %s6, %s4
  $region1: #{yolov8_head_forward.52} parent=0
    #allocation2 [shape = 'u8[65536]{0}', space=vmem, size = 0x10000, scoped, tag = 'output window, operand 0, single buffered']
    #allocation3 [shape = 's32[1]{0}', space=sflag, size = 0x4, scoped, tag = 'scoped memory for yolov8_head_forward.52']
    %8 = vsyncpa [#allocation3], 0
    // Predicated region
    $region2: #{yolov8_head_forward.52} parent=1 // pred_check
      _
    $region3: #{yolov8_head_forward.52} parent=1 // pred_check_branch
      %10 = sbr.rel (0) target = $region5
    $region4: #{yolov8_head_forward.52} parent=1 // pred_region
      _
    $region5: #{yolov8_head_forward.52} parent=1 // pred_fallthru
      _
    // Predicated region
    $region6: #{yolov8_head_forward.52} parent=1 // pred_check
      _
    $region7: #{yolov8_head_forward.52} parent=1 // pred_check_branch
      %12 = sbr.rel (0) target = $region9
    $region8: #{yolov8_head_forward.52} parent=1 // pred_region
      _
    $region9: #{yolov8_head_forward.52} parent=1 // pred_fallthru
      _
    // Predicated region
    $region10: #{yolov8_head_forward.52} parent=1 // pred_check
      _
    $region11: #{yolov8_head_forward.52} parent=1 // pred_check_branch
      %14 = sbr.rel (0) target = $region13
    $region12: #{yolov8_head_forward.52} parent=1 // pred_region
      _
    $region13: #{yolov8_head_forward.52} parent=1 // pred_fallthru
      _
    %v16 = vld [vmem:[%s0] sm:$0xf]
    %v17 = vld [vmem:[%s0 + $0x4] sm:$0xf]
    %v18 = vld [vmem:[%s0 + $0x8] sm:$0xf]
    %v19 = vld [vmem:[%s0 + $0xc] sm:$0xf]
    %v20 = vld [vmem:[%s0 + $0x10] sm:$0xf]
    %v21 = vld [vmem:[%s0 + $0x14] sm:$0xf]
    %v22 = vld [vmem:[%s0 + $0x18] sm:$0xf]
    %v23 = vld [vmem:[%s0 + $0x1c] sm:$0xf]
    %v24 = vld [vmem:[%s0 + $0x20] sm:$0xf]
    %v25 = vld [vmem:[%s0 + $0x24] sm:$0xf]
    %v26 = vld [vmem:[%s0 + $0x28] sm:$0xf]
    %v27 = vld [vmem:[%s0 + $0x2c] sm:$0xf]
    %v28 = vld [vmem:[%s0 + $0x30] sm:$0xf]
    %v29 = vld [vmem:[%s0 + $0x34] sm:$0xf]
    %v30 = vld [vmem:[%s0 + $0x38] sm:$0xf]
    %v31 = vld [vmem:[%s0 + $0x3c] sm:$0xf]
    %v32 = vld [vmem:[%s1] sm:$0xf]
    %v33 = vld [vmem:[%s1 + $0x4] sm:$0xf]
    %v34 = vld [vmem:[%s1 + $0x8] sm:$0xf]
    %v35 = vld [vmem:[%s1 + $0xc] sm:$0xf]
    %v36 = vld [vmem:[%s2] sm:$0x1]
    %v38 = vlaneseq
    %v39 = vshrl.u32 %v38, 7
    %v40 = vsub.s32 0, %v39
    %v41 = vrot.slane %v36, %v40
    %v59 = vunpack.c.l.b16 %v16
    %v60 = vunpack.c.l.b16 %v17
    %v61 = vunpack.c.l.b16 %v18
    %v62 = vunpack.c.l.b16 %v19
    %v63 = vunpack.c.l.b16 %v20
    %v64 = vunpack.c.l.b16 %v21
    %v65 = vunpack.c.l.b16 %v22
    %v66 = vunpack.c.l.b16 %v23
    %v67 = vunpack.c.l.b16 %v24
    %v68 = vunpack.c.l.b16 %v25
    %v69 = vunpack.c.l.b16 %v26
    %v70 = vunpack.c.l.b16 %v27
    %v71 = vunpack.c.l.b16 %v28
    %v72 = vunpack.c.l.b16 %v29
    %v73 = vunpack.c.l.b16 %v30
    %v74 = vunpack.c.l.b16 %v31
    %v75 = vpack.c.b16 %v60, %v59
    %v76 = vpack.c.b16 %v62, %v61
    %v77 = vpack.c.b16 %v64, %v63
    %v78 = vpack.c.b16 %v66, %v65
    %v79 = vpack.c.b16 %v68, %v67
    %v80 = vpack.c.b16 %v70, %v69
    %v81 = vpack.c.b16 %v72, %v71
    %v82 = vpack.c.b16 %v74, %v73
    %v87 = vunpack.c.l.b16 %v32
    %v88 = vunpack.c.l.b16 %v33
    %v89 = vunpack.c.l.b16 %v34
    %v90 = vunpack.c.l.b16 %v35
    %v91 = vpack.c.b16 %v88, %v87
    %v92 = vpack.c.b16 %v90, %v89
    %vm95 = vcmask 261120
    %v97 = vsel %vm95, %v75, 0
    %v100 = vsel %vm95, %v76, 0
    %v103 = vsel %vm95, %v77, 0
    %v106 = vsel %vm95, %v78, 0
    %v109 = vsel %vm95, %v79, 0
    %v112 = vsel %vm95, %v80, 0
    %v115 = vsel %vm95, %v81, 0
    %v118 = vsel %vm95, %v82, 0
    %120 = vmatprep.subr.bf16.mxu0 0
    %121 = vmatpush1.bf16.msra.mxu0 0
    %122 = vmatprep.subr.bf16.mxu0 0
    %123 = vmatpush1.bf16.msra.mxu0 0
    %124 = vmatprep.subr.bf16.mxu0 0
    %125 = vmatpush1.bf16.msra.mxu0 0
    %126 = vmatprep.subr.bf16.mxu0 0
    %127 = vmatpush1.bf16.msra.mxu0 0
    %128 = vmatprep.subr.bf16.mxu0 0
    %129 = vmatpush1.bf16.msra.mxu0 0
    %130 = vmatprep.subr.bf16.mxu0 0
    %131 = vmatpush1.bf16.msra.mxu0 0
    %132 = vmatprep.subr.bf16.mxu0 0
    %133 = vmatpush1.bf16.msra.mxu0 %v92
    %134 = vmatprep.subr.bf16.mxu0 0
    %135 = vmatpush1.bf16.msra.mxu0 %v91
    %136 = vmatprep.subr.bf16.mxu0 0
    %137 = vmatpush2.bf16.msra.mxu0 0
    %138 = vmatprep.subr.bf16.mxu0 0
    %139 = vmatpush2.bf16.msra.mxu0 0
    %140 = vmatprep.subr.bf16.mxu0 0
    %141 = vmatpush2.bf16.msra.mxu0 0
    %142 = vmatprep.subr.bf16.mxu0 0
    %143 = vmatpush2.bf16.msra.mxu0 0
    %144 = vmatprep.subr.bf16.mxu0 0
    %145 = vmatpush2.bf16.msra.mxu0 0
    %146 = vmatprep.subr.bf16.mxu0 0
    %147 = vmatpush2.bf16.msra.mxu0 0
    %148 = vmatprep.subr.bf16.mxu0 0
    %149 = vmatpush2.bf16.msra.mxu0 0
    %150 = vmatprep.subr.bf16.mxu0 0
    %151 = vmatpush2.bf16.msra.mxu0 0
    %152 = vmatprep.mubr.bf16.mxu0 0
    %153 = vmatmul.mubr.bf16.gmra.mxu0 %v97
    %v154 = vpop.f32.mrf.mxu0
    %v155 = vadd.f32 %v41, %v154
    %v156 = vpop.f32.mrf.mxu0
    %v157 = vpop.f32.mrf.mxu0
    %v158 = vadd.f32 %v41, %v157
    %v159 = vpop.f32.mrf.mxu0
    %160 = vmatprep.mubr.bf16.mxu0 0
    %161 = vmatmul.mubr.bf16.gmra.mxu0 %v100
    %v162 = vpop.f32.mrf.mxu0
    %v163 = vadd.f32 %v41, %v162
    %v164 = vpop.f32.mrf.mxu0
    %v165 = vpop.f32.mrf.mxu0
    %v166 = vadd.f32 %v41, %v165
    %v167 = vpop.f32.mrf.mxu0
    %168 = vmatprep.mubr.bf16.mxu0 0
    %169 = vmatmul.mubr.bf16.gmra.mxu0 %v103
    %v170 = vpop.f32.mrf.mxu0
    %v171 = vadd.f32 %v41, %v170
    %v172 = vpop.f32.mrf.mxu0
    %v173 = vpop.f32.mrf.mxu0
    %v174 = vadd.f32 %v41, %v173
    %v175 = vpop.f32.mrf.mxu0
    %176 = vmatprep.mubr.bf16.mxu0 0
    %177 = vmatmul.mubr.bf16.gmra.mxu0 %v106
    %v178 = vpop.f32.mrf.mxu0
    %v179 = vadd.f32 %v41, %v178
    %v180 = vpop.f32.mrf.mxu0
    %v181 = vpop.f32.mrf.mxu0
    %v182 = vadd.f32 %v41, %v181
    %v183 = vpop.f32.mrf.mxu0
    %184 = vmatprep.mubr.bf16.mxu0 0
    %185 = vmatmul.mubr.bf16.gmra.mxu0 %v109
    %v186 = vpop.f32.mrf.mxu0
    %v187 = vadd.f32 %v41, %v186
    %v188 = vpop.f32.mrf.mxu0
    %v189 = vpop.f32.mrf.mxu0
    %v190 = vadd.f32 %v41, %v189
    %v191 = vpop.f32.mrf.mxu0
    %192 = vmatprep.mubr.bf16.mxu0 0
    %193 = vmatmul.mubr.bf16.gmra.mxu0 %v112
    %v194 = vpop.f32.mrf.mxu0
    %v195 = vadd.f32 %v41, %v194
    %v196 = vpop.f32.mrf.mxu0
    %v197 = vpop.f32.mrf.mxu0
    %v198 = vadd.f32 %v41, %v197
    %v199 = vpop.f32.mrf.mxu0
    %200 = vmatprep.mubr.bf16.mxu0 0
    %201 = vmatmul.mubr.bf16.gmra.mxu0 %v115
    %v202 = vpop.f32.mrf.mxu0
    %v203 = vadd.f32 %v41, %v202
    %v204 = vpop.f32.mrf.mxu0
    %v205 = vpop.f32.mrf.mxu0
    %v206 = vadd.f32 %v41, %v205
    %v207 = vpop.f32.mrf.mxu0
    %208 = vmatprep.mubr.bf16.mxu0 0
    %209 = vmatmul.mubr.bf16.gmra.mxu0 %v118
    %v210 = vpop.f32.mrf.mxu0
    %v211 = vadd.f32 %v41, %v210
    %v212 = vpop.f32.mrf.mxu0
    %v213 = vpop.f32.mrf.mxu0
    %v214 = vadd.f32 %v41, %v213
    %v215 = vpop.f32.mrf.mxu0
    %216 = vdwg.mxu0
    %vm217 = vcmask 72704
    %218 = vst.msk [vmem:[#allocation2] sm:$0xff] %vm217, %v155
    %219 = vst.msk [vmem:[#allocation2 + $0x8] sm:$0xff] %vm217, %v158
    %220 = vst.msk [vmem:[#allocation2 + $0x10] sm:$0xff] %vm217, %v163
    %221 = vst.msk [vmem:[#allocation2 + $0x18] sm:$0xff] %vm217, %v166
    %222 = vst.msk [vmem:[#allocation2 + $0x20] sm:$0xff] %vm217, %v171
    %223 = vst.msk [vmem:[#allocation2 + $0x28] sm:$0xff] %vm217, %v174
    %224 = vst.msk [vmem:[#allocation2 + $0x30] sm:$0xff] %vm217, %v179
    %225 = vst.msk [vmem:[#allocation2 + $0x38] sm:$0xff] %vm217, %v182
    %226 = vst.msk [vmem:[#allocation2 + $0x40] sm:$0xff] %vm217, %v187
    %227 = vst.msk [vmem:[#allocation2 + $0x48] sm:$0xff] %vm217, %v190
    %228 = vst.msk [vmem:[#allocation2 + $0x50] sm:$0xff] %vm217, %v195
    %229 = vst.msk [vmem:[#allocation2 + $0x58] sm:$0xff] %vm217, %v198
    %230 = vst.msk [vmem:[#allocation2 + $0x60] sm:$0xff] %vm217, %v203
    %231 = vst.msk [vmem:[#allocation2 + $0x68] sm:$0xff] %vm217, %v206
    %232 = vst.msk [vmem:[#allocation2 + $0x70] sm:$0xff] %vm217, %v211
    %233 = vst.msk [vmem:[#allocation2 + $0x78] sm:$0xff] %vm217, %v214
    // Predicated region
    $region14: #{yolov8_head_forward.52} parent=1 // pred_check
      _
    $region15: #{yolov8_head_forward.52} parent=1 // pred_check_branch
      %235 = sbr.rel (0) target = $region17
    $region16: #{yolov8_head_forward.52} parent=1 // pred_region
      %s237 = ssub.s32 2048, 2048
      %238 = vsyncadd [#allocation3], %s237
      %s239 = sshll.u32 [#allocation2], 4
      %s240 = int_to_ptr.vmem [resolvable:$true] %s239
      %245 = dma.vmem_to_hbm [thread:$0]  %s240, 2048, %s3, [#allocation3], 128, 128, 8
    $region17: #{yolov8_head_forward.52} parent=1 // pred_fallthru
      _
    // Predicated region
    $region18: #{yolov8_head_forward.52} parent=1 // pred_check
      _
    $region19: #{yolov8_head_forward.52} parent=1 // pred_check_branch
      %247 = sbr.rel (0) target = $region21
    $region20: #{yolov8_head_forward.52} parent=1 // pred_region
      %248 = dma.done [#allocation3], 2048
    $region21: #{yolov8_head_forward.52} parent=1 // pred_fallthru
      _
    %249 = vsyncpa [#allocation3], 1

// kernel: yolov8_head_forward.51
$region0: #{yolov8_head_forward.51}
  #allocation0 [shape = 'u32[]', space=smem, size = 0x4, offset = 0x4, fixed_abs, tag = 'smem constant byte address 0x4 - core index']
  #allocation1 [shape = 'u32[144,128]{1,0:T(1,128)}', space=vmem, size = 0x12000, scoped, tag = 'internal scratch']
  %s0 = inlined_call_operand.vmem [shape: bf16[512,16], index: 0, kind: input, shape index: {}]
  %s1 = inlined_call_operand.vmem [shape: bf16[16,9], index: 1, kind: input, shape index: {}]
  %s2 = inlined_call_operand.vmem [shape: f32[1,9], index: 2, kind: input, shape index: {}]
  %s3 = inlined_call_operand.vmem [shape: f32[512,9], index: 3, kind: output, shape index: {}]
  %s4 = sld [smem:[#allocation0]]
  $region45: #{yolov8_head_forward.51} parent=0
    _
  %s6 = ssub.s32 1, %s4
  %s7 = scalar_select 0, %s6, %s4
  loop: start=0, step=1, limit=4
  $region2: #{yolov8_head_forward.51} parent=0 // loop_pre_header
    _
  $region3: #{yolov8_head_forward.51} parent=0 // loop_header
    %s9 = sphi 0, %s13
    %p10 = scmp.ge.s32.totalorder %s9, 4
    %s16 = sphi 0, %s28
    %s17 = sphi 0, %s24
    %s18 = sphi 0, %s16
    %s19 = sphi 0, %s17
    %s20 = sphi 0, %s18
    %s21 = sphi 0, %s19
    %s31 = sphi 0, %s33
    %s34 = sphi 0, %s31
    %s35 = sphi 0, %s34
    %s51 = sphi 0, %s35
    %s57 = sphi 0, %s59
    %s60 = sphi 0, %s57
    %s61 = sphi 0, %s60
    %s77 = sphi 0, %s61
    %s83 = sphi 0, %s85
    %s86 = sphi 0, %s83
    %s87 = sphi 0, %s86
    %s103 = sphi 0, %s87
    %s111 = sphi 0, %s113
    %s114 = sphi 0, %s111
    %s115 = sphi 0, %s114
    %s131 = sphi 0, %s115
  $region4: #{yolov8_head_forward.51} parent=0 // loop_header_branch
    %12 = sbr.rel (%p10) target = $region8
  $region5: #{yolov8_head_forward.51} parent=0 // loop_body
    %s14 = ssub.s32 %s9, 1
    %s15 = ssub.s32 %s9, 2
    %s22 = sadd.s32 1, %s17
    %p23 = scmp.ge.s32.totalorder %s22, 1
    %s24 = scalar_select %p23, 0, %s22
    %s25 = sadd.s32 1, %s16
    %s26 = scalar_select %p23, %s25, %s16
    %p27 = scmp.ge.s32.totalorder %s26, 2
    %s28 = scalar_select %p27, 0, %s26
    %s29 = ssub.s32 %s16, %s28
    %p30 = scmp.eq.s32.totalorder %s29, 0
    %s32 = sadd.s32 %s31, 1
    %s33 = scalar_select %p30, %s31, %s32
    %p36 = pneg %p30
    %p37 = scmp.eq.s32.totalorder %s9, 1
    %p38 = por %p36, %p37
    %p39 = scmp.ne.s32.totalorder %s31, %s34
    %p40 = scmp.eq.s32.totalorder %s9, 0
    %p41 = por %p39, %p40
    %p42 = scmp.ne.s32.totalorder %s31, %s34
    %p43 = scmp.eq.s32.totalorder %s14, 1
    %p44 = por %p42, %p43
    %p45 = scmp.ne.s32.totalorder %s34, %s35
    %p46 = scmp.eq.s32.totalorder %s14, 0
    %p47 = por %p45, %p46
    %p48 = scmp.ne.s32.totalorder %s34, %s35
    %p49 = scmp.eq.s32.totalorder %s15, 1
    %p50 = por %p48, %p49
    %p52 = scmp.ne.s32.totalorder %s35, %s51
    %p53 = scmp.eq.s32.totalorder %s15, 0
    %p54 = por %p52, %p53
    %s55 = ssub.s32 %s17, %s24
    %p56 = scmp.eq.s32.totalorder %s55, 0
    %s58 = sadd.s32 %s57, 1
    %s59 = scalar_select %p56, %s57, %s58
    %p62 = pneg %p56
    %p63 = scmp.eq.s32.totalorder %s9, 1
    %p64 = por %p62, %p63
    %p65 = scmp.ne.s32.totalorder %s57, %s60
    %p66 = scmp.eq.s32.totalorder %s9, 0
    %p67 = por %p65, %p66
    %p68 = scmp.ne.s32.totalorder %s57, %s60
    %p69 = scmp.eq.s32.totalorder %s14, 1
    %p70 = por %p68, %p69
    %p71 = scmp.ne.s32.totalorder %s60, %s61
    %p72 = scmp.eq.s32.totalorder %s14, 0
    %p73 = por %p71, %p72
    %p74 = scmp.ne.s32.totalorder %s60, %s61
    %p75 = scmp.eq.s32.totalorder %s15, 1
    %p76 = por %p74, %p75
    %p78 = scmp.ne.s32.totalorder %s61, %s77
    %p79 = scmp.eq.s32.totalorder %s15, 0
    %p80 = por %p78, %p79
    %s81 = ssub.s32 %s17, %s24
    %p82 = scmp.eq.s32.totalorder %s81, 0
    %s84 = sadd.s32 %s83, 1
    %s85 = scalar_select %p82, %s83, %s84
    %p88 = pneg %p82
    %p89 = scmp.eq.s32.totalorder %s9, 1
    %p90 = por %p88, %p89
    %p91 = scmp.ne.s32.totalorder %s83, %s86
    %p92 = scmp.eq.s32.totalorder %s9, 0
    %p93 = por %p91, %p92
    %p94 = scmp.ne.s32.totalorder %s83, %s86
    %p95 = scmp.eq.s32.totalorder %s14, 1
    %p96 = por %p94, %p95
    %p97 = scmp.ne.s32.totalorder %s86, %s87
    %p98 = scmp.eq.s32.totalorder %s14, 0
    %p99 = por %p97, %p98
    %p100 = scmp.ne.s32.totalorder %s86, %s87
    %p101 = scmp.eq.s32.totalorder %s15, 1
    %p102 = por %p100, %p101
    %p104 = scmp.ne.s32.totalorder %s87, %s103
    %p105 = scmp.eq.s32.totalorder %s15, 0
    %p106 = por %p104, %p105
    %s107 = ssub.s32 %s16, %s28
    %s108 = ssub.s32 %s17, %s24
    %s109 = sor.u32 %s107, %s108
    %p110 = scmp.eq.s32.totalorder %s109, 0
    %s112 = sadd.s32 %s111, 1
    %s113 = scalar_select %p110, %s111, %s112
    %p116 = pneg %p110
    %p117 = scmp.eq.s32.totalorder %s9, 1
    %p118 = por %p116, %p117
    %p119 = scmp.ne.s32.totalorder %s111, %s114
    %p120 = scmp.eq.s32.totalorder %s9, 0
    %p121 = por %p119, %p120
    %p122 = scmp.ne.s32.totalorder %s111, %s114
    %p123 = scmp.eq.s32.totalorder %s14, 1
    %p124 = por %p122, %p123
    %p125 = scmp.ne.s32.totalorder %s114, %s115
    %p126 = scmp.eq.s32.totalorder %s14, 0
    %p127 = por %p125, %p126
    %p128 = scmp.ne.s32.totalorder %s114, %s115
    %p129 = scmp.eq.s32.totalorder %s15, 1
    %p130 = por %p128, %p129
    %p132 = scmp.ne.s32.totalorder %s115, %s131
    %p133 = scmp.eq.s32.totalorder %s15, 0
    %p134 = por %p132, %p133
    %p135 = scmp.le.s32.totalorder 1, %s9
    %p136 = scmp.lt.s32.totalorder %s9, 3
    %p137 = pnand %p135, %p136
    %p138 = pneg %p137
    // Predicated region
    $region9: #{yolov8_head_forward.51} parent=5 // pred_check
      _
    $region10: #{yolov8_head_forward.51} parent=5 // pred_check_branch
      %140 = sbr.rel (%p137) target = $region12
    $region11: #{yolov8_head_forward.51} parent=5 // pred_region
      %s141 = ssub.s32 %s9, 1
      // Predicated region
      $region13: #{yolov8_head_forward.51} parent=11 // pred_check
        %p142 = pneg %p73
      $region14: #{yolov8_head_forward.51} parent=11 // pred_check_branch
        %144 = sbr.rel (%p142) target = $region16
      $region15: #{yolov8_head_forward.51} parent=11 // pred_region
        %p145 = scmp.lt.s32.totalorder %s19, 0
        %s146 = scalar_select %p145, %s19, 0
        %s147 = smul.addr %s146, 4
        %s148 = scalar_lea.vmem %s1, %s147
      $region16: #{yolov8_head_forward.51} parent=11 // pred_fallthru
        _
      // Predicated region
      $region17: #{yolov8_head_forward.51} parent=11 // pred_check
        %p149 = pneg %p99
      $region18: #{yolov8_head_forward.51} parent=11 // pred_check_branch
        %151 = sbr.rel (%p149) target = $region20
      $region19: #{yolov8_head_forward.51} parent=11 // pred_region
        %p152 = scmp.lt.s32.totalorder %s19, 0
        %s153 = scalar_select %p152, %s19, 0
        %s154 = scalar_lea.vmem %s2, %s153
      $region20: #{yolov8_head_forward.51} parent=11 // pred_fallthru
        _
    $region12: #{yolov8_head_forward.51} parent=5 // pred_fallthru
      _
    %p155 = scmp.lt.s32.totalorder %s9, 2
    // Predicated region
    $region21: #{yolov8_head_forward.51} parent=5 // pred_check
      %p156 = pneg %p155
    $region22: #{yolov8_head_forward.51} parent=5 // pred_check_branch
      %158 = sbr.rel (%p156) target = $region24
    $region23: #{yolov8_head_forward.51} parent=5 // pred_region
      // Predicated region
      $region25: #{yolov8_head_forward.51} parent=23 // pred_check
        %p159 = pneg %p41
      $region26: #{yolov8_head_forward.51} parent=23 // pred_check_branch
        %161 = sbr.rel (%p159) target = $region28
      $region27: #{yolov8_head_forward.51} parent=23 // pred_region
        %s162 = smul.u32 32, %s16
        %p163 = scmp.lt.s32.totalorder %s162, 63
        %s164 = scalar_select %p163, %s162, 63
        %s165 = smul.addr %s164, 4
        %s166 = scalar_lea.vmem %s0, %s165
        %s167 = smul.u32 32, %s16
      $region28: #{yolov8_head_forward.51} parent=23 // pred_fallthru
        _
    $region24: #{yolov8_head_forward.51} parent=5 // pred_fallthru
      _
    %p168 = scmp.le.s32.totalorder 1, %s9
    %p169 = scmp.lt.s32.totalorder %s9, 3
    %p170 = pnand %p168, %p169
    %p171 = pneg %p170
    // Predicated region
    $region29: #{yolov8_head_forward.51} parent=5 // pred_check
      _
    $region30: #{yolov8_head_forward.51} parent=5 // pred_check_branch
      %173 = sbr.rel (%p170) target = $region32
    $region31: #{yolov8_head_forward.51} parent=5 // pred_region
      %s174 = ssub.s32 %s9, 1
      %s175 = smul.u32 32, %s18
      %p176 = scmp.lt.s32.totalorder %s175, 63
      %s177 = scalar_select %p176, %s175, 63
      %s178 = smul.addr %s177, 4
      %s179 = scalar_lea.vmem %s0, %s178
      %p180 = pneg %p47
      %p181 = pneg %p44
      %p182 = scmp.lt.s32.totalorder %s19, 0
      %s183 = scalar_select %p182, %s19, 0
      %s184 = smul.addr %s183, 4
      %s185 = scalar_lea.vmem %s1, %s184
      %p186 = pneg %p73
      %p187 = pneg %p70
      %p188 = scmp.lt.s32.totalorder %s19, 0
      %s189 = scalar_select %p188, %s19, 0
      %s190 = scalar_lea.vmem %s2, %s189
      %p191 = pneg %p99
      %p192 = pneg %p96
      %p193 = pneg %p127
      %p194 = pneg %p124
      %s195 = smul.u32 32, %s18
      %p196 = scmp.lt.s32.totalorder %s195, 63
      %s197 = scalar_select %p196, %s195, 63
      %p198 = scmp.lt.s32.totalorder %s19, 0
      %s199 = scalar_select %p198, %s19, 0
      %s200 = sadd.s32 %s199, %s197
      %s201 = smul.addr %s200, 8
      %s202 = scalar_lea.vmem %s3, %s201
      %s203 = smul.u32 32, %s18
      %p204 = scmp.lt.s32.totalorder %s203, 63
      %s205 = scalar_select %p204, %s203, 63
      %s206 = smul.addr %s205, 4
      %s207 = scalar_lea.vmem %s0, %s206
      %s208 = smul.u32 32, %s18
      %p209 = scmp.lt.s32.totalorder %s19, 0
      %s210 = scalar_select %p209, %s19, 0
      %s211 = smul.addr %s210, 4
      %s212 = scalar_lea.vmem %s1, %s211
      %p213 = scmp.lt.s32.totalorder %s19, 0
      %s214 = scalar_select %p213, %s19, 0
      %s215 = scalar_lea.vmem %s2, %s214
      %s216 = smul.u32 32, %s18
      %p217 = scmp.lt.s32.totalorder %s216, 63
      %s218 = scalar_select %p217, %s216, 63
      %p219 = scmp.lt.s32.totalorder %s19, 0
      %s220 = scalar_select %p219, %s19, 0
      %s221 = sadd.s32 %s220, %s218
      %s222 = smul.addr %s221, 8
      %s223 = scalar_lea.vmem %s3, %s222
      %s224 = smul.u32 32, %s18
      %v226 = vld [vmem:[%s207] sm:$0xf]
      %v227 = vld [vmem:[%s207 + $0x4] sm:$0xf]
      %v228 = vld [vmem:[%s207 + $0x8] sm:$0xf]
      %v229 = vld [vmem:[%s207 + $0xc] sm:$0xf]
      %v230 = vld [vmem:[%s207 + $0x10] sm:$0xf]
      %v231 = vld [vmem:[%s207 + $0x14] sm:$0xf]
      %v232 = vld [vmem:[%s207 + $0x18] sm:$0xf]
      %v233 = vld [vmem:[%s207 + $0x1c] sm:$0xf]
      %v234 = vld [vmem:[%s207 + $0x20] sm:$0xf]
      %v235 = vld [vmem:[%s207 + $0x24] sm:$0xf]
      %v236 = vld [vmem:[%s207 + $0x28] sm:$0xf]
      %v237 = vld [vmem:[%s207 + $0x2c] sm:$0xf]
      %v238 = vld [vmem:[%s207 + $0x30] sm:$0xf]
      %v239 = vld [vmem:[%s207 + $0x34] sm:$0xf]
      %v240 = vld [vmem:[%s207 + $0x38] sm:$0xf]
      %v241 = vld [vmem:[%s207 + $0x3c] sm:$0xf]
      %v242 = vld [vmem:[%s207 + $0x40] sm:$0xf]
      %v243 = vld [vmem:[%s207 + $0x44] sm:$0xf]
      %v244 = vld [vmem:[%s207 + $0x48] sm:$0xf]
      %v245 = vld [vmem:[%s207 + $0x4c] sm:$0xf]
      %v246 = vld [vmem:[%s207 + $0x50] sm:$0xf]
      %v247 = vld [vmem:[%s207 + $0x54] sm:$0xf]
      %v248 = vld [vmem:[%s207 + $0x58] sm:$0xf]
      %v249 = vld [vmem:[%s207 + $0x5c] sm:$0xf]
      %v250 = vld [vmem:[%s207 + $0x60] sm:$0xf]
      %v251 = vld [vmem:[%s207 + $0x64] sm:$0xf]
      %v252 = vld [vmem:[%s207 + $0x68] sm:$0xf]
      %v253 = vld [vmem:[%s207 + $0x6c] sm:$0xf]
      %v254 = vld [vmem:[%s207 + $0x70] sm:$0xf]
      %v255 = vld [vmem:[%s207 + $0x74] sm:$0xf]
      %v256 = vld [vmem:[%s207 + $0x78] sm:$0xf]
      %v257 = vld [vmem:[%s207 + $0x7c] sm:$0xf]
      %v258 = vld [vmem:[%s212] sm:$0xf]
      %v259 = vld [vmem:[%s212 + $0x4] sm:$0xf]
      %v260 = vld [vmem:[%s215] sm:$0x1]
      %v262 = vlaneseq
      %v263 = vshrl.u32 %v262, 7
      %v264 = vsub.s32 0, %v263
      %v265 = vrot.slane %v260, %v264
      %v299 = vunpack.c.l.b16 %v226
      %v300 = vunpack.c.l.b16 %v227
      %v301 = vunpack.c.l.b16 %v228
      %v302 = vunpack.c.l.b16 %v229
      %v303 = vunpack.c.l.b16 %v230
      %v304 = vunpack.c.l.b16 %v231
      %v305 = vunpack.c.l.b16 %v232
      %v306 = vunpack.c.l.b16 %v233
      %v307 = vunpack.c.l.b16 %v234
      %v308 = vunpack.c.l.b16 %v235
      %v309 = vunpack.c.l.b16 %v236
      %v310 = vunpack.c.l.b16 %v237
      %v311 = vunpack.c.l.b16 %v238
      %v312 = vunpack.c.l.b16 %v239
      %v313 = vunpack.c.l.b16 %v240
      %v314 = vunpack.c.l.b16 %v241
      %v315 = vunpack.c.l.b16 %v242
      %v316 = vunpack.c.l.b16 %v243
      %v317 = vunpack.c.l.b16 %v244
      %v318 = vunpack.c.l.b16 %v245
      %v319 = vunpack.c.l.b16 %v246
      %v320 = vunpack.c.l.b16 %v247
      %v321 = vunpack.c.l.b16 %v248
      %v322 = vunpack.c.l.b16 %v249
      %v323 = vunpack.c.l.b16 %v250
      %v324 = vunpack.c.l.b16 %v251
      %v325 = vunpack.c.l.b16 %v252
      %v326 = vunpack.c.l.b16 %v253
      %v327 = vunpack.c.l.b16 %v254
      %v328 = vunpack.c.l.b16 %v255
      %v329 = vunpack.c.l.b16 %v256
      %v330 = vunpack.c.l.b16 %v257
      %v331 = vpack.c.b16 %v300, %v299
      %v332 = vpack.c.b16 %v302, %v301
      %v333 = vpack.c.b16 %v304, %v303
      %v334 = vpack.c.b16 %v306, %v305
      %v335 = vpack.c.b16 %v308, %v307
      %v336 = vpack.c.b16 %v310, %v309
      %v337 = vpack.c.b16 %v312, %v311
      %v338 = vpack.c.b16 %v314, %v313
      %v339 = vpack.c.b16 %v316, %v315
      %v340 = vpack.c.b16 %v318, %v317
      %v341 = vpack.c.b16 %v320, %v319
      %v342 = vpack.c.b16 %v322, %v321
      %v343 = vpack.c.b16 %v324, %v323
      %v344 = vpack.c.b16 %v326, %v325
      %v345 = vpack.c.b16 %v328, %v327
      %v346 = vpack.c.b16 %v330, %v329
      %v349 = vunpack.c.l.b16 %v258
      %v350 = vunpack.c.l.b16 %v259
      %v351 = vpack.c.b16 %v350, %v349
      %vm353 = vcmask 130048
      %v355 = vsel %vm353, %v331, 0
      %v358 = vsel %vm353, %v332, 0
      %v361 = vsel %vm353, %v333, 0
      %v364 = vsel %vm353, %v334, 0
      %v367 = vsel %vm353, %v335, 0
      %v370 = vsel %vm353, %v336, 0
      %v373 = vsel %vm353, %v337, 0
      %v376 = vsel %vm353, %v338, 0
      %v379 = vsel %vm353, %v339, 0
      %v382 = vsel %vm353, %v340, 0
      %v385 = vsel %vm353, %v341, 0
      %v388 = vsel %vm353, %v342, 0
      %v391 = vsel %vm353, %v343, 0
      %v394 = vsel %vm353, %v344, 0
      %v397 = vsel %vm353, %v345, 0
      %v400 = vsel %vm353, %v346, 0
      %402 = vmatprep.subr.bf16.mxu0 0
      %403 = vmatpush1.bf16.msra.mxu0 0
      %404 = vmatprep.subr.bf16.mxu0 0
      %405 = vmatpush1.bf16.msra.mxu0 0
      %406 = vmatprep.subr.bf16.mxu0 0
      %407 = vmatpush1.bf16.msra.mxu0 0
      %408 = vmatprep.subr.bf16.mxu0 0
      %409 = vmatpush1.bf16.msra.mxu0 0
      %410 = vmatprep.subr.bf16.mxu0 0
      %411 = vmatpush1.bf16.msra.mxu0 0
      %412 = vmatprep.subr.bf16.mxu0 0
      %413 = vmatpush1.bf16.msra.mxu0 0
      %414 = vmatprep.subr.bf16.mxu0 0
      %415 = vmatpush1.bf16.msra.mxu0 0
      %416 = vmatprep.subr.bf16.mxu0 0
      %417 = vmatpush1.bf16.msra.mxu0 %v351
      %418 = vmatprep.subr.bf16.mxu0 0
      %419 = vmatpush2.bf16.msra.mxu0 0
      %420 = vmatprep.subr.bf16.mxu0 0
      %421 = vmatpush2.bf16.msra.mxu0 0
      %422 = vmatprep.subr.bf16.mxu0 0
      %423 = vmatpush2.bf16.msra.mxu0 0
      %424 = vmatprep.subr.bf16.mxu0 0
      %425 = vmatpush2.bf16.msra.mxu0 0
      %426 = vmatprep.subr.bf16.mxu0 0
      %427 = vmatpush2.bf16.msra.mxu0 0
      %428 = vmatprep.subr.bf16.mxu0 0
      %429 = vmatpush2.bf16.msra.mxu0 0
      %430 = vmatprep.subr.bf16.mxu0 0
      %431 = vmatpush2.bf16.msra.mxu0 0
      %432 = vmatprep.subr.bf16.mxu0 0
      %433 = vmatpush2.bf16.msra.mxu0 0
      %434 = vmatprep.mubr.bf16.mxu0 0
      %435 = vmatmul.mubr.bf16.gmra.mxu0 %v355
      %v436 = vpop.f32.mrf.mxu0
      %v437 = vadd.f32 %v265, %v436
      %v438 = vpop.f32.mrf.mxu0
      %v439 = vpop.f32.mrf.mxu0
      %v440 = vadd.f32 %v265, %v439
      %v441 = vpop.f32.mrf.mxu0
      %442 = vmatprep.mubr.bf16.mxu0 0
      %443 = vmatmul.mubr.bf16.gmra.mxu0 %v358
      %v444 = vpop.f32.mrf.mxu0
      %v445 = vadd.f32 %v265, %v444
      %v446 = vpop.f32.mrf.mxu0
      %v447 = vpop.f32.mrf.mxu0
      %v448 = vadd.f32 %v265, %v447
      %v449 = vpop.f32.mrf.mxu0
      %450 = vmatprep.mubr.bf16.mxu0 0
      %451 = vmatmul.mubr.bf16.gmra.mxu0 %v361
      %v452 = vpop.f32.mrf.mxu0
      %v453 = vadd.f32 %v265, %v452
      %v454 = vpop.f32.mrf.mxu0
      %v455 = vpop.f32.mrf.mxu0
      %v456 = vadd.f32 %v265, %v455
      %v457 = vpop.f32.mrf.mxu0
      %458 = vmatprep.mubr.bf16.mxu0 0
      %459 = vmatmul.mubr.bf16.gmra.mxu0 %v364
      %v460 = vpop.f32.mrf.mxu0
      %v461 = vadd.f32 %v265, %v460
      %v462 = vpop.f32.mrf.mxu0
      %v463 = vpop.f32.mrf.mxu0
      %v464 = vadd.f32 %v265, %v463
      %v465 = vpop.f32.mrf.mxu0
      %466 = vmatprep.mubr.bf16.mxu0 0
      %467 = vmatmul.mubr.bf16.gmra.mxu0 %v367
      %v468 = vpop.f32.mrf.mxu0
      %v469 = vadd.f32 %v265, %v468
      %v470 = vpop.f32.mrf.mxu0
      %v471 = vpop.f32.mrf.mxu0
      %v472 = vadd.f32 %v265, %v471
      %v473 = vpop.f32.mrf.mxu0
      %474 = vmatprep.mubr.bf16.mxu0 0
      %475 = vmatmul.mubr.bf16.gmra.mxu0 %v370
      %v476 = vpop.f32.mrf.mxu0
      %v477 = vadd.f32 %v265, %v476
      %v478 = vpop.f32.mrf.mxu0
      %v479 = vpop.f32.mrf.mxu0
      %v480 = vadd.f32 %v265, %v479
      %v481 = vpop.f32.mrf.mxu0
      %482 = vmatprep.mubr.bf16.mxu0 0
      %483 = vmatmul.mubr.bf16.gmra.mxu0 %v373
      %v484 = vpop.f32.mrf.mxu0
      %v485 = vadd.f32 %v265, %v484
      %v486 = vpop.f32.mrf.mxu0
      %v487 = vpop.f32.mrf.mxu0
      %v488 = vadd.f32 %v265, %v487
      %v489 = vpop.f32.mrf.mxu0
      %490 = vmatprep.mubr.bf16.mxu0 0
      %491 = vmatmul.mubr.bf16.gmra.mxu0 %v376
      %v492 = vpop.f32.mrf.mxu0
      %v493 = vadd.f32 %v265, %v492
      %v494 = vpop.f32.mrf.mxu0
      %v495 = vpop.f32.mrf.mxu0
      %v496 = vadd.f32 %v265, %v495
      %v497 = vpop.f32.mrf.mxu0
      %498 = vmatprep.mubr.bf16.mxu0 0
      %499 = vmatmul.mubr.bf16.gmra.mxu0 %v379
      %v500 = vpop.f32.mrf.mxu0
      %v501 = vadd.f32 %v265, %v500
      %v502 = vpop.f32.mrf.mxu0
      %v503 = vpop.f32.mrf.mxu0
      %v504 = vadd.f32 %v265, %v503
      %v505 = vpop.f32.mrf.mxu0
      %506 = vmatprep.mubr.bf16.mxu0 0
      %507 = vmatmul.mubr.bf16.gmra.mxu0 %v382
      %v508 = vpop.f32.mrf.mxu0
      %v509 = vadd.f32 %v265, %v508
      %v510 = vpop.f32.mrf.mxu0
      %v511 = vpop.f32.mrf.mxu0
      %v512 = vadd.f32 %v265, %v511
      %v513 = vpop.f32.mrf.mxu0
      %514 = vmatprep.mubr.bf16.mxu0 0
      %515 = vmatmul.mubr.bf16.gmra.mxu0 %v385
      %v516 = vpop.f32.mrf.mxu0
      %v517 = vadd.f32 %v265, %v516
      %v518 = vpop.f32.mrf.mxu0
      %v519 = vpop.f32.mrf.mxu0
      %v520 = vadd.f32 %v265, %v519
      %v521 = vpop.f32.mrf.mxu0
      %522 = vmatprep.mubr.bf16.mxu0 0
      %523 = vmatmul.mubr.bf16.gmra.mxu0 %v388
      %v524 = vpop.f32.mrf.mxu0
      %v525 = vadd.f32 %v265, %v524
      %v526 = vpop.f32.mrf.mxu0
      %v527 = vpop.f32.mrf.mxu0
      %v528 = vadd.f32 %v265, %v527
      %v529 = vpop.f32.mrf.mxu0
      %530 = vmatprep.mubr.bf16.mxu0 0
      %531 = vmatmul.mubr.bf16.gmra.mxu0 %v391
      %v532 = vpop.f32.mrf.mxu0
      %v533 = vadd.f32 %v265, %v532
      %v534 = vpop.f32.mrf.mxu0
      %v535 = vpop.f32.mrf.mxu0
      %v536 = vadd.f32 %v265, %v535
      %v537 = vpop.f32.mrf.mxu0
      %538 = vmatprep.mubr.bf16.mxu0 0
      %539 = vmatmul.mubr.bf16.gmra.mxu0 %v394
      %v540 = vpop.f32.mrf.mxu0
      %v541 = vadd.f32 %v265, %v540
      %v542 = vpop.f32.mrf.mxu0
      %v543 = vpop.f32.mrf.mxu0
      %v544 = vadd.f32 %v265, %v543
      %v545 = vpop.f32.mrf.mxu0
      %546 = vmatprep.mubr.bf16.mxu0 0
      %547 = vmatmul.mubr.bf16.gmra.mxu0 %v397
      %v548 = vpop.f32.mrf.mxu0
      %v549 = vadd.f32 %v265, %v548
      %v550 = vpop.f32.mrf.mxu0
      %v551 = vpop.f32.mrf.mxu0
      %v552 = vadd.f32 %v265, %v551
      %v553 = vpop.f32.mrf.mxu0
      %554 = vmatprep.mubr.bf16.mxu0 0
      %555 = vmatmul.mubr.bf16.gmra.mxu0 %v400
      %v556 = vpop.f32.mrf.mxu0
      %v557 = vadd.f32 %v265, %v556
      %v558 = vpop.f32.mrf.mxu0
      %v559 = vpop.f32.mrf.mxu0
      %v560 = vadd.f32 %v265, %v559
      %v561 = vpop.f32.mrf.mxu0
      %562 = vdwg.mxu0
      %vm563 = vcmask 72704
      %564 = vst.msk [vmem:[%s223] sm:$0xff] %vm563, %v437
      %565 = vst.msk [vmem:[%s223 + $0x8] sm:$0xff] %vm563, %v440
      %566 = vst.msk [vmem:[%s223 + $0x10] sm:$0xff] %vm563, %v445
      %567 = vst.msk [vmem:[%s223 + $0x18] sm:$0xff] %vm563, %v448
      %568 = vst.msk [vmem:[%s223 + $0x20] sm:$0xff] %vm563, %v453
      %569 = vst.msk [vmem:[%s223 + $0x28] sm:$0xff] %vm563, %v456
      %570 = vst.msk [vmem:[%s223 + $0x30] sm:$0xff] %vm563, %v461
      %571 = vst.msk [vmem:[%s223 + $0x38] sm:$0xff] %vm563, %v464
      %572 = vst.msk [vmem:[%s223 + $0x40] sm:$0xff] %vm563, %v469
      %573 = vst.msk [vmem:[%s223 + $0x48] sm:$0xff] %vm563, %v472
      %574 = vst.msk [vmem:[%s223 + $0x50] sm:$0xff] %vm563, %v477
      %575 = vst.msk [vmem:[%s223 + $0x58] sm:$0xff] %vm563, %v480
      %576 = vst.msk [vmem:[%s223 + $0x60] sm:$0xff] %vm563, %v485
      %577 = vst.msk [vmem:[%s223 + $0x68] sm:$0xff] %vm563, %v488
      %578 = vst.msk [vmem:[%s223 + $0x70] sm:$0xff] %vm563, %v493
      %579 = vst.msk [vmem:[%s223 + $0x78] sm:$0xff] %vm563, %v496
      %580 = vst.msk [vmem:[%s223 + $0x80] sm:$0xff] %vm563, %v501
      %581 = vst.msk [vmem:[%s223 + $0x88] sm:$0xff] %vm563, %v504
      %582 = vst.msk [vmem:[%s223 + $0x90] sm:$0xff] %vm563, %v509
      %583 = vst.msk [vmem:[%s223 + $0x98] sm:$0xff] %vm563, %v512
      %584 = vst.msk [vmem:[%s223 + $0xa0] sm:$0xff] %vm563, %v517
      %585 = vst.msk [vmem:[%s223 + $0xa8] sm:$0xff] %vm563, %v520
      %586 = vst.msk [vmem:[%s223 + $0xb0] sm:$0xff] %vm563, %v525
      %587 = vst.msk [vmem:[%s223 + $0xb8] sm:$0xff] %vm563, %v528
      %588 = vst.msk [vmem:[%s223 + $0xc0] sm:$0xff] %vm563, %v533
      %589 = vst.msk [vmem:[%s223 + $0xc8] sm:$0xff] %vm563, %v536
      %590 = vst.msk [vmem:[%s223 + $0xd0] sm:$0xff] %vm563, %v541
      %591 = vst.msk [vmem:[%s223 + $0xd8] sm:$0xff] %vm563, %v544
      %592 = vst.msk [vmem:[%s223 + $0xe0] sm:$0xff] %vm563, %v549
      %593 = vst.msk [vmem:[%s223 + $0xe8] sm:$0xff] %vm563, %v552
      %594 = vst.msk [vmem:[%s223 + $0xf0] sm:$0xff] %vm563, %v557
      %595 = vst.msk [vmem:[%s223 + $0xf8] sm:$0xff] %vm563, %v560
      %s596 = smul.u32 32, %s18
      %p597 = scmp.lt.s32.totalorder %s596, 63
      %s598 = scalar_select %p597, %s596, 63
      %p599 = scmp.lt.s32.totalorder %s19, 0
      %s600 = scalar_select %p599, %s19, 0
      %s601 = sadd.s32 %s600, %s598
      %s602 = smul.addr %s601, 8
      %s603 = scalar_lea.vmem %s3, %s602
      // Predicated region
      $region33: #{yolov8_head_forward.51} parent=31 // pred_check
        %p604 = pneg %p124
      $region34: #{yolov8_head_forward.51} parent=31 // pred_check_branch
        %606 = sbr.rel (%p604) target = $region36
      $region35: #{yolov8_head_forward.51} parent=31 // pred_region
        %s607 = smul.u32 32, %s18
      $region36: #{yolov8_head_forward.51} parent=31 // pred_fallthru
        _
    $region32: #{yolov8_head_forward.51} parent=5 // pred_fallthru
      _
    %p608 = scmp.le.s32.totalorder 2, %s9
    // Predicated region
    $region37: #{yolov8_head_forward.51} parent=5 // pred_check
      %p609 = pneg %p608
    $region38: #{yolov8_head_forward.51} parent=5 // pred_check_branch
      %611 = sbr.rel (%p609) target = $region40
    $region39: #{yolov8_head_forward.51} parent=5 // pred_region
      %s612 = ssub.s32 %s9, 2
      // Predicated region
      $region41: #{yolov8_head_forward.51} parent=39 // pred_check
        %p613 = pneg %p130
      $region42: #{yolov8_head_forward.51} parent=39 // pred_check_branch
        %615 = sbr.rel (%p613) target = $region44
      $region43: #{yolov8_head_forward.51} parent=39 // pred_region
        %s616 = smul.u32 32, %s20
        %p617 = scmp.lt.s32.totalorder %s616, 63
        %s618 = scalar_select %p617, %s616, 63
        %p619 = scmp.lt.s32.totalorder %s21, 0
        %s620 = scalar_select %p619, %s21, 0
        %s621 = sadd.s32 %s620, %s618
        %s622 = smul.addr %s621, 8
        %s623 = scalar_lea.vmem %s3, %s622
      $region44: #{yolov8_head_forward.51} parent=39 // pred_fallthru
        _
    $region40: #{yolov8_head_forward.51} parent=5 // pred_fallthru
      _
  $region6: #{yolov8_head_forward.51} parent=0 // loop_footer
    %s13 = sadd.s32 1, %s9
  $region7: #{yolov8_head_forward.51} parent=0 // loop_footer_branch
    %8 = sbr.rel target = $region3
  $region8: #{yolov8_head_forward.51} parent=0 // loop_exit
    _

</llo_original>
